<compile_context>
chip_gen: v7x
topology: tpu7x:2x2x1
jax: 0.10.0
libtpu: 0.0.40
codegen_flags: <defaults>
</compile_context>

<pallas_src>
import math
import random

import jax
import jax.numpy as jnp
from jax.experimental import pallas as pl
from jax.experimental.pallas import tpu as pltpu

VMEM_SPEC = pl.BlockSpec(memory_space=pltpu.MemorySpace.VMEM)


def _round_up(n, m):
    return ((n + m - 1) // m) * m


# ----------------------------- Pallas kernels ------------------------------ #

def _gru_gates(gx, h, whh, bh, Hp):
    """Fused-gate GRU update.  gx:(B,3Hp) pre-computed x-projection (x@Wih + bx),
    h:(B,Hp), whh:(Hp,3Hp), bh:(1,3Hp) (only the n-slice non-zero).
    PyTorch gate order (r, z, n)."""
    gh = jnp.dot(h, whh, preferred_element_type=jnp.float32) + bh
    r = jax.nn.sigmoid(gx[:, 0:Hp] + gh[:, 0:Hp])
    z = jax.nn.sigmoid(gx[:, Hp:2 * Hp] + gh[:, Hp:2 * Hp])
    n = jnp.tanh(gx[:, 2 * Hp:3 * Hp] + r * gh[:, 2 * Hp:3 * Hp])
    return (1.0 - z) * n + z * h


def _make_encoder_kernel(S, Bp, num_layers, Hp):
    """Single-invocation encoder: whole sequence resident in VMEM, time loop
    unrolled in-kernel, hidden state carried in vregs, written back once."""

    def kernel(emb_ref, wih0_ref, bx0_ref, mask_ref, whh_ref, bh_ref, *rest):
        if num_layers > 1:
            wihr_ref, bxr_ref, h_out_ref, xproj_scr = rest
        else:
            h_out_ref, xproj_scr = rest

        # Hoisted layer-0 x-projection for ALL timesteps: one big MXU matmul,
        # off the serial recurrent chain, into VMEM scratch.
        xproj_scr[...] = (jnp.dot(emb_ref[...], wih0_ref[...],
                                  preferred_element_type=jnp.float32)
                          + bx0_ref[...])

        h = [jnp.zeros((Bp, Hp), jnp.float32) for _ in range(num_layers)]

        # Fully unrolled in-kernel time loop (S is small & static here).  For
        # long sequences switch to lax.fori_loop with dynamic ref indexing.
        for t in range(S):
            gx = xproj_scr[t * Bp:(t + 1) * Bp, :]          # (Bp, 3Hp)
            m = mask_ref[t]                                  # (Bp, 1) pack mask
            inp = None
            for l in range(num_layers):
                if l > 0:
                    # TODO(synk): inter-layer dropout is identity (eval-mode).
                    gx = (jnp.dot(inp, wihr_ref[l - 1],
                                  preferred_element_type=jnp.float32)
                          + bxr_ref[l - 1])
                h_new = _gru_gates(gx, h[l], whh_ref[l], bh_ref[l], Hp)
                # pack_padded_sequence emulation: padded steps carry the hidden.
                h[l] = m * h_new + (1.0 - m) * h[l]
                inp = h[l]

        for l in range(num_layers):
            h_out_ref[l] = h[l]

    return kernel


def _make_decoder_kernel(steps, Bp, num_layers, Hp, Vp):
    """Single-invocation decoder: teacher-forcing / argmax feedback, stacked GRU
    layers and fc_out all run in one unrolled in-kernel loop; the embedding is
    pre-folded into the layer-0 gate weights (onehot @ (E @ Wih0))."""

    def kernel(tgtsel_ref, invsel_ref, embwih0_ref, bx0_ref, whh_ref, bh_ref,
               *rest):
        if num_layers > 1:
            wihr_ref, bxr_ref, fcw_ref, fcb_ref, h0_ref, pred_ref = rest
        else:
            fcw_ref, fcb_ref, h0_ref, pred_ref = rest

        h = [h0_ref[l] for l in range(num_layers)]
        prev_oh = jnp.zeros((Bp, Vp), jnp.float32)

        for i in range(steps):
            # Input token one-hot: pre-selected teacher one-hot + (1-sel)*argmax
            # feedback (sel baked into tgtsel/invsel in glue -> no scalar splat).
            # TODO(synk): embedding dropout is identity (eval-mode forward).
            onehot = tgtsel_ref[i] + invsel_ref[i] * prev_oh        # (Bp, Vp)

            # Embedding folded into layer-0 gate weights: single MXU matmul.
            gx = (jnp.dot(onehot, embwih0_ref[...],
                          preferred_element_type=jnp.float32) + bx0_ref[...])
            inp = None
            for l in range(num_layers):
                if l > 0:
                    # TODO(synk): inter-layer dropout is identity (eval-mode).
                    gx = (jnp.dot(inp, wihr_ref[l - 1],
                                  preferred_element_type=jnp.float32)
                          + bxr_ref[l - 1])
                h[l] = _gru_gates(gx, h[l], whh_ref[l], bh_ref[l], Hp)
                inp = h[l]

            # fc_out fused in (padded vocab lanes carry -1e30 bias so the argmax
            # never picks them); output block is VMEM-resident, written once.
            pred = (jnp.dot(inp, fcw_ref[...],
                            preferred_element_type=jnp.float32) + fcb_ref[...])
            pred_ref[i] = pred

            if i + 1 < steps:
                # First-maximal-index argmax one-hot (torch.argmax tie semantics).
                maxv = jnp.max(pred, axis=1, keepdims=True)
                lane = jax.lax.broadcasted_iota(jnp.int32, pred.shape, 1)
                cand = jnp.where(pred >= maxv, lane, jnp.int32(2 ** 30))
                first = jnp.min(cand, axis=1, keepdims=True)
                prev_oh = (lane == first).astype(jnp.float32)

    return kernel


# ------------------------------- Parameters -------------------------------- #

def _init_gru_layer_packed(key, in_size, hidden, P):
    """PyTorch-style GRU layer params packed as fused-gate, lane-padded tensors:
    wih:(P,3P), whh:(P,3P), bx:(1,3P)=[b_ir+b_hr | b_iz+b_hz | b_in],
    bh:(1,3P)=[0 | 0 | b_hn]."""
    G = 3 * P
    k = 1.0 / math.sqrt(hidden)
    k1, k2, k3, k4 = jax.random.split(key, 4)
    wih = jax.random.uniform(k1, (3, in_size, hidden), jnp.float32, -k, k)
    whh = jax.random.uniform(k2, (3, hidden, hidden), jnp.float32, -k, k)
    bih = jax.random.uniform(k3, (3, hidden), jnp.float32, -k, k)
    bhh = jax.random.uniform(k4, (3, hidden), jnp.float32, -k, k)

    wih_p = jnp.zeros((P, G), jnp.float32)
    whh_p = jnp.zeros((P, G), jnp.float32)
    bx = jnp.zeros((1, G), jnp.float32)
    bh = jnp.zeros((1, G), jnp.float32)
    for g in range(3):
        wih_p = wih_p.at[:in_size, g * P:g * P + hidden].set(wih[g])
        whh_p = whh_p.at[:hidden, g * P:g * P + hidden].set(whh[g])
    bx = bx.at[0, 0 * P:0 * P + hidden].set(bih[0] + bhh[0])
    bx = bx.at[0, 1 * P:1 * P + hidden].set(bih[1] + bhh[1])
    bx = bx.at[0, 2 * P:2 * P + hidden].set(bih[2])
    bh = bh.at[0, 2 * P:2 * P + hidden].set(bhh[2])
    return wih_p, whh_p, bx, bh


# ------------------------------ Model wrapper ------------------------------ #

class Seq2SeqPallas:
    def __init__(self, input_size, output_size, embed_size, hidden_size,
                 num_encoder_layers, num_decoder_layers, dropout,
                 cell_type='GRU', seed=0):
        assert cell_type == 'GRU', "only the GRU cell_type is implemented"
        self.input_size = input_size
        self.output_size = output_size
        self.embed_size = embed_size
        self.hidden_size = hidden_size
        self.num_encoder_layers = num_encoder_layers
        self.num_decoder_layers = num_decoder_layers
        self.dropout = dropout                      # identity in eval-mode forward

        P = _round_up(max(embed_size, hidden_size), 128)   # shared lane pad (E, H)
        Vp = _round_up(output_size, 128)
        self.P, self.Vp = P, Vp

        key = jax.random.PRNGKey(seed)
        keys = jax.random.split(key, 4 + num_encoder_layers + num_decoder_layers)

        # nn.Embedding default init: N(0, 1); feature dim zero-padded to P lanes.
        enc_e = jax.random.normal(keys[0], (input_size, embed_size), jnp.float32)
        self.enc_embed = (jnp.zeros((input_size, P), jnp.float32)
                          .at[:, :embed_size].set(enc_e))
        dec_e = jax.random.normal(keys[1], (output_size, embed_size), jnp.float32)
        self.dec_embed = (jnp.zeros((Vp, P), jnp.float32)
                          .at[:output_size, :embed_size].set(dec_e))

        enc = [_init_gru_layer_packed(keys[2 + l],
                                      embed_size if l == 0 else hidden_size,
                                      hidden_size, P)
               for l in range(num_encoder_layers)]
        self.enc_wih0 = enc[0][0]                        # (P, 3P) layer-0 x weights
        self.enc_bx0 = enc[0][2]                         # (1, 3P)
        self.enc_whh = jnp.stack([p[1] for p in enc])    # (L_enc, P, 3P)
        self.enc_bh = jnp.stack([p[3] for p in enc])     # (L_enc, 1, 3P)
        if num_encoder_layers > 1:
            self.enc_wih_rest = jnp.stack([p[0] for p in enc[1:]])
            self.enc_bx_rest = jnp.stack([p[2] for p in enc[1:]])
        else:
            self.enc_wih_rest = None
            self.enc_bx_rest = None

        dec = [_init_gru_layer_packed(keys[2 + num_encoder_layers + l],
                                      embed_size if l == 0 else hidden_size,
                                      hidden_size, P)
               for l in range(num_decoder_layers)]
        self.dec_bx0 = dec[0][2]                         # (1, 3P)
        self.dec_whh = jnp.stack([p[1] for p in dec])    # (L_dec, P, 3P)
        self.dec_bh = jnp.stack([p[3] for p in dec])     # (L_dec, 1, 3P)
        if num_decoder_layers > 1:
            self.dec_wih_rest = jnp.stack([p[0] for p in dec[1:]])
            self.dec_bx_rest = jnp.stack([p[2] for p in dec[1:]])
        else:
            self.dec_wih_rest = None
            self.dec_bx_rest = None
        # Decoder embedding pre-folded into layer-0 gate weights (eval-mode:
        # embedding dropout identity, so E @ Wih0 is exact).
        self.dec_embwih0 = jnp.dot(self.dec_embed, dec[0][0])   # (Vp, 3P)

        kf = 1.0 / math.sqrt(hidden_size)
        fc_w = jax.random.uniform(keys[-2], (hidden_size, output_size),
                                  jnp.float32, -kf, kf)
        fc_b = jax.random.uniform(keys[-1], (output_size,), jnp.float32, -kf, kf)
        self.fc_w = (jnp.zeros((P, Vp), jnp.float32)
                     .at[:hidden_size, :output_size].set(fc_w))
        # Padded vocab lanes get a very negative bias so the in-kernel argmax
        # never selects them; they are sliced off in the wrapper.
        self.fc_b = (jnp.full((1, Vp), -1e30, jnp.float32)
                     .at[0, :output_size].set(fc_b))

        # Jit the whole forward path once (encode + glue + decode).
        self._fwd = jax.jit(self._forward_impl)

    # --------------------------- hidden adaptation ------------------------- #
    def _process_hidden_for_decoder(self, hidden, batch_size):
        if self.num_encoder_layers == self.num_decoder_layers:
            return hidden
        if self.num_encoder_layers < self.num_decoder_layers:
            add = self.num_decoder_layers - self.num_encoder_layers
            last = jnp.broadcast_to(hidden[-1:], (add, batch_size, self.P))
            return jnp.concatenate([hidden, last], axis=0)
        return hidden[-self.num_decoder_layers:]

    # ------------------------- jitted forward core ------------------------- #
    def _forward_impl(self, source, target, lengths, sel):
        B, S = source.shape
        T = target.shape[1]
        steps = T - 1
        P, Vp = self.P, self.Vp
        G = 3 * P
        Bp = _round_up(max(B, 8), 8)          # pad batch to full sublane tiles

        src_p = jnp.pad(source, ((0, Bp - B), (0, 0)))
        tgt_p = jnp.pad(target, ((0, Bp - B), (0, 0)))
        len_p = jnp.pad(lengths.astype(jnp.int32), (0, Bp - B))

        # ------------------------------ encoder ---------------------------- #
        # Embedding gather + time-major flatten (glue; embedding dropout = id).
        emb = jnp.take(self.enc_embed, src_p, axis=0)            # (Bp, S, P)
        emb_tm = jnp.transpose(emb, (1, 0, 2)).reshape(S * Bp, P)
        # pack_padded_sequence validity mask, precomputed off the hot path.
        mask = (jnp.arange(S, dtype=jnp.int32)[:, None] < len_p[None, :]
                ).astype(jnp.float32)[:, :, None]                # (S, Bp, 1)

        Le = self.num_encoder_layers
        enc_in = [emb_tm, self.enc_wih0, self.enc_bx0, mask,
                  self.enc_whh, self.enc_bh]
        if Le > 1:
            enc_in += [self.enc_wih_rest, self.enc_bx_rest]

        # Note: per-step encoder outputs are never used by forward() (no
        # attention), so only the final stacked hidden state is produced.
        hidden = pl.pallas_call(
            _make_encoder_kernel(S, Bp, Le, P),
            out_shape=jax.ShapeDtypeStruct((Le, Bp, P), jnp.float32),
            in_specs=[VMEM_SPEC] * len(enc_in),
            out_specs=VMEM_SPEC,
            scratch_shapes=[pltpu.VMEM((S * Bp, G), jnp.float32)],
        )(*enc_in)

        hidden = self._process_hidden_for_decoder(hidden, Bp)    # (L_dec, Bp, P)

        # ------------------------------ decoder ---------------------------- #
        Ld = self.num_decoder_layers
        sel_f = sel.astype(jnp.float32)                          # (steps,)
        tgt_oh = jax.nn.one_hot(jnp.transpose(tgt_p[:, :steps]), Vp,
                                dtype=jnp.float32)               # (steps, Bp, Vp)
        tgt_sel = sel_f[:, None, None] * tgt_oh
        inv_sel = jnp.broadcast_to((1.0 - sel_f)[:, None, None], (steps, Bp, 1))

        dec_in = [tgt_sel, inv_sel, self.dec_embwih0, self.dec_bx0,
                  self.dec_whh, self.dec_bh]
        if Ld > 1:
            dec_in += [self.dec_wih_rest, self.dec_bx_rest]
        dec_in += [self.fc_w, self.fc_b, hidden]

        preds = pl.pallas_call(
            _make_decoder_kernel(steps, Bp, Ld, P, Vp),
            out_shape=jax.ShapeDtypeStruct((steps, Bp, Vp), jnp.float32),
            in_specs=[VMEM_SPEC] * len(dec_in),
            out_specs=VMEM_SPEC,
        )(*dec_in)

        V = self.output_size
        preds = jnp.transpose(preds, (1, 0, 2))[:B, :, :V]       # (B, steps, V)
        zeros0 = jnp.zeros((B, 1, V), jnp.float32)               # outputs[:,0,:]=0
        return jnp.concatenate([zeros0, preds], axis=1)          # (B, T, V)

    # -------------------------------- forward ------------------------------ #
    def forward(self, source, target, source_lengths, teacher_forcing_ratio=0.5):
        B = source.shape[0]
        T = target.shape[1]
        V = self.output_size
        if T <= 1:
            return jnp.zeros((B, T, V), jnp.float32)

        # Teacher-forcing decisions drawn host-side in the same order / count as
        # the reference (one random.random() per decode iteration), passed as a
        # traced int32 vector so the jitted path never retraces per call.
        flags = [random.random() < teacher_forcing_ratio for _ in range(1, T)]
        sel = jnp.array([1] + [int(flags[i - 1]) for i in range(1, T - 1)],
                        dtype=jnp.int32)                         # (T-1,)

        return self._fwd(jnp.asarray(source, jnp.int32),
                         jnp.asarray(target, jnp.int32),
                         jnp.asarray(source_lengths, jnp.int32),
                         sel)


# ---------------------------------- main ----------------------------------- #

if __name__ == "__main__":
    random.seed(0)  # deterministic teacher-forcing decisions

    INPUT_SIZE = 37     # source vocab
    OUTPUT_SIZE = 29    # target vocab
    EMBED = 16
    HIDDEN = 32
    ENC_LAYERS = 1
    DEC_LAYERS = 2      # exercises _process_hidden_for_decoder (layer expansion)
    DROPOUT = 0.1       # identity in eval-mode forward
    B, S, T = 2, 8, 6

    model = Seq2SeqPallas(INPUT_SIZE, OUTPUT_SIZE, EMBED, HIDDEN,
                          ENC_LAYERS, DEC_LAYERS, DROPOUT, cell_type='GRU',
                          seed=0)

    key = jax.random.PRNGKey(0)
    k1, k2 = jax.random.split(key)
    source = jax.random.randint(k1, (B, S), 0, INPUT_SIZE, dtype=jnp.int32)
    target = jax.random.randint(k2, (B, T), 0, OUTPUT_SIZE, dtype=jnp.int32)
    source_lengths = jnp.array([S, S - 3], dtype=jnp.int32)

    outputs = model.forward(source, target, source_lengths,
                            teacher_forcing_ratio=0.5)
    outputs = jax.block_until_ready(outputs)

    assert outputs.shape == (B, T, OUTPUT_SIZE)
    assert bool(jnp.all(jnp.isfinite(outputs)))
    print("KERNEL_OK")
</pallas_src>

<mosaic_0001>
module attributes {stable_mosaic.version = 11 : i64} {
  func.func @kernel(%arg0: memref<64x128xf32, #tpu.memory_space<vmem>>, %arg1: memref<128x384xf32, #tpu.memory_space<vmem>>, %arg2: memref<1x384xf32, #tpu.memory_space<vmem>>, %arg3: memref<8x8x1xf32, #tpu.memory_space<vmem>>, %arg4: memref<1x128x384xf32, #tpu.memory_space<vmem>>, %arg5: memref<1x1x384xf32, #tpu.memory_space<vmem>>, %arg6: memref<1x8x128xf32, #tpu.memory_space<vmem>>, %arg7: memref<64x384xf32, #tpu.memory_space<vmem>>) attributes {dimension_semantics = [], scalar_prefetch = 0 : i64, scratch_operands = 1 : i64, tpu.core_type = #tpu.core_type<tc>} {
    %c0 = arith.constant 0 : index
    %c0_0 = arith.constant 0 : index
    %0 = vector.load %arg0[%c0, %c0_0] : memref<64x128xf32, #tpu.memory_space<vmem>>, vector<64x128xf32>
    %c0_1 = arith.constant 0 : index
    %c0_2 = arith.constant 0 : index
    %1 = vector.load %arg1[%c0_1, %c0_2] : memref<128x384xf32, #tpu.memory_space<vmem>>, vector<128x384xf32>
    %cst = arith.constant dense<0.000000e+00> : vector<64x384xf32>
    %2 = tpu.matmul %0, %1, %cst {dimension_numbers = #tpu.dot_dimension_numbers<[1], [0], [0], [1], [0, 0, 1, 1], [], []>} : vector<64x128xf32>, vector<128x384xf32>, vector<64x384xf32> -> vector<64x384xf32>
    %c0_3 = arith.constant 0 : index
    %c0_4 = arith.constant 0 : index
    %3 = vector.load %arg2[%c0_3, %c0_4] : memref<1x384xf32, #tpu.memory_space<vmem>>, vector<1x384xf32>
    %4 = vector.broadcast %3 : vector<1x384xf32> to vector<64x384xf32>
    %5 = arith.addf %2, %4 : vector<64x384xf32>
    %c0_5 = arith.constant 0 : index
    %c0_6 = arith.constant 0 : index
    %6 = vector.load %arg7[%c0_5, %c0_6] : memref<64x384xf32, #tpu.memory_space<vmem>>, vector<64x384xf32>
    tpu.vector_store %arg7[%c0_5, %c0_6], %5 {strides = array<i32>} : memref<64x384xf32, #tpu.memory_space<vmem>>, vector<64x384xf32>,
    %cst_7 = arith.constant 0.000000e+00 : f32
    %7 = vector.broadcast %cst_7 : f32 to vector<8x128xf32>
    %c0_8 = arith.constant 0 : index
    %c0_9 = arith.constant 0 : index
    %8 = vector.load %arg7[%c0_8, %c0_9] : memref<64x384xf32, #tpu.memory_space<vmem>>, vector<8x384xf32>
    %c0_10 = arith.constant 0 : index
    %c0_11 = arith.constant 0 : index
    %c0_12 = arith.constant 0 : index
    %9 = vector.load %arg3[%c0_10, %c0_11, %c0_12] : memref<8x8x1xf32, #tpu.memory_space<vmem>>, vector<1x8x1xf32>
    %10 = vector.shape_cast %9 : vector<1x8x1xf32> to vector<8x1xf32>
    %c0_13 = arith.constant 0 : index
    %c0_14 = arith.constant 0 : index
    %c0_15 = arith.constant 0 : index
    %11 = vector.load %arg4[%c0_13, %c0_14, %c0_15] : memref<1x128x384xf32, #tpu.memory_space<vmem>>, vector<1x128x384xf32>
    %12 = vector.shape_cast %11 : vector<1x128x384xf32> to vector<128x384xf32>
    %c0_16 = arith.constant 0 : index
    %c0_17 = arith.constant 0 : index
    %c0_18 = arith.constant 0 : index
    %13 = vector.load %arg5[%c0_16, %c0_17, %c0_18] : memref<1x1x384xf32, #tpu.memory_space<vmem>>, vector<1x1x384xf32>
    %14 = vector.shape_cast %13 : vector<1x1x384xf32> to vector<1x384xf32>
    %cst_19 = arith.constant dense<0.000000e+00> : vector<8x384xf32>
    %15 = tpu.matmul %7, %12, %cst_19 {dimension_numbers = #tpu.dot_dimension_numbers<[1], [0], [0], [1], [0, 0, 1, 1], [], []>} : vector<8x128xf32>, vector<128x384xf32>, vector<8x384xf32> -> vector<8x384xf32>
    %16 = vector.broadcast %14 : vector<1x384xf32> to vector<8x384xf32>
    %17 = arith.addf %15, %16 : vector<8x384xf32>
    %18 = vector.extract_strided_slice %8 {offsets = [0, 0], sizes = [8, 128], strides = [1, 1]} : vector<8x384xf32> to vector<8x128xf32>
    %19 = vector.extract_strided_slice %17 {offsets = [0, 0], sizes = [8, 128], strides = [1, 1]} : vector<8x384xf32> to vector<8x128xf32>
    %20 = arith.addf %18, %19 : vector<8x128xf32>
    %21 = arith.negf %20 : vector<8x128xf32>
    %22 = math.exp %21 : vector<8x128xf32>
    %cst_20 = arith.constant 1.000000e+00 : f32
    %23 = vector.broadcast %cst_20 : f32 to vector<8x128xf32>
    %24 = arith.addf %23, %22 : vector<8x128xf32>
    %25 = arith.divf %23, %24 : vector<8x128xf32>
    %26 = vector.extract_strided_slice %8 {offsets = [0, 128], sizes = [8, 128], strides = [1, 1]} : vector<8x384xf32> to vector<8x128xf32>
    %27 = vector.extract_strided_slice %17 {offsets = [0, 128], sizes = [8, 128], strides = [1, 1]} : vector<8x384xf32> to vector<8x128xf32>
    %28 = arith.addf %26, %27 : vector<8x128xf32>
    %29 = arith.negf %28 : vector<8x128xf32>
    %30 = math.exp %29 : vector<8x128xf32>
    %cst_21 = arith.constant 1.000000e+00 : f32
    %31 = vector.broadcast %cst_21 : f32 to vector<8x128xf32>
    %32 = arith.addf %31, %30 : vector<8x128xf32>
    %33 = arith.divf %31, %32 : vector<8x128xf32>
    %34 = vector.extract_strided_slice %8 {offsets = [0, 256], sizes = [8, 128], strides = [1, 1]} : vector<8x384xf32> to vector<8x128xf32>
    %35 = vector.extract_strided_slice %17 {offsets = [0, 256], sizes = [8, 128], strides = [1, 1]} : vector<8x384xf32> to vector<8x128xf32>
    %36 = arith.mulf %25, %35 : vector<8x128xf32>
    %37 = arith.addf %34, %36 : vector<8x128xf32>
    %38 = math.tanh %37 : vector<8x128xf32>
    %cst_22 = arith.constant 1.000000e+00 : f32
    %39 = vector.broadcast %cst_22 : f32 to vector<8x128xf32>
    %40 = arith.subf %39, %33 : vector<8x128xf32>
    %41 = arith.mulf %40, %38 : vector<8x128xf32>
    %42 = arith.mulf %33, %7 : vector<8x128xf32>
    %43 = arith.addf %41, %42 : vector<8x128xf32>
    %44 = vector.broadcast %10 : vector<8x1xf32> to vector<8x128xf32>
    %45 = arith.mulf %44, %43 : vector<8x128xf32>
    %cst_23 = arith.constant 1.000000e+00 : f32
    %46 = vector.broadcast %cst_23 : f32 to vector<8x1xf32>
    %47 = arith.subf %46, %10 : vector<8x1xf32>
    %48 = vector.broadcast %47 : vector<8x1xf32> to vector<8x128xf32>
    %49 = arith.mulf %48, %7 : vector<8x128xf32>
    %50 = arith.addf %45, %49 : vector<8x128xf32>
    %c8 = arith.constant 8 : index
    %c0_24 = arith.constant 0 : index
    %51 = vector.load %arg7[%c8, %c0_24] : memref<64x384xf32, #tpu.memory_space<vmem>>, vector<8x384xf32>
    %c1 = arith.constant 1 : index
    %c0_25 = arith.constant 0 : index
    %c0_26 = arith.constant 0 : index
    %52 = vector.load %arg3[%c1, %c0_25, %c0_26] : memref<8x8x1xf32, #tpu.memory_space<vmem>>, vector<1x8x1xf32>
    %53 = vector.shape_cast %52 : vector<1x8x1xf32> to vector<8x1xf32>
    %c0_27 = arith.constant 0 : index
    %c0_28 = arith.constant 0 : index
    %c0_29 = arith.constant 0 : index
    %54 = vector.load %arg4[%c0_27, %c0_28, %c0_29] : memref<1x128x384xf32, #tpu.memory_space<vmem>>, vector<1x128x384xf32>
    %55 = vector.shape_cast %54 : vector<1x128x384xf32> to vector<128x384xf32>
    %c0_30 = arith.constant 0 : index
    %c0_31 = arith.constant 0 : index
    %c0_32 = arith.constant 0 : index
    %56 = vector.load %arg5[%c0_30, %c0_31, %c0_32] : memref<1x1x384xf32, #tpu.memory_space<vmem>>, vector<1x1x384xf32>
    %57 = vector.shape_cast %56 : vector<1x1x384xf32> to vector<1x384xf32>
    %cst_33 = arith.constant dense<0.000000e+00> : vector<8x384xf32>
    %58 = tpu.matmul %50, %55, %cst_33 {dimension_numbers = #tpu.dot_dimension_numbers<[1], [0], [0], [1], [0, 0, 1, 1], [], []>} : vector<8x128xf32>, vector<128x384xf32>, vector<8x384xf32> -> vector<8x384xf32>
    %59 = vector.broadcast %57 : vector<1x384xf32> to vector<8x384xf32>
    %60 = arith.addf %58, %59 : vector<8x384xf32>
    %61 = vector.extract_strided_slice %51 {offsets = [0, 0], sizes = [8, 128], strides = [1, 1]} : vector<8x384xf32> to vector<8x128xf32>
    %62 = vector.extract_strided_slice %60 {offsets = [0, 0], sizes = [8, 128], strides = [1, 1]} : vector<8x384xf32> to vector<8x128xf32>
    %63 = arith.addf %61, %62 : vector<8x128xf32>
    %64 = arith.negf %63 : vector<8x128xf32>
    %65 = math.exp %64 : vector<8x128xf32>
    %cst_34 = arith.constant 1.000000e+00 : f32
    %66 = vector.broadcast %cst_34 : f32 to vector<8x128xf32>
    %67 = arith.addf %66, %65 : vector<8x128xf32>
    %68 = arith.divf %66, %67 : vector<8x128xf32>
    %69 = vector.extract_strided_slice %51 {offsets = [0, 128], sizes = [8, 128], strides = [1, 1]} : vector<8x384xf32> to vector<8x128xf32>
    %70 = vector.extract_strided_slice %60 {offsets = [0, 128], sizes = [8, 128], strides = [1, 1]} : vector<8x384xf32> to vector<8x128xf32>
    %71 = arith.addf %69, %70 : vector<8x128xf32>
    %72 = arith.negf %71 : vector<8x128xf32>
    %73 = math.exp %72 : vector<8x128xf32>
    %cst_35 = arith.constant 1.000000e+00 : f32
    %74 = vector.broadcast %cst_35 : f32 to vector<8x128xf32>
    %75 = arith.addf %74, %73 : vector<8x128xf32>
    %76 = arith.divf %74, %75 : vector<8x128xf32>
    %77 = vector.extract_strided_slice %51 {offsets = [0, 256], sizes = [8, 128], strides = [1, 1]} : vector<8x384xf32> to vector<8x128xf32>
    %78 = vector.extract_strided_slice %60 {offsets = [0, 256], sizes = [8, 128], strides = [1, 1]} : vector<8x384xf32> to vector<8x128xf32>
    %79 = arith.mulf %68, %78 : vector<8x128xf32>
    %80 = arith.addf %77, %79 : vector<8x128xf32>
    %81 = math.tanh %80 : vector<8x128xf32>
    %cst_36 = arith.constant 1.000000e+00 : f32
    %82 = vector.broadcast %cst_36 : f32 to vector<8x128xf32>
    %83 = arith.subf %82, %76 : vector<8x128xf32>
    %84 = arith.mulf %83, %81 : vector<8x128xf32>
    %85 = arith.mulf %76, %50 : vector<8x128xf32>
    %86 = arith.addf %84, %85 : vector<8x128xf32>
    %87 = vector.broadcast %53 : vector<8x1xf32> to vector<8x128xf32>
    %88 = arith.mulf %87, %86 : vector<8x128xf32>
    %cst_37 = arith.constant 1.000000e+00 : f32
    %89 = vector.broadcast %cst_37 : f32 to vector<8x1xf32>
    %90 = arith.subf %89, %53 : vector<8x1xf32>
    %91 = vector.broadcast %90 : vector<8x1xf32> to vector<8x128xf32>
    %92 = arith.mulf %91, %50 : vector<8x128xf32>
    %93 = arith.addf %88, %92 : vector<8x128xf32>
    %c16 = arith.constant 16 : index
    %c0_38 = arith.constant 0 : index
    %94 = vector.load %arg7[%c16, %c0_38] : memref<64x384xf32, #tpu.memory_space<vmem>>, vector<8x384xf32>
    %c2 = arith.constant 2 : index
    %c0_39 = arith.constant 0 : index
    %c0_40 = arith.constant 0 : index
    %95 = vector.load %arg3[%c2, %c0_39, %c0_40] : memref<8x8x1xf32, #tpu.memory_space<vmem>>, vector<1x8x1xf32>
    %96 = vector.shape_cast %95 : vector<1x8x1xf32> to vector<8x1xf32>
    %c0_41 = arith.constant 0 : index
    %c0_42 = arith.constant 0 : index
    %c0_43 = arith.constant 0 : index
    %97 = vector.load %arg4[%c0_41, %c0_42, %c0_43] : memref<1x128x384xf32, #tpu.memory_space<vmem>>, vector<1x128x384xf32>
    %98 = vector.shape_cast %97 : vector<1x128x384xf32> to vector<128x384xf32>
    %c0_44 = arith.constant 0 : index
    %c0_45 = arith.constant 0 : index
    %c0_46 = arith.constant 0 : index
    %99 = vector.load %arg5[%c0_44, %c0_45, %c0_46] : memref<1x1x384xf32, #tpu.memory_space<vmem>>, vector<1x1x384xf32>
    %100 = vector.shape_cast %99 : vector<1x1x384xf32> to vector<1x384xf32>
    %cst_47 = arith.constant dense<0.000000e+00> : vector<8x384xf32>
    %101 = tpu.matmul %93, %98, %cst_47 {dimension_numbers = #tpu.dot_dimension_numbers<[1], [0], [0], [1], [0, 0, 1, 1], [], []>} : vector<8x128xf32>, vector<128x384xf32>, vector<8x384xf32> -> vector<8x384xf32>
    %102 = vector.broadcast %100 : vector<1x384xf32> to vector<8x384xf32>
    %103 = arith.addf %101, %102 : vector<8x384xf32>
    %104 = vector.extract_strided_slice %94 {offsets = [0, 0], sizes = [8, 128], strides = [1, 1]} : vector<8x384xf32> to vector<8x128xf32>
    %105 = vector.extract_strided_slice %103 {offsets = [0, 0], sizes = [8, 128], strides = [1, 1]} : vector<8x384xf32> to vector<8x128xf32>
    %106 = arith.addf %104, %105 : vector<8x128xf32>
    %107 = arith.negf %106 : vector<8x128xf32>
    %108 = math.exp %107 : vector<8x128xf32>
    %cst_48 = arith.constant 1.000000e+00 : f32
    %109 = vector.broadcast %cst_48 : f32 to vector<8x128xf32>
    %110 = arith.addf %109, %108 : vector<8x128xf32>
    %111 = arith.divf %109, %110 : vector<8x128xf32>
    %112 = vector.extract_strided_slice %94 {offsets = [0, 128], sizes = [8, 128], strides = [1, 1]} : vector<8x384xf32> to vector<8x128xf32>
    %113 = vector.extract_strided_slice %103 {offsets = [0, 128], sizes = [8, 128], strides = [1, 1]} : vector<8x384xf32> to vector<8x128xf32>
    %114 = arith.addf %112, %113 : vector<8x128xf32>
    %115 = arith.negf %114 : vector<8x128xf32>
    %116 = math.exp %115 : vector<8x128xf32>
    %cst_49 = arith.constant 1.000000e+00 : f32
    %117 = vector.broadcast %cst_49 : f32 to vector<8x128xf32>
    %118 = arith.addf %117, %116 : vector<8x128xf32>
    %119 = arith.divf %117, %118 : vector<8x128xf32>
    %120 = vector.extract_strided_slice %94 {offsets = [0, 256], sizes = [8, 128], strides = [1, 1]} : vector<8x384xf32> to vector<8x128xf32>
    %121 = vector.extract_strided_slice %103 {offsets = [0, 256], sizes = [8, 128], strides = [1, 1]} : vector<8x384xf32> to vector<8x128xf32>
    %122 = arith.mulf %111, %121 : vector<8x128xf32>
    %123 = arith.addf %120, %122 : vector<8x128xf32>
    %124 = math.tanh %123 : vector<8x128xf32>
    %cst_50 = arith.constant 1.000000e+00 : f32
    %125 = vector.broadcast %cst_50 : f32 to vector<8x128xf32>
    %126 = arith.subf %125, %119 : vector<8x128xf32>
    %127 = arith.mulf %126, %124 : vector<8x128xf32>
    %128 = arith.mulf %119, %93 : vector<8x128xf32>
    %129 = arith.addf %127, %128 : vector<8x128xf32>
    %130 = vector.broadcast %96 : vector<8x1xf32> to vector<8x128xf32>
    %131 = arith.mulf %130, %129 : vector<8x128xf32>
    %cst_51 = arith.constant 1.000000e+00 : f32
    %132 = vector.broadcast %cst_51 : f32 to vector<8x1xf32>
    %133 = arith.subf %132, %96 : vector<8x1xf32>
    %134 = vector.broadcast %133 : vector<8x1xf32> to vector<8x128xf32>
    %135 = arith.mulf %134, %93 : vector<8x128xf32>
    %136 = arith.addf %131, %135 : vector<8x128xf32>
    %c24 = arith.constant 24 : index
    %c0_52 = arith.constant 0 : index
    %137 = vector.load %arg7[%c24, %c0_52] : memref<64x384xf32, #tpu.memory_space<vmem>>, vector<8x384xf32>
    %c3 = arith.constant 3 : index
    %c0_53 = arith.constant 0 : index
    %c0_54 = arith.constant 0 : index
    %138 = vector.load %arg3[%c3, %c0_53, %c0_54] : memref<8x8x1xf32, #tpu.memory_space<vmem>>, vector<1x8x1xf32>
    %139 = vector.shape_cast %138 : vector<1x8x1xf32> to vector<8x1xf32>
    %c0_55 = arith.constant 0 : index
    %c0_56 = arith.constant 0 : index
    %c0_57 = arith.constant 0 : index
    %140 = vector.load %arg4[%c0_55, %c0_56, %c0_57] : memref<1x128x384xf32, #tpu.memory_space<vmem>>, vector<1x128x384xf32>
    %141 = vector.shape_cast %140 : vector<1x128x384xf32> to vector<128x384xf32>
    %c0_58 = arith.constant 0 : index
    %c0_59 = arith.constant 0 : index
    %c0_60 = arith.constant 0 : index
    %142 = vector.load %arg5[%c0_58, %c0_59, %c0_60] : memref<1x1x384xf32, #tpu.memory_space<vmem>>, vector<1x1x384xf32>
    %143 = vector.shape_cast %142 : vector<1x1x384xf32> to vector<1x384xf32>
    %cst_61 = arith.constant dense<0.000000e+00> : vector<8x384xf32>
    %144 = tpu.matmul %136, %141, %cst_61 {dimension_numbers = #tpu.dot_dimension_numbers<[1], [0], [0], [1], [0, 0, 1, 1], [], []>} : vector<8x128xf32>, vector<128x384xf32>, vector<8x384xf32> -> vector<8x384xf32>
    %145 = vector.broadcast %143 : vector<1x384xf32> to vector<8x384xf32>
    %146 = arith.addf %144, %145 : vector<8x384xf32>
    %147 = vector.extract_strided_slice %137 {offsets = [0, 0], sizes = [8, 128], strides = [1, 1]} : vector<8x384xf32> to vector<8x128xf32>
    %148 = vector.extract_strided_slice %146 {offsets = [0, 0], sizes = [8, 128], strides = [1, 1]} : vector<8x384xf32> to vector<8x128xf32>
    %149 = arith.addf %147, %148 : vector<8x128xf32>
    %150 = arith.negf %149 : vector<8x128xf32>
    %151 = math.exp %150 : vector<8x128xf32>
    %cst_62 = arith.constant 1.000000e+00 : f32
    %152 = vector.broadcast %cst_62 : f32 to vector<8x128xf32>
    %153 = arith.addf %152, %151 : vector<8x128xf32>
    %154 = arith.divf %152, %153 : vector<8x128xf32>
    %155 = vector.extract_strided_slice %137 {offsets = [0, 128], sizes = [8, 128], strides = [1, 1]} : vector<8x384xf32> to vector<8x128xf32>
    %156 = vector.extract_strided_slice %146 {offsets = [0, 128], sizes = [8, 128], strides = [1, 1]} : vector<8x384xf32> to vector<8x128xf32>
    %157 = arith.addf %155, %156 : vector<8x128xf32>
    %158 = arith.negf %157 : vector<8x128xf32>
    %159 = math.exp %158 : vector<8x128xf32>
    %cst_63 = arith.constant 1.000000e+00 : f32
    %160 = vector.broadcast %cst_63 : f32 to vector<8x128xf32>
    %161 = arith.addf %160, %159 : vector<8x128xf32>
    %162 = arith.divf %160, %161 : vector<8x128xf32>
    %163 = vector.extract_strided_slice %137 {offsets = [0, 256], sizes = [8, 128], strides = [1, 1]} : vector<8x384xf32> to vector<8x128xf32>
    %164 = vector.extract_strided_slice %146 {offsets = [0, 256], sizes = [8, 128], strides = [1, 1]} : vector<8x384xf32> to vector<8x128xf32>
    %165 = arith.mulf %154, %164 : vector<8x128xf32>
    %166 = arith.addf %163, %165 : vector<8x128xf32>
    %167 = math.tanh %166 : vector<8x128xf32>
    %cst_64 = arith.constant 1.000000e+00 : f32
    %168 = vector.broadcast %cst_64 : f32 to vector<8x128xf32>
    %169 = arith.subf %168, %162 : vector<8x128xf32>
    %170 = arith.mulf %169, %167 : vector<8x128xf32>
    %171 = arith.mulf %162, %136 : vector<8x128xf32>
    %172 = arith.addf %170, %171 : vector<8x128xf32>
    %173 = vector.broadcast %139 : vector<8x1xf32> to vector<8x128xf32>
    %174 = arith.mulf %173, %172 : vector<8x128xf32>
    %cst_65 = arith.constant 1.000000e+00 : f32
    %175 = vector.broadcast %cst_65 : f32 to vector<8x1xf32>
    %176 = arith.subf %175, %139 : vector<8x1xf32>
    %177 = vector.broadcast %176 : vector<8x1xf32> to vector<8x128xf32>
    %178 = arith.mulf %177, %136 : vector<8x128xf32>
    %179 = arith.addf %174, %178 : vector<8x128xf32>
    %c32 = arith.constant 32 : index
    %c0_66 = arith.constant 0 : index
    %180 = vector.load %arg7[%c32, %c0_66] : memref<64x384xf32, #tpu.memory_space<vmem>>, vector<8x384xf32>
    %c4 = arith.constant 4 : index
    %c0_67 = arith.constant 0 : index
    %c0_68 = arith.constant 0 : index
    %181 = vector.load %arg3[%c4, %c0_67, %c0_68] : memref<8x8x1xf32, #tpu.memory_space<vmem>>, vector<1x8x1xf32>
    %182 = vector.shape_cast %181 : vector<1x8x1xf32> to vector<8x1xf32>
    %c0_69 = arith.constant 0 : index
    %c0_70 = arith.constant 0 : index
    %c0_71 = arith.constant 0 : index
    %183 = vector.load %arg4[%c0_69, %c0_70, %c0_71] : memref<1x128x384xf32, #tpu.memory_space<vmem>>, vector<1x128x384xf32>
    %184 = vector.shape_cast %183 : vector<1x128x384xf32> to vector<128x384xf32>
    %c0_72 = arith.constant 0 : index
    %c0_73 = arith.constant 0 : index
    %c0_74 = arith.constant 0 : index
    %185 = vector.load %arg5[%c0_72, %c0_73, %c0_74] : memref<1x1x384xf32, #tpu.memory_space<vmem>>, vector<1x1x384xf32>
    %186 = vector.shape_cast %185 : vector<1x1x384xf32> to vector<1x384xf32>
    %cst_75 = arith.constant dense<0.000000e+00> : vector<8x384xf32>
    %187 = tpu.matmul %179, %184, %cst_75 {dimension_numbers = #tpu.dot_dimension_numbers<[1], [0], [0], [1], [0, 0, 1, 1], [], []>} : vector<8x128xf32>, vector<128x384xf32>, vector<8x384xf32> -> vector<8x384xf32>
    %188 = vector.broadcast %186 : vector<1x384xf32> to vector<8x384xf32>
    %189 = arith.addf %187, %188 : vector<8x384xf32>
    %190 = vector.extract_strided_slice %180 {offsets = [0, 0], sizes = [8, 128], strides = [1, 1]} : vector<8x384xf32> to vector<8x128xf32>
    %191 = vector.extract_strided_slice %189 {offsets = [0, 0], sizes = [8, 128], strides = [1, 1]} : vector<8x384xf32> to vector<8x128xf32>
    %192 = arith.addf %190, %191 : vector<8x128xf32>
    %193 = arith.negf %192 : vector<8x128xf32>
    %194 = math.exp %193 : vector<8x128xf32>
    %cst_76 = arith.constant 1.000000e+00 : f32
    %195 = vector.broadcast %cst_76 : f32 to vector<8x128xf32>
    %196 = arith.addf %195, %194 : vector<8x128xf32>
    %197 = arith.divf %195, %196 : vector<8x128xf32>
    %198 = vector.extract_strided_slice %180 {offsets = [0, 128], sizes = [8, 128], strides = [1, 1]} : vector<8x384xf32> to vector<8x128xf32>
    %199 = vector.extract_strided_slice %189 {offsets = [0, 128], sizes = [8, 128], strides = [1, 1]} : vector<8x384xf32> to vector<8x128xf32>
    %200 = arith.addf %198, %199 : vector<8x128xf32>
    %201 = arith.negf %200 : vector<8x128xf32>
    %202 = math.exp %201 : vector<8x128xf32>
    %cst_77 = arith.constant 1.000000e+00 : f32
    %203 = vector.broadcast %cst_77 : f32 to vector<8x128xf32>
    %204 = arith.addf %203, %202 : vector<8x128xf32>
    %205 = arith.divf %203, %204 : vector<8x128xf32>
    %206 = vector.extract_strided_slice %180 {offsets = [0, 256], sizes = [8, 128], strides = [1, 1]} : vector<8x384xf32> to vector<8x128xf32>
    %207 = vector.extract_strided_slice %189 {offsets = [0, 256], sizes = [8, 128], strides = [1, 1]} : vector<8x384xf32> to vector<8x128xf32>
    %208 = arith.mulf %197, %207 : vector<8x128xf32>
    %209 = arith.addf %206, %208 : vector<8x128xf32>
    %210 = math.tanh %209 : vector<8x128xf32>
    %cst_78 = arith.constant 1.000000e+00 : f32
    %211 = vector.broadcast %cst_78 : f32 to vector<8x128xf32>
    %212 = arith.subf %211, %205 : vector<8x128xf32>
    %213 = arith.mulf %212, %210 : vector<8x128xf32>
    %214 = arith.mulf %205, %179 : vector<8x128xf32>
    %215 = arith.addf %213, %214 : vector<8x128xf32>
    %216 = vector.broadcast %182 : vector<8x1xf32> to vector<8x128xf32>
    %217 = arith.mulf %216, %215 : vector<8x128xf32>
    %cst_79 = arith.constant 1.000000e+00 : f32
    %218 = vector.broadcast %cst_79 : f32 to vector<8x1xf32>
    %219 = arith.subf %218, %182 : vector<8x1xf32>
    %220 = vector.broadcast %219 : vector<8x1xf32> to vector<8x128xf32>
    %221 = arith.mulf %220, %179 : vector<8x128xf32>
    %222 = arith.addf %217, %221 : vector<8x128xf32>
    %c40 = arith.constant 40 : index
    %c0_80 = arith.constant 0 : index
    %223 = vector.load %arg7[%c40, %c0_80] : memref<64x384xf32, #tpu.memory_space<vmem>>, vector<8x384xf32>
    %c5 = arith.constant 5 : index
    %c0_81 = arith.constant 0 : index
    %c0_82 = arith.constant 0 : index
    %224 = vector.load %arg3[%c5, %c0_81, %c0_82] : memref<8x8x1xf32, #tpu.memory_space<vmem>>, vector<1x8x1xf32>
    %225 = vector.shape_cast %224 : vector<1x8x1xf32> to vector<8x1xf32>
    %c0_83 = arith.constant 0 : index
    %c0_84 = arith.constant 0 : index
    %c0_85 = arith.constant 0 : index
    %226 = vector.load %arg4[%c0_83, %c0_84, %c0_85] : memref<1x128x384xf32, #tpu.memory_space<vmem>>, vector<1x128x384xf32>
    %227 = vector.shape_cast %226 : vector<1x128x384xf32> to vector<128x384xf32>
    %c0_86 = arith.constant 0 : index
    %c0_87 = arith.constant 0 : index
    %c0_88 = arith.constant 0 : index
    %228 = vector.load %arg5[%c0_86, %c0_87, %c0_88] : memref<1x1x384xf32, #tpu.memory_space<vmem>>, vector<1x1x384xf32>
    %229 = vector.shape_cast %228 : vector<1x1x384xf32> to vector<1x384xf32>
    %cst_89 = arith.constant dense<0.000000e+00> : vector<8x384xf32>
    %230 = tpu.matmul %222, %227, %cst_89 {dimension_numbers = #tpu.dot_dimension_numbers<[1], [0], [0], [1], [0, 0, 1, 1], [], []>} : vector<8x128xf32>, vector<128x384xf32>, vector<8x384xf32> -> vector<8x384xf32>
    %231 = vector.broadcast %229 : vector<1x384xf32> to vector<8x384xf32>
    %232 = arith.addf %230, %231 : vector<8x384xf32>
    %233 = vector.extract_strided_slice %223 {offsets = [0, 0], sizes = [8, 128], strides = [1, 1]} : vector<8x384xf32> to vector<8x128xf32>
    %234 = vector.extract_strided_slice %232 {offsets = [0, 0], sizes = [8, 128], strides = [1, 1]} : vector<8x384xf32> to vector<8x128xf32>
    %235 = arith.addf %233, %234 : vector<8x128xf32>
    %236 = arith.negf %235 : vector<8x128xf32>
    %237 = math.exp %236 : vector<8x128xf32>
    %cst_90 = arith.constant 1.000000e+00 : f32
    %238 = vector.broadcast %cst_90 : f32 to vector<8x128xf32>
    %239 = arith.addf %238, %237 : vector<8x128xf32>
    %240 = arith.divf %238, %239 : vector<8x128xf32>
    %241 = vector.extract_strided_slice %223 {offsets = [0, 128], sizes = [8, 128], strides = [1, 1]} : vector<8x384xf32> to vector<8x128xf32>
    %242 = vector.extract_strided_slice %232 {offsets = [0, 128], sizes = [8, 128], strides = [1, 1]} : vector<8x384xf32> to vector<8x128xf32>
    %243 = arith.addf %241, %242 : vector<8x128xf32>
    %244 = arith.negf %243 : vector<8x128xf32>
    %245 = math.exp %244 : vector<8x128xf32>
    %cst_91 = arith.constant 1.000000e+00 : f32
    %246 = vector.broadcast %cst_91 : f32 to vector<8x128xf32>
    %247 = arith.addf %246, %245 : vector<8x128xf32>
    %248 = arith.divf %246, %247 : vector<8x128xf32>
    %249 = vector.extract_strided_slice %223 {offsets = [0, 256], sizes = [8, 128], strides = [1, 1]} : vector<8x384xf32> to vector<8x128xf32>
    %250 = vector.extract_strided_slice %232 {offsets = [0, 256], sizes = [8, 128], strides = [1, 1]} : vector<8x384xf32> to vector<8x128xf32>
    %251 = arith.mulf %240, %250 : vector<8x128xf32>
    %252 = arith.addf %249, %251 : vector<8x128xf32>
    %253 = math.tanh %252 : vector<8x128xf32>
    %cst_92 = arith.constant 1.000000e+00 : f32
    %254 = vector.broadcast %cst_92 : f32 to vector<8x128xf32>
    %255 = arith.subf %254, %248 : vector<8x128xf32>
    %256 = arith.mulf %255, %253 : vector<8x128xf32>
    %257 = arith.mulf %248, %222 : vector<8x128xf32>
    %258 = arith.addf %256, %257 : vector<8x128xf32>
    %259 = vector.broadcast %225 : vector<8x1xf32> to vector<8x128xf32>
    %260 = arith.mulf %259, %258 : vector<8x128xf32>
    %cst_93 = arith.constant 1.000000e+00 : f32
    %261 = vector.broadcast %cst_93 : f32 to vector<8x1xf32>
    %262 = arith.subf %261, %225 : vector<8x1xf32>
    %263 = vector.broadcast %262 : vector<8x1xf32> to vector<8x128xf32>
    %264 = arith.mulf %263, %222 : vector<8x128xf32>
    %265 = arith.addf %260, %264 : vector<8x128xf32>
    %c48 = arith.constant 48 : index
    %c0_94 = arith.constant 0 : index
    %266 = vector.load %arg7[%c48, %c0_94] : memref<64x384xf32, #tpu.memory_space<vmem>>, vector<8x384xf32>
    %c6 = arith.constant 6 : index
    %c0_95 = arith.constant 0 : index
    %c0_96 = arith.constant 0 : index
    %267 = vector.load %arg3[%c6, %c0_95, %c0_96] : memref<8x8x1xf32, #tpu.memory_space<vmem>>, vector<1x8x1xf32>
    %268 = vector.shape_cast %267 : vector<1x8x1xf32> to vector<8x1xf32>
    %c0_97 = arith.constant 0 : index
    %c0_98 = arith.constant 0 : index
    %c0_99 = arith.constant 0 : index
    %269 = vector.load %arg4[%c0_97, %c0_98, %c0_99] : memref<1x128x384xf32, #tpu.memory_space<vmem>>, vector<1x128x384xf32>
    %270 = vector.shape_cast %269 : vector<1x128x384xf32> to vector<128x384xf32>
    %c0_100 = arith.constant 0 : index
    %c0_101 = arith.constant 0 : index
    %c0_102 = arith.constant 0 : index
    %271 = vector.load %arg5[%c0_100, %c0_101, %c0_102] : memref<1x1x384xf32, #tpu.memory_space<vmem>>, vector<1x1x384xf32>
    %272 = vector.shape_cast %271 : vector<1x1x384xf32> to vector<1x384xf32>
    %cst_103 = arith.constant dense<0.000000e+00> : vector<8x384xf32>
    %273 = tpu.matmul %265, %270, %cst_103 {dimension_numbers = #tpu.dot_dimension_numbers<[1], [0], [0], [1], [0, 0, 1, 1], [], []>} : vector<8x128xf32>, vector<128x384xf32>, vector<8x384xf32> -> vector<8x384xf32>
    %274 = vector.broadcast %272 : vector<1x384xf32> to vector<8x384xf32>
    %275 = arith.addf %273, %274 : vector<8x384xf32>
    %276 = vector.extract_strided_slice %266 {offsets = [0, 0], sizes = [8, 128], strides = [1, 1]} : vector<8x384xf32> to vector<8x128xf32>
    %277 = vector.extract_strided_slice %275 {offsets = [0, 0], sizes = [8, 128], strides = [1, 1]} : vector<8x384xf32> to vector<8x128xf32>
    %278 = arith.addf %276, %277 : vector<8x128xf32>
    %279 = arith.negf %278 : vector<8x128xf32>
    %280 = math.exp %279 : vector<8x128xf32>
    %cst_104 = arith.constant 1.000000e+00 : f32
    %281 = vector.broadcast %cst_104 : f32 to vector<8x128xf32>
    %282 = arith.addf %281, %280 : vector<8x128xf32>
    %283 = arith.divf %281, %282 : vector<8x128xf32>
    %284 = vector.extract_strided_slice %266 {offsets = [0, 128], sizes = [8, 128], strides = [1, 1]} : vector<8x384xf32> to vector<8x128xf32>
    %285 = vector.extract_strided_slice %275 {offsets = [0, 128], sizes = [8, 128], strides = [1, 1]} : vector<8x384xf32> to vector<8x128xf32>
    %286 = arith.addf %284, %285 : vector<8x128xf32>
    %287 = arith.negf %286 : vector<8x128xf32>
    %288 = math.exp %287 : vector<8x128xf32>
    %cst_105 = arith.constant 1.000000e+00 : f32
    %289 = vector.broadcast %cst_105 : f32 to vector<8x128xf32>
    %290 = arith.addf %289, %288 : vector<8x128xf32>
    %291 = arith.divf %289, %290 : vector<8x128xf32>
    %292 = vector.extract_strided_slice %266 {offsets = [0, 256], sizes = [8, 128], strides = [1, 1]} : vector<8x384xf32> to vector<8x128xf32>
    %293 = vector.extract_strided_slice %275 {offsets = [0, 256], sizes = [8, 128], strides = [1, 1]} : vector<8x384xf32> to vector<8x128xf32>
    %294 = arith.mulf %283, %293 : vector<8x128xf32>
    %295 = arith.addf %292, %294 : vector<8x128xf32>
    %296 = math.tanh %295 : vector<8x128xf32>
    %cst_106 = arith.constant 1.000000e+00 : f32
    %297 = vector.broadcast %cst_106 : f32 to vector<8x128xf32>
    %298 = arith.subf %297, %291 : vector<8x128xf32>
    %299 = arith.mulf %298, %296 : vector<8x128xf32>
    %300 = arith.mulf %291, %265 : vector<8x128xf32>
    %301 = arith.addf %299, %300 : vector<8x128xf32>
    %302 = vector.broadcast %268 : vector<8x1xf32> to vector<8x128xf32>
    %303 = arith.mulf %302, %301 : vector<8x128xf32>
    %cst_107 = arith.constant 1.000000e+00 : f32
    %304 = vector.broadcast %cst_107 : f32 to vector<8x1xf32>
    %305 = arith.subf %304, %268 : vector<8x1xf32>
    %306 = vector.broadcast %305 : vector<8x1xf32> to vector<8x128xf32>
    %307 = arith.mulf %306, %265 : vector<8x128xf32>
    %308 = arith.addf %303, %307 : vector<8x128xf32>
    %c56 = arith.constant 56 : index
    %c0_108 = arith.constant 0 : index
    %309 = vector.load %arg7[%c56, %c0_108] : memref<64x384xf32, #tpu.memory_space<vmem>>, vector<8x384xf32>
    %c7 = arith.constant 7 : index
    %c0_109 = arith.constant 0 : index
    %c0_110 = arith.constant 0 : index
    %310 = vector.load %arg3[%c7, %c0_109, %c0_110] : memref<8x8x1xf32, #tpu.memory_space<vmem>>, vector<1x8x1xf32>
    %311 = vector.shape_cast %310 : vector<1x8x1xf32> to vector<8x1xf32>
    %c0_111 = arith.constant 0 : index
    %c0_112 = arith.constant 0 : index
    %c0_113 = arith.constant 0 : index
    %312 = vector.load %arg4[%c0_111, %c0_112, %c0_113] : memref<1x128x384xf32, #tpu.memory_space<vmem>>, vector<1x128x384xf32>
    %313 = vector.shape_cast %312 : vector<1x128x384xf32> to vector<128x384xf32>
    %c0_114 = arith.constant 0 : index
    %c0_115 = arith.constant 0 : index
    %c0_116 = arith.constant 0 : index
    %314 = vector.load %arg5[%c0_114, %c0_115, %c0_116] : memref<1x1x384xf32, #tpu.memory_space<vmem>>, vector<1x1x384xf32>
    %315 = vector.shape_cast %314 : vector<1x1x384xf32> to vector<1x384xf32>
    %cst_117 = arith.constant dense<0.000000e+00> : vector<8x384xf32>
    %316 = tpu.matmul %308, %313, %cst_117 {dimension_numbers = #tpu.dot_dimension_numbers<[1], [0], [0], [1], [0, 0, 1, 1], [], []>} : vector<8x128xf32>, vector<128x384xf32>, vector<8x384xf32> -> vector<8x384xf32>
    %317 = vector.broadcast %315 : vector<1x384xf32> to vector<8x384xf32>
    %318 = arith.addf %316, %317 : vector<8x384xf32>
    %319 = vector.extract_strided_slice %309 {offsets = [0, 0], sizes = [8, 128], strides = [1, 1]} : vector<8x384xf32> to vector<8x128xf32>
    %320 = vector.extract_strided_slice %318 {offsets = [0, 0], sizes = [8, 128], strides = [1, 1]} : vector<8x384xf32> to vector<8x128xf32>
    %321 = arith.addf %319, %320 : vector<8x128xf32>
    %322 = arith.negf %321 : vector<8x128xf32>
    %323 = math.exp %322 : vector<8x128xf32>
    %cst_118 = arith.constant 1.000000e+00 : f32
    %324 = vector.broadcast %cst_118 : f32 to vector<8x128xf32>
    %325 = arith.addf %324, %323 : vector<8x128xf32>
    %326 = arith.divf %324, %325 : vector<8x128xf32>
    %327 = vector.extract_strided_slice %309 {offsets = [0, 128], sizes = [8, 128], strides = [1, 1]} : vector<8x384xf32> to vector<8x128xf32>
    %328 = vector.extract_strided_slice %318 {offsets = [0, 128], sizes = [8, 128], strides = [1, 1]} : vector<8x384xf32> to vector<8x128xf32>
    %329 = arith.addf %327, %328 : vector<8x128xf32>
    %330 = arith.negf %329 : vector<8x128xf32>
    %331 = math.exp %330 : vector<8x128xf32>
    %cst_119 = arith.constant 1.000000e+00 : f32
    %332 = vector.broadcast %cst_119 : f32 to vector<8x128xf32>
    %333 = arith.addf %332, %331 : vector<8x128xf32>
    %334 = arith.divf %332, %333 : vector<8x128xf32>
    %335 = vector.extract_strided_slice %309 {offsets = [0, 256], sizes = [8, 128], strides = [1, 1]} : vector<8x384xf32> to vector<8x128xf32>
    %336 = vector.extract_strided_slice %318 {offsets = [0, 256], sizes = [8, 128], strides = [1, 1]} : vector<8x384xf32> to vector<8x128xf32>
    %337 = arith.mulf %326, %336 : vector<8x128xf32>
    %338 = arith.addf %335, %337 : vector<8x128xf32>
    %339 = math.tanh %338 : vector<8x128xf32>
    %cst_120 = arith.constant 1.000000e+00 : f32
    %340 = vector.broadcast %cst_120 : f32 to vector<8x128xf32>
    %341 = arith.subf %340, %334 : vector<8x128xf32>
    %342 = arith.mulf %341, %339 : vector<8x128xf32>
    %343 = arith.mulf %334, %308 : vector<8x128xf32>
    %344 = arith.addf %342, %343 : vector<8x128xf32>
    %345 = vector.broadcast %311 : vector<8x1xf32> to vector<8x128xf32>
    %346 = arith.mulf %345, %344 : vector<8x128xf32>
    %cst_121 = arith.constant 1.000000e+00 : f32
    %347 = vector.broadcast %cst_121 : f32 to vector<8x1xf32>
    %348 = arith.subf %347, %311 : vector<8x1xf32>
    %349 = vector.broadcast %348 : vector<8x1xf32> to vector<8x128xf32>
    %350 = arith.mulf %349, %308 : vector<8x128xf32>
    %351 = arith.addf %346, %350 : vector<8x128xf32>
    %c0_122 = arith.constant 0 : index
    %c0_123 = arith.constant 0 : index
    %c0_124 = arith.constant 0 : index
    %352 = vector.load %arg6[%c0_122, %c0_123, %c0_124] : memref<1x8x128xf32, #tpu.memory_space<vmem>>, vector<1x8x128xf32>
    %353 = vector.shape_cast %352 : vector<1x8x128xf32> to vector<8x128xf32>
    %354 = vector.shape_cast %351 : vector<8x128xf32> to vector<1x8x128xf32>
    tpu.vector_store %arg6[%c0_122, %c0_123, %c0_124], %354 {strides = array<i32>} : memref<1x8x128xf32, #tpu.memory_space<vmem>>, vector<1x8x128xf32>,
    return
  }
}

module attributes {stable_mosaic.version = 11 : i64} {
  func.func @kernel(%arg0: memref<5x8x128xf32, #tpu.memory_space<vmem>>, %arg1: memref<5x8x1xf32, #tpu.memory_space<vmem>>, %arg2: memref<128x384xf32, #tpu.memory_space<vmem>>, %arg3: memref<1x384xf32, #tpu.memory_space<vmem>>, %arg4: memref<2x128x384xf32, #tpu.memory_space<vmem>>, %arg5: memref<2x1x384xf32, #tpu.memory_space<vmem>>, %arg6: memref<1x128x384xf32, #tpu.memory_space<vmem>>, %arg7: memref<1x1x384xf32, #tpu.memory_space<vmem>>, %arg8: memref<128x128xf32, #tpu.memory_space<vmem>>, %arg9: memref<1x128xf32, #tpu.memory_space<vmem>>, %arg10: memref<2x8x128xf32, #tpu.memory_space<vmem>>, %arg11: memref<5x8x128xf32, #tpu.memory_space<vmem>>) attributes {dimension_semantics = [], scalar_prefetch = 0 : i64, scratch_operands = 0 : i64, tpu.core_type = #tpu.core_type<tc>} {
    %c0 = arith.constant 0 : index
    %c0_0 = arith.constant 0 : index
    %c0_1 = arith.constant 0 : index
    %0 = vector.load %arg10[%c0, %c0_0, %c0_1] : memref<2x8x128xf32, #tpu.memory_space<vmem>>, vector<1x8x128xf32>
    %1 = vector.shape_cast %0 : vector<1x8x128xf32> to vector<8x128xf32>
    %c1 = arith.constant 1 : index
    %c0_2 = arith.constant 0 : index
    %c0_3 = arith.constant 0 : index
    %2 = vector.load %arg10[%c1, %c0_2, %c0_3] : memref<2x8x128xf32, #tpu.memory_space<vmem>>, vector<1x8x128xf32>
    %3 = vector.shape_cast %2 : vector<1x8x128xf32> to vector<8x128xf32>
    %cst = arith.constant 0.000000e+00 : f32
    %4 = vector.broadcast %cst : f32 to vector<8x128xf32>
    %c0_4 = arith.constant 0 : index
    %c0_5 = arith.constant 0 : index
    %c0_6 = arith.constant 0 : index
    %5 = vector.load %arg0[%c0_4, %c0_5, %c0_6] : memref<5x8x128xf32, #tpu.memory_space<vmem>>, vector<1x8x128xf32>
    %6 = vector.shape_cast %5 : vector<1x8x128xf32> to vector<8x128xf32>
    %c0_7 = arith.constant 0 : index
    %c0_8 = arith.constant 0 : index
    %c0_9 = arith.constant 0 : index
    %7 = vector.load %arg1[%c0_7, %c0_8, %c0_9] : memref<5x8x1xf32, #tpu.memory_space<vmem>>, vector<1x8x1xf32>
    %8 = vector.shape_cast %7 : vector<1x8x1xf32> to vector<8x1xf32>
    %9 = vector.broadcast %8 : vector<8x1xf32> to vector<8x128xf32>
    %10 = arith.mulf %9, %4 : vector<8x128xf32>
    %11 = arith.addf %6, %10 : vector<8x128xf32>
    %c0_10 = arith.constant 0 : index
    %c0_11 = arith.constant 0 : index
    %12 = vector.load %arg2[%c0_10, %c0_11] : memref<128x384xf32, #tpu.memory_space<vmem>>, vector<128x384xf32>
    %cst_12 = arith.constant dense<0.000000e+00> : vector<8x384xf32>
    %13 = tpu.matmul %11, %12, %cst_12 {dimension_numbers = #tpu.dot_dimension_numbers<[1], [0], [0], [1], [0, 0, 1, 1], [], []>} : vector<8x128xf32>, vector<128x384xf32>, vector<8x384xf32> -> vector<8x384xf32>
    %c0_13 = arith.constant 0 : index
    %c0_14 = arith.constant 0 : index
    %14 = vector.load %arg3[%c0_13, %c0_14] : memref<1x384xf32, #tpu.memory_space<vmem>>, vector<1x384xf32>
    %15 = vector.broadcast %14 : vector<1x384xf32> to vector<8x384xf32>
    %16 = arith.addf %13, %15 : vector<8x384xf32>
    %c0_15 = arith.constant 0 : index
    %c0_16 = arith.constant 0 : index
    %c0_17 = arith.constant 0 : index
    %17 = vector.load %arg4[%c0_15, %c0_16, %c0_17] : memref<2x128x384xf32, #tpu.memory_space<vmem>>, vector<1x128x384xf32>
    %18 = vector.shape_cast %17 : vector<1x128x384xf32> to vector<128x384xf32>
    %c0_18 = arith.constant 0 : index
    %c0_19 = arith.constant 0 : index
    %c0_20 = arith.constant 0 : index
    %19 = vector.load %arg5[%c0_18, %c0_19, %c0_20] : memref<2x1x384xf32, #tpu.memory_space<vmem>>, vector<1x1x384xf32>
    %20 = vector.shape_cast %19 : vector<1x1x384xf32> to vector<1x384xf32>
    %cst_21 = arith.constant dense<0.000000e+00> : vector<8x384xf32>
    %21 = tpu.matmul %1, %18, %cst_21 {dimension_numbers = #tpu.dot_dimension_numbers<[1], [0], [0], [1], [0, 0, 1, 1], [], []>} : vector<8x128xf32>, vector<128x384xf32>, vector<8x384xf32> -> vector<8x384xf32>
    %22 = vector.broadcast %20 : vector<1x384xf32> to vector<8x384xf32>
    %23 = arith.addf %21, %22 : vector<8x384xf32>
    %24 = vector.extract_strided_slice %16 {offsets = [0, 0], sizes = [8, 128], strides = [1, 1]} : vector<8x384xf32> to vector<8x128xf32>
    %25 = vector.extract_strided_slice %23 {offsets = [0, 0], sizes = [8, 128], strides = [1, 1]} : vector<8x384xf32> to vector<8x128xf32>
    %26 = arith.addf %24, %25 : vector<8x128xf32>
    %27 = arith.negf %26 : vector<8x128xf32>
    %28 = math.exp %27 : vector<8x128xf32>
    %cst_22 = arith.constant 1.000000e+00 : f32
    %29 = vector.broadcast %cst_22 : f32 to vector<8x128xf32>
    %30 = arith.addf %29, %28 : vector<8x128xf32>
    %31 = arith.divf %29, %30 : vector<8x128xf32>
    %32 = vector.extract_strided_slice %16 {offsets = [0, 128], sizes = [8, 128], strides = [1, 1]} : vector<8x384xf32> to vector<8x128xf32>
    %33 = vector.extract_strided_slice %23 {offsets = [0, 128], sizes = [8, 128], strides = [1, 1]} : vector<8x384xf32> to vector<8x128xf32>
    %34 = arith.addf %32, %33 : vector<8x128xf32>
    %35 = arith.negf %34 : vector<8x128xf32>
    %36 = math.exp %35 : vector<8x128xf32>
    %cst_23 = arith.constant 1.000000e+00 : f32
    %37 = vector.broadcast %cst_23 : f32 to vector<8x128xf32>
    %38 = arith.addf %37, %36 : vector<8x128xf32>
    %39 = arith.divf %37, %38 : vector<8x128xf32>
    %40 = vector.extract_strided_slice %16 {offsets = [0, 256], sizes = [8, 128], strides = [1, 1]} : vector<8x384xf32> to vector<8x128xf32>
    %41 = vector.extract_strided_slice %23 {offsets = [0, 256], sizes = [8, 128], strides = [1, 1]} : vector<8x384xf32> to vector<8x128xf32>
    %42 = arith.mulf %31, %41 : vector<8x128xf32>
    %43 = arith.addf %40, %42 : vector<8x128xf32>
    %44 = math.tanh %43 : vector<8x128xf32>
    %cst_24 = arith.constant 1.000000e+00 : f32
    %45 = vector.broadcast %cst_24 : f32 to vector<8x128xf32>
    %46 = arith.subf %45, %39 : vector<8x128xf32>
    %47 = arith.mulf %46, %44 : vector<8x128xf32>
    %48 = arith.mulf %39, %1 : vector<8x128xf32>
    %49 = arith.addf %47, %48 : vector<8x128xf32>
    %c0_25 = arith.constant 0 : index
    %c0_26 = arith.constant 0 : index
    %c0_27 = arith.constant 0 : index
    %50 = vector.load %arg6[%c0_25, %c0_26, %c0_27] : memref<1x128x384xf32, #tpu.memory_space<vmem>>, vector<1x128x384xf32>
    %51 = vector.shape_cast %50 : vector<1x128x384xf32> to vector<128x384xf32>
    %cst_28 = arith.constant dense<0.000000e+00> : vector<8x384xf32>
    %52 = tpu.matmul %49, %51, %cst_28 {dimension_numbers = #tpu.dot_dimension_numbers<[1], [0], [0], [1], [0, 0, 1, 1], [], []>} : vector<8x128xf32>, vector<128x384xf32>, vector<8x384xf32> -> vector<8x384xf32>
    %c0_29 = arith.constant 0 : index
    %c0_30 = arith.constant 0 : index
    %c0_31 = arith.constant 0 : index
    %53 = vector.load %arg7[%c0_29, %c0_30, %c0_31] : memref<1x1x384xf32, #tpu.memory_space<vmem>>, vector<1x1x384xf32>
    %54 = vector.shape_cast %53 : vector<1x1x384xf32> to vector<1x384xf32>
    %55 = vector.broadcast %54 : vector<1x384xf32> to vector<8x384xf32>
    %56 = arith.addf %52, %55 : vector<8x384xf32>
    %c1_32 = arith.constant 1 : index
    %c0_33 = arith.constant 0 : index
    %c0_34 = arith.constant 0 : index
    %57 = vector.load %arg4[%c1_32, %c0_33, %c0_34] : memref<2x128x384xf32, #tpu.memory_space<vmem>>, vector<1x128x384xf32>
    %58 = vector.shape_cast %57 : vector<1x128x384xf32> to vector<128x384xf32>
    %c1_35 = arith.constant 1 : index
    %c0_36 = arith.constant 0 : index
    %c0_37 = arith.constant 0 : index
    %59 = vector.load %arg5[%c1_35, %c0_36, %c0_37] : memref<2x1x384xf32, #tpu.memory_space<vmem>>, vector<1x1x384xf32>
    %60 = vector.shape_cast %59 : vector<1x1x384xf32> to vector<1x384xf32>
    %cst_38 = arith.constant dense<0.000000e+00> : vector<8x384xf32>
    %61 = tpu.matmul %3, %58, %cst_38 {dimension_numbers = #tpu.dot_dimension_numbers<[1], [0], [0], [1], [0, 0, 1, 1], [], []>} : vector<8x128xf32>, vector<128x384xf32>, vector<8x384xf32> -> vector<8x384xf32>
    %62 = vector.broadcast %60 : vector<1x384xf32> to vector<8x384xf32>
    %63 = arith.addf %61, %62 : vector<8x384xf32>
    %64 = vector.extract_strided_slice %56 {offsets = [0, 0], sizes = [8, 128], strides = [1, 1]} : vector<8x384xf32> to vector<8x128xf32>
    %65 = vector.extract_strided_slice %63 {offsets = [0, 0], sizes = [8, 128], strides = [1, 1]} : vector<8x384xf32> to vector<8x128xf32>
    %66 = arith.addf %64, %65 : vector<8x128xf32>
    %67 = arith.negf %66 : vector<8x128xf32>
    %68 = math.exp %67 : vector<8x128xf32>
    %cst_39 = arith.constant 1.000000e+00 : f32
    %69 = vector.broadcast %cst_39 : f32 to vector<8x128xf32>
    %70 = arith.addf %69, %68 : vector<8x128xf32>
    %71 = arith.divf %69, %70 : vector<8x128xf32>
    %72 = vector.extract_strided_slice %56 {offsets = [0, 128], sizes = [8, 128], strides = [1, 1]} : vector<8x384xf32> to vector<8x128xf32>
    %73 = vector.extract_strided_slice %63 {offsets = [0, 128], sizes = [8, 128], strides = [1, 1]} : vector<8x384xf32> to vector<8x128xf32>
    %74 = arith.addf %72, %73 : vector<8x128xf32>
    %75 = arith.negf %74 : vector<8x128xf32>
    %76 = math.exp %75 : vector<8x128xf32>
    %cst_40 = arith.constant 1.000000e+00 : f32
    %77 = vector.broadcast %cst_40 : f32 to vector<8x128xf32>
    %78 = arith.addf %77, %76 : vector<8x128xf32>
    %79 = arith.divf %77, %78 : vector<8x128xf32>
    %80 = vector.extract_strided_slice %56 {offsets = [0, 256], sizes = [8, 128], strides = [1, 1]} : vector<8x384xf32> to vector<8x128xf32>
    %81 = vector.extract_strided_slice %63 {offsets = [0, 256], sizes = [8, 128], strides = [1, 1]} : vector<8x384xf32> to vector<8x128xf32>
    %82 = arith.mulf %71, %81 : vector<8x128xf32>
    %83 = arith.addf %80, %82 : vector<8x128xf32>
    %84 = math.tanh %83 : vector<8x128xf32>
    %cst_41 = arith.constant 1.000000e+00 : f32
    %85 = vector.broadcast %cst_41 : f32 to vector<8x128xf32>
    %86 = arith.subf %85, %79 : vector<8x128xf32>
    %87 = arith.mulf %86, %84 : vector<8x128xf32>
    %88 = arith.mulf %79, %3 : vector<8x128xf32>
    %89 = arith.addf %87, %88 : vector<8x128xf32>
    %c0_42 = arith.constant 0 : index
    %c0_43 = arith.constant 0 : index
    %90 = vector.load %arg8[%c0_42, %c0_43] : memref<128x128xf32, #tpu.memory_space<vmem>>, vector<128x128xf32>
    %cst_44 = arith.constant dense<0.000000e+00> : vector<8x128xf32>
    %91 = tpu.matmul %89, %90, %cst_44 {dimension_numbers = #tpu.dot_dimension_numbers<[1], [0], [0], [1], [0, 0, 1, 1], [], []>} : vector<8x128xf32>, vector<128x128xf32>, vector<8x128xf32> -> vector<8x128xf32>
    %c0_45 = arith.constant 0 : index
    %c0_46 = arith.constant 0 : index
    %92 = vector.load %arg9[%c0_45, %c0_46] : memref<1x128xf32, #tpu.memory_space<vmem>>, vector<1x128xf32>
    %93 = vector.broadcast %92 : vector<1x128xf32> to vector<8x128xf32>
    %94 = arith.addf %91, %93 : vector<8x128xf32>
    %c0_47 = arith.constant 0 : index
    %c0_48 = arith.constant 0 : index
    %c0_49 = arith.constant 0 : index
    %95 = vector.load %arg11[%c0_47, %c0_48, %c0_49] : memref<5x8x128xf32, #tpu.memory_space<vmem>>, vector<1x8x128xf32>
    %96 = vector.shape_cast %95 : vector<1x8x128xf32> to vector<8x128xf32>
    %97 = vector.shape_cast %94 : vector<8x128xf32> to vector<1x8x128xf32>
    tpu.vector_store %arg11[%c0_47, %c0_48, %c0_49], %97 {strides = array<i32>} : memref<5x8x128xf32, #tpu.memory_space<vmem>>, vector<1x8x128xf32>,
    %cst_50 = arith.constant dense<0xFF800000> : vector<8xf32>
    %98 = vector.multi_reduction <maximumf>, %94, %cst_50 [1] : vector<8x128xf32> to vector<8xf32>
    %99 = vector.shape_cast %98 : vector<8xf32> to vector<8x1xf32>
    %100 = tpu.iota {dimensions = array<i32: 1>} : vector<8x128xi32>
    %101 = vector.broadcast %99 : vector<8x1xf32> to vector<8x128xf32>
    %102 = arith.cmpf oge, %94, %101 : vector<8x128xf32>
    %c1073741824_i32 = arith.constant 1073741824 : i32
    %103 = vector.broadcast %c1073741824_i32 : i32 to vector<8x128xi32>
    %104 = arith.select %102, %100, %103 : vector<8x128xi1>, vector<8x128xi32>
    %cst_51 = arith.constant dense<2147483647> : vector<8xi32>
    %105 = vector.multi_reduction <minsi>, %104, %cst_51 [1] : vector<8x128xi32> to vector<8xi32>
    %106 = vector.shape_cast %105 : vector<8xi32> to vector<8x1xi32>
    %107 = vector.broadcast %106 : vector<8x1xi32> to vector<8x128xi32>
    %108 = arith.cmpi eq, %100, %107 : vector<8x128xi32>
    %109 = arith.extui %108 : vector<8x128xi1> to vector<8x128xi32>
    %110 = arith.sitofp %109 : vector<8x128xi32> to vector<8x128xf32>
    %c1_52 = arith.constant 1 : index
    %c0_53 = arith.constant 0 : index
    %c0_54 = arith.constant 0 : index
    %111 = vector.load %arg0[%c1_52, %c0_53, %c0_54] : memref<5x8x128xf32, #tpu.memory_space<vmem>>, vector<1x8x128xf32>
    %112 = vector.shape_cast %111 : vector<1x8x128xf32> to vector<8x128xf32>
    %c1_55 = arith.constant 1 : index
    %c0_56 = arith.constant 0 : index
    %c0_57 = arith.constant 0 : index
    %113 = vector.load %arg1[%c1_55, %c0_56, %c0_57] : memref<5x8x1xf32, #tpu.memory_space<vmem>>, vector<1x8x1xf32>
    %114 = vector.shape_cast %113 : vector<1x8x1xf32> to vector<8x1xf32>
    %115 = vector.broadcast %114 : vector<8x1xf32> to vector<8x128xf32>
    %116 = arith.mulf %115, %110 : vector<8x128xf32>
    %117 = arith.addf %112, %116 : vector<8x128xf32>
    %c0_58 = arith.constant 0 : index
    %c0_59 = arith.constant 0 : index
    %118 = vector.load %arg2[%c0_58, %c0_59] : memref<128x384xf32, #tpu.memory_space<vmem>>, vector<128x384xf32>
    %cst_60 = arith.constant dense<0.000000e+00> : vector<8x384xf32>
    %119 = tpu.matmul %117, %118, %cst_60 {dimension_numbers = #tpu.dot_dimension_numbers<[1], [0], [0], [1], [0, 0, 1, 1], [], []>} : vector<8x128xf32>, vector<128x384xf32>, vector<8x384xf32> -> vector<8x384xf32>
    %c0_61 = arith.constant 0 : index
    %c0_62 = arith.constant 0 : index
    %120 = vector.load %arg3[%c0_61, %c0_62] : memref<1x384xf32, #tpu.memory_space<vmem>>, vector<1x384xf32>
    %121 = vector.broadcast %120 : vector<1x384xf32> to vector<8x384xf32>
    %122 = arith.addf %119, %121 : vector<8x384xf32>
    %c0_63 = arith.constant 0 : index
    %c0_64 = arith.constant 0 : index
    %c0_65 = arith.constant 0 : index
    %123 = vector.load %arg4[%c0_63, %c0_64, %c0_65] : memref<2x128x384xf32, #tpu.memory_space<vmem>>, vector<1x128x384xf32>
    %124 = vector.shape_cast %123 : vector<1x128x384xf32> to vector<128x384xf32>
    %c0_66 = arith.constant 0 : index
    %c0_67 = arith.constant 0 : index
    %c0_68 = arith.constant 0 : index
    %125 = vector.load %arg5[%c0_66, %c0_67, %c0_68] : memref<2x1x384xf32, #tpu.memory_space<vmem>>, vector<1x1x384xf32>
    %126 = vector.shape_cast %125 : vector<1x1x384xf32> to vector<1x384xf32>
    %cst_69 = arith.constant dense<0.000000e+00> : vector<8x384xf32>
    %127 = tpu.matmul %49, %124, %cst_69 {dimension_numbers = #tpu.dot_dimension_numbers<[1], [0], [0], [1], [0, 0, 1, 1], [], []>} : vector<8x128xf32>, vector<128x384xf32>, vector<8x384xf32> -> vector<8x384xf32>
    %128 = vector.broadcast %126 : vector<1x384xf32> to vector<8x384xf32>
    %129 = arith.addf %127, %128 : vector<8x384xf32>
    %130 = vector.extract_strided_slice %122 {offsets = [0, 0], sizes = [8, 128], strides = [1, 1]} : vector<8x384xf32> to vector<8x128xf32>
    %131 = vector.extract_strided_slice %129 {offsets = [0, 0], sizes = [8, 128], strides = [1, 1]} : vector<8x384xf32> to vector<8x128xf32>
    %132 = arith.addf %130, %131 : vector<8x128xf32>
    %133 = arith.negf %132 : vector<8x128xf32>
    %134 = math.exp %133 : vector<8x128xf32>
    %cst_70 = arith.constant 1.000000e+00 : f32
    %135 = vector.broadcast %cst_70 : f32 to vector<8x128xf32>
    %136 = arith.addf %135, %134 : vector<8x128xf32>
    %137 = arith.divf %135, %136 : vector<8x128xf32>
    %138 = vector.extract_strided_slice %122 {offsets = [0, 128], sizes = [8, 128], strides = [1, 1]} : vector<8x384xf32> to vector<8x128xf32>
    %139 = vector.extract_strided_slice %129 {offsets = [0, 128], sizes = [8, 128], strides = [1, 1]} : vector<8x384xf32> to vector<8x128xf32>
    %140 = arith.addf %138, %139 : vector<8x128xf32>
    %141 = arith.negf %140 : vector<8x128xf32>
    %142 = math.exp %141 : vector<8x128xf32>
    %cst_71 = arith.constant 1.000000e+00 : f32
    %143 = vector.broadcast %cst_71 : f32 to vector<8x128xf32>
    %144 = arith.addf %143, %142 : vector<8x128xf32>
    %145 = arith.divf %143, %144 : vector<8x128xf32>
    %146 = vector.extract_strided_slice %122 {offsets = [0, 256], sizes = [8, 128], strides = [1, 1]} : vector<8x384xf32> to vector<8x128xf32>
    %147 = vector.extract_strided_slice %129 {offsets = [0, 256], sizes = [8, 128], strides = [1, 1]} : vector<8x384xf32> to vector<8x128xf32>
    %148 = arith.mulf %137, %147 : vector<8x128xf32>
    %149 = arith.addf %146, %148 : vector<8x128xf32>
    %150 = math.tanh %149 : vector<8x128xf32>
    %cst_72 = arith.constant 1.000000e+00 : f32
    %151 = vector.broadcast %cst_72 : f32 to vector<8x128xf32>
    %152 = arith.subf %151, %145 : vector<8x128xf32>
    %153 = arith.mulf %152, %150 : vector<8x128xf32>
    %154 = arith.mulf %145, %49 : vector<8x128xf32>
    %155 = arith.addf %153, %154 : vector<8x128xf32>
    %c0_73 = arith.constant 0 : index
    %c0_74 = arith.constant 0 : index
    %c0_75 = arith.constant 0 : index
    %156 = vector.load %arg6[%c0_73, %c0_74, %c0_75] : memref<1x128x384xf32, #tpu.memory_space<vmem>>, vector<1x128x384xf32>
    %157 = vector.shape_cast %156 : vector<1x128x384xf32> to vector<128x384xf32>
    %cst_76 = arith.constant dense<0.000000e+00> : vector<8x384xf32>
    %158 = tpu.matmul %155, %157, %cst_76 {dimension_numbers = #tpu.dot_dimension_numbers<[1], [0], [0], [1], [0, 0, 1, 1], [], []>} : vector<8x128xf32>, vector<128x384xf32>, vector<8x384xf32> -> vector<8x384xf32>
    %c0_77 = arith.constant 0 : index
    %c0_78 = arith.constant 0 : index
    %c0_79 = arith.constant 0 : index
    %159 = vector.load %arg7[%c0_77, %c0_78, %c0_79] : memref<1x1x384xf32, #tpu.memory_space<vmem>>, vector<1x1x384xf32>
    %160 = vector.shape_cast %159 : vector<1x1x384xf32> to vector<1x384xf32>
    %161 = vector.broadcast %160 : vector<1x384xf32> to vector<8x384xf32>
    %162 = arith.addf %158, %161 : vector<8x384xf32>
    %c1_80 = arith.constant 1 : index
    %c0_81 = arith.constant 0 : index
    %c0_82 = arith.constant 0 : index
    %163 = vector.load %arg4[%c1_80, %c0_81, %c0_82] : memref<2x128x384xf32, #tpu.memory_space<vmem>>, vector<1x128x384xf32>
    %164 = vector.shape_cast %163 : vector<1x128x384xf32> to vector<128x384xf32>
    %c1_83 = arith.constant 1 : index
    %c0_84 = arith.constant 0 : index
    %c0_85 = arith.constant 0 : index
    %165 = vector.load %arg5[%c1_83, %c0_84, %c0_85] : memref<2x1x384xf32, #tpu.memory_space<vmem>>, vector<1x1x384xf32>
    %166 = vector.shape_cast %165 : vector<1x1x384xf32> to vector<1x384xf32>
    %cst_86 = arith.constant dense<0.000000e+00> : vector<8x384xf32>
    %167 = tpu.matmul %89, %164, %cst_86 {dimension_numbers = #tpu.dot_dimension_numbers<[1], [0], [0], [1], [0, 0, 1, 1], [], []>} : vector<8x128xf32>, vector<128x384xf32>, vector<8x384xf32> -> vector<8x384xf32>
    %168 = vector.broadcast %166 : vector<1x384xf32> to vector<8x384xf32>
    %169 = arith.addf %167, %168 : vector<8x384xf32>
    %170 = vector.extract_strided_slice %162 {offsets = [0, 0], sizes = [8, 128], strides = [1, 1]} : vector<8x384xf32> to vector<8x128xf32>
    %171 = vector.extract_strided_slice %169 {offsets = [0, 0], sizes = [8, 128], strides = [1, 1]} : vector<8x384xf32> to vector<8x128xf32>
    %172 = arith.addf %170, %171 : vector<8x128xf32>
    %173 = arith.negf %172 : vector<8x128xf32>
    %174 = math.exp %173 : vector<8x128xf32>
    %cst_87 = arith.constant 1.000000e+00 : f32
    %175 = vector.broadcast %cst_87 : f32 to vector<8x128xf32>
    %176 = arith.addf %175, %174 : vector<8x128xf32>
    %177 = arith.divf %175, %176 : vector<8x128xf32>
    %178 = vector.extract_strided_slice %162 {offsets = [0, 128], sizes = [8, 128], strides = [1, 1]} : vector<8x384xf32> to vector<8x128xf32>
    %179 = vector.extract_strided_slice %169 {offsets = [0, 128], sizes = [8, 128], strides = [1, 1]} : vector<8x384xf32> to vector<8x128xf32>
    %180 = arith.addf %178, %179 : vector<8x128xf32>
    %181 = arith.negf %180 : vector<8x128xf32>
    %182 = math.exp %181 : vector<8x128xf32>
    %cst_88 = arith.constant 1.000000e+00 : f32
    %183 = vector.broadcast %cst_88 : f32 to vector<8x128xf32>
    %184 = arith.addf %183, %182 : vector<8x128xf32>
    %185 = arith.divf %183, %184 : vector<8x128xf32>
    %186 = vector.extract_strided_slice %162 {offsets = [0, 256], sizes = [8, 128], strides = [1, 1]} : vector<8x384xf32> to vector<8x128xf32>
    %187 = vector.extract_strided_slice %169 {offsets = [0, 256], sizes = [8, 128], strides = [1, 1]} : vector<8x384xf32> to vector<8x128xf32>
    %188 = arith.mulf %177, %187 : vector<8x128xf32>
    %189 = arith.addf %186, %188 : vector<8x128xf32>
    %190 = math.tanh %189 : vector<8x128xf32>
    %cst_89 = arith.constant 1.000000e+00 : f32
    %191 = vector.broadcast %cst_89 : f32 to vector<8x128xf32>
    %192 = arith.subf %191, %185 : vector<8x128xf32>
    %193 = arith.mulf %192, %190 : vector<8x128xf32>
    %194 = arith.mulf %185, %89 : vector<8x128xf32>
    %195 = arith.addf %193, %194 : vector<8x128xf32>
    %c0_90 = arith.constant 0 : index
    %c0_91 = arith.constant 0 : index
    %196 = vector.load %arg8[%c0_90, %c0_91] : memref<128x128xf32, #tpu.memory_space<vmem>>, vector<128x128xf32>
    %cst_92 = arith.constant dense<0.000000e+00> : vector<8x128xf32>
    %197 = tpu.matmul %195, %196, %cst_92 {dimension_numbers = #tpu.dot_dimension_numbers<[1], [0], [0], [1], [0, 0, 1, 1], [], []>} : vector<8x128xf32>, vector<128x128xf32>, vector<8x128xf32> -> vector<8x128xf32>
    %c0_93 = arith.constant 0 : index
    %c0_94 = arith.constant 0 : index
    %198 = vector.load %arg9[%c0_93, %c0_94] : memref<1x128xf32, #tpu.memory_space<vmem>>, vector<1x128xf32>
    %199 = vector.broadcast %198 : vector<1x128xf32> to vector<8x128xf32>
    %200 = arith.addf %197, %199 : vector<8x128xf32>
    %c1_95 = arith.constant 1 : index
    %c0_96 = arith.constant 0 : index
    %c0_97 = arith.constant 0 : index
    %201 = vector.load %arg11[%c1_95, %c0_96, %c0_97] : memref<5x8x128xf32, #tpu.memory_space<vmem>>, vector<1x8x128xf32>
    %202 = vector.shape_cast %201 : vector<1x8x128xf32> to vector<8x128xf32>
    %203 = vector.shape_cast %200 : vector<8x128xf32> to vector<1x8x128xf32>
    tpu.vector_store %arg11[%c1_95, %c0_96, %c0_97], %203 {strides = array<i32>} : memref<5x8x128xf32, #tpu.memory_space<vmem>>, vector<1x8x128xf32>,
    %cst_98 = arith.constant dense<0xFF800000> : vector<8xf32>
    %204 = vector.multi_reduction <maximumf>, %200, %cst_98 [1] : vector<8x128xf32> to vector<8xf32>
    %205 = vector.shape_cast %204 : vector<8xf32> to vector<8x1xf32>
    %206 = tpu.iota {dimensions = array<i32: 1>} : vector<8x128xi32>
    %207 = vector.broadcast %205 : vector<8x1xf32> to vector<8x128xf32>
    %208 = arith.cmpf oge, %200, %207 : vector<8x128xf32>
    %c1073741824_i32_99 = arith.constant 1073741824 : i32
    %209 = vector.broadcast %c1073741824_i32_99 : i32 to vector<8x128xi32>
    %210 = arith.select %208, %206, %209 : vector<8x128xi1>, vector<8x128xi32>
    %cst_100 = arith.constant dense<2147483647> : vector<8xi32>
    %211 = vector.multi_reduction <minsi>, %210, %cst_100 [1] : vector<8x128xi32> to vector<8xi32>
    %212 = vector.shape_cast %211 : vector<8xi32> to vector<8x1xi32>
    %213 = vector.broadcast %212 : vector<8x1xi32> to vector<8x128xi32>
    %214 = arith.cmpi eq, %206, %213 : vector<8x128xi32>
    %215 = arith.extui %214 : vector<8x128xi1> to vector<8x128xi32>
    %216 = arith.sitofp %215 : vector<8x128xi32> to vector<8x128xf32>
    %c2 = arith.constant 2 : index
    %c0_101 = arith.constant 0 : index
    %c0_102 = arith.constant 0 : index
    %217 = vector.load %arg0[%c2, %c0_101, %c0_102] : memref<5x8x128xf32, #tpu.memory_space<vmem>>, vector<1x8x128xf32>
    %218 = vector.shape_cast %217 : vector<1x8x128xf32> to vector<8x128xf32>
    %c2_103 = arith.constant 2 : index
    %c0_104 = arith.constant 0 : index
    %c0_105 = arith.constant 0 : index
    %219 = vector.load %arg1[%c2_103, %c0_104, %c0_105] : memref<5x8x1xf32, #tpu.memory_space<vmem>>, vector<1x8x1xf32>
    %220 = vector.shape_cast %219 : vector<1x8x1xf32> to vector<8x1xf32>
    %221 = vector.broadcast %220 : vector<8x1xf32> to vector<8x128xf32>
    %222 = arith.mulf %221, %216 : vector<8x128xf32>
    %223 = arith.addf %218, %222 : vector<8x128xf32>
    %c0_106 = arith.constant 0 : index
    %c0_107 = arith.constant 0 : index
    %224 = vector.load %arg2[%c0_106, %c0_107] : memref<128x384xf32, #tpu.memory_space<vmem>>, vector<128x384xf32>
    %cst_108 = arith.constant dense<0.000000e+00> : vector<8x384xf32>
    %225 = tpu.matmul %223, %224, %cst_108 {dimension_numbers = #tpu.dot_dimension_numbers<[1], [0], [0], [1], [0, 0, 1, 1], [], []>} : vector<8x128xf32>, vector<128x384xf32>, vector<8x384xf32> -> vector<8x384xf32>
    %c0_109 = arith.constant 0 : index
    %c0_110 = arith.constant 0 : index
    %226 = vector.load %arg3[%c0_109, %c0_110] : memref<1x384xf32, #tpu.memory_space<vmem>>, vector<1x384xf32>
    %227 = vector.broadcast %226 : vector<1x384xf32> to vector<8x384xf32>
    %228 = arith.addf %225, %227 : vector<8x384xf32>
    %c0_111 = arith.constant 0 : index
    %c0_112 = arith.constant 0 : index
    %c0_113 = arith.constant 0 : index
    %229 = vector.load %arg4[%c0_111, %c0_112, %c0_113] : memref<2x128x384xf32, #tpu.memory_space<vmem>>, vector<1x128x384xf32>
    %230 = vector.shape_cast %229 : vector<1x128x384xf32> to vector<128x384xf32>
    %c0_114 = arith.constant 0 : index
    %c0_115 = arith.constant 0 : index
    %c0_116 = arith.constant 0 : index
    %231 = vector.load %arg5[%c0_114, %c0_115, %c0_116] : memref<2x1x384xf32, #tpu.memory_space<vmem>>, vector<1x1x384xf32>
    %232 = vector.shape_cast %231 : vector<1x1x384xf32> to vector<1x384xf32>
    %cst_117 = arith.constant dense<0.000000e+00> : vector<8x384xf32>
    %233 = tpu.matmul %155, %230, %cst_117 {dimension_numbers = #tpu.dot_dimension_numbers<[1], [0], [0], [1], [0, 0, 1, 1], [], []>} : vector<8x128xf32>, vector<128x384xf32>, vector<8x384xf32> -> vector<8x384xf32>
    %234 = vector.broadcast %232 : vector<1x384xf32> to vector<8x384xf32>
    %235 = arith.addf %233, %234 : vector<8x384xf32>
    %236 = vector.extract_strided_slice %228 {offsets = [0, 0], sizes = [8, 128], strides = [1, 1]} : vector<8x384xf32> to vector<8x128xf32>
    %237 = vector.extract_strided_slice %235 {offsets = [0, 0], sizes = [8, 128], strides = [1, 1]} : vector<8x384xf32> to vector<8x128xf32>
    %238 = arith.addf %236, %237 : vector<8x128xf32>
    %239 = arith.negf %238 : vector<8x128xf32>
    %240 = math.exp %239 : vector<8x128xf32>
    %cst_118 = arith.constant 1.000000e+00 : f32
    %241 = vector.broadcast %cst_118 : f32 to vector<8x128xf32>
    %242 = arith.addf %241, %240 : vector<8x128xf32>
    %243 = arith.divf %241, %242 : vector<8x128xf32>
    %244 = vector.extract_strided_slice %228 {offsets = [0, 128], sizes = [8, 128], strides = [1, 1]} : vector<8x384xf32> to vector<8x128xf32>
    %245 = vector.extract_strided_slice %235 {offsets = [0, 128], sizes = [8, 128], strides = [1, 1]} : vector<8x384xf32> to vector<8x128xf32>
    %246 = arith.addf %244, %245 : vector<8x128xf32>
    %247 = arith.negf %246 : vector<8x128xf32>
    %248 = math.exp %247 : vector<8x128xf32>
    %cst_119 = arith.constant 1.000000e+00 : f32
    %249 = vector.broadcast %cst_119 : f32 to vector<8x128xf32>
    %250 = arith.addf %249, %248 : vector<8x128xf32>
    %251 = arith.divf %249, %250 : vector<8x128xf32>
    %252 = vector.extract_strided_slice %228 {offsets = [0, 256], sizes = [8, 128], strides = [1, 1]} : vector<8x384xf32> to vector<8x128xf32>
    %253 = vector.extract_strided_slice %235 {offsets = [0, 256], sizes = [8, 128], strides = [1, 1]} : vector<8x384xf32> to vector<8x128xf32>
    %254 = arith.mulf %243, %253 : vector<8x128xf32>
    %255 = arith.addf %252, %254 : vector<8x128xf32>
    %256 = math.tanh %255 : vector<8x128xf32>
    %cst_120 = arith.constant 1.000000e+00 : f32
    %257 = vector.broadcast %cst_120 : f32 to vector<8x128xf32>
    %258 = arith.subf %257, %251 : vector<8x128xf32>
    %259 = arith.mulf %258, %256 : vector<8x128xf32>
    %260 = arith.mulf %251, %155 : vector<8x128xf32>
    %261 = arith.addf %259, %260 : vector<8x128xf32>
    %c0_121 = arith.constant 0 : index
    %c0_122 = arith.constant 0 : index
    %c0_123 = arith.constant 0 : index
    %262 = vector.load %arg6[%c0_121, %c0_122, %c0_123] : memref<1x128x384xf32, #tpu.memory_space<vmem>>, vector<1x128x384xf32>
    %263 = vector.shape_cast %262 : vector<1x128x384xf32> to vector<128x384xf32>
    %cst_124 = arith.constant dense<0.000000e+00> : vector<8x384xf32>
    %264 = tpu.matmul %261, %263, %cst_124 {dimension_numbers = #tpu.dot_dimension_numbers<[1], [0], [0], [1], [0, 0, 1, 1], [], []>} : vector<8x128xf32>, vector<128x384xf32>, vector<8x384xf32> -> vector<8x384xf32>
    %c0_125 = arith.constant 0 : index
    %c0_126 = arith.constant 0 : index
    %c0_127 = arith.constant 0 : index
    %265 = vector.load %arg7[%c0_125, %c0_126, %c0_127] : memref<1x1x384xf32, #tpu.memory_space<vmem>>, vector<1x1x384xf32>
    %266 = vector.shape_cast %265 : vector<1x1x384xf32> to vector<1x384xf32>
    %267 = vector.broadcast %266 : vector<1x384xf32> to vector<8x384xf32>
    %268 = arith.addf %264, %267 : vector<8x384xf32>
    %c1_128 = arith.constant 1 : index
    %c0_129 = arith.constant 0 : index
    %c0_130 = arith.constant 0 : index
    %269 = vector.load %arg4[%c1_128, %c0_129, %c0_130] : memref<2x128x384xf32, #tpu.memory_space<vmem>>, vector<1x128x384xf32>
    %270 = vector.shape_cast %269 : vector<1x128x384xf32> to vector<128x384xf32>
    %c1_131 = arith.constant 1 : index
    %c0_132 = arith.constant 0 : index
    %c0_133 = arith.constant 0 : index
    %271 = vector.load %arg5[%c1_131, %c0_132, %c0_133] : memref<2x1x384xf32, #tpu.memory_space<vmem>>, vector<1x1x384xf32>
    %272 = vector.shape_cast %271 : vector<1x1x384xf32> to vector<1x384xf32>
    %cst_134 = arith.constant dense<0.000000e+00> : vector<8x384xf32>
    %273 = tpu.matmul %195, %270, %cst_134 {dimension_numbers = #tpu.dot_dimension_numbers<[1], [0], [0], [1], [0, 0, 1, 1], [], []>} : vector<8x128xf32>, vector<128x384xf32>, vector<8x384xf32> -> vector<8x384xf32>
    %274 = vector.broadcast %272 : vector<1x384xf32> to vector<8x384xf32>
    %275 = arith.addf %273, %274 : vector<8x384xf32>
    %276 = vector.extract_strided_slice %268 {offsets = [0, 0], sizes = [8, 128], strides = [1, 1]} : vector<8x384xf32> to vector<8x128xf32>
    %277 = vector.extract_strided_slice %275 {offsets = [0, 0], sizes = [8, 128], strides = [1, 1]} : vector<8x384xf32> to vector<8x128xf32>
    %278 = arith.addf %276, %277 : vector<8x128xf32>
    %279 = arith.negf %278 : vector<8x128xf32>
    %280 = math.exp %279 : vector<8x128xf32>
    %cst_135 = arith.constant 1.000000e+00 : f32
    %281 = vector.broadcast %cst_135 : f32 to vector<8x128xf32>
    %282 = arith.addf %281, %280 : vector<8x128xf32>
    %283 = arith.divf %281, %282 : vector<8x128xf32>
    %284 = vector.extract_strided_slice %268 {offsets = [0, 128], sizes = [8, 128], strides = [1, 1]} : vector<8x384xf32> to vector<8x128xf32>
    %285 = vector.extract_strided_slice %275 {offsets = [0, 128], sizes = [8, 128], strides = [1, 1]} : vector<8x384xf32> to vector<8x128xf32>
    %286 = arith.addf %284, %285 : vector<8x128xf32>
    %287 = arith.negf %286 : vector<8x128xf32>
    %288 = math.exp %287 : vector<8x128xf32>
    %cst_136 = arith.constant 1.000000e+00 : f32
    %289 = vector.broadcast %cst_136 : f32 to vector<8x128xf32>
    %290 = arith.addf %289, %288 : vector<8x128xf32>
    %291 = arith.divf %289, %290 : vector<8x128xf32>
    %292 = vector.extract_strided_slice %268 {offsets = [0, 256], sizes = [8, 128], strides = [1, 1]} : vector<8x384xf32> to vector<8x128xf32>
    %293 = vector.extract_strided_slice %275 {offsets = [0, 256], sizes = [8, 128], strides = [1, 1]} : vector<8x384xf32> to vector<8x128xf32>
    %294 = arith.mulf %283, %293 : vector<8x128xf32>
    %295 = arith.addf %292, %294 : vector<8x128xf32>
    %296 = math.tanh %295 : vector<8x128xf32>
    %cst_137 = arith.constant 1.000000e+00 : f32
    %297 = vector.broadcast %cst_137 : f32 to vector<8x128xf32>
    %298 = arith.subf %297, %291 : vector<8x128xf32>
    %299 = arith.mulf %298, %296 : vector<8x128xf32>
    %300 = arith.mulf %291, %195 : vector<8x128xf32>
    %301 = arith.addf %299, %300 : vector<8x128xf32>
    %c0_138 = arith.constant 0 : index
    %c0_139 = arith.constant 0 : index
    %302 = vector.load %arg8[%c0_138, %c0_139] : memref<128x128xf32, #tpu.memory_space<vmem>>, vector<128x128xf32>
    %cst_140 = arith.constant dense<0.000000e+00> : vector<8x128xf32>
    %303 = tpu.matmul %301, %302, %cst_140 {dimension_numbers = #tpu.dot_dimension_numbers<[1], [0], [0], [1], [0, 0, 1, 1], [], []>} : vector<8x128xf32>, vector<128x128xf32>, vector<8x128xf32> -> vector<8x128xf32>
    %c0_141 = arith.constant 0 : index
    %c0_142 = arith.constant 0 : index
    %304 = vector.load %arg9[%c0_141, %c0_142] : memref<1x128xf32, #tpu.memory_space<vmem>>, vector<1x128xf32>
    %305 = vector.broadcast %304 : vector<1x128xf32> to vector<8x128xf32>
    %306 = arith.addf %303, %305 : vector<8x128xf32>
    %c2_143 = arith.constant 2 : index
    %c0_144 = arith.constant 0 : index
    %c0_145 = arith.constant 0 : index
    %307 = vector.load %arg11[%c2_143, %c0_144, %c0_145] : memref<5x8x128xf32, #tpu.memory_space<vmem>>, vector<1x8x128xf32>
    %308 = vector.shape_cast %307 : vector<1x8x128xf32> to vector<8x128xf32>
    %309 = vector.shape_cast %306 : vector<8x128xf32> to vector<1x8x128xf32>
    tpu.vector_store %arg11[%c2_143, %c0_144, %c0_145], %309 {strides = array<i32>} : memref<5x8x128xf32, #tpu.memory_space<vmem>>, vector<1x8x128xf32>,
    %cst_146 = arith.constant dense<0xFF800000> : vector<8xf32>
    %310 = vector.multi_reduction <maximumf>, %306, %cst_146 [1] : vector<8x128xf32> to vector<8xf32>
    %311 = vector.shape_cast %310 : vector<8xf32> to vector<8x1xf32>
    %312 = tpu.iota {dimensions = array<i32: 1>} : vector<8x128xi32>
    %313 = vector.broadcast %311 : vector<8x1xf32> to vector<8x128xf32>
    %314 = arith.cmpf oge, %306, %313 : vector<8x128xf32>
    %c1073741824_i32_147 = arith.constant 1073741824 : i32
    %315 = vector.broadcast %c1073741824_i32_147 : i32 to vector<8x128xi32>
    %316 = arith.select %314, %312, %315 : vector<8x128xi1>, vector<8x128xi32>
    %cst_148 = arith.constant dense<2147483647> : vector<8xi32>
    %317 = vector.multi_reduction <minsi>, %316, %cst_148 [1] : vector<8x128xi32> to vector<8xi32>
    %318 = vector.shape_cast %317 : vector<8xi32> to vector<8x1xi32>
    %319 = vector.broadcast %318 : vector<8x1xi32> to vector<8x128xi32>
    %320 = arith.cmpi eq, %312, %319 : vector<8x128xi32>
    %321 = arith.extui %320 : vector<8x128xi1> to vector<8x128xi32>
    %322 = arith.sitofp %321 : vector<8x128xi32> to vector<8x128xf32>
    %c3 = arith.constant 3 : index
    %c0_149 = arith.constant 0 : index
    %c0_150 = arith.constant 0 : index
    %323 = vector.load %arg0[%c3, %c0_149, %c0_150] : memref<5x8x128xf32, #tpu.memory_space<vmem>>, vector<1x8x128xf32>
    %324 = vector.shape_cast %323 : vector<1x8x128xf32> to vector<8x128xf32>
    %c3_151 = arith.constant 3 : index
    %c0_152 = arith.constant 0 : index
    %c0_153 = arith.constant 0 : index
    %325 = vector.load %arg1[%c3_151, %c0_152, %c0_153] : memref<5x8x1xf32, #tpu.memory_space<vmem>>, vector<1x8x1xf32>
    %326 = vector.shape_cast %325 : vector<1x8x1xf32> to vector<8x1xf32>
    %327 = vector.broadcast %326 : vector<8x1xf32> to vector<8x128xf32>
    %328 = arith.mulf %327, %322 : vector<8x128xf32>
    %329 = arith.addf %324, %328 : vector<8x128xf32>
    %c0_154 = arith.constant 0 : index
    %c0_155 = arith.constant 0 : index
    %330 = vector.load %arg2[%c0_154, %c0_155] : memref<128x384xf32, #tpu.memory_space<vmem>>, vector<128x384xf32>
    %cst_156 = arith.constant dense<0.000000e+00> : vector<8x384xf32>
    %331 = tpu.matmul %329, %330, %cst_156 {dimension_numbers = #tpu.dot_dimension_numbers<[1], [0], [0], [1], [0, 0, 1, 1], [], []>} : vector<8x128xf32>, vector<128x384xf32>, vector<8x384xf32> -> vector<8x384xf32>
    %c0_157 = arith.constant 0 : index
    %c0_158 = arith.constant 0 : index
    %332 = vector.load %arg3[%c0_157, %c0_158] : memref<1x384xf32, #tpu.memory_space<vmem>>, vector<1x384xf32>
    %333 = vector.broadcast %332 : vector<1x384xf32> to vector<8x384xf32>
    %334 = arith.addf %331, %333 : vector<8x384xf32>
    %c0_159 = arith.constant 0 : index
    %c0_160 = arith.constant 0 : index
    %c0_161 = arith.constant 0 : index
    %335 = vector.load %arg4[%c0_159, %c0_160, %c0_161] : memref<2x128x384xf32, #tpu.memory_space<vmem>>, vector<1x128x384xf32>
    %336 = vector.shape_cast %335 : vector<1x128x384xf32> to vector<128x384xf32>
    %c0_162 = arith.constant 0 : index
    %c0_163 = arith.constant 0 : index
    %c0_164 = arith.constant 0 : index
    %337 = vector.load %arg5[%c0_162, %c0_163, %c0_164] : memref<2x1x384xf32, #tpu.memory_space<vmem>>, vector<1x1x384xf32>
    %338 = vector.shape_cast %337 : vector<1x1x384xf32> to vector<1x384xf32>
    %cst_165 = arith.constant dense<0.000000e+00> : vector<8x384xf32>
    %339 = tpu.matmul %261, %336, %cst_165 {dimension_numbers = #tpu.dot_dimension_numbers<[1], [0], [0], [1], [0, 0, 1, 1], [], []>} : vector<8x128xf32>, vector<128x384xf32>, vector<8x384xf32> -> vector<8x384xf32>
    %340 = vector.broadcast %338 : vector<1x384xf32> to vector<8x384xf32>
    %341 = arith.addf %339, %340 : vector<8x384xf32>
    %342 = vector.extract_strided_slice %334 {offsets = [0, 0], sizes = [8, 128], strides = [1, 1]} : vector<8x384xf32> to vector<8x128xf32>
    %343 = vector.extract_strided_slice %341 {offsets = [0, 0], sizes = [8, 128], strides = [1, 1]} : vector<8x384xf32> to vector<8x128xf32>
    %344 = arith.addf %342, %343 : vector<8x128xf32>
    %345 = arith.negf %344 : vector<8x128xf32>
    %346 = math.exp %345 : vector<8x128xf32>
    %cst_166 = arith.constant 1.000000e+00 : f32
    %347 = vector.broadcast %cst_166 : f32 to vector<8x128xf32>
    %348 = arith.addf %347, %346 : vector<8x128xf32>
    %349 = arith.divf %347, %348 : vector<8x128xf32>
    %350 = vector.extract_strided_slice %334 {offsets = [0, 128], sizes = [8, 128], strides = [1, 1]} : vector<8x384xf32> to vector<8x128xf32>
    %351 = vector.extract_strided_slice %341 {offsets = [0, 128], sizes = [8, 128], strides = [1, 1]} : vector<8x384xf32> to vector<8x128xf32>
    %352 = arith.addf %350, %351 : vector<8x128xf32>
    %353 = arith.negf %352 : vector<8x128xf32>
    %354 = math.exp %353 : vector<8x128xf32>
    %cst_167 = arith.constant 1.000000e+00 : f32
    %355 = vector.broadcast %cst_167 : f32 to vector<8x128xf32>
    %356 = arith.addf %355, %354 : vector<8x128xf32>
    %357 = arith.divf %355, %356 : vector<8x128xf32>
    %358 = vector.extract_strided_slice %334 {offsets = [0, 256], sizes = [8, 128], strides = [1, 1]} : vector<8x384xf32> to vector<8x128xf32>
    %359 = vector.extract_strided_slice %341 {offsets = [0, 256], sizes = [8, 128], strides = [1, 1]} : vector<8x384xf32> to vector<8x128xf32>
    %360 = arith.mulf %349, %359 : vector<8x128xf32>
    %361 = arith.addf %358, %360 : vector<8x128xf32>
    %362 = math.tanh %361 : vector<8x128xf32>
    %cst_168 = arith.constant 1.000000e+00 : f32
    %363 = vector.broadcast %cst_168 : f32 to vector<8x128xf32>
    %364 = arith.subf %363, %357 : vector<8x128xf32>
    %365 = arith.mulf %364, %362 : vector<8x128xf32>
    %366 = arith.mulf %357, %261 : vector<8x128xf32>
    %367 = arith.addf %365, %366 : vector<8x128xf32>
    %c0_169 = arith.constant 0 : index
    %c0_170 = arith.constant 0 : index
    %c0_171 = arith.constant 0 : index
    %368 = vector.load %arg6[%c0_169, %c0_170, %c0_171] : memref<1x128x384xf32, #tpu.memory_space<vmem>>, vector<1x128x384xf32>
    %369 = vector.shape_cast %368 : vector<1x128x384xf32> to vector<128x384xf32>
    %cst_172 = arith.constant dense<0.000000e+00> : vector<8x384xf32>
    %370 = tpu.matmul %367, %369, %cst_172 {dimension_numbers = #tpu.dot_dimension_numbers<[1], [0], [0], [1], [0, 0, 1, 1], [], []>} : vector<8x128xf32>, vector<128x384xf32>, vector<8x384xf32> -> vector<8x384xf32>
    %c0_173 = arith.constant 0 : index
    %c0_174 = arith.constant 0 : index
    %c0_175 = arith.constant 0 : index
    %371 = vector.load %arg7[%c0_173, %c0_174, %c0_175] : memref<1x1x384xf32, #tpu.memory_space<vmem>>, vector<1x1x384xf32>
    %372 = vector.shape_cast %371 : vector<1x1x384xf32> to vector<1x384xf32>
    %373 = vector.broadcast %372 : vector<1x384xf32> to vector<8x384xf32>
    %374 = arith.addf %370, %373 : vector<8x384xf32>
    %c1_176 = arith.constant 1 : index
    %c0_177 = arith.constant 0 : index
    %c0_178 = arith.constant 0 : index
    %375 = vector.load %arg4[%c1_176, %c0_177, %c0_178] : memref<2x128x384xf32, #tpu.memory_space<vmem>>, vector<1x128x384xf32>
    %376 = vector.shape_cast %375 : vector<1x128x384xf32> to vector<128x384xf32>
    %c1_179 = arith.constant 1 : index
    %c0_180 = arith.constant 0 : index
    %c0_181 = arith.constant 0 : index
    %377 = vector.load %arg5[%c1_179, %c0_180, %c0_181] : memref<2x1x384xf32, #tpu.memory_space<vmem>>, vector<1x1x384xf32>
    %378 = vector.shape_cast %377 : vector<1x1x384xf32> to vector<1x384xf32>
    %cst_182 = arith.constant dense<0.000000e+00> : vector<8x384xf32>
    %379 = tpu.matmul %301, %376, %cst_182 {dimension_numbers = #tpu.dot_dimension_numbers<[1], [0], [0], [1], [0, 0, 1, 1], [], []>} : vector<8x128xf32>, vector<128x384xf32>, vector<8x384xf32> -> vector<8x384xf32>
    %380 = vector.broadcast %378 : vector<1x384xf32> to vector<8x384xf32>
    %381 = arith.addf %379, %380 : vector<8x384xf32>
    %382 = vector.extract_strided_slice %374 {offsets = [0, 0], sizes = [8, 128], strides = [1, 1]} : vector<8x384xf32> to vector<8x128xf32>
    %383 = vector.extract_strided_slice %381 {offsets = [0, 0], sizes = [8, 128], strides = [1, 1]} : vector<8x384xf32> to vector<8x128xf32>
    %384 = arith.addf %382, %383 : vector<8x128xf32>
    %385 = arith.negf %384 : vector<8x128xf32>
    %386 = math.exp %385 : vector<8x128xf32>
    %cst_183 = arith.constant 1.000000e+00 : f32
    %387 = vector.broadcast %cst_183 : f32 to vector<8x128xf32>
    %388 = arith.addf %387, %386 : vector<8x128xf32>
    %389 = arith.divf %387, %388 : vector<8x128xf32>
    %390 = vector.extract_strided_slice %374 {offsets = [0, 128], sizes = [8, 128], strides = [1, 1]} : vector<8x384xf32> to vector<8x128xf32>
    %391 = vector.extract_strided_slice %381 {offsets = [0, 128], sizes = [8, 128], strides = [1, 1]} : vector<8x384xf32> to vector<8x128xf32>
    %392 = arith.addf %390, %391 : vector<8x128xf32>
    %393 = arith.negf %392 : vector<8x128xf32>
    %394 = math.exp %393 : vector<8x128xf32>
    %cst_184 = arith.constant 1.000000e+00 : f32
    %395 = vector.broadcast %cst_184 : f32 to vector<8x128xf32>
    %396 = arith.addf %395, %394 : vector<8x128xf32>
    %397 = arith.divf %395, %396 : vector<8x128xf32>
    %398 = vector.extract_strided_slice %374 {offsets = [0, 256], sizes = [8, 128], strides = [1, 1]} : vector<8x384xf32> to vector<8x128xf32>
    %399 = vector.extract_strided_slice %381 {offsets = [0, 256], sizes = [8, 128], strides = [1, 1]} : vector<8x384xf32> to vector<8x128xf32>
    %400 = arith.mulf %389, %399 : vector<8x128xf32>
    %401 = arith.addf %398, %400 : vector<8x128xf32>
    %402 = math.tanh %401 : vector<8x128xf32>
    %cst_185 = arith.constant 1.000000e+00 : f32
    %403 = vector.broadcast %cst_185 : f32 to vector<8x128xf32>
    %404 = arith.subf %403, %397 : vector<8x128xf32>
    %405 = arith.mulf %404, %402 : vector<8x128xf32>
    %406 = arith.mulf %397, %301 : vector<8x128xf32>
    %407 = arith.addf %405, %406 : vector<8x128xf32>
    %c0_186 = arith.constant 0 : index
    %c0_187 = arith.constant 0 : index
    %408 = vector.load %arg8[%c0_186, %c0_187] : memref<128x128xf32, #tpu.memory_space<vmem>>, vector<128x128xf32>
    %cst_188 = arith.constant dense<0.000000e+00> : vector<8x128xf32>
    %409 = tpu.matmul %407, %408, %cst_188 {dimension_numbers = #tpu.dot_dimension_numbers<[1], [0], [0], [1], [0, 0, 1, 1], [], []>} : vector<8x128xf32>, vector<128x128xf32>, vector<8x128xf32> -> vector<8x128xf32>
    %c0_189 = arith.constant 0 : index
    %c0_190 = arith.constant 0 : index
    %410 = vector.load %arg9[%c0_189, %c0_190] : memref<1x128xf32, #tpu.memory_space<vmem>>, vector<1x128xf32>
    %411 = vector.broadcast %410 : vector<1x128xf32> to vector<8x128xf32>
    %412 = arith.addf %409, %411 : vector<8x128xf32>
    %c3_191 = arith.constant 3 : index
    %c0_192 = arith.constant 0 : index
    %c0_193 = arith.constant 0 : index
    %413 = vector.load %arg11[%c3_191, %c0_192, %c0_193] : memref<5x8x128xf32, #tpu.memory_space<vmem>>, vector<1x8x128xf32>
    %414 = vector.shape_cast %413 : vector<1x8x128xf32> to vector<8x128xf32>
    %415 = vector.shape_cast %412 : vector<8x128xf32> to vector<1x8x128xf32>
    tpu.vector_store %arg11[%c3_191, %c0_192, %c0_193], %415 {strides = array<i32>} : memref<5x8x128xf32, #tpu.memory_space<vmem>>, vector<1x8x128xf32>,
    %cst_194 = arith.constant dense<0xFF800000> : vector<8xf32>
    %416 = vector.multi_reduction <maximumf>, %412, %cst_194 [1] : vector<8x128xf32> to vector<8xf32>
    %417 = vector.shape_cast %416 : vector<8xf32> to vector<8x1xf32>
    %418 = tpu.iota {dimensions = array<i32: 1>} : vector<8x128xi32>
    %419 = vector.broadcast %417 : vector<8x1xf32> to vector<8x128xf32>
    %420 = arith.cmpf oge, %412, %419 : vector<8x128xf32>
    %c1073741824_i32_195 = arith.constant 1073741824 : i32
    %421 = vector.broadcast %c1073741824_i32_195 : i32 to vector<8x128xi32>
    %422 = arith.select %420, %418, %421 : vector<8x128xi1>, vector<8x128xi32>
    %cst_196 = arith.constant dense<2147483647> : vector<8xi32>
    %423 = vector.multi_reduction <minsi>, %422, %cst_196 [1] : vector<8x128xi32> to vector<8xi32>
    %424 = vector.shape_cast %423 : vector<8xi32> to vector<8x1xi32>
    %425 = vector.broadcast %424 : vector<8x1xi32> to vector<8x128xi32>
    %426 = arith.cmpi eq, %418, %425 : vector<8x128xi32>
    %427 = arith.extui %426 : vector<8x128xi1> to vector<8x128xi32>
    %428 = arith.sitofp %427 : vector<8x128xi32> to vector<8x128xf32>
    %c4 = arith.constant 4 : index
    %c0_197 = arith.constant 0 : index
    %c0_198 = arith.constant 0 : index
    %429 = vector.load %arg0[%c4, %c0_197, %c0_198] : memref<5x8x128xf32, #tpu.memory_space<vmem>>, vector<1x8x128xf32>
    %430 = vector.shape_cast %429 : vector<1x8x128xf32> to vector<8x128xf32>
    %c4_199 = arith.constant 4 : index
    %c0_200 = arith.constant 0 : index
    %c0_201 = arith.constant 0 : index
    %431 = vector.load %arg1[%c4_199, %c0_200, %c0_201] : memref<5x8x1xf32, #tpu.memory_space<vmem>>, vector<1x8x1xf32>
    %432 = vector.shape_cast %431 : vector<1x8x1xf32> to vector<8x1xf32>
    %433 = vector.broadcast %432 : vector<8x1xf32> to vector<8x128xf32>
    %434 = arith.mulf %433, %428 : vector<8x128xf32>
    %435 = arith.addf %430, %434 : vector<8x128xf32>
    %c0_202 = arith.constant 0 : index
    %c0_203 = arith.constant 0 : index
    %436 = vector.load %arg2[%c0_202, %c0_203] : memref<128x384xf32, #tpu.memory_space<vmem>>, vector<128x384xf32>
    %cst_204 = arith.constant dense<0.000000e+00> : vector<8x384xf32>
    %437 = tpu.matmul %435, %436, %cst_204 {dimension_numbers = #tpu.dot_dimension_numbers<[1], [0], [0], [1], [0, 0, 1, 1], [], []>} : vector<8x128xf32>, vector<128x384xf32>, vector<8x384xf32> -> vector<8x384xf32>
    %c0_205 = arith.constant 0 : index
    %c0_206 = arith.constant 0 : index
    %438 = vector.load %arg3[%c0_205, %c0_206] : memref<1x384xf32, #tpu.memory_space<vmem>>, vector<1x384xf32>
    %439 = vector.broadcast %438 : vector<1x384xf32> to vector<8x384xf32>
    %440 = arith.addf %437, %439 : vector<8x384xf32>
    %c0_207 = arith.constant 0 : index
    %c0_208 = arith.constant 0 : index
    %c0_209 = arith.constant 0 : index
    %441 = vector.load %arg4[%c0_207, %c0_208, %c0_209] : memref<2x128x384xf32, #tpu.memory_space<vmem>>, vector<1x128x384xf32>
    %442 = vector.shape_cast %441 : vector<1x128x384xf32> to vector<128x384xf32>
    %c0_210 = arith.constant 0 : index
    %c0_211 = arith.constant 0 : index
    %c0_212 = arith.constant 0 : index
    %443 = vector.load %arg5[%c0_210, %c0_211, %c0_212] : memref<2x1x384xf32, #tpu.memory_space<vmem>>, vector<1x1x384xf32>
    %444 = vector.shape_cast %443 : vector<1x1x384xf32> to vector<1x384xf32>
    %cst_213 = arith.constant dense<0.000000e+00> : vector<8x384xf32>
    %445 = tpu.matmul %367, %442, %cst_213 {dimension_numbers = #tpu.dot_dimension_numbers<[1], [0], [0], [1], [0, 0, 1, 1], [], []>} : vector<8x128xf32>, vector<128x384xf32>, vector<8x384xf32> -> vector<8x384xf32>
    %446 = vector.broadcast %444 : vector<1x384xf32> to vector<8x384xf32>
    %447 = arith.addf %445, %446 : vector<8x384xf32>
    %448 = vector.extract_strided_slice %440 {offsets = [0, 0], sizes = [8, 128], strides = [1, 1]} : vector<8x384xf32> to vector<8x128xf32>
    %449 = vector.extract_strided_slice %447 {offsets = [0, 0], sizes = [8, 128], strides = [1, 1]} : vector<8x384xf32> to vector<8x128xf32>
    %450 = arith.addf %448, %449 : vector<8x128xf32>
    %451 = arith.negf %450 : vector<8x128xf32>
    %452 = math.exp %451 : vector<8x128xf32>
    %cst_214 = arith.constant 1.000000e+00 : f32
    %453 = vector.broadcast %cst_214 : f32 to vector<8x128xf32>
    %454 = arith.addf %453, %452 : vector<8x128xf32>
    %455 = arith.divf %453, %454 : vector<8x128xf32>
    %456 = vector.extract_strided_slice %440 {offsets = [0, 128], sizes = [8, 128], strides = [1, 1]} : vector<8x384xf32> to vector<8x128xf32>
    %457 = vector.extract_strided_slice %447 {offsets = [0, 128], sizes = [8, 128], strides = [1, 1]} : vector<8x384xf32> to vector<8x128xf32>
    %458 = arith.addf %456, %457 : vector<8x128xf32>
    %459 = arith.negf %458 : vector<8x128xf32>
    %460 = math.exp %459 : vector<8x128xf32>
    %cst_215 = arith.constant 1.000000e+00 : f32
    %461 = vector.broadcast %cst_215 : f32 to vector<8x128xf32>
    %462 = arith.addf %461, %460 : vector<8x128xf32>
    %463 = arith.divf %461, %462 : vector<8x128xf32>
    %464 = vector.extract_strided_slice %440 {offsets = [0, 256], sizes = [8, 128], strides = [1, 1]} : vector<8x384xf32> to vector<8x128xf32>
    %465 = vector.extract_strided_slice %447 {offsets = [0, 256], sizes = [8, 128], strides = [1, 1]} : vector<8x384xf32> to vector<8x128xf32>
    %466 = arith.mulf %455, %465 : vector<8x128xf32>
    %467 = arith.addf %464, %466 : vector<8x128xf32>
    %468 = math.tanh %467 : vector<8x128xf32>
    %cst_216 = arith.constant 1.000000e+00 : f32
    %469 = vector.broadcast %cst_216 : f32 to vector<8x128xf32>
    %470 = arith.subf %469, %463 : vector<8x128xf32>
    %471 = arith.mulf %470, %468 : vector<8x128xf32>
    %472 = arith.mulf %463, %367 : vector<8x128xf32>
    %473 = arith.addf %471, %472 : vector<8x128xf32>
    %c0_217 = arith.constant 0 : index
    %c0_218 = arith.constant 0 : index
    %c0_219 = arith.constant 0 : index
    %474 = vector.load %arg6[%c0_217, %c0_218, %c0_219] : memref<1x128x384xf32, #tpu.memory_space<vmem>>, vector<1x128x384xf32>
    %475 = vector.shape_cast %474 : vector<1x128x384xf32> to vector<128x384xf32>
    %cst_220 = arith.constant dense<0.000000e+00> : vector<8x384xf32>
    %476 = tpu.matmul %473, %475, %cst_220 {dimension_numbers = #tpu.dot_dimension_numbers<[1], [0], [0], [1], [0, 0, 1, 1], [], []>} : vector<8x128xf32>, vector<128x384xf32>, vector<8x384xf32> -> vector<8x384xf32>
    %c0_221 = arith.constant 0 : index
    %c0_222 = arith.constant 0 : index
    %c0_223 = arith.constant 0 : index
    %477 = vector.load %arg7[%c0_221, %c0_222, %c0_223] : memref<1x1x384xf32, #tpu.memory_space<vmem>>, vector<1x1x384xf32>
    %478 = vector.shape_cast %477 : vector<1x1x384xf32> to vector<1x384xf32>
    %479 = vector.broadcast %478 : vector<1x384xf32> to vector<8x384xf32>
    %480 = arith.addf %476, %479 : vector<8x384xf32>
    %c1_224 = arith.constant 1 : index
    %c0_225 = arith.constant 0 : index
    %c0_226 = arith.constant 0 : index
    %481 = vector.load %arg4[%c1_224, %c0_225, %c0_226] : memref<2x128x384xf32, #tpu.memory_space<vmem>>, vector<1x128x384xf32>
    %482 = vector.shape_cast %481 : vector<1x128x384xf32> to vector<128x384xf32>
    %c1_227 = arith.constant 1 : index
    %c0_228 = arith.constant 0 : index
    %c0_229 = arith.constant 0 : index
    %483 = vector.load %arg5[%c1_227, %c0_228, %c0_229] : memref<2x1x384xf32, #tpu.memory_space<vmem>>, vector<1x1x384xf32>
    %484 = vector.shape_cast %483 : vector<1x1x384xf32> to vector<1x384xf32>
    %cst_230 = arith.constant dense<0.000000e+00> : vector<8x384xf32>
    %485 = tpu.matmul %407, %482, %cst_230 {dimension_numbers = #tpu.dot_dimension_numbers<[1], [0], [0], [1], [0, 0, 1, 1], [], []>} : vector<8x128xf32>, vector<128x384xf32>, vector<8x384xf32> -> vector<8x384xf32>
    %486 = vector.broadcast %484 : vector<1x384xf32> to vector<8x384xf32>
    %487 = arith.addf %485, %486 : vector<8x384xf32>
    %488 = vector.extract_strided_slice %480 {offsets = [0, 0], sizes = [8, 128], strides = [1, 1]} : vector<8x384xf32> to vector<8x128xf32>
    %489 = vector.extract_strided_slice %487 {offsets = [0, 0], sizes = [8, 128], strides = [1, 1]} : vector<8x384xf32> to vector<8x128xf32>
    %490 = arith.addf %488, %489 : vector<8x128xf32>
    %491 = arith.negf %490 : vector<8x128xf32>
    %492 = math.exp %491 : vector<8x128xf32>
    %cst_231 = arith.constant 1.000000e+00 : f32
    %493 = vector.broadcast %cst_231 : f32 to vector<8x128xf32>
    %494 = arith.addf %493, %492 : vector<8x128xf32>
    %495 = arith.divf %493, %494 : vector<8x128xf32>
    %496 = vector.extract_strided_slice %480 {offsets = [0, 128], sizes = [8, 128], strides = [1, 1]} : vector<8x384xf32> to vector<8x128xf32>
    %497 = vector.extract_strided_slice %487 {offsets = [0, 128], sizes = [8, 128], strides = [1, 1]} : vector<8x384xf32> to vector<8x128xf32>
    %498 = arith.addf %496, %497 : vector<8x128xf32>
    %499 = arith.negf %498 : vector<8x128xf32>
    %500 = math.exp %499 : vector<8x128xf32>
    %cst_232 = arith.constant 1.000000e+00 : f32
    %501 = vector.broadcast %cst_232 : f32 to vector<8x128xf32>
    %502 = arith.addf %501, %500 : vector<8x128xf32>
    %503 = arith.divf %501, %502 : vector<8x128xf32>
    %504 = vector.extract_strided_slice %480 {offsets = [0, 256], sizes = [8, 128], strides = [1, 1]} : vector<8x384xf32> to vector<8x128xf32>
    %505 = vector.extract_strided_slice %487 {offsets = [0, 256], sizes = [8, 128], strides = [1, 1]} : vector<8x384xf32> to vector<8x128xf32>
    %506 = arith.mulf %495, %505 : vector<8x128xf32>
    %507 = arith.addf %504, %506 : vector<8x128xf32>
    %508 = math.tanh %507 : vector<8x128xf32>
    %cst_233 = arith.constant 1.000000e+00 : f32
    %509 = vector.broadcast %cst_233 : f32 to vector<8x128xf32>
    %510 = arith.subf %509, %503 : vector<8x128xf32>
    %511 = arith.mulf %510, %508 : vector<8x128xf32>
    %512 = arith.mulf %503, %407 : vector<8x128xf32>
    %513 = arith.addf %511, %512 : vector<8x128xf32>
    %c0_234 = arith.constant 0 : index
    %c0_235 = arith.constant 0 : index
    %514 = vector.load %arg8[%c0_234, %c0_235] : memref<128x128xf32, #tpu.memory_space<vmem>>, vector<128x128xf32>
    %cst_236 = arith.constant dense<0.000000e+00> : vector<8x128xf32>
    %515 = tpu.matmul %513, %514, %cst_236 {dimension_numbers = #tpu.dot_dimension_numbers<[1], [0], [0], [1], [0, 0, 1, 1], [], []>} : vector<8x128xf32>, vector<128x128xf32>, vector<8x128xf32> -> vector<8x128xf32>
    %c0_237 = arith.constant 0 : index
    %c0_238 = arith.constant 0 : index
    %516 = vector.load %arg9[%c0_237, %c0_238] : memref<1x128xf32, #tpu.memory_space<vmem>>, vector<1x128xf32>
    %517 = vector.broadcast %516 : vector<1x128xf32> to vector<8x128xf32>
    %518 = arith.addf %515, %517 : vector<8x128xf32>
    %c4_239 = arith.constant 4 : index
    %c0_240 = arith.constant 0 : index
    %c0_241 = arith.constant 0 : index
    %519 = vector.load %arg11[%c4_239, %c0_240, %c0_241] : memref<5x8x128xf32, #tpu.memory_space<vmem>>, vector<1x8x128xf32>
    %520 = vector.shape_cast %519 : vector<1x8x128xf32> to vector<8x128xf32>
    %521 = vector.shape_cast %518 : vector<8x128xf32> to vector<1x8x128xf32>
    tpu.vector_store %arg11[%c4_239, %c0_240, %c0_241], %521 {strides = array<i32>} : memref<5x8x128xf32, #tpu.memory_space<vmem>>, vector<1x8x128xf32>,
    return
  }
}

</mosaic_0001>

<llo_original>
// kernel: _forward_impl.2
$region0: #{_forward_impl.2}
  #allocation0 [shape = 'u32[]', space=smem, size = 0x4, offset = 0x4, fixed_abs, tag = 'smem constant byte address 0x4 - core index']
  #allocation1 [shape = 'u32[144,128]{1,0:T(1,128)}', space=vmem, size = 0x12000, scoped, tag = 'internal scratch']
  #allocation2 [shape = 'f32[64,384]{1,0:T(8,128)}', space=vmem, size = 0x18000, scoped, tag = 'scratch operand']
  %s0 = inlined_call_operand.vmem [shape: f32[64,128], index: 0, kind: input, shape index: {}]
  %s1 = inlined_call_operand.vmem [shape: f32[128,384], index: 1, kind: input, shape index: {}]
  %s2 = inlined_call_operand.vmem [shape: f32[1,384], index: 2, kind: input, shape index: {}]
  %s3 = inlined_call_operand.vmem [shape: f32[8,8,1], index: 3, kind: input, shape index: {}]
  %s4 = inlined_call_operand.vmem [shape: f32[1,128,384], index: 4, kind: input, shape index: {}]
  %s5 = inlined_call_operand.vmem [shape: f32[1,1,384], index: 5, kind: input, shape index: {}]
  %s6 = inlined_call_operand.vmem [shape: f32[1,8,128], index: 6, kind: output, shape index: {}]
  %s7 = sld [smem:[#allocation0]]
  $region34: #{_forward_impl.2} parent=0
    _
  %s9 = ssub.s32 1, %s7
  %s10 = scalar_select 0, %s9, %s7
  // Predicated region
  $region2: #{_forward_impl.2} parent=0 // pred_check
    _
  $region3: #{_forward_impl.2} parent=0 // pred_check_branch
    %12 = sbr.rel (0) target = $region5
  $region4: #{_forward_impl.2} parent=0 // pred_region
    _
  $region5: #{_forward_impl.2} parent=0 // pred_fallthru
    _
  // Predicated region
  $region6: #{_forward_impl.2} parent=0 // pred_check
    _
  $region7: #{_forward_impl.2} parent=0 // pred_check_branch
    %14 = sbr.rel (0) target = $region9
  $region8: #{_forward_impl.2} parent=0 // pred_region
    _
  $region9: #{_forward_impl.2} parent=0 // pred_fallthru
    _
  // Predicated region
  $region10: #{_forward_impl.2} parent=0 // pred_check
    _
  $region11: #{_forward_impl.2} parent=0 // pred_check_branch
    %16 = sbr.rel (0) target = $region13
  $region12: #{_forward_impl.2} parent=0 // pred_region
    _
  $region13: #{_forward_impl.2} parent=0 // pred_fallthru
    _
  // Predicated region
  $region14: #{_forward_impl.2} parent=0 // pred_check
    _
  $region15: #{_forward_impl.2} parent=0 // pred_check_branch
    %18 = sbr.rel (0) target = $region17
  $region16: #{_forward_impl.2} parent=0 // pred_region
    _
  $region17: #{_forward_impl.2} parent=0 // pred_fallthru
    _
  // Predicated region
  $region18: #{_forward_impl.2} parent=0 // pred_check
    _
  $region19: #{_forward_impl.2} parent=0 // pred_check_branch
    %20 = sbr.rel (0) target = $region21
  $region20: #{_forward_impl.2} parent=0 // pred_region
    _
  $region21: #{_forward_impl.2} parent=0 // pred_fallthru
    _
  // Predicated region
  $region22: #{_forward_impl.2} parent=0 // pred_check
    _
  $region23: #{_forward_impl.2} parent=0 // pred_check_branch
    %22 = sbr.rel (0) target = $region25
  $region24: #{_forward_impl.2} parent=0 // pred_region
    _
  $region25: #{_forward_impl.2} parent=0 // pred_fallthru
    _
  %v23 = vld [vmem:[%s0] sm:$0xff]
  %v24 = vld [vmem:[%s0 + $0x8] sm:$0xff]
  %v25 = vld [vmem:[%s0 + $0x10] sm:$0xff]
  %v26 = vld [vmem:[%s0 + $0x18] sm:$0xff]
  %v27 = vld [vmem:[%s0 + $0x20] sm:$0xff]
  %v28 = vld [vmem:[%s0 + $0x28] sm:$0xff]
  %v29 = vld [vmem:[%s0 + $0x30] sm:$0xff]
  %v30 = vld [vmem:[%s0 + $0x38] sm:$0xff]
  %v31 = vld [vmem:[%s1] sm:$0xff]
  %v32 = vld [vmem:[%s1 + $0x8] sm:$0xff]
  %v33 = vld [vmem:[%s1 + $0x10] sm:$0xff]
  %v34 = vld [vmem:[%s1 + $0x18] sm:$0xff]
  %v35 = vld [vmem:[%s1 + $0x20] sm:$0xff]
  %v36 = vld [vmem:[%s1 + $0x28] sm:$0xff]
  %v37 = vld [vmem:[%s1 + $0x30] sm:$0xff]
  %v38 = vld [vmem:[%s1 + $0x38] sm:$0xff]
  %v39 = vld [vmem:[%s1 + $0x40] sm:$0xff]
  %v40 = vld [vmem:[%s1 + $0x48] sm:$0xff]
  %v41 = vld [vmem:[%s1 + $0x50] sm:$0xff]
  %v42 = vld [vmem:[%s1 + $0x58] sm:$0xff]
  %v43 = vld [vmem:[%s1 + $0x60] sm:$0xff]
  %v44 = vld [vmem:[%s1 + $0x68] sm:$0xff]
  %v45 = vld [vmem:[%s1 + $0x70] sm:$0xff]
  %v46 = vld [vmem:[%s1 + $0x78] sm:$0xff]
  %v47 = vld [vmem:[%s1 + $0x80] sm:$0xff]
  %v48 = vld [vmem:[%s1 + $0x88] sm:$0xff]
  %v49 = vld [vmem:[%s1 + $0x90] sm:$0xff]
  %v50 = vld [vmem:[%s1 + $0x98] sm:$0xff]
  %v51 = vld [vmem:[%s1 + $0xa0] sm:$0xff]
  %v52 = vld [vmem:[%s1 + $0xa8] sm:$0xff]
  %v53 = vld [vmem:[%s1 + $0xb0] sm:$0xff]
  %v54 = vld [vmem:[%s1 + $0xb8] sm:$0xff]
  %v55 = vld [vmem:[%s1 + $0xc0] sm:$0xff]
  %v56 = vld [vmem:[%s1 + $0xc8] sm:$0xff]
  %v57 = vld [vmem:[%s1 + $0xd0] sm:$0xff]
  %v58 = vld [vmem:[%s1 + $0xd8] sm:$0xff]
  %v59 = vld [vmem:[%s1 + $0xe0] sm:$0xff]
  %v60 = vld [vmem:[%s1 + $0xe8] sm:$0xff]
  %v61 = vld [vmem:[%s1 + $0xf0] sm:$0xff]
  %v62 = vld [vmem:[%s1 + $0xf8] sm:$0xff]
  %v63 = vld [vmem:[%s1 + $0x100] sm:$0xff]
  %v64 = vld [vmem:[%s1 + $0x108] sm:$0xff]
  %v65 = vld [vmem:[%s1 + $0x110] sm:$0xff]
  %v66 = vld [vmem:[%s1 + $0x118] sm:$0xff]
  %v67 = vld [vmem:[%s1 + $0x120] sm:$0xff]
  %v68 = vld [vmem:[%s1 + $0x128] sm:$0xff]
  %v69 = vld [vmem:[%s1 + $0x130] sm:$0xff]
  %v70 = vld [vmem:[%s1 + $0x138] sm:$0xff]
  %v71 = vld [vmem:[%s1 + $0x140] sm:$0xff]
  %v72 = vld [vmem:[%s1 + $0x148] sm:$0xff]
  %v73 = vld [vmem:[%s1 + $0x150] sm:$0xff]
  %v74 = vld [vmem:[%s1 + $0x158] sm:$0xff]
  %v75 = vld [vmem:[%s1 + $0x160] sm:$0xff]
  %v76 = vld [vmem:[%s1 + $0x168] sm:$0xff]
  %v77 = vld [vmem:[%s1 + $0x170] sm:$0xff]
  %v78 = vld [vmem:[%s1 + $0x178] sm:$0xff]
  %v79 = vld [vmem:[%s2] sm:$0x7]
  %v81 = vlaneseq
  %v82 = vshrl.u32 %v81, 7
  %v83 = vsub.s32 0, %v82
  %v84 = vrot.slane %v79, %v83
  %v85 = vlaneseq
  %v86 = vshrl.u32 %v85, 7
  %v87 = vsub.s32 1, %v86
  %v88 = vrot.slane %v79, %v87
  %v89 = vlaneseq
  %v90 = vshrl.u32 %v89, 7
  %v91 = vsub.s32 2, %v90
  %v92 = vrot.slane %v79, %v91
  %96 = vmatprep.subr.mxu0 %v32
  %97 = vmatpush1.msra.mxu0 %v31
  %98 = vmatprep.subr.mxu0 %v35
  %99 = vmatpush1.msra.mxu0 %v34
  %100 = vmatprep.subr.mxu0 %v38
  %101 = vmatpush1.msra.mxu0 %v37
  %102 = vmatprep.subr.mxu0 %v41
  %103 = vmatpush1.msra.mxu0 %v40
  %104 = vmatprep.subr.mxu0 %v44
  %105 = vmatpush1.msra.mxu0 %v43
  %106 = vmatprep.subr.mxu0 %v47
  %107 = vmatpush1.msra.mxu0 %v46
  %108 = vmatprep.subr.mxu0 %v50
  %109 = vmatpush1.msra.mxu0 %v49
  %110 = vmatprep.subr.mxu0 %v53
  %111 = vmatpush1.msra.mxu0 %v52
  %112 = vmatprep.subr.mxu0 %v56
  %113 = vmatpush1.msra.mxu0 %v55
  %114 = vmatprep.subr.mxu0 %v59
  %115 = vmatpush1.msra.mxu0 %v58
  %116 = vmatprep.subr.mxu0 %v62
  %117 = vmatpush1.msra.mxu0 %v61
  %118 = vmatprep.subr.mxu0 %v65
  %119 = vmatpush1.msra.mxu0 %v64
  %120 = vmatprep.subr.mxu0 %v68
  %121 = vmatpush1.msra.mxu0 %v67
  %122 = vmatprep.subr.mxu0 %v71
  %123 = vmatpush1.msra.mxu0 %v70
  %124 = vmatprep.subr.mxu0 %v74
  %125 = vmatpush1.msra.mxu0 %v73
  %126 = vmatprep.subr.mxu0 %v77
  %127 = vmatpush1.msra.mxu0 %v76
  %128 = vmatprep.subr.mxu0 0.0
  %129 = vmatpush1.msra.mxu0 0.0
  %130 = vmatprep.subr.mxu0 0.0
  %131 = vmatpush1.msra.mxu0 0.0
  %132 = vmatprep.subr.mxu0 0.0
  %133 = vmatpush1.msra.mxu0 0.0
  %134 = vmatprep.subr.mxu0 0.0
  %135 = vmatpush1.msra.mxu0 0.0
  %136 = vmatprep.subr.mxu0 0.0
  %137 = vmatpush1.msra.mxu0 0.0
  %138 = vmatprep.subr.mxu0 0.0
  %139 = vmatpush1.msra.mxu0 0.0
  %140 = vmatprep.subr.mxu0 0.0
  %141 = vmatpush1.msra.mxu0 0.0
  %142 = vmatprep.subr.mxu0 0.0
  %143 = vmatpush1.msra.mxu0 0.0
  %144 = vmatprep.subr.mxu0 0.0
  %145 = vmatpush1.msra.mxu0 0.0
  %146 = vmatprep.subr.mxu0 0.0
  %147 = vmatpush1.msra.mxu0 0.0
  %148 = vmatprep.subr.mxu0 0.0
  %149 = vmatpush1.msra.mxu0 0.0
  %150 = vmatprep.subr.mxu0 0.0
  %151 = vmatpush1.msra.mxu0 0.0
  %152 = vmatprep.subr.mxu0 0.0
  %153 = vmatpush1.msra.mxu0 0.0
  %154 = vmatprep.subr.mxu0 0.0
  %155 = vmatpush1.msra.mxu0 0.0
  %156 = vmatprep.subr.mxu0 0.0
  %157 = vmatpush1.msra.mxu0 0.0
  %158 = vmatprep.subr.mxu0 0.0
  %159 = vmatpush1.msra.mxu0 0.0
  %160 = vmatprep.mubr.f32.mxu0 0.0
  %161 = vmatmul.mubr.f32.gmra.mrb[0].mxu0 %v23
  %v162 = vpop.f32.mrb[0].mxu0
  %v163 = vadd.f32 %v84, %v162
  %v164 = vpop.f32.mrb[0].mxu0
  %v165 = vadd.f32 %v88, %v164
  %166 = vmatprep.mubr.f32.mxu0 0.0
  %167 = vmatmul.mubr.f32.gmra.mrb[0].mxu0 %v24
  %v168 = vpop.f32.mrb[0].mxu0
  %v169 = vadd.f32 %v84, %v168
  %v170 = vpop.f32.mrb[0].mxu0
  %v171 = vadd.f32 %v88, %v170
  %172 = vmatprep.mubr.f32.mxu0 0.0
  %173 = vmatmul.mubr.f32.gmra.mrb[0].mxu0 %v25
  %v174 = vpop.f32.mrb[0].mxu0
  %v175 = vadd.f32 %v84, %v174
  %v176 = vpop.f32.mrb[0].mxu0
  %v177 = vadd.f32 %v88, %v176
  %178 = vmatprep.mubr.f32.mxu0 0.0
  %179 = vmatmul.mubr.f32.gmra.mrb[0].mxu0 %v26
  %v180 = vpop.f32.mrb[0].mxu0
  %v181 = vadd.f32 %v84, %v180
  %v182 = vpop.f32.mrb[0].mxu0
  %v183 = vadd.f32 %v88, %v182
  %184 = vmatprep.mubr.f32.mxu0 0.0
  %185 = vmatmul.mubr.f32.gmra.mrb[0].mxu0 %v27
  %v186 = vpop.f32.mrb[0].mxu0
  %v187 = vadd.f32 %v84, %v186
  %v188 = vpop.f32.mrb[0].mxu0
  %v189 = vadd.f32 %v88, %v188
  %190 = vmatprep.mubr.f32.mxu0 0.0
  %191 = vmatmul.mubr.f32.gmra.mrb[0].mxu0 %v28
  %v192 = vpop.f32.mrb[0].mxu0
  %v193 = vadd.f32 %v84, %v192
  %v194 = vpop.f32.mrb[0].mxu0
  %v195 = vadd.f32 %v88, %v194
  %196 = vmatprep.mubr.f32.mxu0 0.0
  %197 = vmatmul.mubr.f32.gmra.mrb[0].mxu0 %v29
  %v198 = vpop.f32.mrb[0].mxu0
  %v199 = vadd.f32 %v84, %v198
  %v200 = vpop.f32.mrb[0].mxu0
  %v201 = vadd.f32 %v88, %v200
  %202 = vmatprep.mubr.f32.mxu0 0.0
  %203 = vmatmul.mubr.f32.gmra.mrb[0].mxu0 %v30
  %v204 = vpop.f32.mrb[0].mxu0
  %v205 = vadd.f32 %v84, %v204
  %v206 = vpop.f32.mrb[0].mxu0
  %v207 = vadd.f32 %v88, %v206
  %208 = vdwg.mxu0
  %209 = vmatprep.subr.mxu0 0.0
  %210 = vmatpush1.msra.mxu0 %v33
  %211 = vmatprep.subr.mxu0 0.0
  %212 = vmatpush1.msra.mxu0 %v36
  %213 = vmatprep.subr.mxu0 0.0
  %214 = vmatpush1.msra.mxu0 %v39
  %215 = vmatprep.subr.mxu0 0.0
  %216 = vmatpush1.msra.mxu0 %v42
  %217 = vmatprep.subr.mxu0 0.0
  %218 = vmatpush1.msra.mxu0 %v45
  %219 = vmatprep.subr.mxu0 0.0
  %220 = vmatpush1.msra.mxu0 %v48
  %221 = vmatprep.subr.mxu0 0.0
  %222 = vmatpush1.msra.mxu0 %v51
  %223 = vmatprep.subr.mxu0 0.0
  %224 = vmatpush1.msra.mxu0 %v54
  %225 = vmatprep.subr.mxu0 0.0
  %226 = vmatpush1.msra.mxu0 %v57
  %227 = vmatprep.subr.mxu0 0.0
  %228 = vmatpush1.msra.mxu0 %v60
  %229 = vmatprep.subr.mxu0 0.0
  %230 = vmatpush1.msra.mxu0 %v63
  %231 = vmatprep.subr.mxu0 0.0
  %232 = vmatpush1.msra.mxu0 %v66
  %233 = vmatprep.subr.mxu0 0.0
  %234 = vmatpush1.msra.mxu0 %v69
  %235 = vmatprep.subr.mxu0 0.0
  %236 = vmatpush1.msra.mxu0 %v72
  %237 = vmatprep.subr.mxu0 0.0
  %238 = vmatpush1.msra.mxu0 %v75
  %239 = vmatprep.subr.mxu0 0.0
  %240 = vmatpush1.msra.mxu0 %v78
  %241 = vmatprep.subr.mxu0 0.0
  %242 = vmatpush1.msra.mxu0 0.0
  %243 = vmatprep.subr.mxu0 0.0
  %244 = vmatpush1.msra.mxu0 0.0
  %245 = vmatprep.subr.mxu0 0.0
  %246 = vmatpush1.msra.mxu0 0.0
  %247 = vmatprep.subr.mxu0 0.0
  %248 = vmatpush1.msra.mxu0 0.0
  %249 = vmatprep.subr.mxu0 0.0
  %250 = vmatpush1.msra.mxu0 0.0
  %251 = vmatprep.subr.mxu0 0.0
  %252 = vmatpush1.msra.mxu0 0.0
  %253 = vmatprep.subr.mxu0 0.0
  %254 = vmatpush1.msra.mxu0 0.0
  %255 = vmatprep.subr.mxu0 0.0
  %256 = vmatpush1.msra.mxu0 0.0
  %257 = vmatprep.subr.mxu0 0.0
  %258 = vmatpush1.msra.mxu0 0.0
  %259 = vmatprep.subr.mxu0 0.0
  %260 = vmatpush1.msra.mxu0 0.0
  %261 = vmatprep.subr.mxu0 0.0
  %262 = vmatpush1.msra.mxu0 0.0
  %263 = vmatprep.subr.mxu0 0.0
  %264 = vmatpush1.msra.mxu0 0.0
  %265 = vmatprep.subr.mxu0 0.0
  %266 = vmatpush1.msra.mxu0 0.0
  %267 = vmatprep.subr.mxu0 0.0
  %268 = vmatpush1.msra.mxu0 0.0
  %269 = vmatprep.subr.mxu0 0.0
  %270 = vmatpush1.msra.mxu0 0.0
  %271 = vmatprep.subr.mxu0 0.0
  %272 = vmatpush1.msra.mxu0 0.0
  %273 = vmatprep.mubr.f32.mxu0 0.0
  %274 = vmatmul.mubr.f32.gmra.mrb[0].mxu0 %v23
  %v275 = vpop.f32.mrb[0].mxu0
  %v276 = vadd.f32 %v92, %v275
  %v277 = vpop.f32.mrb[0].mxu0
  %278 = vmatprep.mubr.f32.mxu0 0.0
  %279 = vmatmul.mubr.f32.gmra.mrb[0].mxu0 %v24
  %v280 = vpop.f32.mrb[0].mxu0
  %v281 = vadd.f32 %v92, %v280
  %v282 = vpop.f32.mrb[0].mxu0
  %283 = vmatprep.mubr.f32.mxu0 0.0
  %284 = vmatmul.mubr.f32.gmra.mrb[0].mxu0 %v25
  %v285 = vpop.f32.mrb[0].mxu0
  %v286 = vadd.f32 %v92, %v285
  %v287 = vpop.f32.mrb[0].mxu0
  %288 = vmatprep.mubr.f32.mxu0 0.0
  %289 = vmatmul.mubr.f32.gmra.mrb[0].mxu0 %v26
  %v290 = vpop.f32.mrb[0].mxu0
  %v291 = vadd.f32 %v92, %v290
  %v292 = vpop.f32.mrb[0].mxu0
  %293 = vmatprep.mubr.f32.mxu0 0.0
  %294 = vmatmul.mubr.f32.gmra.mrb[0].mxu0 %v27
  %v295 = vpop.f32.mrb[0].mxu0
  %v296 = vadd.f32 %v92, %v295
  %v297 = vpop.f32.mrb[0].mxu0
  %298 = vmatprep.mubr.f32.mxu0 0.0
  %299 = vmatmul.mubr.f32.gmra.mrb[0].mxu0 %v28
  %v300 = vpop.f32.mrb[0].mxu0
  %v301 = vadd.f32 %v92, %v300
  %v302 = vpop.f32.mrb[0].mxu0
  %303 = vmatprep.mubr.f32.mxu0 0.0
  %304 = vmatmul.mubr.f32.gmra.mrb[0].mxu0 %v29
  %v305 = vpop.f32.mrb[0].mxu0
  %v306 = vadd.f32 %v92, %v305
  %v307 = vpop.f32.mrb[0].mxu0
  %308 = vmatprep.mubr.f32.mxu0 0.0
  %309 = vmatmul.mubr.f32.gmra.mrb[0].mxu0 %v30
  %v310 = vpop.f32.mrb[0].mxu0
  %v311 = vadd.f32 %v92, %v310
  %v312 = vpop.f32.mrb[0].mxu0
  %313 = vdwg.mxu0
  %314 = vst [vmem:[#allocation2] sm:$0xff] %v163
  %315 = vst [vmem:[#allocation2 + $0x8] sm:$0xff] %v165
  %316 = vst [vmem:[#allocation2 + $0x10] sm:$0xff] %v276
  %317 = vst [vmem:[#allocation2 + $0x18] sm:$0xff] %v169
  %318 = vst [vmem:[#allocation2 + $0x20] sm:$0xff] %v171
  %319 = vst [vmem:[#allocation2 + $0x28] sm:$0xff] %v281
  %320 = vst [vmem:[#allocation2 + $0x30] sm:$0xff] %v175
  %321 = vst [vmem:[#allocation2 + $0x38] sm:$0xff] %v177
  %322 = vst [vmem:[#allocation2 + $0x40] sm:$0xff] %v286
  %323 = vst [vmem:[#allocation2 + $0x48] sm:$0xff] %v181
  %324 = vst [vmem:[#allocation2 + $0x50] sm:$0xff] %v183
  %325 = vst [vmem:[#allocation2 + $0x58] sm:$0xff] %v291
  %326 = vst [vmem:[#allocation2 + $0x60] sm:$0xff] %v187
  %327 = vst [vmem:[#allocation2 + $0x68] sm:$0xff] %v189
  %328 = vst [vmem:[#allocation2 + $0x70] sm:$0xff] %v296
  %329 = vst [vmem:[#allocation2 + $0x78] sm:$0xff] %v193
  %330 = vst [vmem:[#allocation2 + $0x80] sm:$0xff] %v195
  %331 = vst [vmem:[#allocation2 + $0x88] sm:$0xff] %v301
  %332 = vst [vmem:[#allocation2 + $0x90] sm:$0xff] %v199
  %333 = vst [vmem:[#allocation2 + $0x98] sm:$0xff] %v201
  %334 = vst [vmem:[#allocation2 + $0xa0] sm:$0xff] %v306
  %335 = vst [vmem:[#allocation2 + $0xa8] sm:$0xff] %v205
  %336 = vst [vmem:[#allocation2 + $0xb0] sm:$0xff] %v207
  %337 = vst [vmem:[#allocation2 + $0xb8] sm:$0xff] %v311
  %v338 = vld [vmem:[#allocation2] sm:$0xff]
  %v339 = vld [vmem:[#allocation2 + $0x8] sm:$0xff]
  %v340 = vld [vmem:[#allocation2 + $0x10] sm:$0xff]
  %v341 = vld [vmem:[%s3] sm:$0xff]
  %v342 = vld [vmem:[%s4] sm:$0xff]
  %v343 = vld [vmem:[%s4 + $0x8] sm:$0xff]
  %v344 = vld [vmem:[%s4 + $0x10] sm:$0xff]
  %v345 = vld [vmem:[%s4 + $0x18] sm:$0xff]
  %v346 = vld [vmem:[%s4 + $0x20] sm:$0xff]
  %v347 = vld [vmem:[%s4 + $0x28] sm:$0xff]
  %v348 = vld [vmem:[%s4 + $0x30] sm:$0xff]
  %v349 = vld [vmem:[%s4 + $0x38] sm:$0xff]
  %v350 = vld [vmem:[%s4 + $0x40] sm:$0xff]
  %v351 = vld [vmem:[%s4 + $0x48] sm:$0xff]
  %v352 = vld [vmem:[%s4 + $0x50] sm:$0xff]
  %v353 = vld [vmem:[%s4 + $0x58] sm:$0xff]
  %v354 = vld [vmem:[%s4 + $0x60] sm:$0xff]
  %v355 = vld [vmem:[%s4 + $0x68] sm:$0xff]
  %v356 = vld [vmem:[%s4 + $0x70] sm:$0xff]
  %v357 = vld [vmem:[%s4 + $0x78] sm:$0xff]
  %v358 = vld [vmem:[%s4 + $0x80] sm:$0xff]
  %v359 = vld [vmem:[%s4 + $0x88] sm:$0xff]
  %v360 = vld [vmem:[%s4 + $0x90] sm:$0xff]
  %v361 = vld [vmem:[%s4 + $0x98] sm:$0xff]
  %v362 = vld [vmem:[%s4 + $0xa0] sm:$0xff]
  %v363 = vld [vmem:[%s4 + $0xa8] sm:$0xff]
  %v364 = vld [vmem:[%s4 + $0xb0] sm:$0xff]
  %v365 = vld [vmem:[%s4 + $0xb8] sm:$0xff]
  %v366 = vld [vmem:[%s4 + $0xc0] sm:$0xff]
  %v367 = vld [vmem:[%s4 + $0xc8] sm:$0xff]
  %v368 = vld [vmem:[%s4 + $0xd0] sm:$0xff]
  %v369 = vld [vmem:[%s4 + $0xd8] sm:$0xff]
  %v370 = vld [vmem:[%s4 + $0xe0] sm:$0xff]
  %v371 = vld [vmem:[%s4 + $0xe8] sm:$0xff]
  %v372 = vld [vmem:[%s4 + $0xf0] sm:$0xff]
  %v373 = vld [vmem:[%s4 + $0xf8] sm:$0xff]
  %v374 = vld [vmem:[%s4 + $0x100] sm:$0xff]
  %v375 = vld [vmem:[%s4 + $0x108] sm:$0xff]
  %v376 = vld [vmem:[%s4 + $0x110] sm:$0xff]
  %v377 = vld [vmem:[%s4 + $0x118] sm:$0xff]
  %v378 = vld [vmem:[%s4 + $0x120] sm:$0xff]
  %v379 = vld [vmem:[%s4 + $0x128] sm:$0xff]
  %v380 = vld [vmem:[%s4 + $0x130] sm:$0xff]
  %v381 = vld [vmem:[%s4 + $0x138] sm:$0xff]
  %v382 = vld [vmem:[%s4 + $0x140] sm:$0xff]
  %v383 = vld [vmem:[%s4 + $0x148] sm:$0xff]
  %v384 = vld [vmem:[%s4 + $0x150] sm:$0xff]
  %v385 = vld [vmem:[%s4 + $0x158] sm:$0xff]
  %v386 = vld [vmem:[%s4 + $0x160] sm:$0xff]
  %v387 = vld [vmem:[%s4 + $0x168] sm:$0xff]
  %v388 = vld [vmem:[%s4 + $0x170] sm:$0xff]
  %v389 = vld [vmem:[%s4 + $0x178] sm:$0xff]
  %v390 = vld [vmem:[%s5] sm:$0x7]
  %v392 = vlaneseq
  %v393 = vshrl.u32 %v392, 7
  %v394 = vsub.s32 0, %v393
  %v395 = vrot.slane %v390, %v394
  %v396 = vlaneseq
  %v397 = vshrl.u32 %v396, 7
  %v398 = vsub.s32 1, %v397
  %v399 = vrot.slane %v390, %v398
  %v400 = vlaneseq
  %v401 = vshrl.u32 %v400, 7
  %v402 = vsub.s32 2, %v401
  %v403 = vrot.slane %v390, %v402
  %407 = vmatprep.subr.mxu0 %v343
  %408 = vmatpush1.msra.mxu0 %v342
  %409 = vmatprep.subr.mxu0 %v346
  %410 = vmatpush1.msra.mxu0 %v345
  %411 = vmatprep.subr.mxu0 %v349
  %412 = vmatpush1.msra.mxu0 %v348
  %413 = vmatprep.subr.mxu0 %v352
  %414 = vmatpush1.msra.mxu0 %v351
  %415 = vmatprep.subr.mxu0 %v355
  %416 = vmatpush1.msra.mxu0 %v354
  %417 = vmatprep.subr.mxu0 %v358
  %418 = vmatpush1.msra.mxu0 %v357
  %419 = vmatprep.subr.mxu0 %v361
  %420 = vmatpush1.msra.mxu0 %v360
  %421 = vmatprep.subr.mxu0 %v364
  %422 = vmatpush1.msra.mxu0 %v363
  %423 = vmatprep.subr.mxu0 %v367
  %424 = vmatpush1.msra.mxu0 %v366
  %425 = vmatprep.subr.mxu0 %v370
  %426 = vmatpush1.msra.mxu0 %v369
  %427 = vmatprep.subr.mxu0 %v373
  %428 = vmatpush1.msra.mxu0 %v372
  %429 = vmatprep.subr.mxu0 %v376
  %430 = vmatpush1.msra.mxu0 %v375
  %431 = vmatprep.subr.mxu0 %v379
  %432 = vmatpush1.msra.mxu0 %v378
  %433 = vmatprep.subr.mxu0 %v382
  %434 = vmatpush1.msra.mxu0 %v381
  %435 = vmatprep.subr.mxu0 %v385
  %436 = vmatpush1.msra.mxu0 %v384
  %437 = vmatprep.subr.mxu0 %v388
  %438 = vmatpush1.msra.mxu0 %v387
  %439 = vmatprep.subr.mxu0 0.0
  %440 = vmatpush1.msra.mxu0 0.0
  %441 = vmatprep.subr.mxu0 0.0
  %442 = vmatpush1.msra.mxu0 0.0
  %443 = vmatprep.subr.mxu0 0.0
  %444 = vmatpush1.msra.mxu0 0.0
  %445 = vmatprep.subr.mxu0 0.0
  %446 = vmatpush1.msra.mxu0 0.0
  %447 = vmatprep.subr.mxu0 0.0
  %448 = vmatpush1.msra.mxu0 0.0
  %449 = vmatprep.subr.mxu0 0.0
  %450 = vmatpush1.msra.mxu0 0.0
  %451 = vmatprep.subr.mxu0 0.0
  %452 = vmatpush1.msra.mxu0 0.0
  %453 = vmatprep.subr.mxu0 0.0
  %454 = vmatpush1.msra.mxu0 0.0
  %455 = vmatprep.subr.mxu0 0.0
  %456 = vmatpush1.msra.mxu0 0.0
  %457 = vmatprep.subr.mxu0 0.0
  %458 = vmatpush1.msra.mxu0 0.0
  %459 = vmatprep.subr.mxu0 0.0
  %460 = vmatpush1.msra.mxu0 0.0
  %461 = vmatprep.subr.mxu0 0.0
  %462 = vmatpush1.msra.mxu0 0.0
  %463 = vmatprep.subr.mxu0 0.0
  %464 = vmatpush1.msra.mxu0 0.0
  %465 = vmatprep.subr.mxu0 0.0
  %466 = vmatpush1.msra.mxu0 0.0
  %467 = vmatprep.subr.mxu0 0.0
  %468 = vmatpush1.msra.mxu0 0.0
  %469 = vmatprep.subr.mxu0 0.0
  %470 = vmatpush1.msra.mxu0 0.0
  %471 = vmatprep.mubr.f32.mxu0 0.0
  %472 = vmatmul.mubr.f32.gmra.mrb[0].mxu0 0.0
  %v473 = vpop.f32.mrb[0].mxu0
  %v474 = vadd.f32 %v395, %v473
  %v475 = vpop.f32.mrb[0].mxu0
  %v476 = vadd.f32 %v399, %v475
  %477 = vdwg.mxu0
  %478 = vmatprep.subr.mxu0 0.0
  %479 = vmatpush1.msra.mxu0 %v344
  %480 = vmatprep.subr.mxu0 0.0
  %481 = vmatpush1.msra.mxu0 %v347
  %482 = vmatprep.subr.mxu0 0.0
  %483 = vmatpush1.msra.mxu0 %v350
  %484 = vmatprep.subr.mxu0 0.0
  %485 = vmatpush1.msra.mxu0 %v353
  %486 = vmatprep.subr.mxu0 0.0
  %487 = vmatpush1.msra.mxu0 %v356
  %488 = vmatprep.subr.mxu0 0.0
  %489 = vmatpush1.msra.mxu0 %v359
  %490 = vmatprep.subr.mxu0 0.0
  %491 = vmatpush1.msra.mxu0 %v362
  %492 = vmatprep.subr.mxu0 0.0
  %493 = vmatpush1.msra.mxu0 %v365
  %494 = vmatprep.subr.mxu0 0.0
  %495 = vmatpush1.msra.mxu0 %v368
  %496 = vmatprep.subr.mxu0 0.0
  %497 = vmatpush1.msra.mxu0 %v371
  %498 = vmatprep.subr.mxu0 0.0
  %499 = vmatpush1.msra.mxu0 %v374
  %500 = vmatprep.subr.mxu0 0.0
  %501 = vmatpush1.msra.mxu0 %v377
  %502 = vmatprep.subr.mxu0 0.0
  %503 = vmatpush1.msra.mxu0 %v380
  %504 = vmatprep.subr.mxu0 0.0
  %505 = vmatpush1.msra.mxu0 %v383
  %506 = vmatprep.subr.mxu0 0.0
  %507 = vmatpush1.msra.mxu0 %v386
  %508 = vmatprep.subr.mxu0 0.0
  %509 = vmatpush1.msra.mxu0 %v389
  %510 = vmatprep.subr.mxu0 0.0
  %511 = vmatpush1.msra.mxu0 0.0
  %512 = vmatprep.subr.mxu0 0.0
  %513 = vmatpush1.msra.mxu0 0.0
  %514 = vmatprep.subr.mxu0 0.0
  %515 = vmatpush1.msra.mxu0 0.0
  %516 = vmatprep.subr.mxu0 0.0
  %517 = vmatpush1.msra.mxu0 0.0
  %518 = vmatprep.subr.mxu0 0.0
  %519 = vmatpush1.msra.mxu0 0.0
  %520 = vmatprep.subr.mxu0 0.0
  %521 = vmatpush1.msra.mxu0 0.0
  %522 = vmatprep.subr.mxu0 0.0
  %523 = vmatpush1.msra.mxu0 0.0
  %524 = vmatprep.subr.mxu0 0.0
  %525 = vmatpush1.msra.mxu0 0.0
  %526 = vmatprep.subr.mxu0 0.0
  %527 = vmatpush1.msra.mxu0 0.0
  %528 = vmatprep.subr.mxu0 0.0
  %529 = vmatpush1.msra.mxu0 0.0
  %530 = vmatprep.subr.mxu0 0.0
  %531 = vmatpush1.msra.mxu0 0.0
  %532 = vmatprep.subr.mxu0 0.0
  %533 = vmatpush1.msra.mxu0 0.0
  %534 = vmatprep.subr.mxu0 0.0
  %535 = vmatpush1.msra.mxu0 0.0
  %536 = vmatprep.subr.mxu0 0.0
  %537 = vmatpush1.msra.mxu0 0.0
  %538 = vmatprep.subr.mxu0 0.0
  %539 = vmatpush1.msra.mxu0 0.0
  %540 = vmatprep.subr.mxu0 0.0
  %541 = vmatpush1.msra.mxu0 0.0
  %542 = vmatprep.mubr.f32.mxu0 0.0
  %543 = vmatmul.mubr.f32.gmra.mrb[0].mxu0 0.0
  %v544 = vpop.f32.mrb[0].mxu0
  %v545 = vadd.f32 %v403, %v544
  %v546 = vpop.f32.mrb[0].mxu0
  %547 = vdwg.mxu0
  %v548 = vadd.f32 %v338, %v474
  %v549 = vxor.u32 %v548, 2147483648
  %v550 = vmul.f32 %v549, 1.442695
  %v551 = vpow.pop %v550
  %v552 = vadd.f32 %v551, 1.0
  %v553 = vrcp.pop %v552
  %v554 = vmul.f32 1.0, %v553
  %v555 = vadd.f32 %v339, %v476
  %v556 = vxor.u32 %v555, 2147483648
  %v557 = vmul.f32 %v556, 1.442695
  %v558 = vpow.pop %v557
  %v559 = vadd.f32 %v558, 1.0
  %v560 = vrcp.pop %v559
  %v561 = vmul.f32 1.0, %v560
  %v562 = vmul.f32 %v554, %v545
  %v563 = vadd.f32 %v340, %v562
  %v564 = vtanh.pop %v563
  %v565 = vsub.f32 1.0, %v561
  %v566 = vmul.f32 %v565, %v564
  %v567 = vmul.f32 %v561, 0.0
  %v568 = vadd.f32 %v566, %v567
  %570 = vset.pattern.permute.xlu0 0
  %571 = vperm.xlu0 %570, %v341
  %v572 = vpop.permute.xlu0 %571
  %v574 = vmul.f32 %v572, %v568
  %v575 = vsub.f32 1.0, %v341
  %577 = vset.pattern.permute.xlu0 0
  %578 = vperm.xlu0 %577, %v575
  %v579 = vpop.permute.xlu0 %578
  %v581 = vmul.f32 %v579, 0.0
  %v582 = vadd.f32 %v574, %v581
  %v583 = vld [vmem:[#allocation2 + $0x18] sm:$0xff]
  %v584 = vld [vmem:[#allocation2 + $0x20] sm:$0xff]
  %v585 = vld [vmem:[#allocation2 + $0x28] sm:$0xff]
  %s586 = scalar_lea.vmem %s3, 8
  %v587 = vld [vmem:[%s586] sm:$0xff]
  %588 = vmatprep.subr.mxu0 %v343
  %589 = vmatpush1.msra.mxu0 %v342
  %590 = vmatprep.subr.mxu0 %v346
  %591 = vmatpush1.msra.mxu0 %v345
  %592 = vmatprep.subr.mxu0 %v349
  %593 = vmatpush1.msra.mxu0 %v348
  %594 = vmatprep.subr.mxu0 %v352
  %595 = vmatpush1.msra.mxu0 %v351
  %596 = vmatprep.subr.mxu0 %v355
  %597 = vmatpush1.msra.mxu0 %v354
  %598 = vmatprep.subr.mxu0 %v358
  %599 = vmatpush1.msra.mxu0 %v357
  %600 = vmatprep.subr.mxu0 %v361
  %601 = vmatpush1.msra.mxu0 %v360
  %602 = vmatprep.subr.mxu0 %v364
  %603 = vmatpush1.msra.mxu0 %v363
  %604 = vmatprep.subr.mxu0 %v367
  %605 = vmatpush1.msra.mxu0 %v366
  %606 = vmatprep.subr.mxu0 %v370
  %607 = vmatpush1.msra.mxu0 %v369
  %608 = vmatprep.subr.mxu0 %v373
  %609 = vmatpush1.msra.mxu0 %v372
  %610 = vmatprep.subr.mxu0 %v376
  %611 = vmatpush1.msra.mxu0 %v375
  %612 = vmatprep.subr.mxu0 %v379
  %613 = vmatpush1.msra.mxu0 %v378
  %614 = vmatprep.subr.mxu0 %v382
  %615 = vmatpush1.msra.mxu0 %v381
  %616 = vmatprep.subr.mxu0 %v385
  %617 = vmatpush1.msra.mxu0 %v384
  %618 = vmatprep.subr.mxu0 %v388
  %619 = vmatpush1.msra.mxu0 %v387
  %620 = vmatprep.subr.mxu0 0.0
  %621 = vmatpush1.msra.mxu0 0.0
  %622 = vmatprep.subr.mxu0 0.0
  %623 = vmatpush1.msra.mxu0 0.0
  %624 = vmatprep.subr.mxu0 0.0
  %625 = vmatpush1.msra.mxu0 0.0
  %626 = vmatprep.subr.mxu0 0.0
  %627 = vmatpush1.msra.mxu0 0.0
  %628 = vmatprep.subr.mxu0 0.0
  %629 = vmatpush1.msra.mxu0 0.0
  %630 = vmatprep.subr.mxu0 0.0
  %631 = vmatpush1.msra.mxu0 0.0
  %632 = vmatprep.subr.mxu0 0.0
  %633 = vmatpush1.msra.mxu0 0.0
  %634 = vmatprep.subr.mxu0 0.0
  %635 = vmatpush1.msra.mxu0 0.0
  %636 = vmatprep.subr.mxu0 0.0
  %637 = vmatpush1.msra.mxu0 0.0
  %638 = vmatprep.subr.mxu0 0.0
  %639 = vmatpush1.msra.mxu0 0.0
  %640 = vmatprep.subr.mxu0 0.0
  %641 = vmatpush1.msra.mxu0 0.0
  %642 = vmatprep.subr.mxu0 0.0
  %643 = vmatpush1.msra.mxu0 0.0
  %644 = vmatprep.subr.mxu0 0.0
  %645 = vmatpush1.msra.mxu0 0.0
  %646 = vmatprep.subr.mxu0 0.0
  %647 = vmatpush1.msra.mxu0 0.0
  %648 = vmatprep.subr.mxu0 0.0
  %649 = vmatpush1.msra.mxu0 0.0
  %650 = vmatprep.subr.mxu0 0.0
  %651 = vmatpush1.msra.mxu0 0.0
  %652 = vmatprep.mubr.f32.mxu0 0.0
  %653 = vmatmul.mubr.f32.gmra.mrb[0].mxu0 %v582
  %v654 = vpop.f32.mrb[0].mxu0
  %v655 = vadd.f32 %v395, %v654
  %v656 = vpop.f32.mrb[0].mxu0
  %v657 = vadd.f32 %v399, %v656
  %658 = vdwg.mxu0
  %659 = vmatprep.subr.mxu0 0.0
  %660 = vmatpush1.msra.mxu0 %v344
  %661 = vmatprep.subr.mxu0 0.0
  %662 = vmatpush1.msra.mxu0 %v347
  %663 = vmatprep.subr.mxu0 0.0
  %664 = vmatpush1.msra.mxu0 %v350
  %665 = vmatprep.subr.mxu0 0.0
  %666 = vmatpush1.msra.mxu0 %v353
  %667 = vmatprep.subr.mxu0 0.0
  %668 = vmatpush1.msra.mxu0 %v356
  %669 = vmatprep.subr.mxu0 0.0
  %670 = vmatpush1.msra.mxu0 %v359
  %671 = vmatprep.subr.mxu0 0.0
  %672 = vmatpush1.msra.mxu0 %v362
  %673 = vmatprep.subr.mxu0 0.0
  %674 = vmatpush1.msra.mxu0 %v365
  %675 = vmatprep.subr.mxu0 0.0
  %676 = vmatpush1.msra.mxu0 %v368
  %677 = vmatprep.subr.mxu0 0.0
  %678 = vmatpush1.msra.mxu0 %v371
  %679 = vmatprep.subr.mxu0 0.0
  %680 = vmatpush1.msra.mxu0 %v374
  %681 = vmatprep.subr.mxu0 0.0
  %682 = vmatpush1.msra.mxu0 %v377
  %683 = vmatprep.subr.mxu0 0.0
  %684 = vmatpush1.msra.mxu0 %v380
  %685 = vmatprep.subr.mxu0 0.0
  %686 = vmatpush1.msra.mxu0 %v383
  %687 = vmatprep.subr.mxu0 0.0
  %688 = vmatpush1.msra.mxu0 %v386
  %689 = vmatprep.subr.mxu0 0.0
  %690 = vmatpush1.msra.mxu0 %v389
  %691 = vmatprep.subr.mxu0 0.0
  %692 = vmatpush1.msra.mxu0 0.0
  %693 = vmatprep.subr.mxu0 0.0
  %694 = vmatpush1.msra.mxu0 0.0
  %695 = vmatprep.subr.mxu0 0.0
  %696 = vmatpush1.msra.mxu0 0.0
  %697 = vmatprep.subr.mxu0 0.0
  %698 = vmatpush1.msra.mxu0 0.0
  %699 = vmatprep.subr.mxu0 0.0
  %700 = vmatpush1.msra.mxu0 0.0
  %701 = vmatprep.subr.mxu0 0.0
  %702 = vmatpush1.msra.mxu0 0.0
  %703 = vmatprep.subr.mxu0 0.0
  %704 = vmatpush1.msra.mxu0 0.0
  %705 = vmatprep.subr.mxu0 0.0
  %706 = vmatpush1.msra.mxu0 0.0
  %707 = vmatprep.subr.mxu0 0.0
  %708 = vmatpush1.msra.mxu0 0.0
  %709 = vmatprep.subr.mxu0 0.0
  %710 = vmatpush1.msra.mxu0 0.0
  %711 = vmatprep.subr.mxu0 0.0
  %712 = vmatpush1.msra.mxu0 0.0
  %713 = vmatprep.subr.mxu0 0.0
  %714 = vmatpush1.msra.mxu0 0.0
  %715 = vmatprep.subr.mxu0 0.0
  %716 = vmatpush1.msra.mxu0 0.0
  %717 = vmatprep.subr.mxu0 0.0
  %718 = vmatpush1.msra.mxu0 0.0
  %719 = vmatprep.subr.mxu0 0.0
  %720 = vmatpush1.msra.mxu0 0.0
  %721 = vmatprep.subr.mxu0 0.0
  %722 = vmatpush1.msra.mxu0 0.0
  %723 = vmatprep.mubr.f32.mxu0 0.0
  %724 = vmatmul.mubr.f32.gmra.mrb[0].mxu0 %v582
  %v725 = vpop.f32.mrb[0].mxu0
  %v726 = vadd.f32 %v403, %v725
  %v727 = vpop.f32.mrb[0].mxu0
  %728 = vdwg.mxu0
  %v729 = vadd.f32 %v583, %v655
  %v730 = vxor.u32 %v729, 2147483648
  %v731 = vmul.f32 %v730, 1.442695
  %v732 = vpow.pop %v731
  %v733 = vadd.f32 %v732, 1.0
  %v734 = vrcp.pop %v733
  %v735 = vmul.f32 1.0, %v734
  %v736 = vadd.f32 %v584, %v657
  %v737 = vxor.u32 %v736, 2147483648
  %v738 = vmul.f32 %v737, 1.442695
  %v739 = vpow.pop %v738
  %v740 = vadd.f32 %v739, 1.0
  %v741 = vrcp.pop %v740
  %v742 = vmul.f32 1.0, %v741
  %v743 = vmul.f32 %v735, %v726
  %v744 = vadd.f32 %v585, %v743
  %v745 = vtanh.pop %v744
  %v746 = vsub.f32 1.0, %v742
  %v747 = vmul.f32 %v746, %v745
  %v748 = vmul.f32 %v742, %v582
  %v749 = vadd.f32 %v747, %v748
  %751 = vset.pattern.permute.xlu0 0
  %752 = vperm.xlu0 %751, %v587
  %v753 = vpop.permute.xlu0 %752
  %v755 = vmul.f32 %v753, %v749
  %v756 = vsub.f32 1.0, %v587
  %758 = vset.pattern.permute.xlu0 0
  %759 = vperm.xlu0 %758, %v756
  %v760 = vpop.permute.xlu0 %759
  %v762 = vmul.f32 %v760, %v582
  %v763 = vadd.f32 %v755, %v762
  %v764 = vld [vmem:[#allocation2 + $0x30] sm:$0xff]
  %v765 = vld [vmem:[#allocation2 + $0x38] sm:$0xff]
  %v766 = vld [vmem:[#allocation2 + $0x40] sm:$0xff]
  %s767 = scalar_lea.vmem %s3, 16
  %v768 = vld [vmem:[%s767] sm:$0xff]
  %769 = vmatprep.subr.mxu0 %v343
  %770 = vmatpush1.msra.mxu0 %v342
  %771 = vmatprep.subr.mxu0 %v346
  %772 = vmatpush1.msra.mxu0 %v345
  %773 = vmatprep.subr.mxu0 %v349
  %774 = vmatpush1.msra.mxu0 %v348
  %775 = vmatprep.subr.mxu0 %v352
  %776 = vmatpush1.msra.mxu0 %v351
  %777 = vmatprep.subr.mxu0 %v355
  %778 = vmatpush1.msra.mxu0 %v354
  %779 = vmatprep.subr.mxu0 %v358
  %780 = vmatpush1.msra.mxu0 %v357
  %781 = vmatprep.subr.mxu0 %v361
  %782 = vmatpush1.msra.mxu0 %v360
  %783 = vmatprep.subr.mxu0 %v364
  %784 = vmatpush1.msra.mxu0 %v363
  %785 = vmatprep.subr.mxu0 %v367
  %786 = vmatpush1.msra.mxu0 %v366
  %787 = vmatprep.subr.mxu0 %v370
  %788 = vmatpush1.msra.mxu0 %v369
  %789 = vmatprep.subr.mxu0 %v373
  %790 = vmatpush1.msra.mxu0 %v372
  %791 = vmatprep.subr.mxu0 %v376
  %792 = vmatpush1.msra.mxu0 %v375
  %793 = vmatprep.subr.mxu0 %v379
  %794 = vmatpush1.msra.mxu0 %v378
  %795 = vmatprep.subr.mxu0 %v382
  %796 = vmatpush1.msra.mxu0 %v381
  %797 = vmatprep.subr.mxu0 %v385
  %798 = vmatpush1.msra.mxu0 %v384
  %799 = vmatprep.subr.mxu0 %v388
  %800 = vmatpush1.msra.mxu0 %v387
  %801 = vmatprep.subr.mxu0 0.0
  %802 = vmatpush1.msra.mxu0 0.0
  %803 = vmatprep.subr.mxu0 0.0
  %804 = vmatpush1.msra.mxu0 0.0
  %805 = vmatprep.subr.mxu0 0.0
  %806 = vmatpush1.msra.mxu0 0.0
  %807 = vmatprep.subr.mxu0 0.0
  %808 = vmatpush1.msra.mxu0 0.0
  %809 = vmatprep.subr.mxu0 0.0
  %810 = vmatpush1.msra.mxu0 0.0
  %811 = vmatprep.subr.mxu0 0.0
  %812 = vmatpush1.msra.mxu0 0.0
  %813 = vmatprep.subr.mxu0 0.0
  %814 = vmatpush1.msra.mxu0 0.0
  %815 = vmatprep.subr.mxu0 0.0
  %816 = vmatpush1.msra.mxu0 0.0
  %817 = vmatprep.subr.mxu0 0.0
  %818 = vmatpush1.msra.mxu0 0.0
  %819 = vmatprep.subr.mxu0 0.0
  %820 = vmatpush1.msra.mxu0 0.0
  %821 = vmatprep.subr.mxu0 0.0
  %822 = vmatpush1.msra.mxu0 0.0
  %823 = vmatprep.subr.mxu0 0.0
  %824 = vmatpush1.msra.mxu0 0.0
  %825 = vmatprep.subr.mxu0 0.0
  %826 = vmatpush1.msra.mxu0 0.0
  %827 = vmatprep.subr.mxu0 0.0
  %828 = vmatpush1.msra.mxu0 0.0
  %829 = vmatprep.subr.mxu0 0.0
  %830 = vmatpush1.msra.mxu0 0.0
  %831 = vmatprep.subr.mxu0 0.0
  %832 = vmatpush1.msra.mxu0 0.0
  %833 = vmatprep.mubr.f32.mxu0 0.0
  %834 = vmatmul.mubr.f32.gmra.mrb[0].mxu0 %v763
  %v835 = vpop.f32.mrb[0].mxu0
  %v836 = vadd.f32 %v395, %v835
  %v837 = vpop.f32.mrb[0].mxu0
  %v838 = vadd.f32 %v399, %v837
  %839 = vdwg.mxu0
  %840 = vmatprep.subr.mxu0 0.0
  %841 = vmatpush1.msra.mxu0 %v344
  %842 = vmatprep.subr.mxu0 0.0
  %843 = vmatpush1.msra.mxu0 %v347
  %844 = vmatprep.subr.mxu0 0.0
  %845 = vmatpush1.msra.mxu0 %v350
  %846 = vmatprep.subr.mxu0 0.0
  %847 = vmatpush1.msra.mxu0 %v353
  %848 = vmatprep.subr.mxu0 0.0
  %849 = vmatpush1.msra.mxu0 %v356
  %850 = vmatprep.subr.mxu0 0.0
  %851 = vmatpush1.msra.mxu0 %v359
  %852 = vmatprep.subr.mxu0 0.0
  %853 = vmatpush1.msra.mxu0 %v362
  %854 = vmatprep.subr.mxu0 0.0
  %855 = vmatpush1.msra.mxu0 %v365
  %856 = vmatprep.subr.mxu0 0.0
  %857 = vmatpush1.msra.mxu0 %v368
  %858 = vmatprep.subr.mxu0 0.0
  %859 = vmatpush1.msra.mxu0 %v371
  %860 = vmatprep.subr.mxu0 0.0
  %861 = vmatpush1.msra.mxu0 %v374
  %862 = vmatprep.subr.mxu0 0.0
  %863 = vmatpush1.msra.mxu0 %v377
  %864 = vmatprep.subr.mxu0 0.0
  %865 = vmatpush1.msra.mxu0 %v380
  %866 = vmatprep.subr.mxu0 0.0
  %867 = vmatpush1.msra.mxu0 %v383
  %868 = vmatprep.subr.mxu0 0.0
  %869 = vmatpush1.msra.mxu0 %v386
  %870 = vmatprep.subr.mxu0 0.0
  %871 = vmatpush1.msra.mxu0 %v389
  %872 = vmatprep.subr.mxu0 0.0
  %873 = vmatpush1.msra.mxu0 0.0
  %874 = vmatprep.subr.mxu0 0.0
  %875 = vmatpush1.msra.mxu0 0.0
  %876 = vmatprep.subr.mxu0 0.0
  %877 = vmatpush1.msra.mxu0 0.0
  %878 = vmatprep.subr.mxu0 0.0
  %879 = vmatpush1.msra.mxu0 0.0
  %880 = vmatprep.subr.mxu0 0.0
  %881 = vmatpush1.msra.mxu0 0.0
  %882 = vmatprep.subr.mxu0 0.0
  %883 = vmatpush1.msra.mxu0 0.0
  %884 = vmatprep.subr.mxu0 0.0
  %885 = vmatpush1.msra.mxu0 0.0
  %886 = vmatprep.subr.mxu0 0.0
  %887 = vmatpush1.msra.mxu0 0.0
  %888 = vmatprep.subr.mxu0 0.0
  %889 = vmatpush1.msra.mxu0 0.0
  %890 = vmatprep.subr.mxu0 0.0
  %891 = vmatpush1.msra.mxu0 0.0
  %892 = vmatprep.subr.mxu0 0.0
  %893 = vmatpush1.msra.mxu0 0.0
  %894 = vmatprep.subr.mxu0 0.0
  %895 = vmatpush1.msra.mxu0 0.0
  %896 = vmatprep.subr.mxu0 0.0
  %897 = vmatpush1.msra.mxu0 0.0
  %898 = vmatprep.subr.mxu0 0.0
  %899 = vmatpush1.msra.mxu0 0.0
  %900 = vmatprep.subr.mxu0 0.0
  %901 = vmatpush1.msra.mxu0 0.0
  %902 = vmatprep.subr.mxu0 0.0
  %903 = vmatpush1.msra.mxu0 0.0
  %904 = vmatprep.mubr.f32.mxu0 0.0
  %905 = vmatmul.mubr.f32.gmra.mrb[0].mxu0 %v763
  %v906 = vpop.f32.mrb[0].mxu0
  %v907 = vadd.f32 %v403, %v906
  %v908 = vpop.f32.mrb[0].mxu0
  %909 = vdwg.mxu0
  %v910 = vadd.f32 %v764, %v836
  %v911 = vxor.u32 %v910, 2147483648
  %v912 = vmul.f32 %v911, 1.442695
  %v913 = vpow.pop %v912
  %v914 = vadd.f32 %v913, 1.0
  %v915 = vrcp.pop %v914
  %v916 = vmul.f32 1.0, %v915
  %v917 = vadd.f32 %v765, %v838
  %v918 = vxor.u32 %v917, 2147483648
  %v919 = vmul.f32 %v918, 1.442695
  %v920 = vpow.pop %v919
  %v921 = vadd.f32 %v920, 1.0
  %v922 = vrcp.pop %v921
  %v923 = vmul.f32 1.0, %v922
  %v924 = vmul.f32 %v916, %v907
  %v925 = vadd.f32 %v766, %v924
  %v926 = vtanh.pop %v925
  %v927 = vsub.f32 1.0, %v923
  %v928 = vmul.f32 %v927, %v926
  %v929 = vmul.f32 %v923, %v763
  %v930 = vadd.f32 %v928, %v929
  %932 = vset.pattern.permute.xlu0 0
  %933 = vperm.xlu0 %932, %v768
  %v934 = vpop.permute.xlu0 %933
  %v936 = vmul.f32 %v934, %v930
  %v937 = vsub.f32 1.0, %v768
  %939 = vset.pattern.permute.xlu0 0
  %940 = vperm.xlu0 %939, %v937
  %v941 = vpop.permute.xlu0 %940
  %v943 = vmul.f32 %v941, %v763
  %v944 = vadd.f32 %v936, %v943
  %v945 = vld [vmem:[#allocation2 + $0x48] sm:$0xff]
  %v946 = vld [vmem:[#allocation2 + $0x50] sm:$0xff]
  %v947 = vld [vmem:[#allocation2 + $0x58] sm:$0xff]
  %s948 = scalar_lea.vmem %s3, 24
  %v949 = vld [vmem:[%s948] sm:$0xff]
  %950 = vmatprep.subr.mxu0 %v343
  %951 = vmatpush1.msra.mxu0 %v342
  %952 = vmatprep.subr.mxu0 %v346
  %953 = vmatpush1.msra.mxu0 %v345
  %954 = vmatprep.subr.mxu0 %v349
  %955 = vmatpush1.msra.mxu0 %v348
  %956 = vmatprep.subr.mxu0 %v352
  %957 = vmatpush1.msra.mxu0 %v351
  %958 = vmatprep.subr.mxu0 %v355
  %959 = vmatpush1.msra.mxu0 %v354
  %960 = vmatprep.subr.mxu0 %v358
  %961 = vmatpush1.msra.mxu0 %v357
  %962 = vmatprep.subr.mxu0 %v361
  %963 = vmatpush1.msra.mxu0 %v360
  %964 = vmatprep.subr.mxu0 %v364
  %965 = vmatpush1.msra.mxu0 %v363
  %966 = vmatprep.subr.mxu0 %v367
  %967 = vmatpush1.msra.mxu0 %v366
  %968 = vmatprep.subr.mxu0 %v370
  %969 = vmatpush1.msra.mxu0 %v369
  %970 = vmatprep.subr.mxu0 %v373
  %971 = vmatpush1.msra.mxu0 %v372
  %972 = vmatprep.subr.mxu0 %v376
  %973 = vmatpush1.msra.mxu0 %v375
  %974 = vmatprep.subr.mxu0 %v379
  %975 = vmatpush1.msra.mxu0 %v378
  %976 = vmatprep.subr.mxu0 %v382
  %977 = vmatpush1.msra.mxu0 %v381
  %978 = vmatprep.subr.mxu0 %v385
  %979 = vmatpush1.msra.mxu0 %v384
  %980 = vmatprep.subr.mxu0 %v388
  %981 = vmatpush1.msra.mxu0 %v387
  %982 = vmatprep.subr.mxu0 0.0
  %983 = vmatpush1.msra.mxu0 0.0
  %984 = vmatprep.subr.mxu0 0.0
  %985 = vmatpush1.msra.mxu0 0.0
  %986 = vmatprep.subr.mxu0 0.0
  %987 = vmatpush1.msra.mxu0 0.0
  %988 = vmatprep.subr.mxu0 0.0
  %989 = vmatpush1.msra.mxu0 0.0
  %990 = vmatprep.subr.mxu0 0.0
  %991 = vmatpush1.msra.mxu0 0.0
  %992 = vmatprep.subr.mxu0 0.0
  %993 = vmatpush1.msra.mxu0 0.0
  %994 = vmatprep.subr.mxu0 0.0
  %995 = vmatpush1.msra.mxu0 0.0
  %996 = vmatprep.subr.mxu0 0.0
  %997 = vmatpush1.msra.mxu0 0.0
  %998 = vmatprep.subr.mxu0 0.0
  %999 = vmatpush1.msra.mxu0 0.0
  %1000 = vmatprep.subr.mxu0 0.0
  %1001 = vmatpush1.msra.mxu0 0.0
  %1002 = vmatprep.subr.mxu0 0.0
  %1003 = vmatpush1.msra.mxu0 0.0
  %1004 = vmatprep.subr.mxu0 0.0
  %1005 = vmatpush1.msra.mxu0 0.0
  %1006 = vmatprep.subr.mxu0 0.0
  %1007 = vmatpush1.msra.mxu0 0.0
  %1008 = vmatprep.subr.mxu0 0.0
  %1009 = vmatpush1.msra.mxu0 0.0
  %1010 = vmatprep.subr.mxu0 0.0
  %1011 = vmatpush1.msra.mxu0 0.0
  %1012 = vmatprep.subr.mxu0 0.0
  %1013 = vmatpush1.msra.mxu0 0.0
  %1014 = vmatprep.mubr.f32.mxu0 0.0
  %1015 = vmatmul.mubr.f32.gmra.mrb[0].mxu0 %v944
  %v1016 = vpop.f32.mrb[0].mxu0
  %v1017 = vadd.f32 %v395, %v1016
  %v1018 = vpop.f32.mrb[0].mxu0
  %v1019 = vadd.f32 %v399, %v1018
  %1020 = vdwg.mxu0
  %1021 = vmatprep.subr.mxu0 0.0
  %1022 = vmatpush1.msra.mxu0 %v344
  %1023 = vmatprep.subr.mxu0 0.0
  %1024 = vmatpush1.msra.mxu0 %v347
  %1025 = vmatprep.subr.mxu0 0.0
  %1026 = vmatpush1.msra.mxu0 %v350
  %1027 = vmatprep.subr.mxu0 0.0
  %1028 = vmatpush1.msra.mxu0 %v353
  %1029 = vmatprep.subr.mxu0 0.0
  %1030 = vmatpush1.msra.mxu0 %v356
  %1031 = vmatprep.subr.mxu0 0.0
  %1032 = vmatpush1.msra.mxu0 %v359
  %1033 = vmatprep.subr.mxu0 0.0
  %1034 = vmatpush1.msra.mxu0 %v362
  %1035 = vmatprep.subr.mxu0 0.0
  %1036 = vmatpush1.msra.mxu0 %v365
  %1037 = vmatprep.subr.mxu0 0.0
  %1038 = vmatpush1.msra.mxu0 %v368
  %1039 = vmatprep.subr.mxu0 0.0
  %1040 = vmatpush1.msra.mxu0 %v371
  %1041 = vmatprep.subr.mxu0 0.0
  %1042 = vmatpush1.msra.mxu0 %v374
  %1043 = vmatprep.subr.mxu0 0.0
  %1044 = vmatpush1.msra.mxu0 %v377
  %1045 = vmatprep.subr.mxu0 0.0
  %1046 = vmatpush1.msra.mxu0 %v380
  %1047 = vmatprep.subr.mxu0 0.0
  %1048 = vmatpush1.msra.mxu0 %v383
  %1049 = vmatprep.subr.mxu0 0.0
  %1050 = vmatpush1.msra.mxu0 %v386
  %1051 = vmatprep.subr.mxu0 0.0
  %1052 = vmatpush1.msra.mxu0 %v389
  %1053 = vmatprep.subr.mxu0 0.0
  %1054 = vmatpush1.msra.mxu0 0.0
  %1055 = vmatprep.subr.mxu0 0.0
  %1056 = vmatpush1.msra.mxu0 0.0
  %1057 = vmatprep.subr.mxu0 0.0
  %1058 = vmatpush1.msra.mxu0 0.0
  %1059 = vmatprep.subr.mxu0 0.0
  %1060 = vmatpush1.msra.mxu0 0.0
  %1061 = vmatprep.subr.mxu0 0.0
  %1062 = vmatpush1.msra.mxu0 0.0
  %1063 = vmatprep.subr.mxu0 0.0
  %1064 = vmatpush1.msra.mxu0 0.0
  %1065 = vmatprep.subr.mxu0 0.0
  %1066 = vmatpush1.msra.mxu0 0.0
  %1067 = vmatprep.subr.mxu0 0.0
  %1068 = vmatpush1.msra.mxu0 0.0
  %1069 = vmatprep.subr.mxu0 0.0
  %1070 = vmatpush1.msra.mxu0 0.0
  %1071 = vmatprep.subr.mxu0 0.0
  %1072 = vmatpush1.msra.mxu0 0.0
  %1073 = vmatprep.subr.mxu0 0.0
  %1074 = vmatpush1.msra.mxu0 0.0
  %1075 = vmatprep.subr.mxu0 0.0
  %1076 = vmatpush1.msra.mxu0 0.0
  %1077 = vmatprep.subr.mxu0 0.0
  %1078 = vmatpush1.msra.mxu0 0.0
  %1079 = vmatprep.subr.mxu0 0.0
  %1080 = vmatpush1.msra.mxu0 0.0
  %1081 = vmatprep.subr.mxu0 0.0
  %1082 = vmatpush1.msra.mxu0 0.0
  %1083 = vmatprep.subr.mxu0 0.0
  %1084 = vmatpush1.msra.mxu0 0.0
  %1085 = vmatprep.mubr.f32.mxu0 0.0
  %1086 = vmatmul.mubr.f32.gmra.mrb[0].mxu0 %v944
  %v1087 = vpop.f32.mrb[0].mxu0
  %v1088 = vadd.f32 %v403, %v1087
  %v1089 = vpop.f32.mrb[0].mxu0
  %1090 = vdwg.mxu0
  %v1091 = vadd.f32 %v945, %v1017
  %v1092 = vxor.u32 %v1091, 2147483648
  %v1093 = vmul.f32 %v1092, 1.442695
  %v1094 = vpow.pop %v1093
  %v1095 = vadd.f32 %v1094, 1.0
  %v1096 = vrcp.pop %v1095
  %v1097 = vmul.f32 1.0, %v1096
  %v1098 = vadd.f32 %v946, %v1019
  %v1099 = vxor.u32 %v1098, 2147483648
  %v1100 = vmul.f32 %v1099, 1.442695
  %v1101 = vpow.pop %v1100
  %v1102 = vadd.f32 %v1101, 1.0
  %v1103 = vrcp.pop %v1102
  %v1104 = vmul.f32 1.0, %v1103
  %v1105 = vmul.f32 %v1097, %v1088
  %v1106 = vadd.f32 %v947, %v1105
  %v1107 = vtanh.pop %v1106
  %v1108 = vsub.f32 1.0, %v1104
  %v1109 = vmul.f32 %v1108, %v1107
  %v1110 = vmul.f32 %v1104, %v944
  %v1111 = vadd.f32 %v1109, %v1110
  %1113 = vset.pattern.permute.xlu0 0
  %1114 = vperm.xlu0 %1113, %v949
  %v1115 = vpop.permute.xlu0 %1114
  %v1117 = vmul.f32 %v1115, %v1111
  %v1118 = vsub.f32 1.0, %v949
  %1120 = vset.pattern.permute.xlu0 0
  %1121 = vperm.xlu0 %1120, %v1118
  %v1122 = vpop.permute.xlu0 %1121
  %v1124 = vmul.f32 %v1122, %v944
  %v1125 = vadd.f32 %v1117, %v1124
  %v1126 = vld [vmem:[#allocation2 + $0x60] sm:$0xff]
  %v1127 = vld [vmem:[#allocation2 + $0x68] sm:$0xff]
  %v1128 = vld [vmem:[#allocation2 + $0x70] sm:$0xff]
  %s1129 = scalar_lea.vmem %s3, 32
  %v1130 = vld [vmem:[%s1129] sm:$0xff]
  %1131 = vmatprep.subr.mxu0 %v343
  %1132 = vmatpush1.msra.mxu0 %v342
  %1133 = vmatprep.subr.mxu0 %v346
  %1134 = vmatpush1.msra.mxu0 %v345
  %1135 = vmatprep.subr.mxu0 %v349
  %1136 = vmatpush1.msra.mxu0 %v348
  %1137 = vmatprep.subr.mxu0 %v352
  %1138 = vmatpush1.msra.mxu0 %v351
  %1139 = vmatprep.subr.mxu0 %v355
  %1140 = vmatpush1.msra.mxu0 %v354
  %1141 = vmatprep.subr.mxu0 %v358
  %1142 = vmatpush1.msra.mxu0 %v357
  %1143 = vmatprep.subr.mxu0 %v361
  %1144 = vmatpush1.msra.mxu0 %v360
  %1145 = vmatprep.subr.mxu0 %v364
  %1146 = vmatpush1.msra.mxu0 %v363
  %1147 = vmatprep.subr.mxu0 %v367
  %1148 = vmatpush1.msra.mxu0 %v366
  %1149 = vmatprep.subr.mxu0 %v370
  %1150 = vmatpush1.msra.mxu0 %v369
  %1151 = vmatprep.subr.mxu0 %v373
  %1152 = vmatpush1.msra.mxu0 %v372
  %1153 = vmatprep.subr.mxu0 %v376
  %1154 = vmatpush1.msra.mxu0 %v375
  %1155 = vmatprep.subr.mxu0 %v379
  %1156 = vmatpush1.msra.mxu0 %v378
  %1157 = vmatprep.subr.mxu0 %v382
  %1158 = vmatpush1.msra.mxu0 %v381
  %1159 = vmatprep.subr.mxu0 %v385
  %1160 = vmatpush1.msra.mxu0 %v384
  %1161 = vmatprep.subr.mxu0 %v388
  %1162 = vmatpush1.msra.mxu0 %v387
  %1163 = vmatprep.subr.mxu0 0.0
  %1164 = vmatpush1.msra.mxu0 0.0
  %1165 = vmatprep.subr.mxu0 0.0
  %1166 = vmatpush1.msra.mxu0 0.0
  %1167 = vmatprep.subr.mxu0 0.0
  %1168 = vmatpush1.msra.mxu0 0.0
  %1169 = vmatprep.subr.mxu0 0.0
  %1170 = vmatpush1.msra.mxu0 0.0
  %1171 = vmatprep.subr.mxu0 0.0
  %1172 = vmatpush1.msra.mxu0 0.0
  %1173 = vmatprep.subr.mxu0 0.0
  %1174 = vmatpush1.msra.mxu0 0.0
  %1175 = vmatprep.subr.mxu0 0.0
  %1176 = vmatpush1.msra.mxu0 0.0
  %1177 = vmatprep.subr.mxu0 0.0
  %1178 = vmatpush1.msra.mxu0 0.0
  %1179 = vmatprep.subr.mxu0 0.0
  %1180 = vmatpush1.msra.mxu0 0.0
  %1181 = vmatprep.subr.mxu0 0.0
  %1182 = vmatpush1.msra.mxu0 0.0
  %1183 = vmatprep.subr.mxu0 0.0
  %1184 = vmatpush1.msra.mxu0 0.0
  %1185 = vmatprep.subr.mxu0 0.0
  %1186 = vmatpush1.msra.mxu0 0.0
  %1187 = vmatprep.subr.mxu0 0.0
  %1188 = vmatpush1.msra.mxu0 0.0
  %1189 = vmatprep.subr.mxu0 0.0
  %1190 = vmatpush1.msra.mxu0 0.0
  %1191 = vmatprep.subr.mxu0 0.0
  %1192 = vmatpush1.msra.mxu0 0.0
  %1193 = vmatprep.subr.mxu0 0.0
  %1194 = vmatpush1.msra.mxu0 0.0
  %1195 = vmatprep.mubr.f32.mxu0 0.0
  %1196 = vmatmul.mubr.f32.gmra.mrb[0].mxu0 %v1125
  %v1197 = vpop.f32.mrb[0].mxu0
  %v1198 = vadd.f32 %v395, %v1197
  %v1199 = vpop.f32.mrb[0].mxu0
  %v1200 = vadd.f32 %v399, %v1199
  %1201 = vdwg.mxu0
  %1202 = vmatprep.subr.mxu0 0.0
  %1203 = vmatpush1.msra.mxu0 %v344
  %1204 = vmatprep.subr.mxu0 0.0
  %1205 = vmatpush1.msra.mxu0 %v347
  %1206 = vmatprep.subr.mxu0 0.0
  %1207 = vmatpush1.msra.mxu0 %v350
  %1208 = vmatprep.subr.mxu0 0.0
  %1209 = vmatpush1.msra.mxu0 %v353
  %1210 = vmatprep.subr.mxu0 0.0
  %1211 = vmatpush1.msra.mxu0 %v356
  %1212 = vmatprep.subr.mxu0 0.0
  %1213 = vmatpush1.msra.mxu0 %v359
  %1214 = vmatprep.subr.mxu0 0.0
  %1215 = vmatpush1.msra.mxu0 %v362
  %1216 = vmatprep.subr.mxu0 0.0
  %1217 = vmatpush1.msra.mxu0 %v365
  %1218 = vmatprep.subr.mxu0 0.0
  %1219 = vmatpush1.msra.mxu0 %v368
  %1220 = vmatprep.subr.mxu0 0.0
  %1221 = vmatpush1.msra.mxu0 %v371
  %1222 = vmatprep.subr.mxu0 0.0
  %1223 = vmatpush1.msra.mxu0 %v374
  %1224 = vmatprep.subr.mxu0 0.0
  %1225 = vmatpush1.msra.mxu0 %v377
  %1226 = vmatprep.subr.mxu0 0.0
  %1227 = vmatpush1.msra.mxu0 %v380
  %1228 = vmatprep.subr.mxu0 0.0
  %1229 = vmatpush1.msra.mxu0 %v383
  %1230 = vmatprep.subr.mxu0 0.0
  %1231 = vmatpush1.msra.mxu0 %v386
  %1232 = vmatprep.subr.mxu0 0.0
  %1233 = vmatpush1.msra.mxu0 %v389
  %1234 = vmatprep.subr.mxu0 0.0
  %1235 = vmatpush1.msra.mxu0 0.0
  %1236 = vmatprep.subr.mxu0 0.0
  %1237 = vmatpush1.msra.mxu0 0.0
  %1238 = vmatprep.subr.mxu0 0.0
  %1239 = vmatpush1.msra.mxu0 0.0
  %1240 = vmatprep.subr.mxu0 0.0
  %1241 = vmatpush1.msra.mxu0 0.0
  %1242 = vmatprep.subr.mxu0 0.0
  %1243 = vmatpush1.msra.mxu0 0.0
  %1244 = vmatprep.subr.mxu0 0.0
  %1245 = vmatpush1.msra.mxu0 0.0
  %1246 = vmatprep.subr.mxu0 0.0
  %1247 = vmatpush1.msra.mxu0 0.0
  %1248 = vmatprep.subr.mxu0 0.0
  %1249 = vmatpush1.msra.mxu0 0.0
  %1250 = vmatprep.subr.mxu0 0.0
  %1251 = vmatpush1.msra.mxu0 0.0
  %1252 = vmatprep.subr.mxu0 0.0
  %1253 = vmatpush1.msra.mxu0 0.0
  %1254 = vmatprep.subr.mxu0 0.0
  %1255 = vmatpush1.msra.mxu0 0.0
  %1256 = vmatprep.subr.mxu0 0.0
  %1257 = vmatpush1.msra.mxu0 0.0
  %1258 = vmatprep.subr.mxu0 0.0
  %1259 = vmatpush1.msra.mxu0 0.0
  %1260 = vmatprep.subr.mxu0 0.0
  %1261 = vmatpush1.msra.mxu0 0.0
  %1262 = vmatprep.subr.mxu0 0.0
  %1263 = vmatpush1.msra.mxu0 0.0
  %1264 = vmatprep.subr.mxu0 0.0
  %1265 = vmatpush1.msra.mxu0 0.0
  %1266 = vmatprep.mubr.f32.mxu0 0.0
  %1267 = vmatmul.mubr.f32.gmra.mrb[0].mxu0 %v1125
  %v1268 = vpop.f32.mrb[0].mxu0
  %v1269 = vadd.f32 %v403, %v1268
  %v1270 = vpop.f32.mrb[0].mxu0
  %1271 = vdwg.mxu0
  %v1272 = vadd.f32 %v1126, %v1198
  %v1273 = vxor.u32 %v1272, 2147483648
  %v1274 = vmul.f32 %v1273, 1.442695
  %v1275 = vpow.pop %v1274
  %v1276 = vadd.f32 %v1275, 1.0
  %v1277 = vrcp.pop %v1276
  %v1278 = vmul.f32 1.0, %v1277
  %v1279 = vadd.f32 %v1127, %v1200
  %v1280 = vxor.u32 %v1279, 2147483648
  %v1281 = vmul.f32 %v1280, 1.442695
  %v1282 = vpow.pop %v1281
  %v1283 = vadd.f32 %v1282, 1.0
  %v1284 = vrcp.pop %v1283
  %v1285 = vmul.f32 1.0, %v1284
  %v1286 = vmul.f32 %v1278, %v1269
  %v1287 = vadd.f32 %v1128, %v1286
  %v1288 = vtanh.pop %v1287
  %v1289 = vsub.f32 1.0, %v1285
  %v1290 = vmul.f32 %v1289, %v1288
  %v1291 = vmul.f32 %v1285, %v1125
  %v1292 = vadd.f32 %v1290, %v1291
  %1294 = vset.pattern.permute.xlu0 0
  %1295 = vperm.xlu0 %1294, %v1130
  %v1296 = vpop.permute.xlu0 %1295
  %v1298 = vmul.f32 %v1296, %v1292
  %v1299 = vsub.f32 1.0, %v1130
  %1301 = vset.pattern.permute.xlu0 0
  %1302 = vperm.xlu0 %1301, %v1299
  %v1303 = vpop.permute.xlu0 %1302
  %v1305 = vmul.f32 %v1303, %v1125
  %v1306 = vadd.f32 %v1298, %v1305
  %v1307 = vld [vmem:[#allocation2 + $0x78] sm:$0xff]
  %v1308 = vld [vmem:[#allocation2 + $0x80] sm:$0xff]
  %v1309 = vld [vmem:[#allocation2 + $0x88] sm:$0xff]
  %s1310 = scalar_lea.vmem %s3, 40
  %v1311 = vld [vmem:[%s1310] sm:$0xff]
  %1312 = vmatprep.subr.mxu0 %v343
  %1313 = vmatpush1.msra.mxu0 %v342
  %1314 = vmatprep.subr.mxu0 %v346
  %1315 = vmatpush1.msra.mxu0 %v345
  %1316 = vmatprep.subr.mxu0 %v349
  %1317 = vmatpush1.msra.mxu0 %v348
  %1318 = vmatprep.subr.mxu0 %v352
  %1319 = vmatpush1.msra.mxu0 %v351
  %1320 = vmatprep.subr.mxu0 %v355
  %1321 = vmatpush1.msra.mxu0 %v354
  %1322 = vmatprep.subr.mxu0 %v358
  %1323 = vmatpush1.msra.mxu0 %v357
  %1324 = vmatprep.subr.mxu0 %v361
  %1325 = vmatpush1.msra.mxu0 %v360
  %1326 = vmatprep.subr.mxu0 %v364
  %1327 = vmatpush1.msra.mxu0 %v363
  %1328 = vmatprep.subr.mxu0 %v367
  %1329 = vmatpush1.msra.mxu0 %v366
  %1330 = vmatprep.subr.mxu0 %v370
  %1331 = vmatpush1.msra.mxu0 %v369
  %1332 = vmatprep.subr.mxu0 %v373
  %1333 = vmatpush1.msra.mxu0 %v372
  %1334 = vmatprep.subr.mxu0 %v376
  %1335 = vmatpush1.msra.mxu0 %v375
  %1336 = vmatprep.subr.mxu0 %v379
  %1337 = vmatpush1.msra.mxu0 %v378
  %1338 = vmatprep.subr.mxu0 %v382
  %1339 = vmatpush1.msra.mxu0 %v381
  %1340 = vmatprep.subr.mxu0 %v385
  %1341 = vmatpush1.msra.mxu0 %v384
  %1342 = vmatprep.subr.mxu0 %v388
  %1343 = vmatpush1.msra.mxu0 %v387
  %1344 = vmatprep.subr.mxu0 0.0
  %1345 = vmatpush1.msra.mxu0 0.0
  %1346 = vmatprep.subr.mxu0 0.0
  %1347 = vmatpush1.msra.mxu0 0.0
  %1348 = vmatprep.subr.mxu0 0.0
  %1349 = vmatpush1.msra.mxu0 0.0
  %1350 = vmatprep.subr.mxu0 0.0
  %1351 = vmatpush1.msra.mxu0 0.0
  %1352 = vmatprep.subr.mxu0 0.0
  %1353 = vmatpush1.msra.mxu0 0.0
  %1354 = vmatprep.subr.mxu0 0.0
  %1355 = vmatpush1.msra.mxu0 0.0
  %1356 = vmatprep.subr.mxu0 0.0
  %1357 = vmatpush1.msra.mxu0 0.0
  %1358 = vmatprep.subr.mxu0 0.0
  %1359 = vmatpush1.msra.mxu0 0.0
  %1360 = vmatprep.subr.mxu0 0.0
  %1361 = vmatpush1.msra.mxu0 0.0
  %1362 = vmatprep.subr.mxu0 0.0
  %1363 = vmatpush1.msra.mxu0 0.0
  %1364 = vmatprep.subr.mxu0 0.0
  %1365 = vmatpush1.msra.mxu0 0.0
  %1366 = vmatprep.subr.mxu0 0.0
  %1367 = vmatpush1.msra.mxu0 0.0
  %1368 = vmatprep.subr.mxu0 0.0
  %1369 = vmatpush1.msra.mxu0 0.0
  %1370 = vmatprep.subr.mxu0 0.0
  %1371 = vmatpush1.msra.mxu0 0.0
  %1372 = vmatprep.subr.mxu0 0.0
  %1373 = vmatpush1.msra.mxu0 0.0
  %1374 = vmatprep.subr.mxu0 0.0
  %1375 = vmatpush1.msra.mxu0 0.0
  %1376 = vmatprep.mubr.f32.mxu0 0.0
  %1377 = vmatmul.mubr.f32.gmra.mrb[0].mxu0 %v1306
  %v1378 = vpop.f32.mrb[0].mxu0
  %v1379 = vadd.f32 %v395, %v1378
  %v1380 = vpop.f32.mrb[0].mxu0
  %v1381 = vadd.f32 %v399, %v1380
  %1382 = vdwg.mxu0
  %1383 = vmatprep.subr.mxu0 0.0
  %1384 = vmatpush1.msra.mxu0 %v344
  %1385 = vmatprep.subr.mxu0 0.0
  %1386 = vmatpush1.msra.mxu0 %v347
  %1387 = vmatprep.subr.mxu0 0.0
  %1388 = vmatpush1.msra.mxu0 %v350
  %1389 = vmatprep.subr.mxu0 0.0
  %1390 = vmatpush1.msra.mxu0 %v353
  %1391 = vmatprep.subr.mxu0 0.0
  %1392 = vmatpush1.msra.mxu0 %v356
  %1393 = vmatprep.subr.mxu0 0.0
  %1394 = vmatpush1.msra.mxu0 %v359
  %1395 = vmatprep.subr.mxu0 0.0
  %1396 = vmatpush1.msra.mxu0 %v362
  %1397 = vmatprep.subr.mxu0 0.0
  %1398 = vmatpush1.msra.mxu0 %v365
  %1399 = vmatprep.subr.mxu0 0.0
  %1400 = vmatpush1.msra.mxu0 %v368
  %1401 = vmatprep.subr.mxu0 0.0
  %1402 = vmatpush1.msra.mxu0 %v371
  %1403 = vmatprep.subr.mxu0 0.0
  %1404 = vmatpush1.msra.mxu0 %v374
  %1405 = vmatprep.subr.mxu0 0.0
  %1406 = vmatpush1.msra.mxu0 %v377
  %1407 = vmatprep.subr.mxu0 0.0
  %1408 = vmatpush1.msra.mxu0 %v380
  %1409 = vmatprep.subr.mxu0 0.0
  %1410 = vmatpush1.msra.mxu0 %v383
  %1411 = vmatprep.subr.mxu0 0.0
  %1412 = vmatpush1.msra.mxu0 %v386
  %1413 = vmatprep.subr.mxu0 0.0
  %1414 = vmatpush1.msra.mxu0 %v389
  %1415 = vmatprep.subr.mxu0 0.0
  %1416 = vmatpush1.msra.mxu0 0.0
  %1417 = vmatprep.subr.mxu0 0.0
  %1418 = vmatpush1.msra.mxu0 0.0
  %1419 = vmatprep.subr.mxu0 0.0
  %1420 = vmatpush1.msra.mxu0 0.0
  %1421 = vmatprep.subr.mxu0 0.0
  %1422 = vmatpush1.msra.mxu0 0.0
  %1423 = vmatprep.subr.mxu0 0.0
  %1424 = vmatpush1.msra.mxu0 0.0
  %1425 = vmatprep.subr.mxu0 0.0
  %1426 = vmatpush1.msra.mxu0 0.0
  %1427 = vmatprep.subr.mxu0 0.0
  %1428 = vmatpush1.msra.mxu0 0.0
  %1429 = vmatprep.subr.mxu0 0.0
  %1430 = vmatpush1.msra.mxu0 0.0
  %1431 = vmatprep.subr.mxu0 0.0
  %1432 = vmatpush1.msra.mxu0 0.0
  %1433 = vmatprep.subr.mxu0 0.0
  %1434 = vmatpush1.msra.mxu0 0.0
  %1435 = vmatprep.subr.mxu0 0.0
  %1436 = vmatpush1.msra.mxu0 0.0
  %1437 = vmatprep.subr.mxu0 0.0
  %1438 = vmatpush1.msra.mxu0 0.0
  %1439 = vmatprep.subr.mxu0 0.0
  %1440 = vmatpush1.msra.mxu0 0.0
  %1441 = vmatprep.subr.mxu0 0.0
  %1442 = vmatpush1.msra.mxu0 0.0
  %1443 = vmatprep.subr.mxu0 0.0
  %1444 = vmatpush1.msra.mxu0 0.0
  %1445 = vmatprep.subr.mxu0 0.0
  %1446 = vmatpush1.msra.mxu0 0.0
  %1447 = vmatprep.mubr.f32.mxu0 0.0
  %1448 = vmatmul.mubr.f32.gmra.mrb[0].mxu0 %v1306
  %v1449 = vpop.f32.mrb[0].mxu0
  %v1450 = vadd.f32 %v403, %v1449
  %v1451 = vpop.f32.mrb[0].mxu0
  %1452 = vdwg.mxu0
  %v1453 = vadd.f32 %v1307, %v1379
  %v1454 = vxor.u32 %v1453, 2147483648
  %v1455 = vmul.f32 %v1454, 1.442695
  %v1456 = vpow.pop %v1455
  %v1457 = vadd.f32 %v1456, 1.0
  %v1458 = vrcp.pop %v1457
  %v1459 = vmul.f32 1.0, %v1458
  %v1460 = vadd.f32 %v1308, %v1381
  %v1461 = vxor.u32 %v1460, 2147483648
  %v1462 = vmul.f32 %v1461, 1.442695
  %v1463 = vpow.pop %v1462
  %v1464 = vadd.f32 %v1463, 1.0
  %v1465 = vrcp.pop %v1464
  %v1466 = vmul.f32 1.0, %v1465
  %v1467 = vmul.f32 %v1459, %v1450
  %v1468 = vadd.f32 %v1309, %v1467
  %v1469 = vtanh.pop %v1468
  %v1470 = vsub.f32 1.0, %v1466
  %v1471 = vmul.f32 %v1470, %v1469
  %v1472 = vmul.f32 %v1466, %v1306
  %v1473 = vadd.f32 %v1471, %v1472
  %1475 = vset.pattern.permute.xlu0 0
  %1476 = vperm.xlu0 %1475, %v1311
  %v1477 = vpop.permute.xlu0 %1476
  %v1479 = vmul.f32 %v1477, %v1473
  %v1480 = vsub.f32 1.0, %v1311
  %1482 = vset.pattern.permute.xlu0 0
  %1483 = vperm.xlu0 %1482, %v1480
  %v1484 = vpop.permute.xlu0 %1483
  %v1486 = vmul.f32 %v1484, %v1306
  %v1487 = vadd.f32 %v1479, %v1486
  %v1488 = vld [vmem:[#allocation2 + $0x90] sm:$0xff]
  %v1489 = vld [vmem:[#allocation2 + $0x98] sm:$0xff]
  %v1490 = vld [vmem:[#allocation2 + $0xa0] sm:$0xff]
  %s1491 = scalar_lea.vmem %s3, 48
  %v1492 = vld [vmem:[%s1491] sm:$0xff]
  %1493 = vmatprep.subr.mxu0 %v343
  %1494 = vmatpush1.msra.mxu0 %v342
  %1495 = vmatprep.subr.mxu0 %v346
  %1496 = vmatpush1.msra.mxu0 %v345
  %1497 = vmatprep.subr.mxu0 %v349
  %1498 = vmatpush1.msra.mxu0 %v348
  %1499 = vmatprep.subr.mxu0 %v352
  %1500 = vmatpush1.msra.mxu0 %v351
  %1501 = vmatprep.subr.mxu0 %v355
  %1502 = vmatpush1.msra.mxu0 %v354
  %1503 = vmatprep.subr.mxu0 %v358
  %1504 = vmatpush1.msra.mxu0 %v357
  %1505 = vmatprep.subr.mxu0 %v361
  %1506 = vmatpush1.msra.mxu0 %v360
  %1507 = vmatprep.subr.mxu0 %v364
  %1508 = vmatpush1.msra.mxu0 %v363
  %1509 = vmatprep.subr.mxu0 %v367
  %1510 = vmatpush1.msra.mxu0 %v366
  %1511 = vmatprep.subr.mxu0 %v370
  %1512 = vmatpush1.msra.mxu0 %v369
  %1513 = vmatprep.subr.mxu0 %v373
  %1514 = vmatpush1.msra.mxu0 %v372
  %1515 = vmatprep.subr.mxu0 %v376
  %1516 = vmatpush1.msra.mxu0 %v375
  %1517 = vmatprep.subr.mxu0 %v379
  %1518 = vmatpush1.msra.mxu0 %v378
  %1519 = vmatprep.subr.mxu0 %v382
  %1520 = vmatpush1.msra.mxu0 %v381
  %1521 = vmatprep.subr.mxu0 %v385
  %1522 = vmatpush1.msra.mxu0 %v384
  %1523 = vmatprep.subr.mxu0 %v388
  %1524 = vmatpush1.msra.mxu0 %v387
  %1525 = vmatprep.subr.mxu0 0.0
  %1526 = vmatpush1.msra.mxu0 0.0
  %1527 = vmatprep.subr.mxu0 0.0
  %1528 = vmatpush1.msra.mxu0 0.0
  %1529 = vmatprep.subr.mxu0 0.0
  %1530 = vmatpush1.msra.mxu0 0.0
  %1531 = vmatprep.subr.mxu0 0.0
  %1532 = vmatpush1.msra.mxu0 0.0
  %1533 = vmatprep.subr.mxu0 0.0
  %1534 = vmatpush1.msra.mxu0 0.0
  %1535 = vmatprep.subr.mxu0 0.0
  %1536 = vmatpush1.msra.mxu0 0.0
  %1537 = vmatprep.subr.mxu0 0.0
  %1538 = vmatpush1.msra.mxu0 0.0
  %1539 = vmatprep.subr.mxu0 0.0
  %1540 = vmatpush1.msra.mxu0 0.0
  %1541 = vmatprep.subr.mxu0 0.0
  %1542 = vmatpush1.msra.mxu0 0.0
  %1543 = vmatprep.subr.mxu0 0.0
  %1544 = vmatpush1.msra.mxu0 0.0
  %1545 = vmatprep.subr.mxu0 0.0
  %1546 = vmatpush1.msra.mxu0 0.0
  %1547 = vmatprep.subr.mxu0 0.0
  %1548 = vmatpush1.msra.mxu0 0.0
  %1549 = vmatprep.subr.mxu0 0.0
  %1550 = vmatpush1.msra.mxu0 0.0
  %1551 = vmatprep.subr.mxu0 0.0
  %1552 = vmatpush1.msra.mxu0 0.0
  %1553 = vmatprep.subr.mxu0 0.0
  %1554 = vmatpush1.msra.mxu0 0.0
  %1555 = vmatprep.subr.mxu0 0.0
  %1556 = vmatpush1.msra.mxu0 0.0
  %1557 = vmatprep.mubr.f32.mxu0 0.0
  %1558 = vmatmul.mubr.f32.gmra.mrb[0].mxu0 %v1487
  %v1559 = vpop.f32.mrb[0].mxu0
  %v1560 = vadd.f32 %v395, %v1559
  %v1561 = vpop.f32.mrb[0].mxu0
  %v1562 = vadd.f32 %v399, %v1561
  %1563 = vdwg.mxu0
  %1564 = vmatprep.subr.mxu0 0.0
  %1565 = vmatpush1.msra.mxu0 %v344
  %1566 = vmatprep.subr.mxu0 0.0
  %1567 = vmatpush1.msra.mxu0 %v347
  %1568 = vmatprep.subr.mxu0 0.0
  %1569 = vmatpush1.msra.mxu0 %v350
  %1570 = vmatprep.subr.mxu0 0.0
  %1571 = vmatpush1.msra.mxu0 %v353
  %1572 = vmatprep.subr.mxu0 0.0
  %1573 = vmatpush1.msra.mxu0 %v356
  %1574 = vmatprep.subr.mxu0 0.0
  %1575 = vmatpush1.msra.mxu0 %v359
  %1576 = vmatprep.subr.mxu0 0.0
  %1577 = vmatpush1.msra.mxu0 %v362
  %1578 = vmatprep.subr.mxu0 0.0
  %1579 = vmatpush1.msra.mxu0 %v365
  %1580 = vmatprep.subr.mxu0 0.0
  %1581 = vmatpush1.msra.mxu0 %v368
  %1582 = vmatprep.subr.mxu0 0.0
  %1583 = vmatpush1.msra.mxu0 %v371
  %1584 = vmatprep.subr.mxu0 0.0
  %1585 = vmatpush1.msra.mxu0 %v374
  %1586 = vmatprep.subr.mxu0 0.0
  %1587 = vmatpush1.msra.mxu0 %v377
  %1588 = vmatprep.subr.mxu0 0.0
  %1589 = vmatpush1.msra.mxu0 %v380
  %1590 = vmatprep.subr.mxu0 0.0
  %1591 = vmatpush1.msra.mxu0 %v383
  %1592 = vmatprep.subr.mxu0 0.0
  %1593 = vmatpush1.msra.mxu0 %v386
  %1594 = vmatprep.subr.mxu0 0.0
  %1595 = vmatpush1.msra.mxu0 %v389
  %1596 = vmatprep.subr.mxu0 0.0
  %1597 = vmatpush1.msra.mxu0 0.0
  %1598 = vmatprep.subr.mxu0 0.0
  %1599 = vmatpush1.msra.mxu0 0.0
  %1600 = vmatprep.subr.mxu0 0.0
  %1601 = vmatpush1.msra.mxu0 0.0
  %1602 = vmatprep.subr.mxu0 0.0
  %1603 = vmatpush1.msra.mxu0 0.0
  %1604 = vmatprep.subr.mxu0 0.0
  %1605 = vmatpush1.msra.mxu0 0.0
  %1606 = vmatprep.subr.mxu0 0.0
  %1607 = vmatpush1.msra.mxu0 0.0
  %1608 = vmatprep.subr.mxu0 0.0
  %1609 = vmatpush1.msra.mxu0 0.0
  %1610 = vmatprep.subr.mxu0 0.0
  %1611 = vmatpush1.msra.mxu0 0.0
  %1612 = vmatprep.subr.mxu0 0.0
  %1613 = vmatpush1.msra.mxu0 0.0
  %1614 = vmatprep.subr.mxu0 0.0
  %1615 = vmatpush1.msra.mxu0 0.0
  %1616 = vmatprep.subr.mxu0 0.0
  %1617 = vmatpush1.msra.mxu0 0.0
  %1618 = vmatprep.subr.mxu0 0.0
  %1619 = vmatpush1.msra.mxu0 0.0
  %1620 = vmatprep.subr.mxu0 0.0
  %1621 = vmatpush1.msra.mxu0 0.0
  %1622 = vmatprep.subr.mxu0 0.0
  %1623 = vmatpush1.msra.mxu0 0.0
  %1624 = vmatprep.subr.mxu0 0.0
  %1625 = vmatpush1.msra.mxu0 0.0
  %1626 = vmatprep.subr.mxu0 0.0
  %1627 = vmatpush1.msra.mxu0 0.0
  %1628 = vmatprep.mubr.f32.mxu0 0.0
  %1629 = vmatmul.mubr.f32.gmra.mrb[0].mxu0 %v1487
  %v1630 = vpop.f32.mrb[0].mxu0
  %v1631 = vadd.f32 %v403, %v1630
  %v1632 = vpop.f32.mrb[0].mxu0
  %1633 = vdwg.mxu0
  %v1634 = vadd.f32 %v1488, %v1560
  %v1635 = vxor.u32 %v1634, 2147483648
  %v1636 = vmul.f32 %v1635, 1.442695
  %v1637 = vpow.pop %v1636
  %v1638 = vadd.f32 %v1637, 1.0
  %v1639 = vrcp.pop %v1638
  %v1640 = vmul.f32 1.0, %v1639
  %v1641 = vadd.f32 %v1489, %v1562
  %v1642 = vxor.u32 %v1641, 2147483648
  %v1643 = vmul.f32 %v1642, 1.442695
  %v1644 = vpow.pop %v1643
  %v1645 = vadd.f32 %v1644, 1.0
  %v1646 = vrcp.pop %v1645
  %v1647 = vmul.f32 1.0, %v1646
  %v1648 = vmul.f32 %v1640, %v1631
  %v1649 = vadd.f32 %v1490, %v1648
  %v1650 = vtanh.pop %v1649
  %v1651 = vsub.f32 1.0, %v1647
  %v1652 = vmul.f32 %v1651, %v1650
  %v1653 = vmul.f32 %v1647, %v1487
  %v1654 = vadd.f32 %v1652, %v1653
  %1656 = vset.pattern.permute.xlu0 0
  %1657 = vperm.xlu0 %1656, %v1492
  %v1658 = vpop.permute.xlu0 %1657
  %v1660 = vmul.f32 %v1658, %v1654
  %v1661 = vsub.f32 1.0, %v1492
  %1663 = vset.pattern.permute.xlu0 0
  %1664 = vperm.xlu0 %1663, %v1661
  %v1665 = vpop.permute.xlu0 %1664
  %v1667 = vmul.f32 %v1665, %v1487
  %v1668 = vadd.f32 %v1660, %v1667
  %v1669 = vld [vmem:[#allocation2 + $0xa8] sm:$0xff]
  %v1670 = vld [vmem:[#allocation2 + $0xb0] sm:$0xff]
  %v1671 = vld [vmem:[#allocation2 + $0xb8] sm:$0xff]
  %s1672 = scalar_lea.vmem %s3, 56
  %v1673 = vld [vmem:[%s1672] sm:$0xff]
  %1674 = vmatprep.subr.mxu0 %v343
  %1675 = vmatpush1.msra.mxu0 %v342
  %1676 = vmatprep.subr.mxu0 %v346
  %1677 = vmatpush1.msra.mxu0 %v345
  %1678 = vmatprep.subr.mxu0 %v349
  %1679 = vmatpush1.msra.mxu0 %v348
  %1680 = vmatprep.subr.mxu0 %v352
  %1681 = vmatpush1.msra.mxu0 %v351
  %1682 = vmatprep.subr.mxu0 %v355
  %1683 = vmatpush1.msra.mxu0 %v354
  %1684 = vmatprep.subr.mxu0 %v358
  %1685 = vmatpush1.msra.mxu0 %v357
  %1686 = vmatprep.subr.mxu0 %v361
  %1687 = vmatpush1.msra.mxu0 %v360
  %1688 = vmatprep.subr.mxu0 %v364
  %1689 = vmatpush1.msra.mxu0 %v363
  %1690 = vmatprep.subr.mxu0 %v367
  %1691 = vmatpush1.msra.mxu0 %v366
  %1692 = vmatprep.subr.mxu0 %v370
  %1693 = vmatpush1.msra.mxu0 %v369
  %1694 = vmatprep.subr.mxu0 %v373
  %1695 = vmatpush1.msra.mxu0 %v372
  %1696 = vmatprep.subr.mxu0 %v376
  %1697 = vmatpush1.msra.mxu0 %v375
  %1698 = vmatprep.subr.mxu0 %v379
  %1699 = vmatpush1.msra.mxu0 %v378
  %1700 = vmatprep.subr.mxu0 %v382
  %1701 = vmatpush1.msra.mxu0 %v381
  %1702 = vmatprep.subr.mxu0 %v385
  %1703 = vmatpush1.msra.mxu0 %v384
  %1704 = vmatprep.subr.mxu0 %v388
  %1705 = vmatpush1.msra.mxu0 %v387
  %1706 = vmatprep.subr.mxu0 0.0
  %1707 = vmatpush1.msra.mxu0 0.0
  %1708 = vmatprep.subr.mxu0 0.0
  %1709 = vmatpush1.msra.mxu0 0.0
  %1710 = vmatprep.subr.mxu0 0.0
  %1711 = vmatpush1.msra.mxu0 0.0
  %1712 = vmatprep.subr.mxu0 0.0
  %1713 = vmatpush1.msra.mxu0 0.0
  %1714 = vmatprep.subr.mxu0 0.0
  %1715 = vmatpush1.msra.mxu0 0.0
  %1716 = vmatprep.subr.mxu0 0.0
  %1717 = vmatpush1.msra.mxu0 0.0
  %1718 = vmatprep.subr.mxu0 0.0
  %1719 = vmatpush1.msra.mxu0 0.0
  %1720 = vmatprep.subr.mxu0 0.0
  %1721 = vmatpush1.msra.mxu0 0.0
  %1722 = vmatprep.subr.mxu0 0.0
  %1723 = vmatpush1.msra.mxu0 0.0
  %1724 = vmatprep.subr.mxu0 0.0
  %1725 = vmatpush1.msra.mxu0 0.0
  %1726 = vmatprep.subr.mxu0 0.0
  %1727 = vmatpush1.msra.mxu0 0.0
  %1728 = vmatprep.subr.mxu0 0.0
  %1729 = vmatpush1.msra.mxu0 0.0
  %1730 = vmatprep.subr.mxu0 0.0
  %1731 = vmatpush1.msra.mxu0 0.0
  %1732 = vmatprep.subr.mxu0 0.0
  %1733 = vmatpush1.msra.mxu0 0.0
  %1734 = vmatprep.subr.mxu0 0.0
  %1735 = vmatpush1.msra.mxu0 0.0
  %1736 = vmatprep.subr.mxu0 0.0
  %1737 = vmatpush1.msra.mxu0 0.0
  %1738 = vmatprep.mubr.f32.mxu0 0.0
  %1739 = vmatmul.mubr.f32.gmra.mrb[0].mxu0 %v1668
  %v1740 = vpop.f32.mrb[0].mxu0
  %v1741 = vadd.f32 %v395, %v1740
  %v1742 = vpop.f32.mrb[0].mxu0
  %v1743 = vadd.f32 %v399, %v1742
  %1744 = vdwg.mxu0
  %1745 = vmatprep.subr.mxu0 0.0
  %1746 = vmatpush1.msra.mxu0 %v344
  %1747 = vmatprep.subr.mxu0 0.0
  %1748 = vmatpush1.msra.mxu0 %v347
  %1749 = vmatprep.subr.mxu0 0.0
  %1750 = vmatpush1.msra.mxu0 %v350
  %1751 = vmatprep.subr.mxu0 0.0
  %1752 = vmatpush1.msra.mxu0 %v353
  %1753 = vmatprep.subr.mxu0 0.0
  %1754 = vmatpush1.msra.mxu0 %v356
  %1755 = vmatprep.subr.mxu0 0.0
  %1756 = vmatpush1.msra.mxu0 %v359
  %1757 = vmatprep.subr.mxu0 0.0
  %1758 = vmatpush1.msra.mxu0 %v362
  %1759 = vmatprep.subr.mxu0 0.0
  %1760 = vmatpush1.msra.mxu0 %v365
  %1761 = vmatprep.subr.mxu0 0.0
  %1762 = vmatpush1.msra.mxu0 %v368
  %1763 = vmatprep.subr.mxu0 0.0
  %1764 = vmatpush1.msra.mxu0 %v371
  %1765 = vmatprep.subr.mxu0 0.0
  %1766 = vmatpush1.msra.mxu0 %v374
  %1767 = vmatprep.subr.mxu0 0.0
  %1768 = vmatpush1.msra.mxu0 %v377
  %1769 = vmatprep.subr.mxu0 0.0
  %1770 = vmatpush1.msra.mxu0 %v380
  %1771 = vmatprep.subr.mxu0 0.0
  %1772 = vmatpush1.msra.mxu0 %v383
  %1773 = vmatprep.subr.mxu0 0.0
  %1774 = vmatpush1.msra.mxu0 %v386
  %1775 = vmatprep.subr.mxu0 0.0
  %1776 = vmatpush1.msra.mxu0 %v389
  %1777 = vmatprep.subr.mxu0 0.0
  %1778 = vmatpush1.msra.mxu0 0.0
  %1779 = vmatprep.subr.mxu0 0.0
  %1780 = vmatpush1.msra.mxu0 0.0
  %1781 = vmatprep.subr.mxu0 0.0
  %1782 = vmatpush1.msra.mxu0 0.0
  %1783 = vmatprep.subr.mxu0 0.0
  %1784 = vmatpush1.msra.mxu0 0.0
  %1785 = vmatprep.subr.mxu0 0.0
  %1786 = vmatpush1.msra.mxu0 0.0
  %1787 = vmatprep.subr.mxu0 0.0
  %1788 = vmatpush1.msra.mxu0 0.0
  %1789 = vmatprep.subr.mxu0 0.0
  %1790 = vmatpush1.msra.mxu0 0.0
  %1791 = vmatprep.subr.mxu0 0.0
  %1792 = vmatpush1.msra.mxu0 0.0
  %1793 = vmatprep.subr.mxu0 0.0
  %1794 = vmatpush1.msra.mxu0 0.0
  %1795 = vmatprep.subr.mxu0 0.0
  %1796 = vmatpush1.msra.mxu0 0.0
  %1797 = vmatprep.subr.mxu0 0.0
  %1798 = vmatpush1.msra.mxu0 0.0
  %1799 = vmatprep.subr.mxu0 0.0
  %1800 = vmatpush1.msra.mxu0 0.0
  %1801 = vmatprep.subr.mxu0 0.0
  %1802 = vmatpush1.msra.mxu0 0.0
  %1803 = vmatprep.subr.mxu0 0.0
  %1804 = vmatpush1.msra.mxu0 0.0
  %1805 = vmatprep.subr.mxu0 0.0
  %1806 = vmatpush1.msra.mxu0 0.0
  %1807 = vmatprep.subr.mxu0 0.0
  %1808 = vmatpush1.msra.mxu0 0.0
  %1809 = vmatprep.mubr.f32.mxu0 0.0
  %1810 = vmatmul.mubr.f32.gmra.mrb[0].mxu0 %v1668
  %v1811 = vpop.f32.mrb[0].mxu0
  %v1812 = vadd.f32 %v403, %v1811
  %v1813 = vpop.f32.mrb[0].mxu0
  %1814 = vdwg.mxu0
  %v1815 = vadd.f32 %v1669, %v1741
  %v1816 = vxor.u32 %v1815, 2147483648
  %v1817 = vmul.f32 %v1816, 1.442695
  %v1818 = vpow.pop %v1817
  %v1819 = vadd.f32 %v1818, 1.0
  %v1820 = vrcp.pop %v1819
  %v1821 = vmul.f32 1.0, %v1820
  %v1822 = vadd.f32 %v1670, %v1743
  %v1823 = vxor.u32 %v1822, 2147483648
  %v1824 = vmul.f32 %v1823, 1.442695
  %v1825 = vpow.pop %v1824
  %v1826 = vadd.f32 %v1825, 1.0
  %v1827 = vrcp.pop %v1826
  %v1828 = vmul.f32 1.0, %v1827
  %v1829 = vmul.f32 %v1821, %v1812
  %v1830 = vadd.f32 %v1671, %v1829
  %v1831 = vtanh.pop %v1830
  %v1832 = vsub.f32 1.0, %v1828
  %v1833 = vmul.f32 %v1832, %v1831
  %v1834 = vmul.f32 %v1828, %v1668
  %v1835 = vadd.f32 %v1833, %v1834
  %1837 = vset.pattern.permute.xlu0 0
  %1838 = vperm.xlu0 %1837, %v1673
  %v1839 = vpop.permute.xlu0 %1838
  %v1841 = vmul.f32 %v1839, %v1835
  %v1842 = vsub.f32 1.0, %v1673
  %1844 = vset.pattern.permute.xlu0 0
  %1845 = vperm.xlu0 %1844, %v1842
  %v1846 = vpop.permute.xlu0 %1845
  %v1848 = vmul.f32 %v1846, %v1668
  %v1849 = vadd.f32 %v1841, %v1848
  %1850 = vst [vmem:[%s6] sm:$0xff] %v1849
  // Predicated region
  $region26: #{_forward_impl.2} parent=0 // pred_check
    _
  $region27: #{_forward_impl.2} parent=0 // pred_check_branch
    %1852 = sbr.rel (0) target = $region29
  $region28: #{_forward_impl.2} parent=0 // pred_region
    _
  $region29: #{_forward_impl.2} parent=0 // pred_fallthru
    _
  // Predicated region
  $region30: #{_forward_impl.2} parent=0 // pred_check
    _
  $region31: #{_forward_impl.2} parent=0 // pred_check_branch
    %1854 = sbr.rel (0) target = $region33
  $region32: #{_forward_impl.2} parent=0 // pred_region
    _
  $region33: #{_forward_impl.2} parent=0 // pred_fallthru
    _

// kernel: _forward_impl.3
$region0: #{_forward_impl.3}
  #allocation0 [shape = 'u32[]', space=smem, size = 0x4, offset = 0x4, fixed_abs, tag = 'smem constant byte address 0x4 - core index']
  #allocation1 [shape = 'u32[144,128]{1,0:T(1,128)}', space=vmem, size = 0x12000, scoped, tag = 'internal scratch']
  %s0 = inlined_call_operand.vmem [shape: f32[5,8,128], index: 0, kind: input, shape index: {}]
  %s1 = inlined_call_operand.vmem [shape: f32[5,8,1], index: 1, kind: input, shape index: {}]
  %s2 = inlined_call_operand.hbm [shape: f32[128,384], index: 2, kind: input, shape index: {}]
  %s3 = inlined_call_operand.vmem [shape: f32[1,384], index: 3, kind: input, shape index: {}]
  %s4 = inlined_call_operand.vmem [shape: f32[2,128,384], index: 4, kind: input, shape index: {}]
  %s5 = inlined_call_operand.vmem [shape: f32[2,1,384], index: 5, kind: input, shape index: {}]
  %s6 = inlined_call_operand.hbm [shape: f32[1,128,384], index: 6, kind: input, shape index: {}]
  %s7 = inlined_call_operand.vmem [shape: f32[1,1,384], index: 7, kind: input, shape index: {}]
  %s8 = inlined_call_operand.vmem [shape: f32[128,128], index: 8, kind: input, shape index: {}]
  %s9 = inlined_call_operand.vmem [shape: f32[1,128], index: 9, kind: input, shape index: {}]
  %s10 = inlined_call_operand.vmem [shape: f32[2,8,128], index: 10, kind: input, shape index: {}]
  %s11 = inlined_call_operand.vmem [shape: f32[5,8,128], index: 11, kind: output, shape index: {}]
  %s12 = sld [smem:[#allocation0]]
  $region62: #{_forward_impl.3} parent=0
    _
  %s14 = ssub.s32 1, %s12
  %s15 = scalar_select 0, %s14, %s12
  $region1: #{_forward_impl.3} parent=0
    #allocation2 [shape = 'u8[196608]{0}', space=vmem, size = 0x30000, scoped, tag = 'input window, operand 2, single buffered']
    #allocation3 [shape = 's32[1]{0}', space=sflag, size = 0x4, scoped, tag = 'scoped memory for _forward_impl.3']
    #allocation4 [shape = 'u8[196608]{0}', space=vmem, size = 0x30000, scoped, tag = 'input window, operand 6, single buffered']
    #allocation5 [shape = 's32[1]{0}', space=sflag, size = 0x4, scoped, tag = 'scoped memory for _forward_impl.3']
    %16 = vsyncpa [#allocation3], 0
    %17 = vsyncpa [#allocation5], 0
    // Predicated region
    $region2: #{_forward_impl.3} parent=1 // pred_check
      _
    $region3: #{_forward_impl.3} parent=1 // pred_check_branch
      %19 = sbr.rel (0) target = $region5
    $region4: #{_forward_impl.3} parent=1 // pred_region
      _
    $region5: #{_forward_impl.3} parent=1 // pred_fallthru
      _
    // Predicated region
    $region6: #{_forward_impl.3} parent=1 // pred_check
      _
    $region7: #{_forward_impl.3} parent=1 // pred_check_branch
      %21 = sbr.rel (0) target = $region9
    $region8: #{_forward_impl.3} parent=1 // pred_region
      _
    $region9: #{_forward_impl.3} parent=1 // pred_fallthru
      _
    // Predicated region
    $region10: #{_forward_impl.3} parent=1 // pred_check
      _
    $region11: #{_forward_impl.3} parent=1 // pred_check_branch
      %23 = sbr.rel (0) target = $region13
    $region12: #{_forward_impl.3} parent=1 // pred_region
      %s25 = ssub.s32 6144, 6144
      %26 = vsyncadd [#allocation3], %s25
      %s27 = sshll.u32 [#allocation2], 4
      %s28 = int_to_ptr.vmem [resolvable:$true] %s27
      %33 = dma.hbm_to_vmem [thread:$0]  %s2, 6144, %s28, [#allocation3], 384, 384, 24
    $region13: #{_forward_impl.3} parent=1 // pred_fallthru
      _
    // Predicated region
    $region14: #{_forward_impl.3} parent=1 // pred_check
      _
    $region15: #{_forward_impl.3} parent=1 // pred_check_branch
      %35 = sbr.rel (0) target = $region17
    $region16: #{_forward_impl.3} parent=1 // pred_region
      _
    $region17: #{_forward_impl.3} parent=1 // pred_fallthru
      _
    // Predicated region
    $region18: #{_forward_impl.3} parent=1 // pred_check
      _
    $region19: #{_forward_impl.3} parent=1 // pred_check_branch
      %37 = sbr.rel (0) target = $region21
    $region20: #{_forward_impl.3} parent=1 // pred_region
      _
    $region21: #{_forward_impl.3} parent=1 // pred_fallthru
      _
    // Predicated region
    $region22: #{_forward_impl.3} parent=1 // pred_check
      _
    $region23: #{_forward_impl.3} parent=1 // pred_check_branch
      %39 = sbr.rel (0) target = $region25
    $region24: #{_forward_impl.3} parent=1 // pred_region
      _
    $region25: #{_forward_impl.3} parent=1 // pred_fallthru
      _
    // Predicated region
    $region26: #{_forward_impl.3} parent=1 // pred_check
      _
    $region27: #{_forward_impl.3} parent=1 // pred_check_branch
      %41 = sbr.rel (0) target = $region29
    $region28: #{_forward_impl.3} parent=1 // pred_region
      %s43 = ssub.s32 6144, 6144
      %44 = vsyncadd [#allocation5], %s43
      %s45 = sshll.u32 [#allocation4], 4
      %s46 = int_to_ptr.vmem [resolvable:$true] %s45
      %51 = dma.hbm_to_vmem [thread:$0]  %s6, 6144, %s46, [#allocation5], 384, 384, 24
    $region29: #{_forward_impl.3} parent=1 // pred_fallthru
      _
    // Predicated region
    $region30: #{_forward_impl.3} parent=1 // pred_check
      _
    $region31: #{_forward_impl.3} parent=1 // pred_check_branch
      %53 = sbr.rel (0) target = $region33
    $region32: #{_forward_impl.3} parent=1 // pred_region
      _
    $region33: #{_forward_impl.3} parent=1 // pred_fallthru
      _
    // Predicated region
    $region34: #{_forward_impl.3} parent=1 // pred_check
      _
    $region35: #{_forward_impl.3} parent=1 // pred_check_branch
      %55 = sbr.rel (0) target = $region37
    $region36: #{_forward_impl.3} parent=1 // pred_region
      _
    $region37: #{_forward_impl.3} parent=1 // pred_fallthru
      _
    // Predicated region
    $region38: #{_forward_impl.3} parent=1 // pred_check
      _
    $region39: #{_forward_impl.3} parent=1 // pred_check_branch
      %57 = sbr.rel (0) target = $region41
    $region40: #{_forward_impl.3} parent=1 // pred_region
      _
    $region41: #{_forward_impl.3} parent=1 // pred_fallthru
      _
    // Predicated region
    $region42: #{_forward_impl.3} parent=1 // pred_check
      _
    $region43: #{_forward_impl.3} parent=1 // pred_check_branch
      %59 = sbr.rel (0) target = $region45
    $region44: #{_forward_impl.3} parent=1 // pred_region
      _
    $region45: #{_forward_impl.3} parent=1 // pred_fallthru
      _
    // Predicated region
    $region46: #{_forward_impl.3} parent=1 // pred_check
      _
    $region47: #{_forward_impl.3} parent=1 // pred_check_branch
      %61 = sbr.rel (0) target = $region49
    $region48: #{_forward_impl.3} parent=1 // pred_region
      %62 = dma.done [#allocation3], 6144
    $region49: #{_forward_impl.3} parent=1 // pred_fallthru
      _
    // Predicated region
    $region50: #{_forward_impl.3} parent=1 // pred_check
      _
    $region51: #{_forward_impl.3} parent=1 // pred_check_branch
      %64 = sbr.rel (0) target = $region53
    $region52: #{_forward_impl.3} parent=1 // pred_region
      %65 = dma.done [#allocation5], 6144
    $region53: #{_forward_impl.3} parent=1 // pred_fallthru
      _
    %v66 = vld [vmem:[%s10] sm:$0xff]
    %s67 = scalar_lea.vmem %s10, 8
    %v68 = vld [vmem:[%s67] sm:$0xff]
    %v69 = vld [vmem:[%s0] sm:$0xff]
    %v70 = vld [vmem:[%s1] sm:$0xff]
    %72 = vset.pattern.permute.xlu0 0
    %73 = vperm.xlu0 %72, %v70
    %v74 = vpop.permute.xlu0 %73
    %v76 = vmul.f32 %v74, 0.0
    %v77 = vadd.f32 %v69, %v76
    %v78 = vld [vmem:[#allocation2] sm:$0xff]
    %v79 = vld [vmem:[#allocation2 + $0x8] sm:$0xff]
    %v80 = vld [vmem:[#allocation2 + $0x10] sm:$0xff]
    %v81 = vld [vmem:[#allocation2 + $0x18] sm:$0xff]
    %v82 = vld [vmem:[#allocation2 + $0x20] sm:$0xff]
    %v83 = vld [vmem:[#allocation2 + $0x28] sm:$0xff]
    %v84 = vld [vmem:[#allocation2 + $0x30] sm:$0xff]
    %v85 = vld [vmem:[#allocation2 + $0x38] sm:$0xff]
    %v86 = vld [vmem:[#allocation2 + $0x40] sm:$0xff]
    %v87 = vld [vmem:[#allocation2 + $0x48] sm:$0xff]
    %v88 = vld [vmem:[#allocation2 + $0x50] sm:$0xff]
    %v89 = vld [vmem:[#allocation2 + $0x58] sm:$0xff]
    %v90 = vld [vmem:[#allocation2 + $0x60] sm:$0xff]
    %v91 = vld [vmem:[#allocation2 + $0x68] sm:$0xff]
    %v92 = vld [vmem:[#allocation2 + $0x70] sm:$0xff]
    %v93 = vld [vmem:[#allocation2 + $0x78] sm:$0xff]
    %v94 = vld [vmem:[#allocation2 + $0x80] sm:$0xff]
    %v95 = vld [vmem:[#allocation2 + $0x88] sm:$0xff]
    %v96 = vld [vmem:[#allocation2 + $0x90] sm:$0xff]
    %v97 = vld [vmem:[#allocation2 + $0x98] sm:$0xff]
    %v98 = vld [vmem:[#allocation2 + $0xa0] sm:$0xff]
    %v99 = vld [vmem:[#allocation2 + $0xa8] sm:$0xff]
    %v100 = vld [vmem:[#allocation2 + $0xb0] sm:$0xff]
    %v101 = vld [vmem:[#allocation2 + $0xb8] sm:$0xff]
    %v102 = vld [vmem:[#allocation2 + $0xc0] sm:$0xff]
    %v103 = vld [vmem:[#allocation2 + $0xc8] sm:$0xff]
    %v104 = vld [vmem:[#allocation2 + $0xd0] sm:$0xff]
    %v105 = vld [vmem:[#allocation2 + $0xd8] sm:$0xff]
    %v106 = vld [vmem:[#allocation2 + $0xe0] sm:$0xff]
    %v107 = vld [vmem:[#allocation2 + $0xe8] sm:$0xff]
    %v108 = vld [vmem:[#allocation2 + $0xf0] sm:$0xff]
    %v109 = vld [vmem:[#allocation2 + $0xf8] sm:$0xff]
    %v110 = vld [vmem:[#allocation2 + $0x100] sm:$0xff]
    %v111 = vld [vmem:[#allocation2 + $0x108] sm:$0xff]
    %v112 = vld [vmem:[#allocation2 + $0x110] sm:$0xff]
    %v113 = vld [vmem:[#allocation2 + $0x118] sm:$0xff]
    %v114 = vld [vmem:[#allocation2 + $0x120] sm:$0xff]
    %v115 = vld [vmem:[#allocation2 + $0x128] sm:$0xff]
    %v116 = vld [vmem:[#allocation2 + $0x130] sm:$0xff]
    %v117 = vld [vmem:[#allocation2 + $0x138] sm:$0xff]
    %v118 = vld [vmem:[#allocation2 + $0x140] sm:$0xff]
    %v119 = vld [vmem:[#allocation2 + $0x148] sm:$0xff]
    %v120 = vld [vmem:[#allocation2 + $0x150] sm:$0xff]
    %v121 = vld [vmem:[#allocation2 + $0x158] sm:$0xff]
    %v122 = vld [vmem:[#allocation2 + $0x160] sm:$0xff]
    %v123 = vld [vmem:[#allocation2 + $0x168] sm:$0xff]
    %v124 = vld [vmem:[#allocation2 + $0x170] sm:$0xff]
    %v125 = vld [vmem:[#allocation2 + $0x178] sm:$0xff]
    %v126 = vld [vmem:[%s3] sm:$0x7]
    %v128 = vlaneseq
    %v129 = vshrl.u32 %v128, 7
    %v130 = vsub.s32 0, %v129
    %v131 = vrot.slane %v126, %v130
    %v132 = vlaneseq
    %v133 = vshrl.u32 %v132, 7
    %v134 = vsub.s32 1, %v133
    %v135 = vrot.slane %v126, %v134
    %v136 = vlaneseq
    %v137 = vshrl.u32 %v136, 7
    %v138 = vsub.s32 2, %v137
    %v139 = vrot.slane %v126, %v138
    %143 = vmatprep.subr.mxu0 %v79
    %144 = vmatpush1.msra.mxu0 %v78
    %145 = vmatprep.subr.mxu0 %v82
    %146 = vmatpush1.msra.mxu0 %v81
    %147 = vmatprep.subr.mxu0 %v85
    %148 = vmatpush1.msra.mxu0 %v84
    %149 = vmatprep.subr.mxu0 %v88
    %150 = vmatpush1.msra.mxu0 %v87
    %151 = vmatprep.subr.mxu0 %v91
    %152 = vmatpush1.msra.mxu0 %v90
    %153 = vmatprep.subr.mxu0 %v94
    %154 = vmatpush1.msra.mxu0 %v93
    %155 = vmatprep.subr.mxu0 %v97
    %156 = vmatpush1.msra.mxu0 %v96
    %157 = vmatprep.subr.mxu0 %v100
    %158 = vmatpush1.msra.mxu0 %v99
    %159 = vmatprep.subr.mxu0 %v103
    %160 = vmatpush1.msra.mxu0 %v102
    %161 = vmatprep.subr.mxu0 %v106
    %162 = vmatpush1.msra.mxu0 %v105
    %163 = vmatprep.subr.mxu0 %v109
    %164 = vmatpush1.msra.mxu0 %v108
    %165 = vmatprep.subr.mxu0 %v112
    %166 = vmatpush1.msra.mxu0 %v111
    %167 = vmatprep.subr.mxu0 %v115
    %168 = vmatpush1.msra.mxu0 %v114
    %169 = vmatprep.subr.mxu0 %v118
    %170 = vmatpush1.msra.mxu0 %v117
    %171 = vmatprep.subr.mxu0 %v121
    %172 = vmatpush1.msra.mxu0 %v120
    %173 = vmatprep.subr.mxu0 %v124
    %174 = vmatpush1.msra.mxu0 %v123
    %175 = vmatprep.subr.mxu0 0.0
    %176 = vmatpush1.msra.mxu0 0.0
    %177 = vmatprep.subr.mxu0 0.0
    %178 = vmatpush1.msra.mxu0 0.0
    %179 = vmatprep.subr.mxu0 0.0
    %180 = vmatpush1.msra.mxu0 0.0
    %181 = vmatprep.subr.mxu0 0.0
    %182 = vmatpush1.msra.mxu0 0.0
    %183 = vmatprep.subr.mxu0 0.0
    %184 = vmatpush1.msra.mxu0 0.0
    %185 = vmatprep.subr.mxu0 0.0
    %186 = vmatpush1.msra.mxu0 0.0
    %187 = vmatprep.subr.mxu0 0.0
    %188 = vmatpush1.msra.mxu0 0.0
    %189 = vmatprep.subr.mxu0 0.0
    %190 = vmatpush1.msra.mxu0 0.0
    %191 = vmatprep.subr.mxu0 0.0
    %192 = vmatpush1.msra.mxu0 0.0
    %193 = vmatprep.subr.mxu0 0.0
    %194 = vmatpush1.msra.mxu0 0.0
    %195 = vmatprep.subr.mxu0 0.0
    %196 = vmatpush1.msra.mxu0 0.0
    %197 = vmatprep.subr.mxu0 0.0
    %198 = vmatpush1.msra.mxu0 0.0
    %199 = vmatprep.subr.mxu0 0.0
    %200 = vmatpush1.msra.mxu0 0.0
    %201 = vmatprep.subr.mxu0 0.0
    %202 = vmatpush1.msra.mxu0 0.0
    %203 = vmatprep.subr.mxu0 0.0
    %204 = vmatpush1.msra.mxu0 0.0
    %205 = vmatprep.subr.mxu0 0.0
    %206 = vmatpush1.msra.mxu0 0.0
    %207 = vmatprep.mubr.f32.mxu0 0.0
    %208 = vmatmul.mubr.f32.gmra.mrb[0].mxu0 %v77
    %v209 = vpop.f32.mrb[0].mxu0
    %v210 = vadd.f32 %v131, %v209
    %v211 = vpop.f32.mrb[0].mxu0
    %v212 = vadd.f32 %v135, %v211
    %213 = vdwg.mxu0
    %214 = vmatprep.subr.mxu0 0.0
    %215 = vmatpush1.msra.mxu0 %v80
    %216 = vmatprep.subr.mxu0 0.0
    %217 = vmatpush1.msra.mxu0 %v83
    %218 = vmatprep.subr.mxu0 0.0
    %219 = vmatpush1.msra.mxu0 %v86
    %220 = vmatprep.subr.mxu0 0.0
    %221 = vmatpush1.msra.mxu0 %v89
    %222 = vmatprep.subr.mxu0 0.0
    %223 = vmatpush1.msra.mxu0 %v92
    %224 = vmatprep.subr.mxu0 0.0
    %225 = vmatpush1.msra.mxu0 %v95
    %226 = vmatprep.subr.mxu0 0.0
    %227 = vmatpush1.msra.mxu0 %v98
    %228 = vmatprep.subr.mxu0 0.0
    %229 = vmatpush1.msra.mxu0 %v101
    %230 = vmatprep.subr.mxu0 0.0
    %231 = vmatpush1.msra.mxu0 %v104
    %232 = vmatprep.subr.mxu0 0.0
    %233 = vmatpush1.msra.mxu0 %v107
    %234 = vmatprep.subr.mxu0 0.0
    %235 = vmatpush1.msra.mxu0 %v110
    %236 = vmatprep.subr.mxu0 0.0
    %237 = vmatpush1.msra.mxu0 %v113
    %238 = vmatprep.subr.mxu0 0.0
    %239 = vmatpush1.msra.mxu0 %v116
    %240 = vmatprep.subr.mxu0 0.0
    %241 = vmatpush1.msra.mxu0 %v119
    %242 = vmatprep.subr.mxu0 0.0
    %243 = vmatpush1.msra.mxu0 %v122
    %244 = vmatprep.subr.mxu0 0.0
    %245 = vmatpush1.msra.mxu0 %v125
    %246 = vmatprep.subr.mxu0 0.0
    %247 = vmatpush1.msra.mxu0 0.0
    %248 = vmatprep.subr.mxu0 0.0
    %249 = vmatpush1.msra.mxu0 0.0
    %250 = vmatprep.subr.mxu0 0.0
    %251 = vmatpush1.msra.mxu0 0.0
    %252 = vmatprep.subr.mxu0 0.0
    %253 = vmatpush1.msra.mxu0 0.0
    %254 = vmatprep.subr.mxu0 0.0
    %255 = vmatpush1.msra.mxu0 0.0
    %256 = vmatprep.subr.mxu0 0.0
    %257 = vmatpush1.msra.mxu0 0.0
    %258 = vmatprep.subr.mxu0 0.0
    %259 = vmatpush1.msra.mxu0 0.0
    %260 = vmatprep.subr.mxu0 0.0
    %261 = vmatpush1.msra.mxu0 0.0
    %262 = vmatprep.subr.mxu0 0.0
    %263 = vmatpush1.msra.mxu0 0.0
    %264 = vmatprep.subr.mxu0 0.0
    %265 = vmatpush1.msra.mxu0 0.0
    %266 = vmatprep.subr.mxu0 0.0
    %267 = vmatpush1.msra.mxu0 0.0
    %268 = vmatprep.subr.mxu0 0.0
    %269 = vmatpush1.msra.mxu0 0.0
    %270 = vmatprep.subr.mxu0 0.0
    %271 = vmatpush1.msra.mxu0 0.0
    %272 = vmatprep.subr.mxu0 0.0
    %273 = vmatpush1.msra.mxu0 0.0
    %274 = vmatprep.subr.mxu0 0.0
    %275 = vmatpush1.msra.mxu0 0.0
    %276 = vmatprep.subr.mxu0 0.0
    %277 = vmatpush1.msra.mxu0 0.0
    %278 = vmatprep.mubr.f32.mxu0 0.0
    %279 = vmatmul.mubr.f32.gmra.mrb[0].mxu0 %v77
    %v280 = vpop.f32.mrb[0].mxu0
    %v281 = vadd.f32 %v139, %v280
    %v282 = vpop.f32.mrb[0].mxu0
    %283 = vdwg.mxu0
    %v284 = vld [vmem:[%s4] sm:$0xff]
    %v285 = vld [vmem:[%s4 + $0x8] sm:$0xff]
    %v286 = vld [vmem:[%s4 + $0x10] sm:$0xff]
    %v287 = vld [vmem:[%s4 + $0x18] sm:$0xff]
    %v288 = vld [vmem:[%s4 + $0x20] sm:$0xff]
    %v289 = vld [vmem:[%s4 + $0x28] sm:$0xff]
    %v290 = vld [vmem:[%s4 + $0x30] sm:$0xff]
    %v291 = vld [vmem:[%s4 + $0x38] sm:$0xff]
    %v292 = vld [vmem:[%s4 + $0x40] sm:$0xff]
    %v293 = vld [vmem:[%s4 + $0x48] sm:$0xff]
    %v294 = vld [vmem:[%s4 + $0x50] sm:$0xff]
    %v295 = vld [vmem:[%s4 + $0x58] sm:$0xff]
    %v296 = vld [vmem:[%s4 + $0x60] sm:$0xff]
    %v297 = vld [vmem:[%s4 + $0x68] sm:$0xff]
    %v298 = vld [vmem:[%s4 + $0x70] sm:$0xff]
    %v299 = vld [vmem:[%s4 + $0x78] sm:$0xff]
    %v300 = vld [vmem:[%s4 + $0x80] sm:$0xff]
    %v301 = vld [vmem:[%s4 + $0x88] sm:$0xff]
    %v302 = vld [vmem:[%s4 + $0x90] sm:$0xff]
    %v303 = vld [vmem:[%s4 + $0x98] sm:$0xff]
    %v304 = vld [vmem:[%s4 + $0xa0] sm:$0xff]
    %v305 = vld [vmem:[%s4 + $0xa8] sm:$0xff]
    %v306 = vld [vmem:[%s4 + $0xb0] sm:$0xff]
    %v307 = vld [vmem:[%s4 + $0xb8] sm:$0xff]
    %v308 = vld [vmem:[%s4 + $0xc0] sm:$0xff]
    %v309 = vld [vmem:[%s4 + $0xc8] sm:$0xff]
    %v310 = vld [vmem:[%s4 + $0xd0] sm:$0xff]
    %v311 = vld [vmem:[%s4 + $0xd8] sm:$0xff]
    %v312 = vld [vmem:[%s4 + $0xe0] sm:$0xff]
    %v313 = vld [vmem:[%s4 + $0xe8] sm:$0xff]
    %v314 = vld [vmem:[%s4 + $0xf0] sm:$0xff]
    %v315 = vld [vmem:[%s4 + $0xf8] sm:$0xff]
    %v316 = vld [vmem:[%s4 + $0x100] sm:$0xff]
    %v317 = vld [vmem:[%s4 + $0x108] sm:$0xff]
    %v318 = vld [vmem:[%s4 + $0x110] sm:$0xff]
    %v319 = vld [vmem:[%s4 + $0x118] sm:$0xff]
    %v320 = vld [vmem:[%s4 + $0x120] sm:$0xff]
    %v321 = vld [vmem:[%s4 + $0x128] sm:$0xff]
    %v322 = vld [vmem:[%s4 + $0x130] sm:$0xff]
    %v323 = vld [vmem:[%s4 + $0x138] sm:$0xff]
    %v324 = vld [vmem:[%s4 + $0x140] sm:$0xff]
    %v325 = vld [vmem:[%s4 + $0x148] sm:$0xff]
    %v326 = vld [vmem:[%s4 + $0x150] sm:$0xff]
    %v327 = vld [vmem:[%s4 + $0x158] sm:$0xff]
    %v328 = vld [vmem:[%s4 + $0x160] sm:$0xff]
    %v329 = vld [vmem:[%s4 + $0x168] sm:$0xff]
    %v330 = vld [vmem:[%s4 + $0x170] sm:$0xff]
    %v331 = vld [vmem:[%s4 + $0x178] sm:$0xff]
    %v332 = vld [vmem:[%s5] sm:$0x7]
    %v334 = vlaneseq
    %v335 = vshrl.u32 %v334, 7
    %v336 = vsub.s32 0, %v335
    %v337 = vrot.slane %v332, %v336
    %v338 = vlaneseq
    %v339 = vshrl.u32 %v338, 7
    %v340 = vsub.s32 1, %v339
    %v341 = vrot.slane %v332, %v340
    %v342 = vlaneseq
    %v343 = vshrl.u32 %v342, 7
    %v344 = vsub.s32 2, %v343
    %v345 = vrot.slane %v332, %v344
    %349 = vmatprep.subr.mxu0 %v285
    %350 = vmatpush1.msra.mxu0 %v284
    %351 = vmatprep.subr.mxu0 %v288
    %352 = vmatpush1.msra.mxu0 %v287
    %353 = vmatprep.subr.mxu0 %v291
    %354 = vmatpush1.msra.mxu0 %v290
    %355 = vmatprep.subr.mxu0 %v294
    %356 = vmatpush1.msra.mxu0 %v293
    %357 = vmatprep.subr.mxu0 %v297
    %358 = vmatpush1.msra.mxu0 %v296
    %359 = vmatprep.subr.mxu0 %v300
    %360 = vmatpush1.msra.mxu0 %v299
    %361 = vmatprep.subr.mxu0 %v303
    %362 = vmatpush1.msra.mxu0 %v302
    %363 = vmatprep.subr.mxu0 %v306
    %364 = vmatpush1.msra.mxu0 %v305
    %365 = vmatprep.subr.mxu0 %v309
    %366 = vmatpush1.msra.mxu0 %v308
    %367 = vmatprep.subr.mxu0 %v312
    %368 = vmatpush1.msra.mxu0 %v311
    %369 = vmatprep.subr.mxu0 %v315
    %370 = vmatpush1.msra.mxu0 %v314
    %371 = vmatprep.subr.mxu0 %v318
    %372 = vmatpush1.msra.mxu0 %v317
    %373 = vmatprep.subr.mxu0 %v321
    %374 = vmatpush1.msra.mxu0 %v320
    %375 = vmatprep.subr.mxu0 %v324
    %376 = vmatpush1.msra.mxu0 %v323
    %377 = vmatprep.subr.mxu0 %v327
    %378 = vmatpush1.msra.mxu0 %v326
    %379 = vmatprep.subr.mxu0 %v330
    %380 = vmatpush1.msra.mxu0 %v329
    %381 = vmatprep.subr.mxu0 0.0
    %382 = vmatpush1.msra.mxu0 0.0
    %383 = vmatprep.subr.mxu0 0.0
    %384 = vmatpush1.msra.mxu0 0.0
    %385 = vmatprep.subr.mxu0 0.0
    %386 = vmatpush1.msra.mxu0 0.0
    %387 = vmatprep.subr.mxu0 0.0
    %388 = vmatpush1.msra.mxu0 0.0
    %389 = vmatprep.subr.mxu0 0.0
    %390 = vmatpush1.msra.mxu0 0.0
    %391 = vmatprep.subr.mxu0 0.0
    %392 = vmatpush1.msra.mxu0 0.0
    %393 = vmatprep.subr.mxu0 0.0
    %394 = vmatpush1.msra.mxu0 0.0
    %395 = vmatprep.subr.mxu0 0.0
    %396 = vmatpush1.msra.mxu0 0.0
    %397 = vmatprep.subr.mxu0 0.0
    %398 = vmatpush1.msra.mxu0 0.0
    %399 = vmatprep.subr.mxu0 0.0
    %400 = vmatpush1.msra.mxu0 0.0
    %401 = vmatprep.subr.mxu0 0.0
    %402 = vmatpush1.msra.mxu0 0.0
    %403 = vmatprep.subr.mxu0 0.0
    %404 = vmatpush1.msra.mxu0 0.0
    %405 = vmatprep.subr.mxu0 0.0
    %406 = vmatpush1.msra.mxu0 0.0
    %407 = vmatprep.subr.mxu0 0.0
    %408 = vmatpush1.msra.mxu0 0.0
    %409 = vmatprep.subr.mxu0 0.0
    %410 = vmatpush1.msra.mxu0 0.0
    %411 = vmatprep.subr.mxu0 0.0
    %412 = vmatpush1.msra.mxu0 0.0
    %413 = vmatprep.mubr.f32.mxu0 0.0
    %414 = vmatmul.mubr.f32.gmra.mrb[0].mxu0 %v66
    %v415 = vpop.f32.mrb[0].mxu0
    %v416 = vadd.f32 %v337, %v415
    %v417 = vpop.f32.mrb[0].mxu0
    %v418 = vadd.f32 %v341, %v417
    %419 = vdwg.mxu0
    %420 = vmatprep.subr.mxu0 0.0
    %421 = vmatpush1.msra.mxu0 %v286
    %422 = vmatprep.subr.mxu0 0.0
    %423 = vmatpush1.msra.mxu0 %v289
    %424 = vmatprep.subr.mxu0 0.0
    %425 = vmatpush1.msra.mxu0 %v292
    %426 = vmatprep.subr.mxu0 0.0
    %427 = vmatpush1.msra.mxu0 %v295
    %428 = vmatprep.subr.mxu0 0.0
    %429 = vmatpush1.msra.mxu0 %v298
    %430 = vmatprep.subr.mxu0 0.0
    %431 = vmatpush1.msra.mxu0 %v301
    %432 = vmatprep.subr.mxu0 0.0
    %433 = vmatpush1.msra.mxu0 %v304
    %434 = vmatprep.subr.mxu0 0.0
    %435 = vmatpush1.msra.mxu0 %v307
    %436 = vmatprep.subr.mxu0 0.0
    %437 = vmatpush1.msra.mxu0 %v310
    %438 = vmatprep.subr.mxu0 0.0
    %439 = vmatpush1.msra.mxu0 %v313
    %440 = vmatprep.subr.mxu0 0.0
    %441 = vmatpush1.msra.mxu0 %v316
    %442 = vmatprep.subr.mxu0 0.0
    %443 = vmatpush1.msra.mxu0 %v319
    %444 = vmatprep.subr.mxu0 0.0
    %445 = vmatpush1.msra.mxu0 %v322
    %446 = vmatprep.subr.mxu0 0.0
    %447 = vmatpush1.msra.mxu0 %v325
    %448 = vmatprep.subr.mxu0 0.0
    %449 = vmatpush1.msra.mxu0 %v328
    %450 = vmatprep.subr.mxu0 0.0
    %451 = vmatpush1.msra.mxu0 %v331
    %452 = vmatprep.subr.mxu0 0.0
    %453 = vmatpush1.msra.mxu0 0.0
    %454 = vmatprep.subr.mxu0 0.0
    %455 = vmatpush1.msra.mxu0 0.0
    %456 = vmatprep.subr.mxu0 0.0
    %457 = vmatpush1.msra.mxu0 0.0
    %458 = vmatprep.subr.mxu0 0.0
    %459 = vmatpush1.msra.mxu0 0.0
    %460 = vmatprep.subr.mxu0 0.0
    %461 = vmatpush1.msra.mxu0 0.0
    %462 = vmatprep.subr.mxu0 0.0
    %463 = vmatpush1.msra.mxu0 0.0
    %464 = vmatprep.subr.mxu0 0.0
    %465 = vmatpush1.msra.mxu0 0.0
    %466 = vmatprep.subr.mxu0 0.0
    %467 = vmatpush1.msra.mxu0 0.0
    %468 = vmatprep.subr.mxu0 0.0
    %469 = vmatpush1.msra.mxu0 0.0
    %470 = vmatprep.subr.mxu0 0.0
    %471 = vmatpush1.msra.mxu0 0.0
    %472 = vmatprep.subr.mxu0 0.0
    %473 = vmatpush1.msra.mxu0 0.0
    %474 = vmatprep.subr.mxu0 0.0
    %475 = vmatpush1.msra.mxu0 0.0
    %476 = vmatprep.subr.mxu0 0.0
    %477 = vmatpush1.msra.mxu0 0.0
    %478 = vmatprep.subr.mxu0 0.0
    %479 = vmatpush1.msra.mxu0 0.0
    %480 = vmatprep.subr.mxu0 0.0
    %481 = vmatpush1.msra.mxu0 0.0
    %482 = vmatprep.subr.mxu0 0.0
    %483 = vmatpush1.msra.mxu0 0.0
    %484 = vmatprep.mubr.f32.mxu0 0.0
    %485 = vmatmul.mubr.f32.gmra.mrb[0].mxu0 %v66
    %v486 = vpop.f32.mrb[0].mxu0
    %v487 = vadd.f32 %v345, %v486
    %v488 = vpop.f32.mrb[0].mxu0
    %489 = vdwg.mxu0
    %v490 = vadd.f32 %v210, %v416
    %v491 = vxor.u32 %v490, 2147483648
    %v492 = vmul.f32 %v491, 1.442695
    %v493 = vpow.pop %v492
    %v494 = vadd.f32 %v493, 1.0
    %v495 = vrcp.pop %v494
    %v496 = vmul.f32 1.0, %v495
    %v497 = vadd.f32 %v212, %v418
    %v498 = vxor.u32 %v497, 2147483648
    %v499 = vmul.f32 %v498, 1.442695
    %v500 = vpow.pop %v499
    %v501 = vadd.f32 %v500, 1.0
    %v502 = vrcp.pop %v501
    %v503 = vmul.f32 1.0, %v502
    %v504 = vmul.f32 %v496, %v487
    %v505 = vadd.f32 %v281, %v504
    %v506 = vtanh.pop %v505
    %v507 = vsub.f32 1.0, %v503
    %v508 = vmul.f32 %v507, %v506
    %v509 = vmul.f32 %v503, %v66
    %v510 = vadd.f32 %v508, %v509
    %v511 = vld [vmem:[#allocation4] sm:$0xff]
    %v512 = vld [vmem:[#allocation4 + $0x8] sm:$0xff]
    %v513 = vld [vmem:[#allocation4 + $0x10] sm:$0xff]
    %v514 = vld [vmem:[#allocation4 + $0x18] sm:$0xff]
    %v515 = vld [vmem:[#allocation4 + $0x20] sm:$0xff]
    %v516 = vld [vmem:[#allocation4 + $0x28] sm:$0xff]
    %v517 = vld [vmem:[#allocation4 + $0x30] sm:$0xff]
    %v518 = vld [vmem:[#allocation4 + $0x38] sm:$0xff]
    %v519 = vld [vmem:[#allocation4 + $0x40] sm:$0xff]
    %v520 = vld [vmem:[#allocation4 + $0x48] sm:$0xff]
    %v521 = vld [vmem:[#allocation4 + $0x50] sm:$0xff]
    %v522 = vld [vmem:[#allocation4 + $0x58] sm:$0xff]
    %v523 = vld [vmem:[#allocation4 + $0x60] sm:$0xff]
    %v524 = vld [vmem:[#allocation4 + $0x68] sm:$0xff]
    %v525 = vld [vmem:[#allocation4 + $0x70] sm:$0xff]
    %v526 = vld [vmem:[#allocation4 + $0x78] sm:$0xff]
    %v527 = vld [vmem:[#allocation4 + $0x80] sm:$0xff]
    %v528 = vld [vmem:[#allocation4 + $0x88] sm:$0xff]
    %v529 = vld [vmem:[#allocation4 + $0x90] sm:$0xff]
    %v530 = vld [vmem:[#allocation4 + $0x98] sm:$0xff]
    %v531 = vld [vmem:[#allocation4 + $0xa0] sm:$0xff]
    %v532 = vld [vmem:[#allocation4 + $0xa8] sm:$0xff]
    %v533 = vld [vmem:[#allocation4 + $0xb0] sm:$0xff]
    %v534 = vld [vmem:[#allocation4 + $0xb8] sm:$0xff]
    %v535 = vld [vmem:[#allocation4 + $0xc0] sm:$0xff]
    %v536 = vld [vmem:[#allocation4 + $0xc8] sm:$0xff]
    %v537 = vld [vmem:[#allocation4 + $0xd0] sm:$0xff]
    %v538 = vld [vmem:[#allocation4 + $0xd8] sm:$0xff]
    %v539 = vld [vmem:[#allocation4 + $0xe0] sm:$0xff]
    %v540 = vld [vmem:[#allocation4 + $0xe8] sm:$0xff]
    %v541 = vld [vmem:[#allocation4 + $0xf0] sm:$0xff]
    %v542 = vld [vmem:[#allocation4 + $0xf8] sm:$0xff]
    %v543 = vld [vmem:[#allocation4 + $0x100] sm:$0xff]
    %v544 = vld [vmem:[#allocation4 + $0x108] sm:$0xff]
    %v545 = vld [vmem:[#allocation4 + $0x110] sm:$0xff]
    %v546 = vld [vmem:[#allocation4 + $0x118] sm:$0xff]
    %v547 = vld [vmem:[#allocation4 + $0x120] sm:$0xff]
    %v548 = vld [vmem:[#allocation4 + $0x128] sm:$0xff]
    %v549 = vld [vmem:[#allocation4 + $0x130] sm:$0xff]
    %v550 = vld [vmem:[#allocation4 + $0x138] sm:$0xff]
    %v551 = vld [vmem:[#allocation4 + $0x140] sm:$0xff]
    %v552 = vld [vmem:[#allocation4 + $0x148] sm:$0xff]
    %v553 = vld [vmem:[#allocation4 + $0x150] sm:$0xff]
    %v554 = vld [vmem:[#allocation4 + $0x158] sm:$0xff]
    %v555 = vld [vmem:[#allocation4 + $0x160] sm:$0xff]
    %v556 = vld [vmem:[#allocation4 + $0x168] sm:$0xff]
    %v557 = vld [vmem:[#allocation4 + $0x170] sm:$0xff]
    %v558 = vld [vmem:[#allocation4 + $0x178] sm:$0xff]
    %v559 = vld [vmem:[%s7] sm:$0x7]
    %v561 = vlaneseq
    %v562 = vshrl.u32 %v561, 7
    %v563 = vsub.s32 0, %v562
    %v564 = vrot.slane %v559, %v563
    %v565 = vlaneseq
    %v566 = vshrl.u32 %v565, 7
    %v567 = vsub.s32 1, %v566
    %v568 = vrot.slane %v559, %v567
    %v569 = vlaneseq
    %v570 = vshrl.u32 %v569, 7
    %v571 = vsub.s32 2, %v570
    %v572 = vrot.slane %v559, %v571
    %576 = vmatprep.subr.mxu0 %v512
    %577 = vmatpush1.msra.mxu0 %v511
    %578 = vmatprep.subr.mxu0 %v515
    %579 = vmatpush1.msra.mxu0 %v514
    %580 = vmatprep.subr.mxu0 %v518
    %581 = vmatpush1.msra.mxu0 %v517
    %582 = vmatprep.subr.mxu0 %v521
    %583 = vmatpush1.msra.mxu0 %v520
    %584 = vmatprep.subr.mxu0 %v524
    %585 = vmatpush1.msra.mxu0 %v523
    %586 = vmatprep.subr.mxu0 %v527
    %587 = vmatpush1.msra.mxu0 %v526
    %588 = vmatprep.subr.mxu0 %v530
    %589 = vmatpush1.msra.mxu0 %v529
    %590 = vmatprep.subr.mxu0 %v533
    %591 = vmatpush1.msra.mxu0 %v532
    %592 = vmatprep.subr.mxu0 %v536
    %593 = vmatpush1.msra.mxu0 %v535
    %594 = vmatprep.subr.mxu0 %v539
    %595 = vmatpush1.msra.mxu0 %v538
    %596 = vmatprep.subr.mxu0 %v542
    %597 = vmatpush1.msra.mxu0 %v541
    %598 = vmatprep.subr.mxu0 %v545
    %599 = vmatpush1.msra.mxu0 %v544
    %600 = vmatprep.subr.mxu0 %v548
    %601 = vmatpush1.msra.mxu0 %v547
    %602 = vmatprep.subr.mxu0 %v551
    %603 = vmatpush1.msra.mxu0 %v550
    %604 = vmatprep.subr.mxu0 %v554
    %605 = vmatpush1.msra.mxu0 %v553
    %606 = vmatprep.subr.mxu0 %v557
    %607 = vmatpush1.msra.mxu0 %v556
    %608 = vmatprep.subr.mxu0 0.0
    %609 = vmatpush1.msra.mxu0 0.0
    %610 = vmatprep.subr.mxu0 0.0
    %611 = vmatpush1.msra.mxu0 0.0
    %612 = vmatprep.subr.mxu0 0.0
    %613 = vmatpush1.msra.mxu0 0.0
    %614 = vmatprep.subr.mxu0 0.0
    %615 = vmatpush1.msra.mxu0 0.0
    %616 = vmatprep.subr.mxu0 0.0
    %617 = vmatpush1.msra.mxu0 0.0
    %618 = vmatprep.subr.mxu0 0.0
    %619 = vmatpush1.msra.mxu0 0.0
    %620 = vmatprep.subr.mxu0 0.0
    %621 = vmatpush1.msra.mxu0 0.0
    %622 = vmatprep.subr.mxu0 0.0
    %623 = vmatpush1.msra.mxu0 0.0
    %624 = vmatprep.subr.mxu0 0.0
    %625 = vmatpush1.msra.mxu0 0.0
    %626 = vmatprep.subr.mxu0 0.0
    %627 = vmatpush1.msra.mxu0 0.0
    %628 = vmatprep.subr.mxu0 0.0
    %629 = vmatpush1.msra.mxu0 0.0
    %630 = vmatprep.subr.mxu0 0.0
    %631 = vmatpush1.msra.mxu0 0.0
    %632 = vmatprep.subr.mxu0 0.0
    %633 = vmatpush1.msra.mxu0 0.0
    %634 = vmatprep.subr.mxu0 0.0
    %635 = vmatpush1.msra.mxu0 0.0
    %636 = vmatprep.subr.mxu0 0.0
    %637 = vmatpush1.msra.mxu0 0.0
    %638 = vmatprep.subr.mxu0 0.0
    %639 = vmatpush1.msra.mxu0 0.0
    %640 = vmatprep.mubr.f32.mxu0 0.0
    %641 = vmatmul.mubr.f32.gmra.mrb[0].mxu0 %v510
    %v642 = vpop.f32.mrb[0].mxu0
    %v643 = vadd.f32 %v564, %v642
    %v644 = vpop.f32.mrb[0].mxu0
    %v645 = vadd.f32 %v568, %v644
    %646 = vdwg.mxu0
    %647 = vmatprep.subr.mxu0 0.0
    %648 = vmatpush1.msra.mxu0 %v513
    %649 = vmatprep.subr.mxu0 0.0
    %650 = vmatpush1.msra.mxu0 %v516
    %651 = vmatprep.subr.mxu0 0.0
    %652 = vmatpush1.msra.mxu0 %v519
    %653 = vmatprep.subr.mxu0 0.0
    %654 = vmatpush1.msra.mxu0 %v522
    %655 = vmatprep.subr.mxu0 0.0
    %656 = vmatpush1.msra.mxu0 %v525
    %657 = vmatprep.subr.mxu0 0.0
    %658 = vmatpush1.msra.mxu0 %v528
    %659 = vmatprep.subr.mxu0 0.0
    %660 = vmatpush1.msra.mxu0 %v531
    %661 = vmatprep.subr.mxu0 0.0
    %662 = vmatpush1.msra.mxu0 %v534
    %663 = vmatprep.subr.mxu0 0.0
    %664 = vmatpush1.msra.mxu0 %v537
    %665 = vmatprep.subr.mxu0 0.0
    %666 = vmatpush1.msra.mxu0 %v540
    %667 = vmatprep.subr.mxu0 0.0
    %668 = vmatpush1.msra.mxu0 %v543
    %669 = vmatprep.subr.mxu0 0.0
    %670 = vmatpush1.msra.mxu0 %v546
    %671 = vmatprep.subr.mxu0 0.0
    %672 = vmatpush1.msra.mxu0 %v549
    %673 = vmatprep.subr.mxu0 0.0
    %674 = vmatpush1.msra.mxu0 %v552
    %675 = vmatprep.subr.mxu0 0.0
    %676 = vmatpush1.msra.mxu0 %v555
    %677 = vmatprep.subr.mxu0 0.0
    %678 = vmatpush1.msra.mxu0 %v558
    %679 = vmatprep.subr.mxu0 0.0
    %680 = vmatpush1.msra.mxu0 0.0
    %681 = vmatprep.subr.mxu0 0.0
    %682 = vmatpush1.msra.mxu0 0.0
    %683 = vmatprep.subr.mxu0 0.0
    %684 = vmatpush1.msra.mxu0 0.0
    %685 = vmatprep.subr.mxu0 0.0
    %686 = vmatpush1.msra.mxu0 0.0
    %687 = vmatprep.subr.mxu0 0.0
    %688 = vmatpush1.msra.mxu0 0.0
    %689 = vmatprep.subr.mxu0 0.0
    %690 = vmatpush1.msra.mxu0 0.0
    %691 = vmatprep.subr.mxu0 0.0
    %692 = vmatpush1.msra.mxu0 0.0
    %693 = vmatprep.subr.mxu0 0.0
    %694 = vmatpush1.msra.mxu0 0.0
    %695 = vmatprep.subr.mxu0 0.0
    %696 = vmatpush1.msra.mxu0 0.0
    %697 = vmatprep.subr.mxu0 0.0
    %698 = vmatpush1.msra.mxu0 0.0
    %699 = vmatprep.subr.mxu0 0.0
    %700 = vmatpush1.msra.mxu0 0.0
    %701 = vmatprep.subr.mxu0 0.0
    %702 = vmatpush1.msra.mxu0 0.0
    %703 = vmatprep.subr.mxu0 0.0
    %704 = vmatpush1.msra.mxu0 0.0
    %705 = vmatprep.subr.mxu0 0.0
    %706 = vmatpush1.msra.mxu0 0.0
    %707 = vmatprep.subr.mxu0 0.0
    %708 = vmatpush1.msra.mxu0 0.0
    %709 = vmatprep.subr.mxu0 0.0
    %710 = vmatpush1.msra.mxu0 0.0
    %711 = vmatprep.mubr.f32.mxu0 0.0
    %712 = vmatmul.mubr.f32.gmra.mrb[0].mxu0 %v510
    %v713 = vpop.f32.mrb[0].mxu0
    %v714 = vadd.f32 %v572, %v713
    %v715 = vpop.f32.mrb[0].mxu0
    %716 = vdwg.mxu0
    %s717 = scalar_lea.vmem %s4, 384
    %v718 = vld [vmem:[%s717] sm:$0xff]
    %v719 = vld [vmem:[%s717 + $0x8] sm:$0xff]
    %v720 = vld [vmem:[%s717 + $0x10] sm:$0xff]
    %v721 = vld [vmem:[%s717 + $0x18] sm:$0xff]
    %v722 = vld [vmem:[%s717 + $0x20] sm:$0xff]
    %v723 = vld [vmem:[%s717 + $0x28] sm:$0xff]
    %v724 = vld [vmem:[%s717 + $0x30] sm:$0xff]
    %v725 = vld [vmem:[%s717 + $0x38] sm:$0xff]
    %v726 = vld [vmem:[%s717 + $0x40] sm:$0xff]
    %v727 = vld [vmem:[%s717 + $0x48] sm:$0xff]
    %v728 = vld [vmem:[%s717 + $0x50] sm:$0xff]
    %v729 = vld [vmem:[%s717 + $0x58] sm:$0xff]
    %v730 = vld [vmem:[%s717 + $0x60] sm:$0xff]
    %v731 = vld [vmem:[%s717 + $0x68] sm:$0xff]
    %v732 = vld [vmem:[%s717 + $0x70] sm:$0xff]
    %v733 = vld [vmem:[%s717 + $0x78] sm:$0xff]
    %v734 = vld [vmem:[%s717 + $0x80] sm:$0xff]
    %v735 = vld [vmem:[%s717 + $0x88] sm:$0xff]
    %v736 = vld [vmem:[%s717 + $0x90] sm:$0xff]
    %v737 = vld [vmem:[%s717 + $0x98] sm:$0xff]
    %v738 = vld [vmem:[%s717 + $0xa0] sm:$0xff]
    %v739 = vld [vmem:[%s717 + $0xa8] sm:$0xff]
    %v740 = vld [vmem:[%s717 + $0xb0] sm:$0xff]
    %v741 = vld [vmem:[%s717 + $0xb8] sm:$0xff]
    %v742 = vld [vmem:[%s717 + $0xc0] sm:$0xff]
    %v743 = vld [vmem:[%s717 + $0xc8] sm:$0xff]
    %v744 = vld [vmem:[%s717 + $0xd0] sm:$0xff]
    %v745 = vld [vmem:[%s717 + $0xd8] sm:$0xff]
    %v746 = vld [vmem:[%s717 + $0xe0] sm:$0xff]
    %v747 = vld [vmem:[%s717 + $0xe8] sm:$0xff]
    %v748 = vld [vmem:[%s717 + $0xf0] sm:$0xff]
    %v749 = vld [vmem:[%s717 + $0xf8] sm:$0xff]
    %v750 = vld [vmem:[%s717 + $0x100] sm:$0xff]
    %v751 = vld [vmem:[%s717 + $0x108] sm:$0xff]
    %v752 = vld [vmem:[%s717 + $0x110] sm:$0xff]
    %v753 = vld [vmem:[%s717 + $0x118] sm:$0xff]
    %v754 = vld [vmem:[%s717 + $0x120] sm:$0xff]
    %v755 = vld [vmem:[%s717 + $0x128] sm:$0xff]
    %v756 = vld [vmem:[%s717 + $0x130] sm:$0xff]
    %v757 = vld [vmem:[%s717 + $0x138] sm:$0xff]
    %v758 = vld [vmem:[%s717 + $0x140] sm:$0xff]
    %v759 = vld [vmem:[%s717 + $0x148] sm:$0xff]
    %v760 = vld [vmem:[%s717 + $0x150] sm:$0xff]
    %v761 = vld [vmem:[%s717 + $0x158] sm:$0xff]
    %v762 = vld [vmem:[%s717 + $0x160] sm:$0xff]
    %v763 = vld [vmem:[%s717 + $0x168] sm:$0xff]
    %v764 = vld [vmem:[%s717 + $0x170] sm:$0xff]
    %v765 = vld [vmem:[%s717 + $0x178] sm:$0xff]
    %s766 = scalar_lea.vmem %s5, 3
    %v767 = vld [vmem:[%s766] sm:$0x7]
    %v769 = vlaneseq
    %v770 = vshrl.u32 %v769, 7
    %v771 = vsub.s32 0, %v770
    %v772 = vrot.slane %v767, %v771
    %v773 = vlaneseq
    %v774 = vshrl.u32 %v773, 7
    %v775 = vsub.s32 1, %v774
    %v776 = vrot.slane %v767, %v775
    %v777 = vlaneseq
    %v778 = vshrl.u32 %v777, 7
    %v779 = vsub.s32 2, %v778
    %v780 = vrot.slane %v767, %v779
    %784 = vmatprep.subr.mxu0 %v719
    %785 = vmatpush1.msra.mxu0 %v718
    %786 = vmatprep.subr.mxu0 %v722
    %787 = vmatpush1.msra.mxu0 %v721
    %788 = vmatprep.subr.mxu0 %v725
    %789 = vmatpush1.msra.mxu0 %v724
    %790 = vmatprep.subr.mxu0 %v728
    %791 = vmatpush1.msra.mxu0 %v727
    %792 = vmatprep.subr.mxu0 %v731
    %793 = vmatpush1.msra.mxu0 %v730
    %794 = vmatprep.subr.mxu0 %v734
    %795 = vmatpush1.msra.mxu0 %v733
    %796 = vmatprep.subr.mxu0 %v737
    %797 = vmatpush1.msra.mxu0 %v736
    %798 = vmatprep.subr.mxu0 %v740
    %799 = vmatpush1.msra.mxu0 %v739
    %800 = vmatprep.subr.mxu0 %v743
    %801 = vmatpush1.msra.mxu0 %v742
    %802 = vmatprep.subr.mxu0 %v746
    %803 = vmatpush1.msra.mxu0 %v745
    %804 = vmatprep.subr.mxu0 %v749
    %805 = vmatpush1.msra.mxu0 %v748
    %806 = vmatprep.subr.mxu0 %v752
    %807 = vmatpush1.msra.mxu0 %v751
    %808 = vmatprep.subr.mxu0 %v755
    %809 = vmatpush1.msra.mxu0 %v754
    %810 = vmatprep.subr.mxu0 %v758
    %811 = vmatpush1.msra.mxu0 %v757
    %812 = vmatprep.subr.mxu0 %v761
    %813 = vmatpush1.msra.mxu0 %v760
    %814 = vmatprep.subr.mxu0 %v764
    %815 = vmatpush1.msra.mxu0 %v763
    %816 = vmatprep.subr.mxu0 0.0
    %817 = vmatpush1.msra.mxu0 0.0
    %818 = vmatprep.subr.mxu0 0.0
    %819 = vmatpush1.msra.mxu0 0.0
    %820 = vmatprep.subr.mxu0 0.0
    %821 = vmatpush1.msra.mxu0 0.0
    %822 = vmatprep.subr.mxu0 0.0
    %823 = vmatpush1.msra.mxu0 0.0
    %824 = vmatprep.subr.mxu0 0.0
    %825 = vmatpush1.msra.mxu0 0.0
    %826 = vmatprep.subr.mxu0 0.0
    %827 = vmatpush1.msra.mxu0 0.0
    %828 = vmatprep.subr.mxu0 0.0
    %829 = vmatpush1.msra.mxu0 0.0
    %830 = vmatprep.subr.mxu0 0.0
    %831 = vmatpush1.msra.mxu0 0.0
    %832 = vmatprep.subr.mxu0 0.0
    %833 = vmatpush1.msra.mxu0 0.0
    %834 = vmatprep.subr.mxu0 0.0
    %835 = vmatpush1.msra.mxu0 0.0
    %836 = vmatprep.subr.mxu0 0.0
    %837 = vmatpush1.msra.mxu0 0.0
    %838 = vmatprep.subr.mxu0 0.0
    %839 = vmatpush1.msra.mxu0 0.0
    %840 = vmatprep.subr.mxu0 0.0
    %841 = vmatpush1.msra.mxu0 0.0
    %842 = vmatprep.subr.mxu0 0.0
    %843 = vmatpush1.msra.mxu0 0.0
    %844 = vmatprep.subr.mxu0 0.0
    %845 = vmatpush1.msra.mxu0 0.0
    %846 = vmatprep.subr.mxu0 0.0
    %847 = vmatpush1.msra.mxu0 0.0
    %848 = vmatprep.mubr.f32.mxu0 0.0
    %849 = vmatmul.mubr.f32.gmra.mrb[0].mxu0 %v68
    %v850 = vpop.f32.mrb[0].mxu0
    %v851 = vadd.f32 %v772, %v850
    %v852 = vpop.f32.mrb[0].mxu0
    %v853 = vadd.f32 %v776, %v852
    %854 = vdwg.mxu0
    %855 = vmatprep.subr.mxu0 0.0
    %856 = vmatpush1.msra.mxu0 %v720
    %857 = vmatprep.subr.mxu0 0.0
    %858 = vmatpush1.msra.mxu0 %v723
    %859 = vmatprep.subr.mxu0 0.0
    %860 = vmatpush1.msra.mxu0 %v726
    %861 = vmatprep.subr.mxu0 0.0
    %862 = vmatpush1.msra.mxu0 %v729
    %863 = vmatprep.subr.mxu0 0.0
    %864 = vmatpush1.msra.mxu0 %v732
    %865 = vmatprep.subr.mxu0 0.0
    %866 = vmatpush1.msra.mxu0 %v735
    %867 = vmatprep.subr.mxu0 0.0
    %868 = vmatpush1.msra.mxu0 %v738
    %869 = vmatprep.subr.mxu0 0.0
    %870 = vmatpush1.msra.mxu0 %v741
    %871 = vmatprep.subr.mxu0 0.0
    %872 = vmatpush1.msra.mxu0 %v744
    %873 = vmatprep.subr.mxu0 0.0
    %874 = vmatpush1.msra.mxu0 %v747
    %875 = vmatprep.subr.mxu0 0.0
    %876 = vmatpush1.msra.mxu0 %v750
    %877 = vmatprep.subr.mxu0 0.0
    %878 = vmatpush1.msra.mxu0 %v753
    %879 = vmatprep.subr.mxu0 0.0
    %880 = vmatpush1.msra.mxu0 %v756
    %881 = vmatprep.subr.mxu0 0.0
    %882 = vmatpush1.msra.mxu0 %v759
    %883 = vmatprep.subr.mxu0 0.0
    %884 = vmatpush1.msra.mxu0 %v762
    %885 = vmatprep.subr.mxu0 0.0
    %886 = vmatpush1.msra.mxu0 %v765
    %887 = vmatprep.subr.mxu0 0.0
    %888 = vmatpush1.msra.mxu0 0.0
    %889 = vmatprep.subr.mxu0 0.0
    %890 = vmatpush1.msra.mxu0 0.0
    %891 = vmatprep.subr.mxu0 0.0
    %892 = vmatpush1.msra.mxu0 0.0
    %893 = vmatprep.subr.mxu0 0.0
    %894 = vmatpush1.msra.mxu0 0.0
    %895 = vmatprep.subr.mxu0 0.0
    %896 = vmatpush1.msra.mxu0 0.0
    %897 = vmatprep.subr.mxu0 0.0
    %898 = vmatpush1.msra.mxu0 0.0
    %899 = vmatprep.subr.mxu0 0.0
    %900 = vmatpush1.msra.mxu0 0.0
    %901 = vmatprep.subr.mxu0 0.0
    %902 = vmatpush1.msra.mxu0 0.0
    %903 = vmatprep.subr.mxu0 0.0
    %904 = vmatpush1.msra.mxu0 0.0
    %905 = vmatprep.subr.mxu0 0.0
    %906 = vmatpush1.msra.mxu0 0.0
    %907 = vmatprep.subr.mxu0 0.0
    %908 = vmatpush1.msra.mxu0 0.0
    %909 = vmatprep.subr.mxu0 0.0
    %910 = vmatpush1.msra.mxu0 0.0
    %911 = vmatprep.subr.mxu0 0.0
    %912 = vmatpush1.msra.mxu0 0.0
    %913 = vmatprep.subr.mxu0 0.0
    %914 = vmatpush1.msra.mxu0 0.0
    %915 = vmatprep.subr.mxu0 0.0
    %916 = vmatpush1.msra.mxu0 0.0
    %917 = vmatprep.subr.mxu0 0.0
    %918 = vmatpush1.msra.mxu0 0.0
    %919 = vmatprep.mubr.f32.mxu0 0.0
    %920 = vmatmul.mubr.f32.gmra.mrb[0].mxu0 %v68
    %v921 = vpop.f32.mrb[0].mxu0
    %v922 = vadd.f32 %v780, %v921
    %v923 = vpop.f32.mrb[0].mxu0
    %924 = vdwg.mxu0
    %v925 = vadd.f32 %v643, %v851
    %v926 = vxor.u32 %v925, 2147483648
    %v927 = vmul.f32 %v926, 1.442695
    %v928 = vpow.pop %v927
    %v929 = vadd.f32 %v928, 1.0
    %v930 = vrcp.pop %v929
    %v931 = vmul.f32 1.0, %v930
    %v932 = vadd.f32 %v645, %v853
    %v933 = vxor.u32 %v932, 2147483648
    %v934 = vmul.f32 %v933, 1.442695
    %v935 = vpow.pop %v934
    %v936 = vadd.f32 %v935, 1.0
    %v937 = vrcp.pop %v936
    %v938 = vmul.f32 1.0, %v937
    %v939 = vmul.f32 %v931, %v922
    %v940 = vadd.f32 %v714, %v939
    %v941 = vtanh.pop %v940
    %v942 = vsub.f32 1.0, %v938
    %v943 = vmul.f32 %v942, %v941
    %v944 = vmul.f32 %v938, %v68
    %v945 = vadd.f32 %v943, %v944
    %v946 = vld [vmem:[%s8] sm:$0xff]
    %v947 = vld [vmem:[%s8 + $0x8] sm:$0xff]
    %v948 = vld [vmem:[%s8 + $0x10] sm:$0xff]
    %v949 = vld [vmem:[%s8 + $0x18] sm:$0xff]
    %v950 = vld [vmem:[%s8 + $0x20] sm:$0xff]
    %v951 = vld [vmem:[%s8 + $0x28] sm:$0xff]
    %v952 = vld [vmem:[%s8 + $0x30] sm:$0xff]
    %v953 = vld [vmem:[%s8 + $0x38] sm:$0xff]
    %v954 = vld [vmem:[%s8 + $0x40] sm:$0xff]
    %v955 = vld [vmem:[%s8 + $0x48] sm:$0xff]
    %v956 = vld [vmem:[%s8 + $0x50] sm:$0xff]
    %v957 = vld [vmem:[%s8 + $0x58] sm:$0xff]
    %v958 = vld [vmem:[%s8 + $0x60] sm:$0xff]
    %v959 = vld [vmem:[%s8 + $0x68] sm:$0xff]
    %v960 = vld [vmem:[%s8 + $0x70] sm:$0xff]
    %v961 = vld [vmem:[%s8 + $0x78] sm:$0xff]
    %v962 = vld [vmem:[%s9] sm:$0x1]
    %v964 = vlaneseq
    %v965 = vshrl.u32 %v964, 7
    %v966 = vsub.s32 0, %v965
    %v967 = vrot.slane %v962, %v966
    %969 = vmatprep.subr.mxu0 0.0
    %970 = vmatpush1.msra.mxu0 %v946
    %971 = vmatprep.subr.mxu0 0.0
    %972 = vmatpush1.msra.mxu0 %v947
    %973 = vmatprep.subr.mxu0 0.0
    %974 = vmatpush1.msra.mxu0 %v948
    %975 = vmatprep.subr.mxu0 0.0
    %976 = vmatpush1.msra.mxu0 %v949
    %977 = vmatprep.subr.mxu0 0.0
    %978 = vmatpush1.msra.mxu0 %v950
    %979 = vmatprep.subr.mxu0 0.0
    %980 = vmatpush1.msra.mxu0 %v951
    %981 = vmatprep.subr.mxu0 0.0
    %982 = vmatpush1.msra.mxu0 %v952
    %983 = vmatprep.subr.mxu0 0.0
    %984 = vmatpush1.msra.mxu0 %v953
    %985 = vmatprep.subr.mxu0 0.0
    %986 = vmatpush1.msra.mxu0 %v954
    %987 = vmatprep.subr.mxu0 0.0
    %988 = vmatpush1.msra.mxu0 %v955
    %989 = vmatprep.subr.mxu0 0.0
    %990 = vmatpush1.msra.mxu0 %v956
    %991 = vmatprep.subr.mxu0 0.0
    %992 = vmatpush1.msra.mxu0 %v957
    %993 = vmatprep.subr.mxu0 0.0
    %994 = vmatpush1.msra.mxu0 %v958
    %995 = vmatprep.subr.mxu0 0.0
    %996 = vmatpush1.msra.mxu0 %v959
    %997 = vmatprep.subr.mxu0 0.0
    %998 = vmatpush1.msra.mxu0 %v960
    %999 = vmatprep.subr.mxu0 0.0
    %1000 = vmatpush1.msra.mxu0 %v961
    %1001 = vmatprep.subr.mxu0 0.0
    %1002 = vmatpush1.msra.mxu0 0.0
    %1003 = vmatprep.subr.mxu0 0.0
    %1004 = vmatpush1.msra.mxu0 0.0
    %1005 = vmatprep.subr.mxu0 0.0
    %1006 = vmatpush1.msra.mxu0 0.0
    %1007 = vmatprep.subr.mxu0 0.0
    %1008 = vmatpush1.msra.mxu0 0.0
    %1009 = vmatprep.subr.mxu0 0.0
    %1010 = vmatpush1.msra.mxu0 0.0
    %1011 = vmatprep.subr.mxu0 0.0
    %1012 = vmatpush1.msra.mxu0 0.0
    %1013 = vmatprep.subr.mxu0 0.0
    %1014 = vmatpush1.msra.mxu0 0.0
    %1015 = vmatprep.subr.mxu0 0.0
    %1016 = vmatpush1.msra.mxu0 0.0
    %1017 = vmatprep.subr.mxu0 0.0
    %1018 = vmatpush1.msra.mxu0 0.0
    %1019 = vmatprep.subr.mxu0 0.0
    %1020 = vmatpush1.msra.mxu0 0.0
    %1021 = vmatprep.subr.mxu0 0.0
    %1022 = vmatpush1.msra.mxu0 0.0
    %1023 = vmatprep.subr.mxu0 0.0
    %1024 = vmatpush1.msra.mxu0 0.0
    %1025 = vmatprep.subr.mxu0 0.0
    %1026 = vmatpush1.msra.mxu0 0.0
    %1027 = vmatprep.subr.mxu0 0.0
    %1028 = vmatpush1.msra.mxu0 0.0
    %1029 = vmatprep.subr.mxu0 0.0
    %1030 = vmatpush1.msra.mxu0 0.0
    %1031 = vmatprep.subr.mxu0 0.0
    %1032 = vmatpush1.msra.mxu0 0.0
    %1033 = vmatprep.mubr.f32.mxu0 0.0
    %1034 = vmatmul.mubr.f32.gmra.mrb[0].mxu0 %v945
    %v1035 = vpop.f32.mrb[0].mxu0
    %v1036 = vadd.f32 %v967, %v1035
    %v1037 = vpop.f32.mrb[0].mxu0
    %1038 = vdwg.mxu0
    %1039 = vst [vmem:[%s11] sm:$0xff] %v1036
    %1040 = vmax.xlane.f32.xlu0 %v1036
    %v1041 = vpop.xlane.xlu0 %1040
    %v1042 = vlaneseq
    %v1043 = vand.u32 %v1042, 127
    %vm1044 = vcmp.ge.f32.partialorder %v1036, %v1041
    %v1045 = vsel %vm1044, %v1043, 1073741824
    %v1046 = vand.u32 %v1045, 65535
    %v1047 = vshra.s32 %v1045, 16
    %v1048 = vcvt.s32.f32 %v1046
    %v1049 = vcvt.s32.f32 %v1047
    %1050 = vmin.xlane.f32.xlu0 %v1049
    %v1051 = vpop.xlane.xlu0 %1050
    %vm1052 = vcmp.eq.f32.partialorder %v1049, %v1051
    %v1053 = vsel %vm1052, %v1048, inf
    %1054 = vmin.xlane.f32.xlu0 %v1053
    %v1055 = vpop.xlane.xlu0 %1054
    %v1056 = vcvt.f32.s32 %v1055
    %v1057 = vcvt.f32.s32 %v1051
    %v1058 = vshll.u32 %v1057, 16
    %v1059 = vadd.s32 %v1058, %v1056
    %vm1060 = vcmp.eq.s32.totalorder %v1043, %v1059
    %v1061 = vsel %vm1060, 1, 0
    %v1062 = vcvt.s32.f32 %v1061
    %s1063 = scalar_lea.vmem %s0, 8
    %v1064 = vld [vmem:[%s1063] sm:$0xff]
    %s1065 = scalar_lea.vmem %s1, 8
    %v1066 = vld [vmem:[%s1065] sm:$0xff]
    %1068 = vset.pattern.permute.xlu0 0
    %1069 = vperm.xlu0 %1068, %v1066
    %v1070 = vpop.permute.xlu0 %1069
    %v1072 = vmul.f32 %v1070, %v1062
    %v1073 = vadd.f32 %v1064, %v1072
    %v1074 = vld [vmem:[#allocation2] sm:$0xff]
    %v1075 = vld [vmem:[#allocation2 + $0x8] sm:$0xff]
    %v1076 = vld [vmem:[#allocation2 + $0x10] sm:$0xff]
    %v1077 = vld [vmem:[#allocation2 + $0x18] sm:$0xff]
    %v1078 = vld [vmem:[#allocation2 + $0x20] sm:$0xff]
    %v1079 = vld [vmem:[#allocation2 + $0x28] sm:$0xff]
    %v1080 = vld [vmem:[#allocation2 + $0x30] sm:$0xff]
    %v1081 = vld [vmem:[#allocation2 + $0x38] sm:$0xff]
    %v1082 = vld [vmem:[#allocation2 + $0x40] sm:$0xff]
    %v1083 = vld [vmem:[#allocation2 + $0x48] sm:$0xff]
    %v1084 = vld [vmem:[#allocation2 + $0x50] sm:$0xff]
    %v1085 = vld [vmem:[#allocation2 + $0x58] sm:$0xff]
    %v1086 = vld [vmem:[#allocation2 + $0x60] sm:$0xff]
    %v1087 = vld [vmem:[#allocation2 + $0x68] sm:$0xff]
    %v1088 = vld [vmem:[#allocation2 + $0x70] sm:$0xff]
    %v1089 = vld [vmem:[#allocation2 + $0x78] sm:$0xff]
    %v1090 = vld [vmem:[#allocation2 + $0x80] sm:$0xff]
    %v1091 = vld [vmem:[#allocation2 + $0x88] sm:$0xff]
    %v1092 = vld [vmem:[#allocation2 + $0x90] sm:$0xff]
    %v1093 = vld [vmem:[#allocation2 + $0x98] sm:$0xff]
    %v1094 = vld [vmem:[#allocation2 + $0xa0] sm:$0xff]
    %v1095 = vld [vmem:[#allocation2 + $0xa8] sm:$0xff]
    %v1096 = vld [vmem:[#allocation2 + $0xb0] sm:$0xff]
    %v1097 = vld [vmem:[#allocation2 + $0xb8] sm:$0xff]
    %v1098 = vld [vmem:[#allocation2 + $0xc0] sm:$0xff]
    %v1099 = vld [vmem:[#allocation2 + $0xc8] sm:$0xff]
    %v1100 = vld [vmem:[#allocation2 + $0xd0] sm:$0xff]
    %v1101 = vld [vmem:[#allocation2 + $0xd8] sm:$0xff]
    %v1102 = vld [vmem:[#allocation2 + $0xe0] sm:$0xff]
    %v1103 = vld [vmem:[#allocation2 + $0xe8] sm:$0xff]
    %v1104 = vld [vmem:[#allocation2 + $0xf0] sm:$0xff]
    %v1105 = vld [vmem:[#allocation2 + $0xf8] sm:$0xff]
    %v1106 = vld [vmem:[#allocation2 + $0x100] sm:$0xff]
    %v1107 = vld [vmem:[#allocation2 + $0x108] sm:$0xff]
    %v1108 = vld [vmem:[#allocation2 + $0x110] sm:$0xff]
    %v1109 = vld [vmem:[#allocation2 + $0x118] sm:$0xff]
    %v1110 = vld [vmem:[#allocation2 + $0x120] sm:$0xff]
    %v1111 = vld [vmem:[#allocation2 + $0x128] sm:$0xff]
    %v1112 = vld [vmem:[#allocation2 + $0x130] sm:$0xff]
    %v1113 = vld [vmem:[#allocation2 + $0x138] sm:$0xff]
    %v1114 = vld [vmem:[#allocation2 + $0x140] sm:$0xff]
    %v1115 = vld [vmem:[#allocation2 + $0x148] sm:$0xff]
    %v1116 = vld [vmem:[#allocation2 + $0x150] sm:$0xff]
    %v1117 = vld [vmem:[#allocation2 + $0x158] sm:$0xff]
    %v1118 = vld [vmem:[#allocation2 + $0x160] sm:$0xff]
    %v1119 = vld [vmem:[#allocation2 + $0x168] sm:$0xff]
    %v1120 = vld [vmem:[#allocation2 + $0x170] sm:$0xff]
    %v1121 = vld [vmem:[#allocation2 + $0x178] sm:$0xff]
    %v1122 = vld [vmem:[%s3] sm:$0x7]
    %v1124 = vlaneseq
    %v1125 = vshrl.u32 %v1124, 7
    %v1126 = vsub.s32 0, %v1125
    %v1127 = vrot.slane %v1122, %v1126
    %v1128 = vlaneseq
    %v1129 = vshrl.u32 %v1128, 7
    %v1130 = vsub.s32 1, %v1129
    %v1131 = vrot.slane %v1122, %v1130
    %v1132 = vlaneseq
    %v1133 = vshrl.u32 %v1132, 7
    %v1134 = vsub.s32 2, %v1133
    %v1135 = vrot.slane %v1122, %v1134
    %1139 = vmatprep.subr.mxu0 %v1075
    %1140 = vmatpush1.msra.mxu0 %v1074
    %1141 = vmatprep.subr.mxu0 %v1078
    %1142 = vmatpush1.msra.mxu0 %v1077
    %1143 = vmatprep.subr.mxu0 %v1081
    %1144 = vmatpush1.msra.mxu0 %v1080
    %1145 = vmatprep.subr.mxu0 %v1084
    %1146 = vmatpush1.msra.mxu0 %v1083
    %1147 = vmatprep.subr.mxu0 %v1087
    %1148 = vmatpush1.msra.mxu0 %v1086
    %1149 = vmatprep.subr.mxu0 %v1090
    %1150 = vmatpush1.msra.mxu0 %v1089
    %1151 = vmatprep.subr.mxu0 %v1093
    %1152 = vmatpush1.msra.mxu0 %v1092
    %1153 = vmatprep.subr.mxu0 %v1096
    %1154 = vmatpush1.msra.mxu0 %v1095
    %1155 = vmatprep.subr.mxu0 %v1099
    %1156 = vmatpush1.msra.mxu0 %v1098
    %1157 = vmatprep.subr.mxu0 %v1102
    %1158 = vmatpush1.msra.mxu0 %v1101
    %1159 = vmatprep.subr.mxu0 %v1105
    %1160 = vmatpush1.msra.mxu0 %v1104
    %1161 = vmatprep.subr.mxu0 %v1108
    %1162 = vmatpush1.msra.mxu0 %v1107
    %1163 = vmatprep.subr.mxu0 %v1111
    %1164 = vmatpush1.msra.mxu0 %v1110
    %1165 = vmatprep.subr.mxu0 %v1114
    %1166 = vmatpush1.msra.mxu0 %v1113
    %1167 = vmatprep.subr.mxu0 %v1117
    %1168 = vmatpush1.msra.mxu0 %v1116
    %1169 = vmatprep.subr.mxu0 %v1120
    %1170 = vmatpush1.msra.mxu0 %v1119
    %1171 = vmatprep.subr.mxu0 0.0
    %1172 = vmatpush1.msra.mxu0 0.0
    %1173 = vmatprep.subr.mxu0 0.0
    %1174 = vmatpush1.msra.mxu0 0.0
    %1175 = vmatprep.subr.mxu0 0.0
    %1176 = vmatpush1.msra.mxu0 0.0
    %1177 = vmatprep.subr.mxu0 0.0
    %1178 = vmatpush1.msra.mxu0 0.0
    %1179 = vmatprep.subr.mxu0 0.0
    %1180 = vmatpush1.msra.mxu0 0.0
    %1181 = vmatprep.subr.mxu0 0.0
    %1182 = vmatpush1.msra.mxu0 0.0
    %1183 = vmatprep.subr.mxu0 0.0
    %1184 = vmatpush1.msra.mxu0 0.0
    %1185 = vmatprep.subr.mxu0 0.0
    %1186 = vmatpush1.msra.mxu0 0.0
    %1187 = vmatprep.subr.mxu0 0.0
    %1188 = vmatpush1.msra.mxu0 0.0
    %1189 = vmatprep.subr.mxu0 0.0
    %1190 = vmatpush1.msra.mxu0 0.0
    %1191 = vmatprep.subr.mxu0 0.0
    %1192 = vmatpush1.msra.mxu0 0.0
    %1193 = vmatprep.subr.mxu0 0.0
    %1194 = vmatpush1.msra.mxu0 0.0
    %1195 = vmatprep.subr.mxu0 0.0
    %1196 = vmatpush1.msra.mxu0 0.0
    %1197 = vmatprep.subr.mxu0 0.0
    %1198 = vmatpush1.msra.mxu0 0.0
    %1199 = vmatprep.subr.mxu0 0.0
    %1200 = vmatpush1.msra.mxu0 0.0
    %1201 = vmatprep.subr.mxu0 0.0
    %1202 = vmatpush1.msra.mxu0 0.0
    %1203 = vmatprep.mubr.f32.mxu0 0.0
    %1204 = vmatmul.mubr.f32.gmra.mrb[0].mxu0 %v1073
    %v1205 = vpop.f32.mrb[0].mxu0
    %v1206 = vadd.f32 %v1127, %v1205
    %v1207 = vpop.f32.mrb[0].mxu0
    %v1208 = vadd.f32 %v1131, %v1207
    %1209 = vdwg.mxu0
    %1210 = vmatprep.subr.mxu0 0.0
    %1211 = vmatpush1.msra.mxu0 %v1076
    %1212 = vmatprep.subr.mxu0 0.0
    %1213 = vmatpush1.msra.mxu0 %v1079
    %1214 = vmatprep.subr.mxu0 0.0
    %1215 = vmatpush1.msra.mxu0 %v1082
    %1216 = vmatprep.subr.mxu0 0.0
    %1217 = vmatpush1.msra.mxu0 %v1085
    %1218 = vmatprep.subr.mxu0 0.0
    %1219 = vmatpush1.msra.mxu0 %v1088
    %1220 = vmatprep.subr.mxu0 0.0
    %1221 = vmatpush1.msra.mxu0 %v1091
    %1222 = vmatprep.subr.mxu0 0.0
    %1223 = vmatpush1.msra.mxu0 %v1094
    %1224 = vmatprep.subr.mxu0 0.0
    %1225 = vmatpush1.msra.mxu0 %v1097
    %1226 = vmatprep.subr.mxu0 0.0
    %1227 = vmatpush1.msra.mxu0 %v1100
    %1228 = vmatprep.subr.mxu0 0.0
    %1229 = vmatpush1.msra.mxu0 %v1103
    %1230 = vmatprep.subr.mxu0 0.0
    %1231 = vmatpush1.msra.mxu0 %v1106
    %1232 = vmatprep.subr.mxu0 0.0
    %1233 = vmatpush1.msra.mxu0 %v1109
    %1234 = vmatprep.subr.mxu0 0.0
    %1235 = vmatpush1.msra.mxu0 %v1112
    %1236 = vmatprep.subr.mxu0 0.0
    %1237 = vmatpush1.msra.mxu0 %v1115
    %1238 = vmatprep.subr.mxu0 0.0
    %1239 = vmatpush1.msra.mxu0 %v1118
    %1240 = vmatprep.subr.mxu0 0.0
    %1241 = vmatpush1.msra.mxu0 %v1121
    %1242 = vmatprep.subr.mxu0 0.0
    %1243 = vmatpush1.msra.mxu0 0.0
    %1244 = vmatprep.subr.mxu0 0.0
    %1245 = vmatpush1.msra.mxu0 0.0
    %1246 = vmatprep.subr.mxu0 0.0
    %1247 = vmatpush1.msra.mxu0 0.0
    %1248 = vmatprep.subr.mxu0 0.0
    %1249 = vmatpush1.msra.mxu0 0.0
    %1250 = vmatprep.subr.mxu0 0.0
    %1251 = vmatpush1.msra.mxu0 0.0
    %1252 = vmatprep.subr.mxu0 0.0
    %1253 = vmatpush1.msra.mxu0 0.0
    %1254 = vmatprep.subr.mxu0 0.0
    %1255 = vmatpush1.msra.mxu0 0.0
    %1256 = vmatprep.subr.mxu0 0.0
    %1257 = vmatpush1.msra.mxu0 0.0
    %1258 = vmatprep.subr.mxu0 0.0
    %1259 = vmatpush1.msra.mxu0 0.0
    %1260 = vmatprep.subr.mxu0 0.0
    %1261 = vmatpush1.msra.mxu0 0.0
    %1262 = vmatprep.subr.mxu0 0.0
    %1263 = vmatpush1.msra.mxu0 0.0
    %1264 = vmatprep.subr.mxu0 0.0
    %1265 = vmatpush1.msra.mxu0 0.0
    %1266 = vmatprep.subr.mxu0 0.0
    %1267 = vmatpush1.msra.mxu0 0.0
    %1268 = vmatprep.subr.mxu0 0.0
    %1269 = vmatpush1.msra.mxu0 0.0
    %1270 = vmatprep.subr.mxu0 0.0
    %1271 = vmatpush1.msra.mxu0 0.0
    %1272 = vmatprep.subr.mxu0 0.0
    %1273 = vmatpush1.msra.mxu0 0.0
    %1274 = vmatprep.mubr.f32.mxu0 0.0
    %1275 = vmatmul.mubr.f32.gmra.mrb[0].mxu0 %v1073
    %v1276 = vpop.f32.mrb[0].mxu0
    %v1277 = vadd.f32 %v1135, %v1276
    %v1278 = vpop.f32.mrb[0].mxu0
    %1279 = vdwg.mxu0
    %v1280 = vld [vmem:[%s4] sm:$0xff]
    %v1281 = vld [vmem:[%s4 + $0x8] sm:$0xff]
    %v1282 = vld [vmem:[%s4 + $0x10] sm:$0xff]
    %v1283 = vld [vmem:[%s4 + $0x18] sm:$0xff]
    %v1284 = vld [vmem:[%s4 + $0x20] sm:$0xff]
    %v1285 = vld [vmem:[%s4 + $0x28] sm:$0xff]
    %v1286 = vld [vmem:[%s4 + $0x30] sm:$0xff]
    %v1287 = vld [vmem:[%s4 + $0x38] sm:$0xff]
    %v1288 = vld [vmem:[%s4 + $0x40] sm:$0xff]
    %v1289 = vld [vmem:[%s4 + $0x48] sm:$0xff]
    %v1290 = vld [vmem:[%s4 + $0x50] sm:$0xff]
    %v1291 = vld [vmem:[%s4 + $0x58] sm:$0xff]
    %v1292 = vld [vmem:[%s4 + $0x60] sm:$0xff]
    %v1293 = vld [vmem:[%s4 + $0x68] sm:$0xff]
    %v1294 = vld [vmem:[%s4 + $0x70] sm:$0xff]
    %v1295 = vld [vmem:[%s4 + $0x78] sm:$0xff]
    %v1296 = vld [vmem:[%s4 + $0x80] sm:$0xff]
    %v1297 = vld [vmem:[%s4 + $0x88] sm:$0xff]
    %v1298 = vld [vmem:[%s4 + $0x90] sm:$0xff]
    %v1299 = vld [vmem:[%s4 + $0x98] sm:$0xff]
    %v1300 = vld [vmem:[%s4 + $0xa0] sm:$0xff]
    %v1301 = vld [vmem:[%s4 + $0xa8] sm:$0xff]
    %v1302 = vld [vmem:[%s4 + $0xb0] sm:$0xff]
    %v1303 = vld [vmem:[%s4 + $0xb8] sm:$0xff]
    %v1304 = vld [vmem:[%s4 + $0xc0] sm:$0xff]
    %v1305 = vld [vmem:[%s4 + $0xc8] sm:$0xff]
    %v1306 = vld [vmem:[%s4 + $0xd0] sm:$0xff]
    %v1307 = vld [vmem:[%s4 + $0xd8] sm:$0xff]
    %v1308 = vld [vmem:[%s4 + $0xe0] sm:$0xff]
    %v1309 = vld [vmem:[%s4 + $0xe8] sm:$0xff]
    %v1310 = vld [vmem:[%s4 + $0xf0] sm:$0xff]
    %v1311 = vld [vmem:[%s4 + $0xf8] sm:$0xff]
    %v1312 = vld [vmem:[%s4 + $0x100] sm:$0xff]
    %v1313 = vld [vmem:[%s4 + $0x108] sm:$0xff]
    %v1314 = vld [vmem:[%s4 + $0x110] sm:$0xff]
    %v1315 = vld [vmem:[%s4 + $0x118] sm:$0xff]
    %v1316 = vld [vmem:[%s4 + $0x120] sm:$0xff]
    %v1317 = vld [vmem:[%s4 + $0x128] sm:$0xff]
    %v1318 = vld [vmem:[%s4 + $0x130] sm:$0xff]
    %v1319 = vld [vmem:[%s4 + $0x138] sm:$0xff]
    %v1320 = vld [vmem:[%s4 + $0x140] sm:$0xff]
    %v1321 = vld [vmem:[%s4 + $0x148] sm:$0xff]
    %v1322 = vld [vmem:[%s4 + $0x150] sm:$0xff]
    %v1323 = vld [vmem:[%s4 + $0x158] sm:$0xff]
    %v1324 = vld [vmem:[%s4 + $0x160] sm:$0xff]
    %v1325 = vld [vmem:[%s4 + $0x168] sm:$0xff]
    %v1326 = vld [vmem:[%s4 + $0x170] sm:$0xff]
    %v1327 = vld [vmem:[%s4 + $0x178] sm:$0xff]
    %v1328 = vld [vmem:[%s5] sm:$0x7]
    %v1330 = vlaneseq
    %v1331 = vshrl.u32 %v1330, 7
    %v1332 = vsub.s32 0, %v1331
    %v1333 = vrot.slane %v1328, %v1332
    %v1334 = vlaneseq
    %v1335 = vshrl.u32 %v1334, 7
    %v1336 = vsub.s32 1, %v1335
    %v1337 = vrot.slane %v1328, %v1336
    %v1338 = vlaneseq
    %v1339 = vshrl.u32 %v1338, 7
    %v1340 = vsub.s32 2, %v1339
    %v1341 = vrot.slane %v1328, %v1340
    %1345 = vmatprep.subr.mxu0 %v1281
    %1346 = vmatpush1.msra.mxu0 %v1280
    %1347 = vmatprep.subr.mxu0 %v1284
    %1348 = vmatpush1.msra.mxu0 %v1283
    %1349 = vmatprep.subr.mxu0 %v1287
    %1350 = vmatpush1.msra.mxu0 %v1286
    %1351 = vmatprep.subr.mxu0 %v1290
    %1352 = vmatpush1.msra.mxu0 %v1289
    %1353 = vmatprep.subr.mxu0 %v1293
    %1354 = vmatpush1.msra.mxu0 %v1292
    %1355 = vmatprep.subr.mxu0 %v1296
    %1356 = vmatpush1.msra.mxu0 %v1295
    %1357 = vmatprep.subr.mxu0 %v1299
    %1358 = vmatpush1.msra.mxu0 %v1298
    %1359 = vmatprep.subr.mxu0 %v1302
    %1360 = vmatpush1.msra.mxu0 %v1301
    %1361 = vmatprep.subr.mxu0 %v1305
    %1362 = vmatpush1.msra.mxu0 %v1304
    %1363 = vmatprep.subr.mxu0 %v1308
    %1364 = vmatpush1.msra.mxu0 %v1307
    %1365 = vmatprep.subr.mxu0 %v1311
    %1366 = vmatpush1.msra.mxu0 %v1310
    %1367 = vmatprep.subr.mxu0 %v1314
    %1368 = vmatpush1.msra.mxu0 %v1313
    %1369 = vmatprep.subr.mxu0 %v1317
    %1370 = vmatpush1.msra.mxu0 %v1316
    %1371 = vmatprep.subr.mxu0 %v1320
    %1372 = vmatpush1.msra.mxu0 %v1319
    %1373 = vmatprep.subr.mxu0 %v1323
    %1374 = vmatpush1.msra.mxu0 %v1322
    %1375 = vmatprep.subr.mxu0 %v1326
    %1376 = vmatpush1.msra.mxu0 %v1325
    %1377 = vmatprep.subr.mxu0 0.0
    %1378 = vmatpush1.msra.mxu0 0.0
    %1379 = vmatprep.subr.mxu0 0.0
    %1380 = vmatpush1.msra.mxu0 0.0
    %1381 = vmatprep.subr.mxu0 0.0
    %1382 = vmatpush1.msra.mxu0 0.0
    %1383 = vmatprep.subr.mxu0 0.0
    %1384 = vmatpush1.msra.mxu0 0.0
    %1385 = vmatprep.subr.mxu0 0.0
    %1386 = vmatpush1.msra.mxu0 0.0
    %1387 = vmatprep.subr.mxu0 0.0
    %1388 = vmatpush1.msra.mxu0 0.0
    %1389 = vmatprep.subr.mxu0 0.0
    %1390 = vmatpush1.msra.mxu0 0.0
    %1391 = vmatprep.subr.mxu0 0.0
    %1392 = vmatpush1.msra.mxu0 0.0
    %1393 = vmatprep.subr.mxu0 0.0
    %1394 = vmatpush1.msra.mxu0 0.0
    %1395 = vmatprep.subr.mxu0 0.0
    %1396 = vmatpush1.msra.mxu0 0.0
    %1397 = vmatprep.subr.mxu0 0.0
    %1398 = vmatpush1.msra.mxu0 0.0
    %1399 = vmatprep.subr.mxu0 0.0
    %1400 = vmatpush1.msra.mxu0 0.0
    %1401 = vmatprep.subr.mxu0 0.0
    %1402 = vmatpush1.msra.mxu0 0.0
    %1403 = vmatprep.subr.mxu0 0.0
    %1404 = vmatpush1.msra.mxu0 0.0
    %1405 = vmatprep.subr.mxu0 0.0
    %1406 = vmatpush1.msra.mxu0 0.0
    %1407 = vmatprep.subr.mxu0 0.0
    %1408 = vmatpush1.msra.mxu0 0.0
    %1409 = vmatprep.mubr.f32.mxu0 0.0
    %1410 = vmatmul.mubr.f32.gmra.mrb[0].mxu0 %v510
    %v1411 = vpop.f32.mrb[0].mxu0
    %v1412 = vadd.f32 %v1333, %v1411
    %v1413 = vpop.f32.mrb[0].mxu0
    %v1414 = vadd.f32 %v1337, %v1413
    %1415 = vdwg.mxu0
    %1416 = vmatprep.subr.mxu0 0.0
    %1417 = vmatpush1.msra.mxu0 %v1282
    %1418 = vmatprep.subr.mxu0 0.0
    %1419 = vmatpush1.msra.mxu0 %v1285
    %1420 = vmatprep.subr.mxu0 0.0
    %1421 = vmatpush1.msra.mxu0 %v1288
    %1422 = vmatprep.subr.mxu0 0.0
    %1423 = vmatpush1.msra.mxu0 %v1291
    %1424 = vmatprep.subr.mxu0 0.0
    %1425 = vmatpush1.msra.mxu0 %v1294
    %1426 = vmatprep.subr.mxu0 0.0
    %1427 = vmatpush1.msra.mxu0 %v1297
    %1428 = vmatprep.subr.mxu0 0.0
    %1429 = vmatpush1.msra.mxu0 %v1300
    %1430 = vmatprep.subr.mxu0 0.0
    %1431 = vmatpush1.msra.mxu0 %v1303
    %1432 = vmatprep.subr.mxu0 0.0
    %1433 = vmatpush1.msra.mxu0 %v1306
    %1434 = vmatprep.subr.mxu0 0.0
    %1435 = vmatpush1.msra.mxu0 %v1309
    %1436 = vmatprep.subr.mxu0 0.0
    %1437 = vmatpush1.msra.mxu0 %v1312
    %1438 = vmatprep.subr.mxu0 0.0
    %1439 = vmatpush1.msra.mxu0 %v1315
    %1440 = vmatprep.subr.mxu0 0.0
    %1441 = vmatpush1.msra.mxu0 %v1318
    %1442 = vmatprep.subr.mxu0 0.0
    %1443 = vmatpush1.msra.mxu0 %v1321
    %1444 = vmatprep.subr.mxu0 0.0
    %1445 = vmatpush1.msra.mxu0 %v1324
    %1446 = vmatprep.subr.mxu0 0.0
    %1447 = vmatpush1.msra.mxu0 %v1327
    %1448 = vmatprep.subr.mxu0 0.0
    %1449 = vmatpush1.msra.mxu0 0.0
    %1450 = vmatprep.subr.mxu0 0.0
    %1451 = vmatpush1.msra.mxu0 0.0
    %1452 = vmatprep.subr.mxu0 0.0
    %1453 = vmatpush1.msra.mxu0 0.0
    %1454 = vmatprep.subr.mxu0 0.0
    %1455 = vmatpush1.msra.mxu0 0.0
    %1456 = vmatprep.subr.mxu0 0.0
    %1457 = vmatpush1.msra.mxu0 0.0
    %1458 = vmatprep.subr.mxu0 0.0
    %1459 = vmatpush1.msra.mxu0 0.0
    %1460 = vmatprep.subr.mxu0 0.0
    %1461 = vmatpush1.msra.mxu0 0.0
    %1462 = vmatprep.subr.mxu0 0.0
    %1463 = vmatpush1.msra.mxu0 0.0
    %1464 = vmatprep.subr.mxu0 0.0
    %1465 = vmatpush1.msra.mxu0 0.0
    %1466 = vmatprep.subr.mxu0 0.0
    %1467 = vmatpush1.msra.mxu0 0.0
    %1468 = vmatprep.subr.mxu0 0.0
    %1469 = vmatpush1.msra.mxu0 0.0
    %1470 = vmatprep.subr.mxu0 0.0
    %1471 = vmatpush1.msra.mxu0 0.0
    %1472 = vmatprep.subr.mxu0 0.0
    %1473 = vmatpush1.msra.mxu0 0.0
    %1474 = vmatprep.subr.mxu0 0.0
    %1475 = vmatpush1.msra.mxu0 0.0
    %1476 = vmatprep.subr.mxu0 0.0
    %1477 = vmatpush1.msra.mxu0 0.0
    %1478 = vmatprep.subr.mxu0 0.0
    %1479 = vmatpush1.msra.mxu0 0.0
    %1480 = vmatprep.mubr.f32.mxu0 0.0
    %1481 = vmatmul.mubr.f32.gmra.mrb[0].mxu0 %v510
    %v1482 = vpop.f32.mrb[0].mxu0
    %v1483 = vadd.f32 %v1341, %v1482
    %v1484 = vpop.f32.mrb[0].mxu0
    %1485 = vdwg.mxu0
    %v1486 = vadd.f32 %v1206, %v1412
    %v1487 = vxor.u32 %v1486, 2147483648
    %v1488 = vmul.f32 %v1487, 1.442695
    %v1489 = vpow.pop %v1488
    %v1490 = vadd.f32 %v1489, 1.0
    %v1491 = vrcp.pop %v1490
    %v1492 = vmul.f32 1.0, %v1491
    %v1493 = vadd.f32 %v1208, %v1414
    %v1494 = vxor.u32 %v1493, 2147483648
    %v1495 = vmul.f32 %v1494, 1.442695
    %v1496 = vpow.pop %v1495
    %v1497 = vadd.f32 %v1496, 1.0
    %v1498 = vrcp.pop %v1497
    %v1499 = vmul.f32 1.0, %v1498
    %v1500 = vmul.f32 %v1492, %v1483
    %v1501 = vadd.f32 %v1277, %v1500
    %v1502 = vtanh.pop %v1501
    %v1503 = vsub.f32 1.0, %v1499
    %v1504 = vmul.f32 %v1503, %v1502
    %v1505 = vmul.f32 %v1499, %v510
    %v1506 = vadd.f32 %v1504, %v1505
    %v1507 = vld [vmem:[#allocation4] sm:$0xff]
    %v1508 = vld [vmem:[#allocation4 + $0x8] sm:$0xff]
    %v1509 = vld [vmem:[#allocation4 + $0x10] sm:$0xff]
    %v1510 = vld [vmem:[#allocation4 + $0x18] sm:$0xff]
    %v1511 = vld [vmem:[#allocation4 + $0x20] sm:$0xff]
    %v1512 = vld [vmem:[#allocation4 + $0x28] sm:$0xff]
    %v1513 = vld [vmem:[#allocation4 + $0x30] sm:$0xff]
    %v1514 = vld [vmem:[#allocation4 + $0x38] sm:$0xff]
    %v1515 = vld [vmem:[#allocation4 + $0x40] sm:$0xff]
    %v1516 = vld [vmem:[#allocation4 + $0x48] sm:$0xff]
    %v1517 = vld [vmem:[#allocation4 + $0x50] sm:$0xff]
    %v1518 = vld [vmem:[#allocation4 + $0x58] sm:$0xff]
    %v1519 = vld [vmem:[#allocation4 + $0x60] sm:$0xff]
    %v1520 = vld [vmem:[#allocation4 + $0x68] sm:$0xff]
    %v1521 = vld [vmem:[#allocation4 + $0x70] sm:$0xff]
    %v1522 = vld [vmem:[#allocation4 + $0x78] sm:$0xff]
    %v1523 = vld [vmem:[#allocation4 + $0x80] sm:$0xff]
    %v1524 = vld [vmem:[#allocation4 + $0x88] sm:$0xff]
    %v1525 = vld [vmem:[#allocation4 + $0x90] sm:$0xff]
    %v1526 = vld [vmem:[#allocation4 + $0x98] sm:$0xff]
    %v1527 = vld [vmem:[#allocation4 + $0xa0] sm:$0xff]
    %v1528 = vld [vmem:[#allocation4 + $0xa8] sm:$0xff]
    %v1529 = vld [vmem:[#allocation4 + $0xb0] sm:$0xff]
    %v1530 = vld [vmem:[#allocation4 + $0xb8] sm:$0xff]
    %v1531 = vld [vmem:[#allocation4 + $0xc0] sm:$0xff]
    %v1532 = vld [vmem:[#allocation4 + $0xc8] sm:$0xff]
    %v1533 = vld [vmem:[#allocation4 + $0xd0] sm:$0xff]
    %v1534 = vld [vmem:[#allocation4 + $0xd8] sm:$0xff]
    %v1535 = vld [vmem:[#allocation4 + $0xe0] sm:$0xff]
    %v1536 = vld [vmem:[#allocation4 + $0xe8] sm:$0xff]
    %v1537 = vld [vmem:[#allocation4 + $0xf0] sm:$0xff]
    %v1538 = vld [vmem:[#allocation4 + $0xf8] sm:$0xff]
    %v1539 = vld [vmem:[#allocation4 + $0x100] sm:$0xff]
    %v1540 = vld [vmem:[#allocation4 + $0x108] sm:$0xff]
    %v1541 = vld [vmem:[#allocation4 + $0x110] sm:$0xff]
    %v1542 = vld [vmem:[#allocation4 + $0x118] sm:$0xff]
    %v1543 = vld [vmem:[#allocation4 + $0x120] sm:$0xff]
    %v1544 = vld [vmem:[#allocation4 + $0x128] sm:$0xff]
    %v1545 = vld [vmem:[#allocation4 + $0x130] sm:$0xff]
    %v1546 = vld [vmem:[#allocation4 + $0x138] sm:$0xff]
    %v1547 = vld [vmem:[#allocation4 + $0x140] sm:$0xff]
    %v1548 = vld [vmem:[#allocation4 + $0x148] sm:$0xff]
    %v1549 = vld [vmem:[#allocation4 + $0x150] sm:$0xff]
    %v1550 = vld [vmem:[#allocation4 + $0x158] sm:$0xff]
    %v1551 = vld [vmem:[#allocation4 + $0x160] sm:$0xff]
    %v1552 = vld [vmem:[#allocation4 + $0x168] sm:$0xff]
    %v1553 = vld [vmem:[#allocation4 + $0x170] sm:$0xff]
    %v1554 = vld [vmem:[#allocation4 + $0x178] sm:$0xff]
    %v1555 = vld [vmem:[%s7] sm:$0x7]
    %v1557 = vlaneseq
    %v1558 = vshrl.u32 %v1557, 7
    %v1559 = vsub.s32 0, %v1558
    %v1560 = vrot.slane %v1555, %v1559
    %v1561 = vlaneseq
    %v1562 = vshrl.u32 %v1561, 7
    %v1563 = vsub.s32 1, %v1562
    %v1564 = vrot.slane %v1555, %v1563
    %v1565 = vlaneseq
    %v1566 = vshrl.u32 %v1565, 7
    %v1567 = vsub.s32 2, %v1566
    %v1568 = vrot.slane %v1555, %v1567
    %1572 = vmatprep.subr.mxu0 %v1508
    %1573 = vmatpush1.msra.mxu0 %v1507
    %1574 = vmatprep.subr.mxu0 %v1511
    %1575 = vmatpush1.msra.mxu0 %v1510
    %1576 = vmatprep.subr.mxu0 %v1514
    %1577 = vmatpush1.msra.mxu0 %v1513
    %1578 = vmatprep.subr.mxu0 %v1517
    %1579 = vmatpush1.msra.mxu0 %v1516
    %1580 = vmatprep.subr.mxu0 %v1520
    %1581 = vmatpush1.msra.mxu0 %v1519
    %1582 = vmatprep.subr.mxu0 %v1523
    %1583 = vmatpush1.msra.mxu0 %v1522
    %1584 = vmatprep.subr.mxu0 %v1526
    %1585 = vmatpush1.msra.mxu0 %v1525
    %1586 = vmatprep.subr.mxu0 %v1529
    %1587 = vmatpush1.msra.mxu0 %v1528
    %1588 = vmatprep.subr.mxu0 %v1532
    %1589 = vmatpush1.msra.mxu0 %v1531
    %1590 = vmatprep.subr.mxu0 %v1535
    %1591 = vmatpush1.msra.mxu0 %v1534
    %1592 = vmatprep.subr.mxu0 %v1538
    %1593 = vmatpush1.msra.mxu0 %v1537
    %1594 = vmatprep.subr.mxu0 %v1541
    %1595 = vmatpush1.msra.mxu0 %v1540
    %1596 = vmatprep.subr.mxu0 %v1544
    %1597 = vmatpush1.msra.mxu0 %v1543
    %1598 = vmatprep.subr.mxu0 %v1547
    %1599 = vmatpush1.msra.mxu0 %v1546
    %1600 = vmatprep.subr.mxu0 %v1550
    %1601 = vmatpush1.msra.mxu0 %v1549
    %1602 = vmatprep.subr.mxu0 %v1553
    %1603 = vmatpush1.msra.mxu0 %v1552
    %1604 = vmatprep.subr.mxu0 0.0
    %1605 = vmatpush1.msra.mxu0 0.0
    %1606 = vmatprep.subr.mxu0 0.0
    %1607 = vmatpush1.msra.mxu0 0.0
    %1608 = vmatprep.subr.mxu0 0.0
    %1609 = vmatpush1.msra.mxu0 0.0
    %1610 = vmatprep.subr.mxu0 0.0
    %1611 = vmatpush1.msra.mxu0 0.0
    %1612 = vmatprep.subr.mxu0 0.0
    %1613 = vmatpush1.msra.mxu0 0.0
    %1614 = vmatprep.subr.mxu0 0.0
    %1615 = vmatpush1.msra.mxu0 0.0
    %1616 = vmatprep.subr.mxu0 0.0
    %1617 = vmatpush1.msra.mxu0 0.0
    %1618 = vmatprep.subr.mxu0 0.0
    %1619 = vmatpush1.msra.mxu0 0.0
    %1620 = vmatprep.subr.mxu0 0.0
    %1621 = vmatpush1.msra.mxu0 0.0
    %1622 = vmatprep.subr.mxu0 0.0
    %1623 = vmatpush1.msra.mxu0 0.0
    %1624 = vmatprep.subr.mxu0 0.0
    %1625 = vmatpush1.msra.mxu0 0.0
    %1626 = vmatprep.subr.mxu0 0.0
    %1627 = vmatpush1.msra.mxu0 0.0
    %1628 = vmatprep.subr.mxu0 0.0
    %1629 = vmatpush1.msra.mxu0 0.0
    %1630 = vmatprep.subr.mxu0 0.0
    %1631 = vmatpush1.msra.mxu0 0.0
    %1632 = vmatprep.subr.mxu0 0.0
    %1633 = vmatpush1.msra.mxu0 0.0
    %1634 = vmatprep.subr.mxu0 0.0
    %1635 = vmatpush1.msra.mxu0 0.0
    %1636 = vmatprep.mubr.f32.mxu0 0.0
    %1637 = vmatmul.mubr.f32.gmra.mrb[0].mxu0 %v1506
    %v1638 = vpop.f32.mrb[0].mxu0
    %v1639 = vadd.f32 %v1560, %v1638
    %v1640 = vpop.f32.mrb[0].mxu0
    %v1641 = vadd.f32 %v1564, %v1640
    %1642 = vdwg.mxu0
    %1643 = vmatprep.subr.mxu0 0.0
    %1644 = vmatpush1.msra.mxu0 %v1509
    %1645 = vmatprep.subr.mxu0 0.0
    %1646 = vmatpush1.msra.mxu0 %v1512
    %1647 = vmatprep.subr.mxu0 0.0
    %1648 = vmatpush1.msra.mxu0 %v1515
    %1649 = vmatprep.subr.mxu0 0.0
    %1650 = vmatpush1.msra.mxu0 %v1518
    %1651 = vmatprep.subr.mxu0 0.0
    %1652 = vmatpush1.msra.mxu0 %v1521
    %1653 = vmatprep.subr.mxu0 0.0
    %1654 = vmatpush1.msra.mxu0 %v1524
    %1655 = vmatprep.subr.mxu0 0.0
    %1656 = vmatpush1.msra.mxu0 %v1527
    %1657 = vmatprep.subr.mxu0 0.0
    %1658 = vmatpush1.msra.mxu0 %v1530
    %1659 = vmatprep.subr.mxu0 0.0
    %1660 = vmatpush1.msra.mxu0 %v1533
    %1661 = vmatprep.subr.mxu0 0.0
    %1662 = vmatpush1.msra.mxu0 %v1536
    %1663 = vmatprep.subr.mxu0 0.0
    %1664 = vmatpush1.msra.mxu0 %v1539
    %1665 = vmatprep.subr.mxu0 0.0
    %1666 = vmatpush1.msra.mxu0 %v1542
    %1667 = vmatprep.subr.mxu0 0.0
    %1668 = vmatpush1.msra.mxu0 %v1545
    %1669 = vmatprep.subr.mxu0 0.0
    %1670 = vmatpush1.msra.mxu0 %v1548
    %1671 = vmatprep.subr.mxu0 0.0
    %1672 = vmatpush1.msra.mxu0 %v1551
    %1673 = vmatprep.subr.mxu0 0.0
    %1674 = vmatpush1.msra.mxu0 %v1554
    %1675 = vmatprep.subr.mxu0 0.0
    %1676 = vmatpush1.msra.mxu0 0.0
    %1677 = vmatprep.subr.mxu0 0.0
    %1678 = vmatpush1.msra.mxu0 0.0
    %1679 = vmatprep.subr.mxu0 0.0
    %1680 = vmatpush1.msra.mxu0 0.0
    %1681 = vmatprep.subr.mxu0 0.0
    %1682 = vmatpush1.msra.mxu0 0.0
    %1683 = vmatprep.subr.mxu0 0.0
    %1684 = vmatpush1.msra.mxu0 0.0
    %1685 = vmatprep.subr.mxu0 0.0
    %1686 = vmatpush1.msra.mxu0 0.0
    %1687 = vmatprep.subr.mxu0 0.0
    %1688 = vmatpush1.msra.mxu0 0.0
    %1689 = vmatprep.subr.mxu0 0.0
    %1690 = vmatpush1.msra.mxu0 0.0
    %1691 = vmatprep.subr.mxu0 0.0
    %1692 = vmatpush1.msra.mxu0 0.0
    %1693 = vmatprep.subr.mxu0 0.0
    %1694 = vmatpush1.msra.mxu0 0.0
    %1695 = vmatprep.subr.mxu0 0.0
    %1696 = vmatpush1.msra.mxu0 0.0
    %1697 = vmatprep.subr.mxu0 0.0
    %1698 = vmatpush1.msra.mxu0 0.0
    %1699 = vmatprep.subr.mxu0 0.0
    %1700 = vmatpush1.msra.mxu0 0.0
    %1701 = vmatprep.subr.mxu0 0.0
    %1702 = vmatpush1.msra.mxu0 0.0
    %1703 = vmatprep.subr.mxu0 0.0
    %1704 = vmatpush1.msra.mxu0 0.0
    %1705 = vmatprep.subr.mxu0 0.0
    %1706 = vmatpush1.msra.mxu0 0.0
    %1707 = vmatprep.mubr.f32.mxu0 0.0
    %1708 = vmatmul.mubr.f32.gmra.mrb[0].mxu0 %v1506
    %v1709 = vpop.f32.mrb[0].mxu0
    %v1710 = vadd.f32 %v1568, %v1709
    %v1711 = vpop.f32.mrb[0].mxu0
    %1712 = vdwg.mxu0
    %v1713 = vld [vmem:[%s717] sm:$0xff]
    %v1714 = vld [vmem:[%s717 + $0x8] sm:$0xff]
    %v1715 = vld [vmem:[%s717 + $0x10] sm:$0xff]
    %v1716 = vld [vmem:[%s717 + $0x18] sm:$0xff]
    %v1717 = vld [vmem:[%s717 + $0x20] sm:$0xff]
    %v1718 = vld [vmem:[%s717 + $0x28] sm:$0xff]
    %v1719 = vld [vmem:[%s717 + $0x30] sm:$0xff]
    %v1720 = vld [vmem:[%s717 + $0x38] sm:$0xff]
    %v1721 = vld [vmem:[%s717 + $0x40] sm:$0xff]
    %v1722 = vld [vmem:[%s717 + $0x48] sm:$0xff]
    %v1723 = vld [vmem:[%s717 + $0x50] sm:$0xff]
    %v1724 = vld [vmem:[%s717 + $0x58] sm:$0xff]
    %v1725 = vld [vmem:[%s717 + $0x60] sm:$0xff]
    %v1726 = vld [vmem:[%s717 + $0x68] sm:$0xff]
    %v1727 = vld [vmem:[%s717 + $0x70] sm:$0xff]
    %v1728 = vld [vmem:[%s717 + $0x78] sm:$0xff]
    %v1729 = vld [vmem:[%s717 + $0x80] sm:$0xff]
    %v1730 = vld [vmem:[%s717 + $0x88] sm:$0xff]
    %v1731 = vld [vmem:[%s717 + $0x90] sm:$0xff]
    %v1732 = vld [vmem:[%s717 + $0x98] sm:$0xff]
    %v1733 = vld [vmem:[%s717 + $0xa0] sm:$0xff]
    %v1734 = vld [vmem:[%s717 + $0xa8] sm:$0xff]
    %v1735 = vld [vmem:[%s717 + $0xb0] sm:$0xff]
    %v1736 = vld [vmem:[%s717 + $0xb8] sm:$0xff]
    %v1737 = vld [vmem:[%s717 + $0xc0] sm:$0xff]
    %v1738 = vld [vmem:[%s717 + $0xc8] sm:$0xff]
    %v1739 = vld [vmem:[%s717 + $0xd0] sm:$0xff]
    %v1740 = vld [vmem:[%s717 + $0xd8] sm:$0xff]
    %v1741 = vld [vmem:[%s717 + $0xe0] sm:$0xff]
    %v1742 = vld [vmem:[%s717 + $0xe8] sm:$0xff]
    %v1743 = vld [vmem:[%s717 + $0xf0] sm:$0xff]
    %v1744 = vld [vmem:[%s717 + $0xf8] sm:$0xff]
    %v1745 = vld [vmem:[%s717 + $0x100] sm:$0xff]
    %v1746 = vld [vmem:[%s717 + $0x108] sm:$0xff]
    %v1747 = vld [vmem:[%s717 + $0x110] sm:$0xff]
    %v1748 = vld [vmem:[%s717 + $0x118] sm:$0xff]
    %v1749 = vld [vmem:[%s717 + $0x120] sm:$0xff]
    %v1750 = vld [vmem:[%s717 + $0x128] sm:$0xff]
    %v1751 = vld [vmem:[%s717 + $0x130] sm:$0xff]
    %v1752 = vld [vmem:[%s717 + $0x138] sm:$0xff]
    %v1753 = vld [vmem:[%s717 + $0x140] sm:$0xff]
    %v1754 = vld [vmem:[%s717 + $0x148] sm:$0xff]
    %v1755 = vld [vmem:[%s717 + $0x150] sm:$0xff]
    %v1756 = vld [vmem:[%s717 + $0x158] sm:$0xff]
    %v1757 = vld [vmem:[%s717 + $0x160] sm:$0xff]
    %v1758 = vld [vmem:[%s717 + $0x168] sm:$0xff]
    %v1759 = vld [vmem:[%s717 + $0x170] sm:$0xff]
    %v1760 = vld [vmem:[%s717 + $0x178] sm:$0xff]
    %v1761 = vld [vmem:[%s766] sm:$0x7]
    %v1763 = vlaneseq
    %v1764 = vshrl.u32 %v1763, 7
    %v1765 = vsub.s32 0, %v1764
    %v1766 = vrot.slane %v1761, %v1765
    %v1767 = vlaneseq
    %v1768 = vshrl.u32 %v1767, 7
    %v1769 = vsub.s32 1, %v1768
    %v1770 = vrot.slane %v1761, %v1769
    %v1771 = vlaneseq
    %v1772 = vshrl.u32 %v1771, 7
    %v1773 = vsub.s32 2, %v1772
    %v1774 = vrot.slane %v1761, %v1773
    %1778 = vmatprep.subr.mxu0 %v1714
    %1779 = vmatpush1.msra.mxu0 %v1713
    %1780 = vmatprep.subr.mxu0 %v1717
    %1781 = vmatpush1.msra.mxu0 %v1716
    %1782 = vmatprep.subr.mxu0 %v1720
    %1783 = vmatpush1.msra.mxu0 %v1719
    %1784 = vmatprep.subr.mxu0 %v1723
    %1785 = vmatpush1.msra.mxu0 %v1722
    %1786 = vmatprep.subr.mxu0 %v1726
    %1787 = vmatpush1.msra.mxu0 %v1725
    %1788 = vmatprep.subr.mxu0 %v1729
    %1789 = vmatpush1.msra.mxu0 %v1728
    %1790 = vmatprep.subr.mxu0 %v1732
    %1791 = vmatpush1.msra.mxu0 %v1731
    %1792 = vmatprep.subr.mxu0 %v1735
    %1793 = vmatpush1.msra.mxu0 %v1734
    %1794 = vmatprep.subr.mxu0 %v1738
    %1795 = vmatpush1.msra.mxu0 %v1737
    %1796 = vmatprep.subr.mxu0 %v1741
    %1797 = vmatpush1.msra.mxu0 %v1740
    %1798 = vmatprep.subr.mxu0 %v1744
    %1799 = vmatpush1.msra.mxu0 %v1743
    %1800 = vmatprep.subr.mxu0 %v1747
    %1801 = vmatpush1.msra.mxu0 %v1746
    %1802 = vmatprep.subr.mxu0 %v1750
    %1803 = vmatpush1.msra.mxu0 %v1749
    %1804 = vmatprep.subr.mxu0 %v1753
    %1805 = vmatpush1.msra.mxu0 %v1752
    %1806 = vmatprep.subr.mxu0 %v1756
    %1807 = vmatpush1.msra.mxu0 %v1755
    %1808 = vmatprep.subr.mxu0 %v1759
    %1809 = vmatpush1.msra.mxu0 %v1758
    %1810 = vmatprep.subr.mxu0 0.0
    %1811 = vmatpush1.msra.mxu0 0.0
    %1812 = vmatprep.subr.mxu0 0.0
    %1813 = vmatpush1.msra.mxu0 0.0
    %1814 = vmatprep.subr.mxu0 0.0
    %1815 = vmatpush1.msra.mxu0 0.0
    %1816 = vmatprep.subr.mxu0 0.0
    %1817 = vmatpush1.msra.mxu0 0.0
    %1818 = vmatprep.subr.mxu0 0.0
    %1819 = vmatpush1.msra.mxu0 0.0
    %1820 = vmatprep.subr.mxu0 0.0
    %1821 = vmatpush1.msra.mxu0 0.0
    %1822 = vmatprep.subr.mxu0 0.0
    %1823 = vmatpush1.msra.mxu0 0.0
    %1824 = vmatprep.subr.mxu0 0.0
    %1825 = vmatpush1.msra.mxu0 0.0
    %1826 = vmatprep.subr.mxu0 0.0
    %1827 = vmatpush1.msra.mxu0 0.0
    %1828 = vmatprep.subr.mxu0 0.0
    %1829 = vmatpush1.msra.mxu0 0.0
    %1830 = vmatprep.subr.mxu0 0.0
    %1831 = vmatpush1.msra.mxu0 0.0
    %1832 = vmatprep.subr.mxu0 0.0
    %1833 = vmatpush1.msra.mxu0 0.0
    %1834 = vmatprep.subr.mxu0 0.0
    %1835 = vmatpush1.msra.mxu0 0.0
    %1836 = vmatprep.subr.mxu0 0.0
    %1837 = vmatpush1.msra.mxu0 0.0
    %1838 = vmatprep.subr.mxu0 0.0
    %1839 = vmatpush1.msra.mxu0 0.0
    %1840 = vmatprep.subr.mxu0 0.0
    %1841 = vmatpush1.msra.mxu0 0.0
    %1842 = vmatprep.mubr.f32.mxu0 0.0
    %1843 = vmatmul.mubr.f32.gmra.mrb[0].mxu0 %v945
    %v1844 = vpop.f32.mrb[0].mxu0
    %v1845 = vadd.f32 %v1766, %v1844
    %v1846 = vpop.f32.mrb[0].mxu0
    %v1847 = vadd.f32 %v1770, %v1846
    %1848 = vdwg.mxu0
    %1849 = vmatprep.subr.mxu0 0.0
    %1850 = vmatpush1.msra.mxu0 %v1715
    %1851 = vmatprep.subr.mxu0 0.0
    %1852 = vmatpush1.msra.mxu0 %v1718
    %1853 = vmatprep.subr.mxu0 0.0
    %1854 = vmatpush1.msra.mxu0 %v1721
    %1855 = vmatprep.subr.mxu0 0.0
    %1856 = vmatpush1.msra.mxu0 %v1724
    %1857 = vmatprep.subr.mxu0 0.0
    %1858 = vmatpush1.msra.mxu0 %v1727
    %1859 = vmatprep.subr.mxu0 0.0
    %1860 = vmatpush1.msra.mxu0 %v1730
    %1861 = vmatprep.subr.mxu0 0.0
    %1862 = vmatpush1.msra.mxu0 %v1733
    %1863 = vmatprep.subr.mxu0 0.0
    %1864 = vmatpush1.msra.mxu0 %v1736
    %1865 = vmatprep.subr.mxu0 0.0
    %1866 = vmatpush1.msra.mxu0 %v1739
    %1867 = vmatprep.subr.mxu0 0.0
    %1868 = vmatpush1.msra.mxu0 %v1742
    %1869 = vmatprep.subr.mxu0 0.0
    %1870 = vmatpush1.msra.mxu0 %v1745
    %1871 = vmatprep.subr.mxu0 0.0
    %1872 = vmatpush1.msra.mxu0 %v1748
    %1873 = vmatprep.subr.mxu0 0.0
    %1874 = vmatpush1.msra.mxu0 %v1751
    %1875 = vmatprep.subr.mxu0 0.0
    %1876 = vmatpush1.msra.mxu0 %v1754
    %1877 = vmatprep.subr.mxu0 0.0
    %1878 = vmatpush1.msra.mxu0 %v1757
    %1879 = vmatprep.subr.mxu0 0.0
    %1880 = vmatpush1.msra.mxu0 %v1760
    %1881 = vmatprep.subr.mxu0 0.0
    %1882 = vmatpush1.msra.mxu0 0.0
    %1883 = vmatprep.subr.mxu0 0.0
    %1884 = vmatpush1.msra.mxu0 0.0
    %1885 = vmatprep.subr.mxu0 0.0
    %1886 = vmatpush1.msra.mxu0 0.0
    %1887 = vmatprep.subr.mxu0 0.0
    %1888 = vmatpush1.msra.mxu0 0.0
    %1889 = vmatprep.subr.mxu0 0.0
    %1890 = vmatpush1.msra.mxu0 0.0
    %1891 = vmatprep.subr.mxu0 0.0
    %1892 = vmatpush1.msra.mxu0 0.0
    %1893 = vmatprep.subr.mxu0 0.0
    %1894 = vmatpush1.msra.mxu0 0.0
    %1895 = vmatprep.subr.mxu0 0.0
    %1896 = vmatpush1.msra.mxu0 0.0
    %1897 = vmatprep.subr.mxu0 0.0
    %1898 = vmatpush1.msra.mxu0 0.0
    %1899 = vmatprep.subr.mxu0 0.0
    %1900 = vmatpush1.msra.mxu0 0.0
    %1901 = vmatprep.subr.mxu0 0.0
    %1902 = vmatpush1.msra.mxu0 0.0
    %1903 = vmatprep.subr.mxu0 0.0
    %1904 = vmatpush1.msra.mxu0 0.0
    %1905 = vmatprep.subr.mxu0 0.0
    %1906 = vmatpush1.msra.mxu0 0.0
    %1907 = vmatprep.subr.mxu0 0.0
    %1908 = vmatpush1.msra.mxu0 0.0
    %1909 = vmatprep.subr.mxu0 0.0
    %1910 = vmatpush1.msra.mxu0 0.0
    %1911 = vmatprep.subr.mxu0 0.0
    %1912 = vmatpush1.msra.mxu0 0.0
    %1913 = vmatprep.mubr.f32.mxu0 0.0
    %1914 = vmatmul.mubr.f32.gmra.mrb[0].mxu0 %v945
    %v1915 = vpop.f32.mrb[0].mxu0
    %v1916 = vadd.f32 %v1774, %v1915
    %v1917 = vpop.f32.mrb[0].mxu0
    %1918 = vdwg.mxu0
    %v1919 = vadd.f32 %v1639, %v1845
    %v1920 = vxor.u32 %v1919, 2147483648
    %v1921 = vmul.f32 %v1920, 1.442695
    %v1922 = vpow.pop %v1921
    %v1923 = vadd.f32 %v1922, 1.0
    %v1924 = vrcp.pop %v1923
    %v1925 = vmul.f32 1.0, %v1924
    %v1926 = vadd.f32 %v1641, %v1847
    %v1927 = vxor.u32 %v1926, 2147483648
    %v1928 = vmul.f32 %v1927, 1.442695
    %v1929 = vpow.pop %v1928
    %v1930 = vadd.f32 %v1929, 1.0
    %v1931 = vrcp.pop %v1930
    %v1932 = vmul.f32 1.0, %v1931
    %v1933 = vmul.f32 %v1925, %v1916
    %v1934 = vadd.f32 %v1710, %v1933
    %v1935 = vtanh.pop %v1934
    %v1936 = vsub.f32 1.0, %v1932
    %v1937 = vmul.f32 %v1936, %v1935
    %v1938 = vmul.f32 %v1932, %v945
    %v1939 = vadd.f32 %v1937, %v1938
    %v1940 = vld [vmem:[%s8] sm:$0xff]
    %v1941 = vld [vmem:[%s8 + $0x8] sm:$0xff]
    %v1942 = vld [vmem:[%s8 + $0x10] sm:$0xff]
    %v1943 = vld [vmem:[%s8 + $0x18] sm:$0xff]
    %v1944 = vld [vmem:[%s8 + $0x20] sm:$0xff]
    %v1945 = vld [vmem:[%s8 + $0x28] sm:$0xff]
    %v1946 = vld [vmem:[%s8 + $0x30] sm:$0xff]
    %v1947 = vld [vmem:[%s8 + $0x38] sm:$0xff]
    %v1948 = vld [vmem:[%s8 + $0x40] sm:$0xff]
    %v1949 = vld [vmem:[%s8 + $0x48] sm:$0xff]
    %v1950 = vld [vmem:[%s8 + $0x50] sm:$0xff]
    %v1951 = vld [vmem:[%s8 + $0x58] sm:$0xff]
    %v1952 = vld [vmem:[%s8 + $0x60] sm:$0xff]
    %v1953 = vld [vmem:[%s8 + $0x68] sm:$0xff]
    %v1954 = vld [vmem:[%s8 + $0x70] sm:$0xff]
    %v1955 = vld [vmem:[%s8 + $0x78] sm:$0xff]
    %v1956 = vld [vmem:[%s9] sm:$0x1]
    %v1958 = vlaneseq
    %v1959 = vshrl.u32 %v1958, 7
    %v1960 = vsub.s32 0, %v1959
    %v1961 = vrot.slane %v1956, %v1960
    %1963 = vmatprep.subr.mxu0 0.0
    %1964 = vmatpush1.msra.mxu0 %v1940
    %1965 = vmatprep.subr.mxu0 0.0
    %1966 = vmatpush1.msra.mxu0 %v1941
    %1967 = vmatprep.subr.mxu0 0.0
    %1968 = vmatpush1.msra.mxu0 %v1942
    %1969 = vmatprep.subr.mxu0 0.0
    %1970 = vmatpush1.msra.mxu0 %v1943
    %1971 = vmatprep.subr.mxu0 0.0
    %1972 = vmatpush1.msra.mxu0 %v1944
    %1973 = vmatprep.subr.mxu0 0.0
    %1974 = vmatpush1.msra.mxu0 %v1945
    %1975 = vmatprep.subr.mxu0 0.0
    %1976 = vmatpush1.msra.mxu0 %v1946
    %1977 = vmatprep.subr.mxu0 0.0
    %1978 = vmatpush1.msra.mxu0 %v1947
    %1979 = vmatprep.subr.mxu0 0.0
    %1980 = vmatpush1.msra.mxu0 %v1948
    %1981 = vmatprep.subr.mxu0 0.0
    %1982 = vmatpush1.msra.mxu0 %v1949
    %1983 = vmatprep.subr.mxu0 0.0
    %1984 = vmatpush1.msra.mxu0 %v1950
    %1985 = vmatprep.subr.mxu0 0.0
    %1986 = vmatpush1.msra.mxu0 %v1951
    %1987 = vmatprep.subr.mxu0 0.0
    %1988 = vmatpush1.msra.mxu0 %v1952
    %1989 = vmatprep.subr.mxu0 0.0
    %1990 = vmatpush1.msra.mxu0 %v1953
    %1991 = vmatprep.subr.mxu0 0.0
    %1992 = vmatpush1.msra.mxu0 %v1954
    %1993 = vmatprep.subr.mxu0 0.0
    %1994 = vmatpush1.msra.mxu0 %v1955
    %1995 = vmatprep.subr.mxu0 0.0
    %1996 = vmatpush1.msra.mxu0 0.0
    %1997 = vmatprep.subr.mxu0 0.0
    %1998 = vmatpush1.msra.mxu0 0.0
    %1999 = vmatprep.subr.mxu0 0.0
    %2000 = vmatpush1.msra.mxu0 0.0
    %2001 = vmatprep.subr.mxu0 0.0
    %2002 = vmatpush1.msra.mxu0 0.0
    %2003 = vmatprep.subr.mxu0 0.0
    %2004 = vmatpush1.msra.mxu0 0.0
    %2005 = vmatprep.subr.mxu0 0.0
    %2006 = vmatpush1.msra.mxu0 0.0
    %2007 = vmatprep.subr.mxu0 0.0
    %2008 = vmatpush1.msra.mxu0 0.0
    %2009 = vmatprep.subr.mxu0 0.0
    %2010 = vmatpush1.msra.mxu0 0.0
    %2011 = vmatprep.subr.mxu0 0.0
    %2012 = vmatpush1.msra.mxu0 0.0
    %2013 = vmatprep.subr.mxu0 0.0
    %2014 = vmatpush1.msra.mxu0 0.0
    %2015 = vmatprep.subr.mxu0 0.0
    %2016 = vmatpush1.msra.mxu0 0.0
    %2017 = vmatprep.subr.mxu0 0.0
    %2018 = vmatpush1.msra.mxu0 0.0
    %2019 = vmatprep.subr.mxu0 0.0
    %2020 = vmatpush1.msra.mxu0 0.0
    %2021 = vmatprep.subr.mxu0 0.0
    %2022 = vmatpush1.msra.mxu0 0.0
    %2023 = vmatprep.subr.mxu0 0.0
    %2024 = vmatpush1.msra.mxu0 0.0
    %2025 = vmatprep.subr.mxu0 0.0
    %2026 = vmatpush1.msra.mxu0 0.0
    %2027 = vmatprep.mubr.f32.mxu0 0.0
    %2028 = vmatmul.mubr.f32.gmra.mrb[0].mxu0 %v1939
    %v2029 = vpop.f32.mrb[0].mxu0
    %v2030 = vadd.f32 %v1961, %v2029
    %v2031 = vpop.f32.mrb[0].mxu0
    %2032 = vdwg.mxu0
    %s2033 = scalar_lea.vmem %s11, 8
    %2034 = vst [vmem:[%s2033] sm:$0xff] %v2030
    %2035 = vmax.xlane.f32.xlu0 %v2030
    %v2036 = vpop.xlane.xlu0 %2035
    %vm2037 = vcmp.ge.f32.partialorder %v2030, %v2036
    %v2038 = vsel %vm2037, %v1043, 1073741824
    %v2039 = vand.u32 %v2038, 65535
    %v2040 = vshra.s32 %v2038, 16
    %v2041 = vcvt.s32.f32 %v2039
    %v2042 = vcvt.s32.f32 %v2040
    %2043 = vmin.xlane.f32.xlu0 %v2042
    %v2044 = vpop.xlane.xlu0 %2043
    %vm2045 = vcmp.eq.f32.partialorder %v2042, %v2044
    %v2046 = vsel %vm2045, %v2041, inf
    %2047 = vmin.xlane.f32.xlu0 %v2046
    %v2048 = vpop.xlane.xlu0 %2047
    %v2049 = vcvt.f32.s32 %v2048
    %v2050 = vcvt.f32.s32 %v2044
    %v2051 = vshll.u32 %v2050, 16
    %v2052 = vadd.s32 %v2051, %v2049
    %vm2053 = vcmp.eq.s32.totalorder %v1043, %v2052
    %v2054 = vsel %vm2053, 1, 0
    %v2055 = vcvt.s32.f32 %v2054
    %s2056 = scalar_lea.vmem %s0, 16
    %v2057 = vld [vmem:[%s2056] sm:$0xff]
    %s2058 = scalar_lea.vmem %s1, 16
    %v2059 = vld [vmem:[%s2058] sm:$0xff]
    %2061 = vset.pattern.permute.xlu0 0
    %2062 = vperm.xlu0 %2061, %v2059
    %v2063 = vpop.permute.xlu0 %2062
    %v2065 = vmul.f32 %v2063, %v2055
    %v2066 = vadd.f32 %v2057, %v2065
    %v2067 = vld [vmem:[#allocation2] sm:$0xff]
    %v2068 = vld [vmem:[#allocation2 + $0x8] sm:$0xff]
    %v2069 = vld [vmem:[#allocation2 + $0x10] sm:$0xff]
    %v2070 = vld [vmem:[#allocation2 + $0x18] sm:$0xff]
    %v2071 = vld [vmem:[#allocation2 + $0x20] sm:$0xff]
    %v2072 = vld [vmem:[#allocation2 + $0x28] sm:$0xff]
    %v2073 = vld [vmem:[#allocation2 + $0x30] sm:$0xff]
    %v2074 = vld [vmem:[#allocation2 + $0x38] sm:$0xff]
    %v2075 = vld [vmem:[#allocation2 + $0x40] sm:$0xff]
    %v2076 = vld [vmem:[#allocation2 + $0x48] sm:$0xff]
    %v2077 = vld [vmem:[#allocation2 + $0x50] sm:$0xff]
    %v2078 = vld [vmem:[#allocation2 + $0x58] sm:$0xff]
    %v2079 = vld [vmem:[#allocation2 + $0x60] sm:$0xff]
    %v2080 = vld [vmem:[#allocation2 + $0x68] sm:$0xff]
    %v2081 = vld [vmem:[#allocation2 + $0x70] sm:$0xff]
    %v2082 = vld [vmem:[#allocation2 + $0x78] sm:$0xff]
    %v2083 = vld [vmem:[#allocation2 + $0x80] sm:$0xff]
    %v2084 = vld [vmem:[#allocation2 + $0x88] sm:$0xff]
    %v2085 = vld [vmem:[#allocation2 + $0x90] sm:$0xff]
    %v2086 = vld [vmem:[#allocation2 + $0x98] sm:$0xff]
    %v2087 = vld [vmem:[#allocation2 + $0xa0] sm:$0xff]
    %v2088 = vld [vmem:[#allocation2 + $0xa8] sm:$0xff]
    %v2089 = vld [vmem:[#allocation2 + $0xb0] sm:$0xff]
    %v2090 = vld [vmem:[#allocation2 + $0xb8] sm:$0xff]
    %v2091 = vld [vmem:[#allocation2 + $0xc0] sm:$0xff]
    %v2092 = vld [vmem:[#allocation2 + $0xc8] sm:$0xff]
    %v2093 = vld [vmem:[#allocation2 + $0xd0] sm:$0xff]
    %v2094 = vld [vmem:[#allocation2 + $0xd8] sm:$0xff]
    %v2095 = vld [vmem:[#allocation2 + $0xe0] sm:$0xff]
    %v2096 = vld [vmem:[#allocation2 + $0xe8] sm:$0xff]
    %v2097 = vld [vmem:[#allocation2 + $0xf0] sm:$0xff]
    %v2098 = vld [vmem:[#allocation2 + $0xf8] sm:$0xff]
    %v2099 = vld [vmem:[#allocation2 + $0x100] sm:$0xff]
    %v2100 = vld [vmem:[#allocation2 + $0x108] sm:$0xff]
    %v2101 = vld [vmem:[#allocation2 + $0x110] sm:$0xff]
    %v2102 = vld [vmem:[#allocation2 + $0x118] sm:$0xff]
    %v2103 = vld [vmem:[#allocation2 + $0x120] sm:$0xff]
    %v2104 = vld [vmem:[#allocation2 + $0x128] sm:$0xff]
    %v2105 = vld [vmem:[#allocation2 + $0x130] sm:$0xff]
    %v2106 = vld [vmem:[#allocation2 + $0x138] sm:$0xff]
    %v2107 = vld [vmem:[#allocation2 + $0x140] sm:$0xff]
    %v2108 = vld [vmem:[#allocation2 + $0x148] sm:$0xff]
    %v2109 = vld [vmem:[#allocation2 + $0x150] sm:$0xff]
    %v2110 = vld [vmem:[#allocation2 + $0x158] sm:$0xff]
    %v2111 = vld [vmem:[#allocation2 + $0x160] sm:$0xff]
    %v2112 = vld [vmem:[#allocation2 + $0x168] sm:$0xff]
    %v2113 = vld [vmem:[#allocation2 + $0x170] sm:$0xff]
    %v2114 = vld [vmem:[#allocation2 + $0x178] sm:$0xff]
    %v2115 = vld [vmem:[%s3] sm:$0x7]
    %v2117 = vlaneseq
    %v2118 = vshrl.u32 %v2117, 7
    %v2119 = vsub.s32 0, %v2118
    %v2120 = vrot.slane %v2115, %v2119
    %v2121 = vlaneseq
    %v2122 = vshrl.u32 %v2121, 7
    %v2123 = vsub.s32 1, %v2122
    %v2124 = vrot.slane %v2115, %v2123
    %v2125 = vlaneseq
    %v2126 = vshrl.u32 %v2125, 7
    %v2127 = vsub.s32 2, %v2126
    %v2128 = vrot.slane %v2115, %v2127
    %2132 = vmatprep.subr.mxu0 %v2068
    %2133 = vmatpush1.msra.mxu0 %v2067
    %2134 = vmatprep.subr.mxu0 %v2071
    %2135 = vmatpush1.msra.mxu0 %v2070
    %2136 = vmatprep.subr.mxu0 %v2074
    %2137 = vmatpush1.msra.mxu0 %v2073
    %2138 = vmatprep.subr.mxu0 %v2077
    %2139 = vmatpush1.msra.mxu0 %v2076
    %2140 = vmatprep.subr.mxu0 %v2080
    %2141 = vmatpush1.msra.mxu0 %v2079
    %2142 = vmatprep.subr.mxu0 %v2083
    %2143 = vmatpush1.msra.mxu0 %v2082
    %2144 = vmatprep.subr.mxu0 %v2086
    %2145 = vmatpush1.msra.mxu0 %v2085
    %2146 = vmatprep.subr.mxu0 %v2089
    %2147 = vmatpush1.msra.mxu0 %v2088
    %2148 = vmatprep.subr.mxu0 %v2092
    %2149 = vmatpush1.msra.mxu0 %v2091
    %2150 = vmatprep.subr.mxu0 %v2095
    %2151 = vmatpush1.msra.mxu0 %v2094
    %2152 = vmatprep.subr.mxu0 %v2098
    %2153 = vmatpush1.msra.mxu0 %v2097
    %2154 = vmatprep.subr.mxu0 %v2101
    %2155 = vmatpush1.msra.mxu0 %v2100
    %2156 = vmatprep.subr.mxu0 %v2104
    %2157 = vmatpush1.msra.mxu0 %v2103
    %2158 = vmatprep.subr.mxu0 %v2107
    %2159 = vmatpush1.msra.mxu0 %v2106
    %2160 = vmatprep.subr.mxu0 %v2110
    %2161 = vmatpush1.msra.mxu0 %v2109
    %2162 = vmatprep.subr.mxu0 %v2113
    %2163 = vmatpush1.msra.mxu0 %v2112
    %2164 = vmatprep.subr.mxu0 0.0
    %2165 = vmatpush1.msra.mxu0 0.0
    %2166 = vmatprep.subr.mxu0 0.0
    %2167 = vmatpush1.msra.mxu0 0.0
    %2168 = vmatprep.subr.mxu0 0.0
    %2169 = vmatpush1.msra.mxu0 0.0
    %2170 = vmatprep.subr.mxu0 0.0
    %2171 = vmatpush1.msra.mxu0 0.0
    %2172 = vmatprep.subr.mxu0 0.0
    %2173 = vmatpush1.msra.mxu0 0.0
    %2174 = vmatprep.subr.mxu0 0.0
    %2175 = vmatpush1.msra.mxu0 0.0
    %2176 = vmatprep.subr.mxu0 0.0
    %2177 = vmatpush1.msra.mxu0 0.0
    %2178 = vmatprep.subr.mxu0 0.0
    %2179 = vmatpush1.msra.mxu0 0.0
    %2180 = vmatprep.subr.mxu0 0.0
    %2181 = vmatpush1.msra.mxu0 0.0
    %2182 = vmatprep.subr.mxu0 0.0
    %2183 = vmatpush1.msra.mxu0 0.0
    %2184 = vmatprep.subr.mxu0 0.0
    %2185 = vmatpush1.msra.mxu0 0.0
    %2186 = vmatprep.subr.mxu0 0.0
    %2187 = vmatpush1.msra.mxu0 0.0
    %2188 = vmatprep.subr.mxu0 0.0
    %2189 = vmatpush1.msra.mxu0 0.0
    %2190 = vmatprep.subr.mxu0 0.0
    %2191 = vmatpush1.msra.mxu0 0.0
    %2192 = vmatprep.subr.mxu0 0.0
    %2193 = vmatpush1.msra.mxu0 0.0
    %2194 = vmatprep.subr.mxu0 0.0
    %2195 = vmatpush1.msra.mxu0 0.0
    %2196 = vmatprep.mubr.f32.mxu0 0.0
    %2197 = vmatmul.mubr.f32.gmra.mrb[0].mxu0 %v2066
    %v2198 = vpop.f32.mrb[0].mxu0
    %v2199 = vadd.f32 %v2120, %v2198
    %v2200 = vpop.f32.mrb[0].mxu0
    %v2201 = vadd.f32 %v2124, %v2200
    %2202 = vdwg.mxu0
    %2203 = vmatprep.subr.mxu0 0.0
    %2204 = vmatpush1.msra.mxu0 %v2069
    %2205 = vmatprep.subr.mxu0 0.0
    %2206 = vmatpush1.msra.mxu0 %v2072
    %2207 = vmatprep.subr.mxu0 0.0
    %2208 = vmatpush1.msra.mxu0 %v2075
    %2209 = vmatprep.subr.mxu0 0.0
    %2210 = vmatpush1.msra.mxu0 %v2078
    %2211 = vmatprep.subr.mxu0 0.0
    %2212 = vmatpush1.msra.mxu0 %v2081
    %2213 = vmatprep.subr.mxu0 0.0
    %2214 = vmatpush1.msra.mxu0 %v2084
    %2215 = vmatprep.subr.mxu0 0.0
    %2216 = vmatpush1.msra.mxu0 %v2087
    %2217 = vmatprep.subr.mxu0 0.0
    %2218 = vmatpush1.msra.mxu0 %v2090
    %2219 = vmatprep.subr.mxu0 0.0
    %2220 = vmatpush1.msra.mxu0 %v2093
    %2221 = vmatprep.subr.mxu0 0.0
    %2222 = vmatpush1.msra.mxu0 %v2096
    %2223 = vmatprep.subr.mxu0 0.0
    %2224 = vmatpush1.msra.mxu0 %v2099
    %2225 = vmatprep.subr.mxu0 0.0
    %2226 = vmatpush1.msra.mxu0 %v2102
    %2227 = vmatprep.subr.mxu0 0.0
    %2228 = vmatpush1.msra.mxu0 %v2105
    %2229 = vmatprep.subr.mxu0 0.0
    %2230 = vmatpush1.msra.mxu0 %v2108
    %2231 = vmatprep.subr.mxu0 0.0
    %2232 = vmatpush1.msra.mxu0 %v2111
    %2233 = vmatprep.subr.mxu0 0.0
    %2234 = vmatpush1.msra.mxu0 %v2114
    %2235 = vmatprep.subr.mxu0 0.0
    %2236 = vmatpush1.msra.mxu0 0.0
    %2237 = vmatprep.subr.mxu0 0.0
    %2238 = vmatpush1.msra.mxu0 0.0
    %2239 = vmatprep.subr.mxu0 0.0
    %2240 = vmatpush1.msra.mxu0 0.0
    %2241 = vmatprep.subr.mxu0 0.0
    %2242 = vmatpush1.msra.mxu0 0.0
    %2243 = vmatprep.subr.mxu0 0.0
    %2244 = vmatpush1.msra.mxu0 0.0
    %2245 = vmatprep.subr.mxu0 0.0
    %2246 = vmatpush1.msra.mxu0 0.0
    %2247 = vmatprep.subr.mxu0 0.0
    %2248 = vmatpush1.msra.mxu0 0.0
    %2249 = vmatprep.subr.mxu0 0.0
    %2250 = vmatpush1.msra.mxu0 0.0
    %2251 = vmatprep.subr.mxu0 0.0
    %2252 = vmatpush1.msra.mxu0 0.0
    %2253 = vmatprep.subr.mxu0 0.0
    %2254 = vmatpush1.msra.mxu0 0.0
    %2255 = vmatprep.subr.mxu0 0.0
    %2256 = vmatpush1.msra.mxu0 0.0
    %2257 = vmatprep.subr.mxu0 0.0
    %2258 = vmatpush1.msra.mxu0 0.0
    %2259 = vmatprep.subr.mxu0 0.0
    %2260 = vmatpush1.msra.mxu0 0.0
    %2261 = vmatprep.subr.mxu0 0.0
    %2262 = vmatpush1.msra.mxu0 0.0
    %2263 = vmatprep.subr.mxu0 0.0
    %2264 = vmatpush1.msra.mxu0 0.0
    %2265 = vmatprep.subr.mxu0 0.0
    %2266 = vmatpush1.msra.mxu0 0.0
    %2267 = vmatprep.mubr.f32.mxu0 0.0
    %2268 = vmatmul.mubr.f32.gmra.mrb[0].mxu0 %v2066
    %v2269 = vpop.f32.mrb[0].mxu0
    %v2270 = vadd.f32 %v2128, %v2269
    %v2271 = vpop.f32.mrb[0].mxu0
    %2272 = vdwg.mxu0
    %v2273 = vld [vmem:[%s4] sm:$0xff]
    %v2274 = vld [vmem:[%s4 + $0x8] sm:$0xff]
    %v2275 = vld [vmem:[%s4 + $0x10] sm:$0xff]
    %v2276 = vld [vmem:[%s4 + $0x18] sm:$0xff]
    %v2277 = vld [vmem:[%s4 + $0x20] sm:$0xff]
    %v2278 = vld [vmem:[%s4 + $0x28] sm:$0xff]
    %v2279 = vld [vmem:[%s4 + $0x30] sm:$0xff]
    %v2280 = vld [vmem:[%s4 + $0x38] sm:$0xff]
    %v2281 = vld [vmem:[%s4 + $0x40] sm:$0xff]
    %v2282 = vld [vmem:[%s4 + $0x48] sm:$0xff]
    %v2283 = vld [vmem:[%s4 + $0x50] sm:$0xff]
    %v2284 = vld [vmem:[%s4 + $0x58] sm:$0xff]
    %v2285 = vld [vmem:[%s4 + $0x60] sm:$0xff]
    %v2286 = vld [vmem:[%s4 + $0x68] sm:$0xff]
    %v2287 = vld [vmem:[%s4 + $0x70] sm:$0xff]
    %v2288 = vld [vmem:[%s4 + $0x78] sm:$0xff]
    %v2289 = vld [vmem:[%s4 + $0x80] sm:$0xff]
    %v2290 = vld [vmem:[%s4 + $0x88] sm:$0xff]
    %v2291 = vld [vmem:[%s4 + $0x90] sm:$0xff]
    %v2292 = vld [vmem:[%s4 + $0x98] sm:$0xff]
    %v2293 = vld [vmem:[%s4 + $0xa0] sm:$0xff]
    %v2294 = vld [vmem:[%s4 + $0xa8] sm:$0xff]
    %v2295 = vld [vmem:[%s4 + $0xb0] sm:$0xff]
    %v2296 = vld [vmem:[%s4 + $0xb8] sm:$0xff]
    %v2297 = vld [vmem:[%s4 + $0xc0] sm:$0xff]
    %v2298 = vld [vmem:[%s4 + $0xc8] sm:$0xff]
    %v2299 = vld [vmem:[%s4 + $0xd0] sm:$0xff]
    %v2300 = vld [vmem:[%s4 + $0xd8] sm:$0xff]
    %v2301 = vld [vmem:[%s4 + $0xe0] sm:$0xff]
    %v2302 = vld [vmem:[%s4 + $0xe8] sm:$0xff]
    %v2303 = vld [vmem:[%s4 + $0xf0] sm:$0xff]
    %v2304 = vld [vmem:[%s4 + $0xf8] sm:$0xff]
    %v2305 = vld [vmem:[%s4 + $0x100] sm:$0xff]
    %v2306 = vld [vmem:[%s4 + $0x108] sm:$0xff]
    %v2307 = vld [vmem:[%s4 + $0x110] sm:$0xff]
    %v2308 = vld [vmem:[%s4 + $0x118] sm:$0xff]
    %v2309 = vld [vmem:[%s4 + $0x120] sm:$0xff]
    %v2310 = vld [vmem:[%s4 + $0x128] sm:$0xff]
    %v2311 = vld [vmem:[%s4 + $0x130] sm:$0xff]
    %v2312 = vld [vmem:[%s4 + $0x138] sm:$0xff]
    %v2313 = vld [vmem:[%s4 + $0x140] sm:$0xff]
    %v2314 = vld [vmem:[%s4 + $0x148] sm:$0xff]
    %v2315 = vld [vmem:[%s4 + $0x150] sm:$0xff]
    %v2316 = vld [vmem:[%s4 + $0x158] sm:$0xff]
    %v2317 = vld [vmem:[%s4 + $0x160] sm:$0xff]
    %v2318 = vld [vmem:[%s4 + $0x168] sm:$0xff]
    %v2319 = vld [vmem:[%s4 + $0x170] sm:$0xff]
    %v2320 = vld [vmem:[%s4 + $0x178] sm:$0xff]
    %v2321 = vld [vmem:[%s5] sm:$0x7]
    %v2323 = vlaneseq
    %v2324 = vshrl.u32 %v2323, 7
    %v2325 = vsub.s32 0, %v2324
    %v2326 = vrot.slane %v2321, %v2325
    %v2327 = vlaneseq
    %v2328 = vshrl.u32 %v2327, 7
    %v2329 = vsub.s32 1, %v2328
    %v2330 = vrot.slane %v2321, %v2329
    %v2331 = vlaneseq
    %v2332 = vshrl.u32 %v2331, 7
    %v2333 = vsub.s32 2, %v2332
    %v2334 = vrot.slane %v2321, %v2333
    %2338 = vmatprep.subr.mxu0 %v2274
    %2339 = vmatpush1.msra.mxu0 %v2273
    %2340 = vmatprep.subr.mxu0 %v2277
    %2341 = vmatpush1.msra.mxu0 %v2276
    %2342 = vmatprep.subr.mxu0 %v2280
    %2343 = vmatpush1.msra.mxu0 %v2279
    %2344 = vmatprep.subr.mxu0 %v2283
    %2345 = vmatpush1.msra.mxu0 %v2282
    %2346 = vmatprep.subr.mxu0 %v2286
    %2347 = vmatpush1.msra.mxu0 %v2285
    %2348 = vmatprep.subr.mxu0 %v2289
    %2349 = vmatpush1.msra.mxu0 %v2288
    %2350 = vmatprep.subr.mxu0 %v2292
    %2351 = vmatpush1.msra.mxu0 %v2291
    %2352 = vmatprep.subr.mxu0 %v2295
    %2353 = vmatpush1.msra.mxu0 %v2294
    %2354 = vmatprep.subr.mxu0 %v2298
    %2355 = vmatpush1.msra.mxu0 %v2297
    %2356 = vmatprep.subr.mxu0 %v2301
    %2357 = vmatpush1.msra.mxu0 %v2300
    %2358 = vmatprep.subr.mxu0 %v2304
    %2359 = vmatpush1.msra.mxu0 %v2303
    %2360 = vmatprep.subr.mxu0 %v2307
    %2361 = vmatpush1.msra.mxu0 %v2306
    %2362 = vmatprep.subr.mxu0 %v2310
    %2363 = vmatpush1.msra.mxu0 %v2309
    %2364 = vmatprep.subr.mxu0 %v2313
    %2365 = vmatpush1.msra.mxu0 %v2312
    %2366 = vmatprep.subr.mxu0 %v2316
    %2367 = vmatpush1.msra.mxu0 %v2315
    %2368 = vmatprep.subr.mxu0 %v2319
    %2369 = vmatpush1.msra.mxu0 %v2318
    %2370 = vmatprep.subr.mxu0 0.0
    %2371 = vmatpush1.msra.mxu0 0.0
    %2372 = vmatprep.subr.mxu0 0.0
    %2373 = vmatpush1.msra.mxu0 0.0
    %2374 = vmatprep.subr.mxu0 0.0
    %2375 = vmatpush1.msra.mxu0 0.0
    %2376 = vmatprep.subr.mxu0 0.0
    %2377 = vmatpush1.msra.mxu0 0.0
    %2378 = vmatprep.subr.mxu0 0.0
    %2379 = vmatpush1.msra.mxu0 0.0
    %2380 = vmatprep.subr.mxu0 0.0
    %2381 = vmatpush1.msra.mxu0 0.0
    %2382 = vmatprep.subr.mxu0 0.0
    %2383 = vmatpush1.msra.mxu0 0.0
    %2384 = vmatprep.subr.mxu0 0.0
    %2385 = vmatpush1.msra.mxu0 0.0
    %2386 = vmatprep.subr.mxu0 0.0
    %2387 = vmatpush1.msra.mxu0 0.0
    %2388 = vmatprep.subr.mxu0 0.0
    %2389 = vmatpush1.msra.mxu0 0.0
    %2390 = vmatprep.subr.mxu0 0.0
    %2391 = vmatpush1.msra.mxu0 0.0
    %2392 = vmatprep.subr.mxu0 0.0
    %2393 = vmatpush1.msra.mxu0 0.0
    %2394 = vmatprep.subr.mxu0 0.0
    %2395 = vmatpush1.msra.mxu0 0.0
    %2396 = vmatprep.subr.mxu0 0.0
    %2397 = vmatpush1.msra.mxu0 0.0
    %2398 = vmatprep.subr.mxu0 0.0
    %2399 = vmatpush1.msra.mxu0 0.0
    %2400 = vmatprep.subr.mxu0 0.0
    %2401 = vmatpush1.msra.mxu0 0.0
    %2402 = vmatprep.mubr.f32.mxu0 0.0
    %2403 = vmatmul.mubr.f32.gmra.mrb[0].mxu0 %v1506
    %v2404 = vpop.f32.mrb[0].mxu0
    %v2405 = vadd.f32 %v2326, %v2404
    %v2406 = vpop.f32.mrb[0].mxu0
    %v2407 = vadd.f32 %v2330, %v2406
    %2408 = vdwg.mxu0
    %2409 = vmatprep.subr.mxu0 0.0
    %2410 = vmatpush1.msra.mxu0 %v2275
    %2411 = vmatprep.subr.mxu0 0.0
    %2412 = vmatpush1.msra.mxu0 %v2278
    %2413 = vmatprep.subr.mxu0 0.0
    %2414 = vmatpush1.msra.mxu0 %v2281
    %2415 = vmatprep.subr.mxu0 0.0
    %2416 = vmatpush1.msra.mxu0 %v2284
    %2417 = vmatprep.subr.mxu0 0.0
    %2418 = vmatpush1.msra.mxu0 %v2287
    %2419 = vmatprep.subr.mxu0 0.0
    %2420 = vmatpush1.msra.mxu0 %v2290
    %2421 = vmatprep.subr.mxu0 0.0
    %2422 = vmatpush1.msra.mxu0 %v2293
    %2423 = vmatprep.subr.mxu0 0.0
    %2424 = vmatpush1.msra.mxu0 %v2296
    %2425 = vmatprep.subr.mxu0 0.0
    %2426 = vmatpush1.msra.mxu0 %v2299
    %2427 = vmatprep.subr.mxu0 0.0
    %2428 = vmatpush1.msra.mxu0 %v2302
    %2429 = vmatprep.subr.mxu0 0.0
    %2430 = vmatpush1.msra.mxu0 %v2305
    %2431 = vmatprep.subr.mxu0 0.0
    %2432 = vmatpush1.msra.mxu0 %v2308
    %2433 = vmatprep.subr.mxu0 0.0
    %2434 = vmatpush1.msra.mxu0 %v2311
    %2435 = vmatprep.subr.mxu0 0.0
    %2436 = vmatpush1.msra.mxu0 %v2314
    %2437 = vmatprep.subr.mxu0 0.0
    %2438 = vmatpush1.msra.mxu0 %v2317
    %2439 = vmatprep.subr.mxu0 0.0
    %2440 = vmatpush1.msra.mxu0 %v2320
    %2441 = vmatprep.subr.mxu0 0.0
    %2442 = vmatpush1.msra.mxu0 0.0
    %2443 = vmatprep.subr.mxu0 0.0
    %2444 = vmatpush1.msra.mxu0 0.0
    %2445 = vmatprep.subr.mxu0 0.0
    %2446 = vmatpush1.msra.mxu0 0.0
    %2447 = vmatprep.subr.mxu0 0.0
    %2448 = vmatpush1.msra.mxu0 0.0
    %2449 = vmatprep.subr.mxu0 0.0
    %2450 = vmatpush1.msra.mxu0 0.0
    %2451 = vmatprep.subr.mxu0 0.0
    %2452 = vmatpush1.msra.mxu0 0.0
    %2453 = vmatprep.subr.mxu0 0.0
    %2454 = vmatpush1.msra.mxu0 0.0
    %2455 = vmatprep.subr.mxu0 0.0
    %2456 = vmatpush1.msra.mxu0 0.0
    %2457 = vmatprep.subr.mxu0 0.0
    %2458 = vmatpush1.msra.mxu0 0.0
    %2459 = vmatprep.subr.mxu0 0.0
    %2460 = vmatpush1.msra.mxu0 0.0
    %2461 = vmatprep.subr.mxu0 0.0
    %2462 = vmatpush1.msra.mxu0 0.0
    %2463 = vmatprep.subr.mxu0 0.0
    %2464 = vmatpush1.msra.mxu0 0.0
    %2465 = vmatprep.subr.mxu0 0.0
    %2466 = vmatpush1.msra.mxu0 0.0
    %2467 = vmatprep.subr.mxu0 0.0
    %2468 = vmatpush1.msra.mxu0 0.0
    %2469 = vmatprep.subr.mxu0 0.0
    %2470 = vmatpush1.msra.mxu0 0.0
    %2471 = vmatprep.subr.mxu0 0.0
    %2472 = vmatpush1.msra.mxu0 0.0
    %2473 = vmatprep.mubr.f32.mxu0 0.0
    %2474 = vmatmul.mubr.f32.gmra.mrb[0].mxu0 %v1506
    %v2475 = vpop.f32.mrb[0].mxu0
    %v2476 = vadd.f32 %v2334, %v2475
    %v2477 = vpop.f32.mrb[0].mxu0
    %2478 = vdwg.mxu0
    %v2479 = vadd.f32 %v2199, %v2405
    %v2480 = vxor.u32 %v2479, 2147483648
    %v2481 = vmul.f32 %v2480, 1.442695
    %v2482 = vpow.pop %v2481
    %v2483 = vadd.f32 %v2482, 1.0
    %v2484 = vrcp.pop %v2483
    %v2485 = vmul.f32 1.0, %v2484
    %v2486 = vadd.f32 %v2201, %v2407
    %v2487 = vxor.u32 %v2486, 2147483648
    %v2488 = vmul.f32 %v2487, 1.442695
    %v2489 = vpow.pop %v2488
    %v2490 = vadd.f32 %v2489, 1.0
    %v2491 = vrcp.pop %v2490
    %v2492 = vmul.f32 1.0, %v2491
    %v2493 = vmul.f32 %v2485, %v2476
    %v2494 = vadd.f32 %v2270, %v2493
    %v2495 = vtanh.pop %v2494
    %v2496 = vsub.f32 1.0, %v2492
    %v2497 = vmul.f32 %v2496, %v2495
    %v2498 = vmul.f32 %v2492, %v1506
    %v2499 = vadd.f32 %v2497, %v2498
    %v2500 = vld [vmem:[#allocation4] sm:$0xff]
    %v2501 = vld [vmem:[#allocation4 + $0x8] sm:$0xff]
    %v2502 = vld [vmem:[#allocation4 + $0x10] sm:$0xff]
    %v2503 = vld [vmem:[#allocation4 + $0x18] sm:$0xff]
    %v2504 = vld [vmem:[#allocation4 + $0x20] sm:$0xff]
    %v2505 = vld [vmem:[#allocation4 + $0x28] sm:$0xff]
    %v2506 = vld [vmem:[#allocation4 + $0x30] sm:$0xff]
    %v2507 = vld [vmem:[#allocation4 + $0x38] sm:$0xff]
    %v2508 = vld [vmem:[#allocation4 + $0x40] sm:$0xff]
    %v2509 = vld [vmem:[#allocation4 + $0x48] sm:$0xff]
    %v2510 = vld [vmem:[#allocation4 + $0x50] sm:$0xff]
    %v2511 = vld [vmem:[#allocation4 + $0x58] sm:$0xff]
    %v2512 = vld [vmem:[#allocation4 + $0x60] sm:$0xff]
    %v2513 = vld [vmem:[#allocation4 + $0x68] sm:$0xff]
    %v2514 = vld [vmem:[#allocation4 + $0x70] sm:$0xff]
    %v2515 = vld [vmem:[#allocation4 + $0x78] sm:$0xff]
    %v2516 = vld [vmem:[#allocation4 + $0x80] sm:$0xff]
    %v2517 = vld [vmem:[#allocation4 + $0x88] sm:$0xff]
    %v2518 = vld [vmem:[#allocation4 + $0x90] sm:$0xff]
    %v2519 = vld [vmem:[#allocation4 + $0x98] sm:$0xff]
    %v2520 = vld [vmem:[#allocation4 + $0xa0] sm:$0xff]
    %v2521 = vld [vmem:[#allocation4 + $0xa8] sm:$0xff]
    %v2522 = vld [vmem:[#allocation4 + $0xb0] sm:$0xff]
    %v2523 = vld [vmem:[#allocation4 + $0xb8] sm:$0xff]
    %v2524 = vld [vmem:[#allocation4 + $0xc0] sm:$0xff]
    %v2525 = vld [vmem:[#allocation4 + $0xc8] sm:$0xff]
    %v2526 = vld [vmem:[#allocation4 + $0xd0] sm:$0xff]
    %v2527 = vld [vmem:[#allocation4 + $0xd8] sm:$0xff]
    %v2528 = vld [vmem:[#allocation4 + $0xe0] sm:$0xff]
    %v2529 = vld [vmem:[#allocation4 + $0xe8] sm:$0xff]
    %v2530 = vld [vmem:[#allocation4 + $0xf0] sm:$0xff]
    %v2531 = vld [vmem:[#allocation4 + $0xf8] sm:$0xff]
    %v2532 = vld [vmem:[#allocation4 + $0x100] sm:$0xff]
    %v2533 = vld [vmem:[#allocation4 + $0x108] sm:$0xff]
    %v2534 = vld [vmem:[#allocation4 + $0x110] sm:$0xff]
    %v2535 = vld [vmem:[#allocation4 + $0x118] sm:$0xff]
    %v2536 = vld [vmem:[#allocation4 + $0x120] sm:$0xff]
    %v2537 = vld [vmem:[#allocation4 + $0x128] sm:$0xff]
    %v2538 = vld [vmem:[#allocation4 + $0x130] sm:$0xff]
    %v2539 = vld [vmem:[#allocation4 + $0x138] sm:$0xff]
    %v2540 = vld [vmem:[#allocation4 + $0x140] sm:$0xff]
    %v2541 = vld [vmem:[#allocation4 + $0x148] sm:$0xff]
    %v2542 = vld [vmem:[#allocation4 + $0x150] sm:$0xff]
    %v2543 = vld [vmem:[#allocation4 + $0x158] sm:$0xff]
    %v2544 = vld [vmem:[#allocation4 + $0x160] sm:$0xff]
    %v2545 = vld [vmem:[#allocation4 + $0x168] sm:$0xff]
    %v2546 = vld [vmem:[#allocation4 + $0x170] sm:$0xff]
    %v2547 = vld [vmem:[#allocation4 + $0x178] sm:$0xff]
    %v2548 = vld [vmem:[%s7] sm:$0x7]
    %v2550 = vlaneseq
    %v2551 = vshrl.u32 %v2550, 7
    %v2552 = vsub.s32 0, %v2551
    %v2553 = vrot.slane %v2548, %v2552
    %v2554 = vlaneseq
    %v2555 = vshrl.u32 %v2554, 7
    %v2556 = vsub.s32 1, %v2555
    %v2557 = vrot.slane %v2548, %v2556
    %v2558 = vlaneseq
    %v2559 = vshrl.u32 %v2558, 7
    %v2560 = vsub.s32 2, %v2559
    %v2561 = vrot.slane %v2548, %v2560
    %2565 = vmatprep.subr.mxu0 %v2501
    %2566 = vmatpush1.msra.mxu0 %v2500
    %2567 = vmatprep.subr.mxu0 %v2504
    %2568 = vmatpush1.msra.mxu0 %v2503
    %2569 = vmatprep.subr.mxu0 %v2507
    %2570 = vmatpush1.msra.mxu0 %v2506
    %2571 = vmatprep.subr.mxu0 %v2510
    %2572 = vmatpush1.msra.mxu0 %v2509
    %2573 = vmatprep.subr.mxu0 %v2513
    %2574 = vmatpush1.msra.mxu0 %v2512
    %2575 = vmatprep.subr.mxu0 %v2516
    %2576 = vmatpush1.msra.mxu0 %v2515
    %2577 = vmatprep.subr.mxu0 %v2519
    %2578 = vmatpush1.msra.mxu0 %v2518
    %2579 = vmatprep.subr.mxu0 %v2522
    %2580 = vmatpush1.msra.mxu0 %v2521
    %2581 = vmatprep.subr.mxu0 %v2525
    %2582 = vmatpush1.msra.mxu0 %v2524
    %2583 = vmatprep.subr.mxu0 %v2528
    %2584 = vmatpush1.msra.mxu0 %v2527
    %2585 = vmatprep.subr.mxu0 %v2531
    %2586 = vmatpush1.msra.mxu0 %v2530
    %2587 = vmatprep.subr.mxu0 %v2534
    %2588 = vmatpush1.msra.mxu0 %v2533
    %2589 = vmatprep.subr.mxu0 %v2537
    %2590 = vmatpush1.msra.mxu0 %v2536
    %2591 = vmatprep.subr.mxu0 %v2540
    %2592 = vmatpush1.msra.mxu0 %v2539
    %2593 = vmatprep.subr.mxu0 %v2543
    %2594 = vmatpush1.msra.mxu0 %v2542
    %2595 = vmatprep.subr.mxu0 %v2546
    %2596 = vmatpush1.msra.mxu0 %v2545
    %2597 = vmatprep.subr.mxu0 0.0
    %2598 = vmatpush1.msra.mxu0 0.0
    %2599 = vmatprep.subr.mxu0 0.0
    %2600 = vmatpush1.msra.mxu0 0.0
    %2601 = vmatprep.subr.mxu0 0.0
    %2602 = vmatpush1.msra.mxu0 0.0
    %2603 = vmatprep.subr.mxu0 0.0
    %2604 = vmatpush1.msra.mxu0 0.0
    %2605 = vmatprep.subr.mxu0 0.0
    %2606 = vmatpush1.msra.mxu0 0.0
    %2607 = vmatprep.subr.mxu0 0.0
    %2608 = vmatpush1.msra.mxu0 0.0
    %2609 = vmatprep.subr.mxu0 0.0
    %2610 = vmatpush1.msra.mxu0 0.0
    %2611 = vmatprep.subr.mxu0 0.0
    %2612 = vmatpush1.msra.mxu0 0.0
    %2613 = vmatprep.subr.mxu0 0.0
    %2614 = vmatpush1.msra.mxu0 0.0
    %2615 = vmatprep.subr.mxu0 0.0
    %2616 = vmatpush1.msra.mxu0 0.0
    %2617 = vmatprep.subr.mxu0 0.0
    %2618 = vmatpush1.msra.mxu0 0.0
    %2619 = vmatprep.subr.mxu0 0.0
    %2620 = vmatpush1.msra.mxu0 0.0
    %2621 = vmatprep.subr.mxu0 0.0
    %2622 = vmatpush1.msra.mxu0 0.0
    %2623 = vmatprep.subr.mxu0 0.0
    %2624 = vmatpush1.msra.mxu0 0.0
    %2625 = vmatprep.subr.mxu0 0.0
    %2626 = vmatpush1.msra.mxu0 0.0
    %2627 = vmatprep.subr.mxu0 0.0
    %2628 = vmatpush1.msra.mxu0 0.0
    %2629 = vmatprep.mubr.f32.mxu0 0.0
    %2630 = vmatmul.mubr.f32.gmra.mrb[0].mxu0 %v2499
    %v2631 = vpop.f32.mrb[0].mxu0
    %v2632 = vadd.f32 %v2553, %v2631
    %v2633 = vpop.f32.mrb[0].mxu0
    %v2634 = vadd.f32 %v2557, %v2633
    %2635 = vdwg.mxu0
    %2636 = vmatprep.subr.mxu0 0.0
    %2637 = vmatpush1.msra.mxu0 %v2502
    %2638 = vmatprep.subr.mxu0 0.0
    %2639 = vmatpush1.msra.mxu0 %v2505
    %2640 = vmatprep.subr.mxu0 0.0
    %2641 = vmatpush1.msra.mxu0 %v2508
    %2642 = vmatprep.subr.mxu0 0.0
    %2643 = vmatpush1.msra.mxu0 %v2511
    %2644 = vmatprep.subr.mxu0 0.0
    %2645 = vmatpush1.msra.mxu0 %v2514
    %2646 = vmatprep.subr.mxu0 0.0
    %2647 = vmatpush1.msra.mxu0 %v2517
    %2648 = vmatprep.subr.mxu0 0.0
    %2649 = vmatpush1.msra.mxu0 %v2520
    %2650 = vmatprep.subr.mxu0 0.0
    %2651 = vmatpush1.msra.mxu0 %v2523
    %2652 = vmatprep.subr.mxu0 0.0
    %2653 = vmatpush1.msra.mxu0 %v2526
    %2654 = vmatprep.subr.mxu0 0.0
    %2655 = vmatpush1.msra.mxu0 %v2529
    %2656 = vmatprep.subr.mxu0 0.0
    %2657 = vmatpush1.msra.mxu0 %v2532
    %2658 = vmatprep.subr.mxu0 0.0
    %2659 = vmatpush1.msra.mxu0 %v2535
    %2660 = vmatprep.subr.mxu0 0.0
    %2661 = vmatpush1.msra.mxu0 %v2538
    %2662 = vmatprep.subr.mxu0 0.0
    %2663 = vmatpush1.msra.mxu0 %v2541
    %2664 = vmatprep.subr.mxu0 0.0
    %2665 = vmatpush1.msra.mxu0 %v2544
    %2666 = vmatprep.subr.mxu0 0.0
    %2667 = vmatpush1.msra.mxu0 %v2547
    %2668 = vmatprep.subr.mxu0 0.0
    %2669 = vmatpush1.msra.mxu0 0.0
    %2670 = vmatprep.subr.mxu0 0.0
    %2671 = vmatpush1.msra.mxu0 0.0
    %2672 = vmatprep.subr.mxu0 0.0
    %2673 = vmatpush1.msra.mxu0 0.0
    %2674 = vmatprep.subr.mxu0 0.0
    %2675 = vmatpush1.msra.mxu0 0.0
    %2676 = vmatprep.subr.mxu0 0.0
    %2677 = vmatpush1.msra.mxu0 0.0
    %2678 = vmatprep.subr.mxu0 0.0
    %2679 = vmatpush1.msra.mxu0 0.0
    %2680 = vmatprep.subr.mxu0 0.0
    %2681 = vmatpush1.msra.mxu0 0.0
    %2682 = vmatprep.subr.mxu0 0.0
    %2683 = vmatpush1.msra.mxu0 0.0
    %2684 = vmatprep.subr.mxu0 0.0
    %2685 = vmatpush1.msra.mxu0 0.0
    %2686 = vmatprep.subr.mxu0 0.0
    %2687 = vmatpush1.msra.mxu0 0.0
    %2688 = vmatprep.subr.mxu0 0.0
    %2689 = vmatpush1.msra.mxu0 0.0
    %2690 = vmatprep.subr.mxu0 0.0
    %2691 = vmatpush1.msra.mxu0 0.0
    %2692 = vmatprep.subr.mxu0 0.0
    %2693 = vmatpush1.msra.mxu0 0.0
    %2694 = vmatprep.subr.mxu0 0.0
    %2695 = vmatpush1.msra.mxu0 0.0
    %2696 = vmatprep.subr.mxu0 0.0
    %2697 = vmatpush1.msra.mxu0 0.0
    %2698 = vmatprep.subr.mxu0 0.0
    %2699 = vmatpush1.msra.mxu0 0.0
    %2700 = vmatprep.mubr.f32.mxu0 0.0
    %2701 = vmatmul.mubr.f32.gmra.mrb[0].mxu0 %v2499
    %v2702 = vpop.f32.mrb[0].mxu0
    %v2703 = vadd.f32 %v2561, %v2702
    %v2704 = vpop.f32.mrb[0].mxu0
    %2705 = vdwg.mxu0
    %v2706 = vld [vmem:[%s717] sm:$0xff]
    %v2707 = vld [vmem:[%s717 + $0x8] sm:$0xff]
    %v2708 = vld [vmem:[%s717 + $0x10] sm:$0xff]
    %v2709 = vld [vmem:[%s717 + $0x18] sm:$0xff]
    %v2710 = vld [vmem:[%s717 + $0x20] sm:$0xff]
    %v2711 = vld [vmem:[%s717 + $0x28] sm:$0xff]
    %v2712 = vld [vmem:[%s717 + $0x30] sm:$0xff]
    %v2713 = vld [vmem:[%s717 + $0x38] sm:$0xff]
    %v2714 = vld [vmem:[%s717 + $0x40] sm:$0xff]
    %v2715 = vld [vmem:[%s717 + $0x48] sm:$0xff]
    %v2716 = vld [vmem:[%s717 + $0x50] sm:$0xff]
    %v2717 = vld [vmem:[%s717 + $0x58] sm:$0xff]
    %v2718 = vld [vmem:[%s717 + $0x60] sm:$0xff]
    %v2719 = vld [vmem:[%s717 + $0x68] sm:$0xff]
    %v2720 = vld [vmem:[%s717 + $0x70] sm:$0xff]
    %v2721 = vld [vmem:[%s717 + $0x78] sm:$0xff]
    %v2722 = vld [vmem:[%s717 + $0x80] sm:$0xff]
    %v2723 = vld [vmem:[%s717 + $0x88] sm:$0xff]
    %v2724 = vld [vmem:[%s717 + $0x90] sm:$0xff]
    %v2725 = vld [vmem:[%s717 + $0x98] sm:$0xff]
    %v2726 = vld [vmem:[%s717 + $0xa0] sm:$0xff]
    %v2727 = vld [vmem:[%s717 + $0xa8] sm:$0xff]
    %v2728 = vld [vmem:[%s717 + $0xb0] sm:$0xff]
    %v2729 = vld [vmem:[%s717 + $0xb8] sm:$0xff]
    %v2730 = vld [vmem:[%s717 + $0xc0] sm:$0xff]
    %v2731 = vld [vmem:[%s717 + $0xc8] sm:$0xff]
    %v2732 = vld [vmem:[%s717 + $0xd0] sm:$0xff]
    %v2733 = vld [vmem:[%s717 + $0xd8] sm:$0xff]
    %v2734 = vld [vmem:[%s717 + $0xe0] sm:$0xff]
    %v2735 = vld [vmem:[%s717 + $0xe8] sm:$0xff]
    %v2736 = vld [vmem:[%s717 + $0xf0] sm:$0xff]
    %v2737 = vld [vmem:[%s717 + $0xf8] sm:$0xff]
    %v2738 = vld [vmem:[%s717 + $0x100] sm:$0xff]
    %v2739 = vld [vmem:[%s717 + $0x108] sm:$0xff]
    %v2740 = vld [vmem:[%s717 + $0x110] sm:$0xff]
    %v2741 = vld [vmem:[%s717 + $0x118] sm:$0xff]
    %v2742 = vld [vmem:[%s717 + $0x120] sm:$0xff]
    %v2743 = vld [vmem:[%s717 + $0x128] sm:$0xff]
    %v2744 = vld [vmem:[%s717 + $0x130] sm:$0xff]
    %v2745 = vld [vmem:[%s717 + $0x138] sm:$0xff]
    %v2746 = vld [vmem:[%s717 + $0x140] sm:$0xff]
    %v2747 = vld [vmem:[%s717 + $0x148] sm:$0xff]
    %v2748 = vld [vmem:[%s717 + $0x150] sm:$0xff]
    %v2749 = vld [vmem:[%s717 + $0x158] sm:$0xff]
    %v2750 = vld [vmem:[%s717 + $0x160] sm:$0xff]
    %v2751 = vld [vmem:[%s717 + $0x168] sm:$0xff]
    %v2752 = vld [vmem:[%s717 + $0x170] sm:$0xff]
    %v2753 = vld [vmem:[%s717 + $0x178] sm:$0xff]
    %v2754 = vld [vmem:[%s766] sm:$0x7]
    %v2756 = vlaneseq
    %v2757 = vshrl.u32 %v2756, 7
    %v2758 = vsub.s32 0, %v2757
    %v2759 = vrot.slane %v2754, %v2758
    %v2760 = vlaneseq
    %v2761 = vshrl.u32 %v2760, 7
    %v2762 = vsub.s32 1, %v2761
    %v2763 = vrot.slane %v2754, %v2762
    %v2764 = vlaneseq
    %v2765 = vshrl.u32 %v2764, 7
    %v2766 = vsub.s32 2, %v2765
    %v2767 = vrot.slane %v2754, %v2766
    %2771 = vmatprep.subr.mxu0 %v2707
    %2772 = vmatpush1.msra.mxu0 %v2706
    %2773 = vmatprep.subr.mxu0 %v2710
    %2774 = vmatpush1.msra.mxu0 %v2709
    %2775 = vmatprep.subr.mxu0 %v2713
    %2776 = vmatpush1.msra.mxu0 %v2712
    %2777 = vmatprep.subr.mxu0 %v2716
    %2778 = vmatpush1.msra.mxu0 %v2715
    %2779 = vmatprep.subr.mxu0 %v2719
    %2780 = vmatpush1.msra.mxu0 %v2718
    %2781 = vmatprep.subr.mxu0 %v2722
    %2782 = vmatpush1.msra.mxu0 %v2721
    %2783 = vmatprep.subr.mxu0 %v2725
    %2784 = vmatpush1.msra.mxu0 %v2724
    %2785 = vmatprep.subr.mxu0 %v2728
    %2786 = vmatpush1.msra.mxu0 %v2727
    %2787 = vmatprep.subr.mxu0 %v2731
    %2788 = vmatpush1.msra.mxu0 %v2730
    %2789 = vmatprep.subr.mxu0 %v2734
    %2790 = vmatpush1.msra.mxu0 %v2733
    %2791 = vmatprep.subr.mxu0 %v2737
    %2792 = vmatpush1.msra.mxu0 %v2736
    %2793 = vmatprep.subr.mxu0 %v2740
    %2794 = vmatpush1.msra.mxu0 %v2739
    %2795 = vmatprep.subr.mxu0 %v2743
    %2796 = vmatpush1.msra.mxu0 %v2742
    %2797 = vmatprep.subr.mxu0 %v2746
    %2798 = vmatpush1.msra.mxu0 %v2745
    %2799 = vmatprep.subr.mxu0 %v2749
    %2800 = vmatpush1.msra.mxu0 %v2748
    %2801 = vmatprep.subr.mxu0 %v2752
    %2802 = vmatpush1.msra.mxu0 %v2751
    %2803 = vmatprep.subr.mxu0 0.0
    %2804 = vmatpush1.msra.mxu0 0.0
    %2805 = vmatprep.subr.mxu0 0.0
    %2806 = vmatpush1.msra.mxu0 0.0
    %2807 = vmatprep.subr.mxu0 0.0
    %2808 = vmatpush1.msra.mxu0 0.0
    %2809 = vmatprep.subr.mxu0 0.0
    %2810 = vmatpush1.msra.mxu0 0.0
    %2811 = vmatprep.subr.mxu0 0.0
    %2812 = vmatpush1.msra.mxu0 0.0
    %2813 = vmatprep.subr.mxu0 0.0
    %2814 = vmatpush1.msra.mxu0 0.0
    %2815 = vmatprep.subr.mxu0 0.0
    %2816 = vmatpush1.msra.mxu0 0.0
    %2817 = vmatprep.subr.mxu0 0.0
    %2818 = vmatpush1.msra.mxu0 0.0
    %2819 = vmatprep.subr.mxu0 0.0
    %2820 = vmatpush1.msra.mxu0 0.0
    %2821 = vmatprep.subr.mxu0 0.0
    %2822 = vmatpush1.msra.mxu0 0.0
    %2823 = vmatprep.subr.mxu0 0.0
    %2824 = vmatpush1.msra.mxu0 0.0
    %2825 = vmatprep.subr.mxu0 0.0
    %2826 = vmatpush1.msra.mxu0 0.0
    %2827 = vmatprep.subr.mxu0 0.0
    %2828 = vmatpush1.msra.mxu0 0.0
    %2829 = vmatprep.subr.mxu0 0.0
    %2830 = vmatpush1.msra.mxu0 0.0
    %2831 = vmatprep.subr.mxu0 0.0
    %2832 = vmatpush1.msra.mxu0 0.0
    %2833 = vmatprep.subr.mxu0 0.0
    %2834 = vmatpush1.msra.mxu0 0.0
    %2835 = vmatprep.mubr.f32.mxu0 0.0
    %2836 = vmatmul.mubr.f32.gmra.mrb[0].mxu0 %v1939
    %v2837 = vpop.f32.mrb[0].mxu0
    %v2838 = vadd.f32 %v2759, %v2837
    %v2839 = vpop.f32.mrb[0].mxu0
    %v2840 = vadd.f32 %v2763, %v2839
    %2841 = vdwg.mxu0
    %2842 = vmatprep.subr.mxu0 0.0
    %2843 = vmatpush1.msra.mxu0 %v2708
    %2844 = vmatprep.subr.mxu0 0.0
    %2845 = vmatpush1.msra.mxu0 %v2711
    %2846 = vmatprep.subr.mxu0 0.0
    %2847 = vmatpush1.msra.mxu0 %v2714
    %2848 = vmatprep.subr.mxu0 0.0
    %2849 = vmatpush1.msra.mxu0 %v2717
    %2850 = vmatprep.subr.mxu0 0.0
    %2851 = vmatpush1.msra.mxu0 %v2720
    %2852 = vmatprep.subr.mxu0 0.0
    %2853 = vmatpush1.msra.mxu0 %v2723
    %2854 = vmatprep.subr.mxu0 0.0
    %2855 = vmatpush1.msra.mxu0 %v2726
    %2856 = vmatprep.subr.mxu0 0.0
    %2857 = vmatpush1.msra.mxu0 %v2729
    %2858 = vmatprep.subr.mxu0 0.0
    %2859 = vmatpush1.msra.mxu0 %v2732
    %2860 = vmatprep.subr.mxu0 0.0
    %2861 = vmatpush1.msra.mxu0 %v2735
    %2862 = vmatprep.subr.mxu0 0.0
    %2863 = vmatpush1.msra.mxu0 %v2738
    %2864 = vmatprep.subr.mxu0 0.0
    %2865 = vmatpush1.msra.mxu0 %v2741
    %2866 = vmatprep.subr.mxu0 0.0
    %2867 = vmatpush1.msra.mxu0 %v2744
    %2868 = vmatprep.subr.mxu0 0.0
    %2869 = vmatpush1.msra.mxu0 %v2747
    %2870 = vmatprep.subr.mxu0 0.0
    %2871 = vmatpush1.msra.mxu0 %v2750
    %2872 = vmatprep.subr.mxu0 0.0
    %2873 = vmatpush1.msra.mxu0 %v2753
    %2874 = vmatprep.subr.mxu0 0.0
    %2875 = vmatpush1.msra.mxu0 0.0
    %2876 = vmatprep.subr.mxu0 0.0
    %2877 = vmatpush1.msra.mxu0 0.0
    %2878 = vmatprep.subr.mxu0 0.0
    %2879 = vmatpush1.msra.mxu0 0.0
    %2880 = vmatprep.subr.mxu0 0.0
    %2881 = vmatpush1.msra.mxu0 0.0
    %2882 = vmatprep.subr.mxu0 0.0
    %2883 = vmatpush1.msra.mxu0 0.0
    %2884 = vmatprep.subr.mxu0 0.0
    %2885 = vmatpush1.msra.mxu0 0.0
    %2886 = vmatprep.subr.mxu0 0.0
    %2887 = vmatpush1.msra.mxu0 0.0
    %2888 = vmatprep.subr.mxu0 0.0
    %2889 = vmatpush1.msra.mxu0 0.0
    %2890 = vmatprep.subr.mxu0 0.0
    %2891 = vmatpush1.msra.mxu0 0.0
    %2892 = vmatprep.subr.mxu0 0.0
    %2893 = vmatpush1.msra.mxu0 0.0
    %2894 = vmatprep.subr.mxu0 0.0
    %2895 = vmatpush1.msra.mxu0 0.0
    %2896 = vmatprep.subr.mxu0 0.0
    %2897 = vmatpush1.msra.mxu0 0.0
    %2898 = vmatprep.subr.mxu0 0.0
    %2899 = vmatpush1.msra.mxu0 0.0
    %2900 = vmatprep.subr.mxu0 0.0
    %2901 = vmatpush1.msra.mxu0 0.0
    %2902 = vmatprep.subr.mxu0 0.0
    %2903 = vmatpush1.msra.mxu0 0.0
    %2904 = vmatprep.subr.mxu0 0.0
    %2905 = vmatpush1.msra.mxu0 0.0
    %2906 = vmatprep.mubr.f32.mxu0 0.0
    %2907 = vmatmul.mubr.f32.gmra.mrb[0].mxu0 %v1939
    %v2908 = vpop.f32.mrb[0].mxu0
    %v2909 = vadd.f32 %v2767, %v2908
    %v2910 = vpop.f32.mrb[0].mxu0
    %2911 = vdwg.mxu0
    %v2912 = vadd.f32 %v2632, %v2838
    %v2913 = vxor.u32 %v2912, 2147483648
    %v2914 = vmul.f32 %v2913, 1.442695
    %v2915 = vpow.pop %v2914
    %v2916 = vadd.f32 %v2915, 1.0
    %v2917 = vrcp.pop %v2916
    %v2918 = vmul.f32 1.0, %v2917
    %v2919 = vadd.f32 %v2634, %v2840
    %v2920 = vxor.u32 %v2919, 2147483648
    %v2921 = vmul.f32 %v2920, 1.442695
    %v2922 = vpow.pop %v2921
    %v2923 = vadd.f32 %v2922, 1.0
    %v2924 = vrcp.pop %v2923
    %v2925 = vmul.f32 1.0, %v2924
    %v2926 = vmul.f32 %v2918, %v2909
    %v2927 = vadd.f32 %v2703, %v2926
    %v2928 = vtanh.pop %v2927
    %v2929 = vsub.f32 1.0, %v2925
    %v2930 = vmul.f32 %v2929, %v2928
    %v2931 = vmul.f32 %v2925, %v1939
    %v2932 = vadd.f32 %v2930, %v2931
    %v2933 = vld [vmem:[%s8] sm:$0xff]
    %v2934 = vld [vmem:[%s8 + $0x8] sm:$0xff]
    %v2935 = vld [vmem:[%s8 + $0x10] sm:$0xff]
    %v2936 = vld [vmem:[%s8 + $0x18] sm:$0xff]
    %v2937 = vld [vmem:[%s8 + $0x20] sm:$0xff]
    %v2938 = vld [vmem:[%s8 + $0x28] sm:$0xff]
    %v2939 = vld [vmem:[%s8 + $0x30] sm:$0xff]
    %v2940 = vld [vmem:[%s8 + $0x38] sm:$0xff]
    %v2941 = vld [vmem:[%s8 + $0x40] sm:$0xff]
    %v2942 = vld [vmem:[%s8 + $0x48] sm:$0xff]
    %v2943 = vld [vmem:[%s8 + $0x50] sm:$0xff]
    %v2944 = vld [vmem:[%s8 + $0x58] sm:$0xff]
    %v2945 = vld [vmem:[%s8 + $0x60] sm:$0xff]
    %v2946 = vld [vmem:[%s8 + $0x68] sm:$0xff]
    %v2947 = vld [vmem:[%s8 + $0x70] sm:$0xff]
    %v2948 = vld [vmem:[%s8 + $0x78] sm:$0xff]
    %v2949 = vld [vmem:[%s9] sm:$0x1]
    %v2951 = vlaneseq
    %v2952 = vshrl.u32 %v2951, 7
    %v2953 = vsub.s32 0, %v2952
    %v2954 = vrot.slane %v2949, %v2953
    %2956 = vmatprep.subr.mxu0 0.0
    %2957 = vmatpush1.msra.mxu0 %v2933
    %2958 = vmatprep.subr.mxu0 0.0
    %2959 = vmatpush1.msra.mxu0 %v2934
    %2960 = vmatprep.subr.mxu0 0.0
    %2961 = vmatpush1.msra.mxu0 %v2935
    %2962 = vmatprep.subr.mxu0 0.0
    %2963 = vmatpush1.msra.mxu0 %v2936
    %2964 = vmatprep.subr.mxu0 0.0
    %2965 = vmatpush1.msra.mxu0 %v2937
    %2966 = vmatprep.subr.mxu0 0.0
    %2967 = vmatpush1.msra.mxu0 %v2938
    %2968 = vmatprep.subr.mxu0 0.0
    %2969 = vmatpush1.msra.mxu0 %v2939
    %2970 = vmatprep.subr.mxu0 0.0
    %2971 = vmatpush1.msra.mxu0 %v2940
    %2972 = vmatprep.subr.mxu0 0.0
    %2973 = vmatpush1.msra.mxu0 %v2941
    %2974 = vmatprep.subr.mxu0 0.0
    %2975 = vmatpush1.msra.mxu0 %v2942
    %2976 = vmatprep.subr.mxu0 0.0
    %2977 = vmatpush1.msra.mxu0 %v2943
    %2978 = vmatprep.subr.mxu0 0.0
    %2979 = vmatpush1.msra.mxu0 %v2944
    %2980 = vmatprep.subr.mxu0 0.0
    %2981 = vmatpush1.msra.mxu0 %v2945
    %2982 = vmatprep.subr.mxu0 0.0
    %2983 = vmatpush1.msra.mxu0 %v2946
    %2984 = vmatprep.subr.mxu0 0.0
    %2985 = vmatpush1.msra.mxu0 %v2947
    %2986 = vmatprep.subr.mxu0 0.0
    %2987 = vmatpush1.msra.mxu0 %v2948
    %2988 = vmatprep.subr.mxu0 0.0
    %2989 = vmatpush1.msra.mxu0 0.0
    %2990 = vmatprep.subr.mxu0 0.0
    %2991 = vmatpush1.msra.mxu0 0.0
    %2992 = vmatprep.subr.mxu0 0.0
    %2993 = vmatpush1.msra.mxu0 0.0
    %2994 = vmatprep.subr.mxu0 0.0
    %2995 = vmatpush1.msra.mxu0 0.0
    %2996 = vmatprep.subr.mxu0 0.0
    %2997 = vmatpush1.msra.mxu0 0.0
    %2998 = vmatprep.subr.mxu0 0.0
    %2999 = vmatpush1.msra.mxu0 0.0
    %3000 = vmatprep.subr.mxu0 0.0
    %3001 = vmatpush1.msra.mxu0 0.0
    %3002 = vmatprep.subr.mxu0 0.0
    %3003 = vmatpush1.msra.mxu0 0.0
    %3004 = vmatprep.subr.mxu0 0.0
    %3005 = vmatpush1.msra.mxu0 0.0
    %3006 = vmatprep.subr.mxu0 0.0
    %3007 = vmatpush1.msra.mxu0 0.0
    %3008 = vmatprep.subr.mxu0 0.0
    %3009 = vmatpush1.msra.mxu0 0.0
    %3010 = vmatprep.subr.mxu0 0.0
    %3011 = vmatpush1.msra.mxu0 0.0
    %3012 = vmatprep.subr.mxu0 0.0
    %3013 = vmatpush1.msra.mxu0 0.0
    %3014 = vmatprep.subr.mxu0 0.0
    %3015 = vmatpush1.msra.mxu0 0.0
    %3016 = vmatprep.subr.mxu0 0.0
    %3017 = vmatpush1.msra.mxu0 0.0
    %3018 = vmatprep.subr.mxu0 0.0
    %3019 = vmatpush1.msra.mxu0 0.0
    %3020 = vmatprep.mubr.f32.mxu0 0.0
    %3021 = vmatmul.mubr.f32.gmra.mrb[0].mxu0 %v2932
    %v3022 = vpop.f32.mrb[0].mxu0
    %v3023 = vadd.f32 %v2954, %v3022
    %v3024 = vpop.f32.mrb[0].mxu0
    %3025 = vdwg.mxu0
    %s3026 = scalar_lea.vmem %s11, 16
    %3027 = vst [vmem:[%s3026] sm:$0xff] %v3023
    %3028 = vmax.xlane.f32.xlu0 %v3023
    %v3029 = vpop.xlane.xlu0 %3028
    %vm3030 = vcmp.ge.f32.partialorder %v3023, %v3029
    %v3031 = vsel %vm3030, %v1043, 1073741824
    %v3032 = vand.u32 %v3031, 65535
    %v3033 = vshra.s32 %v3031, 16
    %v3034 = vcvt.s32.f32 %v3032
    %v3035 = vcvt.s32.f32 %v3033
    %3036 = vmin.xlane.f32.xlu0 %v3035
    %v3037 = vpop.xlane.xlu0 %3036
    %vm3038 = vcmp.eq.f32.partialorder %v3035, %v3037
    %v3039 = vsel %vm3038, %v3034, inf
    %3040 = vmin.xlane.f32.xlu0 %v3039
    %v3041 = vpop.xlane.xlu0 %3040
    %v3042 = vcvt.f32.s32 %v3041
    %v3043 = vcvt.f32.s32 %v3037
    %v3044 = vshll.u32 %v3043, 16
    %v3045 = vadd.s32 %v3044, %v3042
    %vm3046 = vcmp.eq.s32.totalorder %v1043, %v3045
    %v3047 = vsel %vm3046, 1, 0
    %v3048 = vcvt.s32.f32 %v3047
    %s3049 = scalar_lea.vmem %s0, 24
    %v3050 = vld [vmem:[%s3049] sm:$0xff]
    %s3051 = scalar_lea.vmem %s1, 24
    %v3052 = vld [vmem:[%s3051] sm:$0xff]
    %3054 = vset.pattern.permute.xlu0 0
    %3055 = vperm.xlu0 %3054, %v3052
    %v3056 = vpop.permute.xlu0 %3055
    %v3058 = vmul.f32 %v3056, %v3048
    %v3059 = vadd.f32 %v3050, %v3058
    %v3060 = vld [vmem:[#allocation2] sm:$0xff]
    %v3061 = vld [vmem:[#allocation2 + $0x8] sm:$0xff]
    %v3062 = vld [vmem:[#allocation2 + $0x10] sm:$0xff]
    %v3063 = vld [vmem:[#allocation2 + $0x18] sm:$0xff]
    %v3064 = vld [vmem:[#allocation2 + $0x20] sm:$0xff]
    %v3065 = vld [vmem:[#allocation2 + $0x28] sm:$0xff]
    %v3066 = vld [vmem:[#allocation2 + $0x30] sm:$0xff]
    %v3067 = vld [vmem:[#allocation2 + $0x38] sm:$0xff]
    %v3068 = vld [vmem:[#allocation2 + $0x40] sm:$0xff]
    %v3069 = vld [vmem:[#allocation2 + $0x48] sm:$0xff]
    %v3070 = vld [vmem:[#allocation2 + $0x50] sm:$0xff]
    %v3071 = vld [vmem:[#allocation2 + $0x58] sm:$0xff]
    %v3072 = vld [vmem:[#allocation2 + $0x60] sm:$0xff]
    %v3073 = vld [vmem:[#allocation2 + $0x68] sm:$0xff]
    %v3074 = vld [vmem:[#allocation2 + $0x70] sm:$0xff]
    %v3075 = vld [vmem:[#allocation2 + $0x78] sm:$0xff]
    %v3076 = vld [vmem:[#allocation2 + $0x80] sm:$0xff]
    %v3077 = vld [vmem:[#allocation2 + $0x88] sm:$0xff]
    %v3078 = vld [vmem:[#allocation2 + $0x90] sm:$0xff]
    %v3079 = vld [vmem:[#allocation2 + $0x98] sm:$0xff]
    %v3080 = vld [vmem:[#allocation2 + $0xa0] sm:$0xff]
    %v3081 = vld [vmem:[#allocation2 + $0xa8] sm:$0xff]
    %v3082 = vld [vmem:[#allocation2 + $0xb0] sm:$0xff]
    %v3083 = vld [vmem:[#allocation2 + $0xb8] sm:$0xff]
    %v3084 = vld [vmem:[#allocation2 + $0xc0] sm:$0xff]
    %v3085 = vld [vmem:[#allocation2 + $0xc8] sm:$0xff]
    %v3086 = vld [vmem:[#allocation2 + $0xd0] sm:$0xff]
    %v3087 = vld [vmem:[#allocation2 + $0xd8] sm:$0xff]
    %v3088 = vld [vmem:[#allocation2 + $0xe0] sm:$0xff]
    %v3089 = vld [vmem:[#allocation2 + $0xe8] sm:$0xff]
    %v3090 = vld [vmem:[#allocation2 + $0xf0] sm:$0xff]
    %v3091 = vld [vmem:[#allocation2 + $0xf8] sm:$0xff]
    %v3092 = vld [vmem:[#allocation2 + $0x100] sm:$0xff]
    %v3093 = vld [vmem:[#allocation2 + $0x108] sm:$0xff]
    %v3094 = vld [vmem:[#allocation2 + $0x110] sm:$0xff]
    %v3095 = vld [vmem:[#allocation2 + $0x118] sm:$0xff]
    %v3096 = vld [vmem:[#allocation2 + $0x120] sm:$0xff]
    %v3097 = vld [vmem:[#allocation2 + $0x128] sm:$0xff]
    %v3098 = vld [vmem:[#allocation2 + $0x130] sm:$0xff]
    %v3099 = vld [vmem:[#allocation2 + $0x138] sm:$0xff]
    %v3100 = vld [vmem:[#allocation2 + $0x140] sm:$0xff]
    %v3101 = vld [vmem:[#allocation2 + $0x148] sm:$0xff]
    %v3102 = vld [vmem:[#allocation2 + $0x150] sm:$0xff]
    %v3103 = vld [vmem:[#allocation2 + $0x158] sm:$0xff]
    %v3104 = vld [vmem:[#allocation2 + $0x160] sm:$0xff]
    %v3105 = vld [vmem:[#allocation2 + $0x168] sm:$0xff]
    %v3106 = vld [vmem:[#allocation2 + $0x170] sm:$0xff]
    %v3107 = vld [vmem:[#allocation2 + $0x178] sm:$0xff]
    %v3108 = vld [vmem:[%s3] sm:$0x7]
    %v3110 = vlaneseq
    %v3111 = vshrl.u32 %v3110, 7
    %v3112 = vsub.s32 0, %v3111
    %v3113 = vrot.slane %v3108, %v3112
    %v3114 = vlaneseq
    %v3115 = vshrl.u32 %v3114, 7
    %v3116 = vsub.s32 1, %v3115
    %v3117 = vrot.slane %v3108, %v3116
    %v3118 = vlaneseq
    %v3119 = vshrl.u32 %v3118, 7
    %v3120 = vsub.s32 2, %v3119
    %v3121 = vrot.slane %v3108, %v3120
    %3125 = vmatprep.subr.mxu0 %v3061
    %3126 = vmatpush1.msra.mxu0 %v3060
    %3127 = vmatprep.subr.mxu0 %v3064
    %3128 = vmatpush1.msra.mxu0 %v3063
    %3129 = vmatprep.subr.mxu0 %v3067
    %3130 = vmatpush1.msra.mxu0 %v3066
    %3131 = vmatprep.subr.mxu0 %v3070
    %3132 = vmatpush1.msra.mxu0 %v3069
    %3133 = vmatprep.subr.mxu0 %v3073
    %3134 = vmatpush1.msra.mxu0 %v3072
    %3135 = vmatprep.subr.mxu0 %v3076
    %3136 = vmatpush1.msra.mxu0 %v3075
    %3137 = vmatprep.subr.mxu0 %v3079
    %3138 = vmatpush1.msra.mxu0 %v3078
    %3139 = vmatprep.subr.mxu0 %v3082
    %3140 = vmatpush1.msra.mxu0 %v3081
    %3141 = vmatprep.subr.mxu0 %v3085
    %3142 = vmatpush1.msra.mxu0 %v3084
    %3143 = vmatprep.subr.mxu0 %v3088
    %3144 = vmatpush1.msra.mxu0 %v3087
    %3145 = vmatprep.subr.mxu0 %v3091
    %3146 = vmatpush1.msra.mxu0 %v3090
    %3147 = vmatprep.subr.mxu0 %v3094
    %3148 = vmatpush1.msra.mxu0 %v3093
    %3149 = vmatprep.subr.mxu0 %v3097
    %3150 = vmatpush1.msra.mxu0 %v3096
    %3151 = vmatprep.subr.mxu0 %v3100
    %3152 = vmatpush1.msra.mxu0 %v3099
    %3153 = vmatprep.subr.mxu0 %v3103
    %3154 = vmatpush1.msra.mxu0 %v3102
    %3155 = vmatprep.subr.mxu0 %v3106
    %3156 = vmatpush1.msra.mxu0 %v3105
    %3157 = vmatprep.subr.mxu0 0.0
    %3158 = vmatpush1.msra.mxu0 0.0
    %3159 = vmatprep.subr.mxu0 0.0
    %3160 = vmatpush1.msra.mxu0 0.0
    %3161 = vmatprep.subr.mxu0 0.0
    %3162 = vmatpush1.msra.mxu0 0.0
    %3163 = vmatprep.subr.mxu0 0.0
    %3164 = vmatpush1.msra.mxu0 0.0
    %3165 = vmatprep.subr.mxu0 0.0
    %3166 = vmatpush1.msra.mxu0 0.0
    %3167 = vmatprep.subr.mxu0 0.0
    %3168 = vmatpush1.msra.mxu0 0.0
    %3169 = vmatprep.subr.mxu0 0.0
    %3170 = vmatpush1.msra.mxu0 0.0
    %3171 = vmatprep.subr.mxu0 0.0
    %3172 = vmatpush1.msra.mxu0 0.0
    %3173 = vmatprep.subr.mxu0 0.0
    %3174 = vmatpush1.msra.mxu0 0.0
    %3175 = vmatprep.subr.mxu0 0.0
    %3176 = vmatpush1.msra.mxu0 0.0
    %3177 = vmatprep.subr.mxu0 0.0
    %3178 = vmatpush1.msra.mxu0 0.0
    %3179 = vmatprep.subr.mxu0 0.0
    %3180 = vmatpush1.msra.mxu0 0.0
    %3181 = vmatprep.subr.mxu0 0.0
    %3182 = vmatpush1.msra.mxu0 0.0
    %3183 = vmatprep.subr.mxu0 0.0
    %3184 = vmatpush1.msra.mxu0 0.0
    %3185 = vmatprep.subr.mxu0 0.0
    %3186 = vmatpush1.msra.mxu0 0.0
    %3187 = vmatprep.subr.mxu0 0.0
    %3188 = vmatpush1.msra.mxu0 0.0
    %3189 = vmatprep.mubr.f32.mxu0 0.0
    %3190 = vmatmul.mubr.f32.gmra.mrb[0].mxu0 %v3059
    %v3191 = vpop.f32.mrb[0].mxu0
    %v3192 = vadd.f32 %v3113, %v3191
    %v3193 = vpop.f32.mrb[0].mxu0
    %v3194 = vadd.f32 %v3117, %v3193
    %3195 = vdwg.mxu0
    %3196 = vmatprep.subr.mxu0 0.0
    %3197 = vmatpush1.msra.mxu0 %v3062
    %3198 = vmatprep.subr.mxu0 0.0
    %3199 = vmatpush1.msra.mxu0 %v3065
    %3200 = vmatprep.subr.mxu0 0.0
    %3201 = vmatpush1.msra.mxu0 %v3068
    %3202 = vmatprep.subr.mxu0 0.0
    %3203 = vmatpush1.msra.mxu0 %v3071
    %3204 = vmatprep.subr.mxu0 0.0
    %3205 = vmatpush1.msra.mxu0 %v3074
    %3206 = vmatprep.subr.mxu0 0.0
    %3207 = vmatpush1.msra.mxu0 %v3077
    %3208 = vmatprep.subr.mxu0 0.0
    %3209 = vmatpush1.msra.mxu0 %v3080
    %3210 = vmatprep.subr.mxu0 0.0
    %3211 = vmatpush1.msra.mxu0 %v3083
    %3212 = vmatprep.subr.mxu0 0.0
    %3213 = vmatpush1.msra.mxu0 %v3086
    %3214 = vmatprep.subr.mxu0 0.0
    %3215 = vmatpush1.msra.mxu0 %v3089
    %3216 = vmatprep.subr.mxu0 0.0
    %3217 = vmatpush1.msra.mxu0 %v3092
    %3218 = vmatprep.subr.mxu0 0.0
    %3219 = vmatpush1.msra.mxu0 %v3095
    %3220 = vmatprep.subr.mxu0 0.0
    %3221 = vmatpush1.msra.mxu0 %v3098
    %3222 = vmatprep.subr.mxu0 0.0
    %3223 = vmatpush1.msra.mxu0 %v3101
    %3224 = vmatprep.subr.mxu0 0.0
    %3225 = vmatpush1.msra.mxu0 %v3104
    %3226 = vmatprep.subr.mxu0 0.0
    %3227 = vmatpush1.msra.mxu0 %v3107
    %3228 = vmatprep.subr.mxu0 0.0
    %3229 = vmatpush1.msra.mxu0 0.0
    %3230 = vmatprep.subr.mxu0 0.0
    %3231 = vmatpush1.msra.mxu0 0.0
    %3232 = vmatprep.subr.mxu0 0.0
    %3233 = vmatpush1.msra.mxu0 0.0
    %3234 = vmatprep.subr.mxu0 0.0
    %3235 = vmatpush1.msra.mxu0 0.0
    %3236 = vmatprep.subr.mxu0 0.0
    %3237 = vmatpush1.msra.mxu0 0.0
    %3238 = vmatprep.subr.mxu0 0.0
    %3239 = vmatpush1.msra.mxu0 0.0
    %3240 = vmatprep.subr.mxu0 0.0
    %3241 = vmatpush1.msra.mxu0 0.0
    %3242 = vmatprep.subr.mxu0 0.0
    %3243 = vmatpush1.msra.mxu0 0.0
    %3244 = vmatprep.subr.mxu0 0.0
    %3245 = vmatpush1.msra.mxu0 0.0
    %3246 = vmatprep.subr.mxu0 0.0
    %3247 = vmatpush1.msra.mxu0 0.0
    %3248 = vmatprep.subr.mxu0 0.0
    %3249 = vmatpush1.msra.mxu0 0.0
    %3250 = vmatprep.subr.mxu0 0.0
    %3251 = vmatpush1.msra.mxu0 0.0
    %3252 = vmatprep.subr.mxu0 0.0
    %3253 = vmatpush1.msra.mxu0 0.0
    %3254 = vmatprep.subr.mxu0 0.0
    %3255 = vmatpush1.msra.mxu0 0.0
    %3256 = vmatprep.subr.mxu0 0.0
    %3257 = vmatpush1.msra.mxu0 0.0
    %3258 = vmatprep.subr.mxu0 0.0
    %3259 = vmatpush1.msra.mxu0 0.0
    %3260 = vmatprep.mubr.f32.mxu0 0.0
    %3261 = vmatmul.mubr.f32.gmra.mrb[0].mxu0 %v3059
    %v3262 = vpop.f32.mrb[0].mxu0
    %v3263 = vadd.f32 %v3121, %v3262
    %v3264 = vpop.f32.mrb[0].mxu0
    %3265 = vdwg.mxu0
    %v3266 = vld [vmem:[%s4] sm:$0xff]
    %v3267 = vld [vmem:[%s4 + $0x8] sm:$0xff]
    %v3268 = vld [vmem:[%s4 + $0x10] sm:$0xff]
    %v3269 = vld [vmem:[%s4 + $0x18] sm:$0xff]
    %v3270 = vld [vmem:[%s4 + $0x20] sm:$0xff]
    %v3271 = vld [vmem:[%s4 + $0x28] sm:$0xff]
    %v3272 = vld [vmem:[%s4 + $0x30] sm:$0xff]
    %v3273 = vld [vmem:[%s4 + $0x38] sm:$0xff]
    %v3274 = vld [vmem:[%s4 + $0x40] sm:$0xff]
    %v3275 = vld [vmem:[%s4 + $0x48] sm:$0xff]
    %v3276 = vld [vmem:[%s4 + $0x50] sm:$0xff]
    %v3277 = vld [vmem:[%s4 + $0x58] sm:$0xff]
    %v3278 = vld [vmem:[%s4 + $0x60] sm:$0xff]
    %v3279 = vld [vmem:[%s4 + $0x68] sm:$0xff]
    %v3280 = vld [vmem:[%s4 + $0x70] sm:$0xff]
    %v3281 = vld [vmem:[%s4 + $0x78] sm:$0xff]
    %v3282 = vld [vmem:[%s4 + $0x80] sm:$0xff]
    %v3283 = vld [vmem:[%s4 + $0x88] sm:$0xff]
    %v3284 = vld [vmem:[%s4 + $0x90] sm:$0xff]
    %v3285 = vld [vmem:[%s4 + $0x98] sm:$0xff]
    %v3286 = vld [vmem:[%s4 + $0xa0] sm:$0xff]
    %v3287 = vld [vmem:[%s4 + $0xa8] sm:$0xff]
    %v3288 = vld [vmem:[%s4 + $0xb0] sm:$0xff]
    %v3289 = vld [vmem:[%s4 + $0xb8] sm:$0xff]
    %v3290 = vld [vmem:[%s4 + $0xc0] sm:$0xff]
    %v3291 = vld [vmem:[%s4 + $0xc8] sm:$0xff]
    %v3292 = vld [vmem:[%s4 + $0xd0] sm:$0xff]
    %v3293 = vld [vmem:[%s4 + $0xd8] sm:$0xff]
    %v3294 = vld [vmem:[%s4 + $0xe0] sm:$0xff]
    %v3295 = vld [vmem:[%s4 + $0xe8] sm:$0xff]
    %v3296 = vld [vmem:[%s4 + $0xf0] sm:$0xff]
    %v3297 = vld [vmem:[%s4 + $0xf8] sm:$0xff]
    %v3298 = vld [vmem:[%s4 + $0x100] sm:$0xff]
    %v3299 = vld [vmem:[%s4 + $0x108] sm:$0xff]
    %v3300 = vld [vmem:[%s4 + $0x110] sm:$0xff]
    %v3301 = vld [vmem:[%s4 + $0x118] sm:$0xff]
    %v3302 = vld [vmem:[%s4 + $0x120] sm:$0xff]
    %v3303 = vld [vmem:[%s4 + $0x128] sm:$0xff]
    %v3304 = vld [vmem:[%s4 + $0x130] sm:$0xff]
    %v3305 = vld [vmem:[%s4 + $0x138] sm:$0xff]
    %v3306 = vld [vmem:[%s4 + $0x140] sm:$0xff]
    %v3307 = vld [vmem:[%s4 + $0x148] sm:$0xff]
    %v3308 = vld [vmem:[%s4 + $0x150] sm:$0xff]
    %v3309 = vld [vmem:[%s4 + $0x158] sm:$0xff]
    %v3310 = vld [vmem:[%s4 + $0x160] sm:$0xff]
    %v3311 = vld [vmem:[%s4 + $0x168] sm:$0xff]
    %v3312 = vld [vmem:[%s4 + $0x170] sm:$0xff]
    %v3313 = vld [vmem:[%s4 + $0x178] sm:$0xff]
    %v3314 = vld [vmem:[%s5] sm:$0x7]
    %v3316 = vlaneseq
    %v3317 = vshrl.u32 %v3316, 7
    %v3318 = vsub.s32 0, %v3317
    %v3319 = vrot.slane %v3314, %v3318
    %v3320 = vlaneseq
    %v3321 = vshrl.u32 %v3320, 7
    %v3322 = vsub.s32 1, %v3321
    %v3323 = vrot.slane %v3314, %v3322
    %v3324 = vlaneseq
    %v3325 = vshrl.u32 %v3324, 7
    %v3326 = vsub.s32 2, %v3325
    %v3327 = vrot.slane %v3314, %v3326
    %3331 = vmatprep.subr.mxu0 %v3267
    %3332 = vmatpush1.msra.mxu0 %v3266
    %3333 = vmatprep.subr.mxu0 %v3270
    %3334 = vmatpush1.msra.mxu0 %v3269
    %3335 = vmatprep.subr.mxu0 %v3273
    %3336 = vmatpush1.msra.mxu0 %v3272
    %3337 = vmatprep.subr.mxu0 %v3276
    %3338 = vmatpush1.msra.mxu0 %v3275
    %3339 = vmatprep.subr.mxu0 %v3279
    %3340 = vmatpush1.msra.mxu0 %v3278
    %3341 = vmatprep.subr.mxu0 %v3282
    %3342 = vmatpush1.msra.mxu0 %v3281
    %3343 = vmatprep.subr.mxu0 %v3285
    %3344 = vmatpush1.msra.mxu0 %v3284
    %3345 = vmatprep.subr.mxu0 %v3288
    %3346 = vmatpush1.msra.mxu0 %v3287
    %3347 = vmatprep.subr.mxu0 %v3291
    %3348 = vmatpush1.msra.mxu0 %v3290
    %3349 = vmatprep.subr.mxu0 %v3294
    %3350 = vmatpush1.msra.mxu0 %v3293
    %3351 = vmatprep.subr.mxu0 %v3297
    %3352 = vmatpush1.msra.mxu0 %v3296
    %3353 = vmatprep.subr.mxu0 %v3300
    %3354 = vmatpush1.msra.mxu0 %v3299
    %3355 = vmatprep.subr.mxu0 %v3303
    %3356 = vmatpush1.msra.mxu0 %v3302
    %3357 = vmatprep.subr.mxu0 %v3306
    %3358 = vmatpush1.msra.mxu0 %v3305
    %3359 = vmatprep.subr.mxu0 %v3309
    %3360 = vmatpush1.msra.mxu0 %v3308
    %3361 = vmatprep.subr.mxu0 %v3312
    %3362 = vmatpush1.msra.mxu0 %v3311
    %3363 = vmatprep.subr.mxu0 0.0
    %3364 = vmatpush1.msra.mxu0 0.0
    %3365 = vmatprep.subr.mxu0 0.0
    %3366 = vmatpush1.msra.mxu0 0.0
    %3367 = vmatprep.subr.mxu0 0.0
    %3368 = vmatpush1.msra.mxu0 0.0
    %3369 = vmatprep.subr.mxu0 0.0
    %3370 = vmatpush1.msra.mxu0 0.0
    %3371 = vmatprep.subr.mxu0 0.0
    %3372 = vmatpush1.msra.mxu0 0.0
    %3373 = vmatprep.subr.mxu0 0.0
    %3374 = vmatpush1.msra.mxu0 0.0
    %3375 = vmatprep.subr.mxu0 0.0
    %3376 = vmatpush1.msra.mxu0 0.0
    %3377 = vmatprep.subr.mxu0 0.0
    %3378 = vmatpush1.msra.mxu0 0.0
    %3379 = vmatprep.subr.mxu0 0.0
    %3380 = vmatpush1.msra.mxu0 0.0
    %3381 = vmatprep.subr.mxu0 0.0
    %3382 = vmatpush1.msra.mxu0 0.0
    %3383 = vmatprep.subr.mxu0 0.0
    %3384 = vmatpush1.msra.mxu0 0.0
    %3385 = vmatprep.subr.mxu0 0.0
    %3386 = vmatpush1.msra.mxu0 0.0
    %3387 = vmatprep.subr.mxu0 0.0
    %3388 = vmatpush1.msra.mxu0 0.0
    %3389 = vmatprep.subr.mxu0 0.0
    %3390 = vmatpush1.msra.mxu0 0.0
    %3391 = vmatprep.subr.mxu0 0.0
    %3392 = vmatpush1.msra.mxu0 0.0
    %3393 = vmatprep.subr.mxu0 0.0
    %3394 = vmatpush1.msra.mxu0 0.0
    %3395 = vmatprep.mubr.f32.mxu0 0.0
    %3396 = vmatmul.mubr.f32.gmra.mrb[0].mxu0 %v2499
    %v3397 = vpop.f32.mrb[0].mxu0
    %v3398 = vadd.f32 %v3319, %v3397
    %v3399 = vpop.f32.mrb[0].mxu0
    %v3400 = vadd.f32 %v3323, %v3399
    %3401 = vdwg.mxu0
    %3402 = vmatprep.subr.mxu0 0.0
    %3403 = vmatpush1.msra.mxu0 %v3268
    %3404 = vmatprep.subr.mxu0 0.0
    %3405 = vmatpush1.msra.mxu0 %v3271
    %3406 = vmatprep.subr.mxu0 0.0
    %3407 = vmatpush1.msra.mxu0 %v3274
    %3408 = vmatprep.subr.mxu0 0.0
    %3409 = vmatpush1.msra.mxu0 %v3277
    %3410 = vmatprep.subr.mxu0 0.0
    %3411 = vmatpush1.msra.mxu0 %v3280
    %3412 = vmatprep.subr.mxu0 0.0
    %3413 = vmatpush1.msra.mxu0 %v3283
    %3414 = vmatprep.subr.mxu0 0.0
    %3415 = vmatpush1.msra.mxu0 %v3286
    %3416 = vmatprep.subr.mxu0 0.0
    %3417 = vmatpush1.msra.mxu0 %v3289
    %3418 = vmatprep.subr.mxu0 0.0
    %3419 = vmatpush1.msra.mxu0 %v3292
    %3420 = vmatprep.subr.mxu0 0.0
    %3421 = vmatpush1.msra.mxu0 %v3295
    %3422 = vmatprep.subr.mxu0 0.0
    %3423 = vmatpush1.msra.mxu0 %v3298
    %3424 = vmatprep.subr.mxu0 0.0
    %3425 = vmatpush1.msra.mxu0 %v3301
    %3426 = vmatprep.subr.mxu0 0.0
    %3427 = vmatpush1.msra.mxu0 %v3304
    %3428 = vmatprep.subr.mxu0 0.0
    %3429 = vmatpush1.msra.mxu0 %v3307
    %3430 = vmatprep.subr.mxu0 0.0
    %3431 = vmatpush1.msra.mxu0 %v3310
    %3432 = vmatprep.subr.mxu0 0.0
    %3433 = vmatpush1.msra.mxu0 %v3313
    %3434 = vmatprep.subr.mxu0 0.0
    %3435 = vmatpush1.msra.mxu0 0.0
    %3436 = vmatprep.subr.mxu0 0.0
    %3437 = vmatpush1.msra.mxu0 0.0
    %3438 = vmatprep.subr.mxu0 0.0
    %3439 = vmatpush1.msra.mxu0 0.0
    %3440 = vmatprep.subr.mxu0 0.0
    %3441 = vmatpush1.msra.mxu0 0.0
    %3442 = vmatprep.subr.mxu0 0.0
    %3443 = vmatpush1.msra.mxu0 0.0
    %3444 = vmatprep.subr.mxu0 0.0
    %3445 = vmatpush1.msra.mxu0 0.0
    %3446 = vmatprep.subr.mxu0 0.0
    %3447 = vmatpush1.msra.mxu0 0.0
    %3448 = vmatprep.subr.mxu0 0.0
    %3449 = vmatpush1.msra.mxu0 0.0
    %3450 = vmatprep.subr.mxu0 0.0
    %3451 = vmatpush1.msra.mxu0 0.0
    %3452 = vmatprep.subr.mxu0 0.0
    %3453 = vmatpush1.msra.mxu0 0.0
    %3454 = vmatprep.subr.mxu0 0.0
    %3455 = vmatpush1.msra.mxu0 0.0
    %3456 = vmatprep.subr.mxu0 0.0
    %3457 = vmatpush1.msra.mxu0 0.0
    %3458 = vmatprep.subr.mxu0 0.0
    %3459 = vmatpush1.msra.mxu0 0.0
    %3460 = vmatprep.subr.mxu0 0.0
    %3461 = vmatpush1.msra.mxu0 0.0
    %3462 = vmatprep.subr.mxu0 0.0
    %3463 = vmatpush1.msra.mxu0 0.0
    %3464 = vmatprep.subr.mxu0 0.0
    %3465 = vmatpush1.msra.mxu0 0.0
    %3466 = vmatprep.mubr.f32.mxu0 0.0
    %3467 = vmatmul.mubr.f32.gmra.mrb[0].mxu0 %v2499
    %v3468 = vpop.f32.mrb[0].mxu0
    %v3469 = vadd.f32 %v3327, %v3468
    %v3470 = vpop.f32.mrb[0].mxu0
    %3471 = vdwg.mxu0
    %v3472 = vadd.f32 %v3192, %v3398
    %v3473 = vxor.u32 %v3472, 2147483648
    %v3474 = vmul.f32 %v3473, 1.442695
    %v3475 = vpow.pop %v3474
    %v3476 = vadd.f32 %v3475, 1.0
    %v3477 = vrcp.pop %v3476
    %v3478 = vmul.f32 1.0, %v3477
    %v3479 = vadd.f32 %v3194, %v3400
    %v3480 = vxor.u32 %v3479, 2147483648
    %v3481 = vmul.f32 %v3480, 1.442695
    %v3482 = vpow.pop %v3481
    %v3483 = vadd.f32 %v3482, 1.0
    %v3484 = vrcp.pop %v3483
    %v3485 = vmul.f32 1.0, %v3484
    %v3486 = vmul.f32 %v3478, %v3469
    %v3487 = vadd.f32 %v3263, %v3486
    %v3488 = vtanh.pop %v3487
    %v3489 = vsub.f32 1.0, %v3485
    %v3490 = vmul.f32 %v3489, %v3488
    %v3491 = vmul.f32 %v3485, %v2499
    %v3492 = vadd.f32 %v3490, %v3491
    %v3493 = vld [vmem:[#allocation4] sm:$0xff]
    %v3494 = vld [vmem:[#allocation4 + $0x8] sm:$0xff]
    %v3495 = vld [vmem:[#allocation4 + $0x10] sm:$0xff]
    %v3496 = vld [vmem:[#allocation4 + $0x18] sm:$0xff]
    %v3497 = vld [vmem:[#allocation4 + $0x20] sm:$0xff]
    %v3498 = vld [vmem:[#allocation4 + $0x28] sm:$0xff]
    %v3499 = vld [vmem:[#allocation4 + $0x30] sm:$0xff]
    %v3500 = vld [vmem:[#allocation4 + $0x38] sm:$0xff]
    %v3501 = vld [vmem:[#allocation4 + $0x40] sm:$0xff]
    %v3502 = vld [vmem:[#allocation4 + $0x48] sm:$0xff]
    %v3503 = vld [vmem:[#allocation4 + $0x50] sm:$0xff]
    %v3504 = vld [vmem:[#allocation4 + $0x58] sm:$0xff]
    %v3505 = vld [vmem:[#allocation4 + $0x60] sm:$0xff]
    %v3506 = vld [vmem:[#allocation4 + $0x68] sm:$0xff]
    %v3507 = vld [vmem:[#allocation4 + $0x70] sm:$0xff]
    %v3508 = vld [vmem:[#allocation4 + $0x78] sm:$0xff]
    %v3509 = vld [vmem:[#allocation4 + $0x80] sm:$0xff]
    %v3510 = vld [vmem:[#allocation4 + $0x88] sm:$0xff]
    %v3511 = vld [vmem:[#allocation4 + $0x90] sm:$0xff]
    %v3512 = vld [vmem:[#allocation4 + $0x98] sm:$0xff]
    %v3513 = vld [vmem:[#allocation4 + $0xa0] sm:$0xff]
    %v3514 = vld [vmem:[#allocation4 + $0xa8] sm:$0xff]
    %v3515 = vld [vmem:[#allocation4 + $0xb0] sm:$0xff]
    %v3516 = vld [vmem:[#allocation4 + $0xb8] sm:$0xff]
    %v3517 = vld [vmem:[#allocation4 + $0xc0] sm:$0xff]
    %v3518 = vld [vmem:[#allocation4 + $0xc8] sm:$0xff]
    %v3519 = vld [vmem:[#allocation4 + $0xd0] sm:$0xff]
    %v3520 = vld [vmem:[#allocation4 + $0xd8] sm:$0xff]
    %v3521 = vld [vmem:[#allocation4 + $0xe0] sm:$0xff]
    %v3522 = vld [vmem:[#allocation4 + $0xe8] sm:$0xff]
    %v3523 = vld [vmem:[#allocation4 + $0xf0] sm:$0xff]
    %v3524 = vld [vmem:[#allocation4 + $0xf8] sm:$0xff]
    %v3525 = vld [vmem:[#allocation4 + $0x100] sm:$0xff]
    %v3526 = vld [vmem:[#allocation4 + $0x108] sm:$0xff]
    %v3527 = vld [vmem:[#allocation4 + $0x110] sm:$0xff]
    %v3528 = vld [vmem:[#allocation4 + $0x118] sm:$0xff]
    %v3529 = vld [vmem:[#allocation4 + $0x120] sm:$0xff]
    %v3530 = vld [vmem:[#allocation4 + $0x128] sm:$0xff]
    %v3531 = vld [vmem:[#allocation4 + $0x130] sm:$0xff]
    %v3532 = vld [vmem:[#allocation4 + $0x138] sm:$0xff]
    %v3533 = vld [vmem:[#allocation4 + $0x140] sm:$0xff]
    %v3534 = vld [vmem:[#allocation4 + $0x148] sm:$0xff]
    %v3535 = vld [vmem:[#allocation4 + $0x150] sm:$0xff]
    %v3536 = vld [vmem:[#allocation4 + $0x158] sm:$0xff]
    %v3537 = vld [vmem:[#allocation4 + $0x160] sm:$0xff]
    %v3538 = vld [vmem:[#allocation4 + $0x168] sm:$0xff]
    %v3539 = vld [vmem:[#allocation4 + $0x170] sm:$0xff]
    %v3540 = vld [vmem:[#allocation4 + $0x178] sm:$0xff]
    %v3541 = vld [vmem:[%s7] sm:$0x7]
    %v3543 = vlaneseq
    %v3544 = vshrl.u32 %v3543, 7
    %v3545 = vsub.s32 0, %v3544
    %v3546 = vrot.slane %v3541, %v3545
    %v3547 = vlaneseq
    %v3548 = vshrl.u32 %v3547, 7
    %v3549 = vsub.s32 1, %v3548
    %v3550 = vrot.slane %v3541, %v3549
    %v3551 = vlaneseq
    %v3552 = vshrl.u32 %v3551, 7
    %v3553 = vsub.s32 2, %v3552
    %v3554 = vrot.slane %v3541, %v3553
    %3558 = vmatprep.subr.mxu0 %v3494
    %3559 = vmatpush1.msra.mxu0 %v3493
    %3560 = vmatprep.subr.mxu0 %v3497
    %3561 = vmatpush1.msra.mxu0 %v3496
    %3562 = vmatprep.subr.mxu0 %v3500
    %3563 = vmatpush1.msra.mxu0 %v3499
    %3564 = vmatprep.subr.mxu0 %v3503
    %3565 = vmatpush1.msra.mxu0 %v3502
    %3566 = vmatprep.subr.mxu0 %v3506
    %3567 = vmatpush1.msra.mxu0 %v3505
    %3568 = vmatprep.subr.mxu0 %v3509
    %3569 = vmatpush1.msra.mxu0 %v3508
    %3570 = vmatprep.subr.mxu0 %v3512
    %3571 = vmatpush1.msra.mxu0 %v3511
    %3572 = vmatprep.subr.mxu0 %v3515
    %3573 = vmatpush1.msra.mxu0 %v3514
    %3574 = vmatprep.subr.mxu0 %v3518
    %3575 = vmatpush1.msra.mxu0 %v3517
    %3576 = vmatprep.subr.mxu0 %v3521
    %3577 = vmatpush1.msra.mxu0 %v3520
    %3578 = vmatprep.subr.mxu0 %v3524
    %3579 = vmatpush1.msra.mxu0 %v3523
    %3580 = vmatprep.subr.mxu0 %v3527
    %3581 = vmatpush1.msra.mxu0 %v3526
    %3582 = vmatprep.subr.mxu0 %v3530
    %3583 = vmatpush1.msra.mxu0 %v3529
    %3584 = vmatprep.subr.mxu0 %v3533
    %3585 = vmatpush1.msra.mxu0 %v3532
    %3586 = vmatprep.subr.mxu0 %v3536
    %3587 = vmatpush1.msra.mxu0 %v3535
    %3588 = vmatprep.subr.mxu0 %v3539
    %3589 = vmatpush1.msra.mxu0 %v3538
    %3590 = vmatprep.subr.mxu0 0.0
    %3591 = vmatpush1.msra.mxu0 0.0
    %3592 = vmatprep.subr.mxu0 0.0
    %3593 = vmatpush1.msra.mxu0 0.0
    %3594 = vmatprep.subr.mxu0 0.0
    %3595 = vmatpush1.msra.mxu0 0.0
    %3596 = vmatprep.subr.mxu0 0.0
    %3597 = vmatpush1.msra.mxu0 0.0
    %3598 = vmatprep.subr.mxu0 0.0
    %3599 = vmatpush1.msra.mxu0 0.0
    %3600 = vmatprep.subr.mxu0 0.0
    %3601 = vmatpush1.msra.mxu0 0.0
    %3602 = vmatprep.subr.mxu0 0.0
    %3603 = vmatpush1.msra.mxu0 0.0
    %3604 = vmatprep.subr.mxu0 0.0
    %3605 = vmatpush1.msra.mxu0 0.0
    %3606 = vmatprep.subr.mxu0 0.0
    %3607 = vmatpush1.msra.mxu0 0.0
    %3608 = vmatprep.subr.mxu0 0.0
    %3609 = vmatpush1.msra.mxu0 0.0
    %3610 = vmatprep.subr.mxu0 0.0
    %3611 = vmatpush1.msra.mxu0 0.0
    %3612 = vmatprep.subr.mxu0 0.0
    %3613 = vmatpush1.msra.mxu0 0.0
    %3614 = vmatprep.subr.mxu0 0.0
    %3615 = vmatpush1.msra.mxu0 0.0
    %3616 = vmatprep.subr.mxu0 0.0
    %3617 = vmatpush1.msra.mxu0 0.0
    %3618 = vmatprep.subr.mxu0 0.0
    %3619 = vmatpush1.msra.mxu0 0.0
    %3620 = vmatprep.subr.mxu0 0.0
    %3621 = vmatpush1.msra.mxu0 0.0
    %3622 = vmatprep.mubr.f32.mxu0 0.0
    %3623 = vmatmul.mubr.f32.gmra.mrb[0].mxu0 %v3492
    %v3624 = vpop.f32.mrb[0].mxu0
    %v3625 = vadd.f32 %v3546, %v3624
    %v3626 = vpop.f32.mrb[0].mxu0
    %v3627 = vadd.f32 %v3550, %v3626
    %3628 = vdwg.mxu0
    %3629 = vmatprep.subr.mxu0 0.0
    %3630 = vmatpush1.msra.mxu0 %v3495
    %3631 = vmatprep.subr.mxu0 0.0
    %3632 = vmatpush1.msra.mxu0 %v3498
    %3633 = vmatprep.subr.mxu0 0.0
    %3634 = vmatpush1.msra.mxu0 %v3501
    %3635 = vmatprep.subr.mxu0 0.0
    %3636 = vmatpush1.msra.mxu0 %v3504
    %3637 = vmatprep.subr.mxu0 0.0
    %3638 = vmatpush1.msra.mxu0 %v3507
    %3639 = vmatprep.subr.mxu0 0.0
    %3640 = vmatpush1.msra.mxu0 %v3510
    %3641 = vmatprep.subr.mxu0 0.0
    %3642 = vmatpush1.msra.mxu0 %v3513
    %3643 = vmatprep.subr.mxu0 0.0
    %3644 = vmatpush1.msra.mxu0 %v3516
    %3645 = vmatprep.subr.mxu0 0.0
    %3646 = vmatpush1.msra.mxu0 %v3519
    %3647 = vmatprep.subr.mxu0 0.0
    %3648 = vmatpush1.msra.mxu0 %v3522
    %3649 = vmatprep.subr.mxu0 0.0
    %3650 = vmatpush1.msra.mxu0 %v3525
    %3651 = vmatprep.subr.mxu0 0.0
    %3652 = vmatpush1.msra.mxu0 %v3528
    %3653 = vmatprep.subr.mxu0 0.0
    %3654 = vmatpush1.msra.mxu0 %v3531
    %3655 = vmatprep.subr.mxu0 0.0
    %3656 = vmatpush1.msra.mxu0 %v3534
    %3657 = vmatprep.subr.mxu0 0.0
    %3658 = vmatpush1.msra.mxu0 %v3537
    %3659 = vmatprep.subr.mxu0 0.0
    %3660 = vmatpush1.msra.mxu0 %v3540
    %3661 = vmatprep.subr.mxu0 0.0
    %3662 = vmatpush1.msra.mxu0 0.0
    %3663 = vmatprep.subr.mxu0 0.0
    %3664 = vmatpush1.msra.mxu0 0.0
    %3665 = vmatprep.subr.mxu0 0.0
    %3666 = vmatpush1.msra.mxu0 0.0
    %3667 = vmatprep.subr.mxu0 0.0
    %3668 = vmatpush1.msra.mxu0 0.0
    %3669 = vmatprep.subr.mxu0 0.0
    %3670 = vmatpush1.msra.mxu0 0.0
    %3671 = vmatprep.subr.mxu0 0.0
    %3672 = vmatpush1.msra.mxu0 0.0
    %3673 = vmatprep.subr.mxu0 0.0
    %3674 = vmatpush1.msra.mxu0 0.0
    %3675 = vmatprep.subr.mxu0 0.0
    %3676 = vmatpush1.msra.mxu0 0.0
    %3677 = vmatprep.subr.mxu0 0.0
    %3678 = vmatpush1.msra.mxu0 0.0
    %3679 = vmatprep.subr.mxu0 0.0
    %3680 = vmatpush1.msra.mxu0 0.0
    %3681 = vmatprep.subr.mxu0 0.0
    %3682 = vmatpush1.msra.mxu0 0.0
    %3683 = vmatprep.subr.mxu0 0.0
    %3684 = vmatpush1.msra.mxu0 0.0
    %3685 = vmatprep.subr.mxu0 0.0
    %3686 = vmatpush1.msra.mxu0 0.0
    %3687 = vmatprep.subr.mxu0 0.0
    %3688 = vmatpush1.msra.mxu0 0.0
    %3689 = vmatprep.subr.mxu0 0.0
    %3690 = vmatpush1.msra.mxu0 0.0
    %3691 = vmatprep.subr.mxu0 0.0
    %3692 = vmatpush1.msra.mxu0 0.0
    %3693 = vmatprep.mubr.f32.mxu0 0.0
    %3694 = vmatmul.mubr.f32.gmra.mrb[0].mxu0 %v3492
    %v3695 = vpop.f32.mrb[0].mxu0
    %v3696 = vadd.f32 %v3554, %v3695
    %v3697 = vpop.f32.mrb[0].mxu0
    %3698 = vdwg.mxu0
    %v3699 = vld [vmem:[%s717] sm:$0xff]
    %v3700 = vld [vmem:[%s717 + $0x8] sm:$0xff]
    %v3701 = vld [vmem:[%s717 + $0x10] sm:$0xff]
    %v3702 = vld [vmem:[%s717 + $0x18] sm:$0xff]
    %v3703 = vld [vmem:[%s717 + $0x20] sm:$0xff]
    %v3704 = vld [vmem:[%s717 + $0x28] sm:$0xff]
    %v3705 = vld [vmem:[%s717 + $0x30] sm:$0xff]
    %v3706 = vld [vmem:[%s717 + $0x38] sm:$0xff]
    %v3707 = vld [vmem:[%s717 + $0x40] sm:$0xff]
    %v3708 = vld [vmem:[%s717 + $0x48] sm:$0xff]
    %v3709 = vld [vmem:[%s717 + $0x50] sm:$0xff]
    %v3710 = vld [vmem:[%s717 + $0x58] sm:$0xff]
    %v3711 = vld [vmem:[%s717 + $0x60] sm:$0xff]
    %v3712 = vld [vmem:[%s717 + $0x68] sm:$0xff]
    %v3713 = vld [vmem:[%s717 + $0x70] sm:$0xff]
    %v3714 = vld [vmem:[%s717 + $0x78] sm:$0xff]
    %v3715 = vld [vmem:[%s717 + $0x80] sm:$0xff]
    %v3716 = vld [vmem:[%s717 + $0x88] sm:$0xff]
    %v3717 = vld [vmem:[%s717 + $0x90] sm:$0xff]
    %v3718 = vld [vmem:[%s717 + $0x98] sm:$0xff]
    %v3719 = vld [vmem:[%s717 + $0xa0] sm:$0xff]
    %v3720 = vld [vmem:[%s717 + $0xa8] sm:$0xff]
    %v3721 = vld [vmem:[%s717 + $0xb0] sm:$0xff]
    %v3722 = vld [vmem:[%s717 + $0xb8] sm:$0xff]
    %v3723 = vld [vmem:[%s717 + $0xc0] sm:$0xff]
    %v3724 = vld [vmem:[%s717 + $0xc8] sm:$0xff]
    %v3725 = vld [vmem:[%s717 + $0xd0] sm:$0xff]
    %v3726 = vld [vmem:[%s717 + $0xd8] sm:$0xff]
    %v3727 = vld [vmem:[%s717 + $0xe0] sm:$0xff]
    %v3728 = vld [vmem:[%s717 + $0xe8] sm:$0xff]
    %v3729 = vld [vmem:[%s717 + $0xf0] sm:$0xff]
    %v3730 = vld [vmem:[%s717 + $0xf8] sm:$0xff]
    %v3731 = vld [vmem:[%s717 + $0x100] sm:$0xff]
    %v3732 = vld [vmem:[%s717 + $0x108] sm:$0xff]
    %v3733 = vld [vmem:[%s717 + $0x110] sm:$0xff]
    %v3734 = vld [vmem:[%s717 + $0x118] sm:$0xff]
    %v3735 = vld [vmem:[%s717 + $0x120] sm:$0xff]
    %v3736 = vld [vmem:[%s717 + $0x128] sm:$0xff]
    %v3737 = vld [vmem:[%s717 + $0x130] sm:$0xff]
    %v3738 = vld [vmem:[%s717 + $0x138] sm:$0xff]
    %v3739 = vld [vmem:[%s717 + $0x140] sm:$0xff]
    %v3740 = vld [vmem:[%s717 + $0x148] sm:$0xff]
    %v3741 = vld [vmem:[%s717 + $0x150] sm:$0xff]
    %v3742 = vld [vmem:[%s717 + $0x158] sm:$0xff]
    %v3743 = vld [vmem:[%s717 + $0x160] sm:$0xff]
    %v3744 = vld [vmem:[%s717 + $0x168] sm:$0xff]
    %v3745 = vld [vmem:[%s717 + $0x170] sm:$0xff]
    %v3746 = vld [vmem:[%s717 + $0x178] sm:$0xff]
    %v3747 = vld [vmem:[%s766] sm:$0x7]
    %v3749 = vlaneseq
    %v3750 = vshrl.u32 %v3749, 7
    %v3751 = vsub.s32 0, %v3750
    %v3752 = vrot.slane %v3747, %v3751
    %v3753 = vlaneseq
    %v3754 = vshrl.u32 %v3753, 7
    %v3755 = vsub.s32 1, %v3754
    %v3756 = vrot.slane %v3747, %v3755
    %v3757 = vlaneseq
    %v3758 = vshrl.u32 %v3757, 7
    %v3759 = vsub.s32 2, %v3758
    %v3760 = vrot.slane %v3747, %v3759
    %3764 = vmatprep.subr.mxu0 %v3700
    %3765 = vmatpush1.msra.mxu0 %v3699
    %3766 = vmatprep.subr.mxu0 %v3703
    %3767 = vmatpush1.msra.mxu0 %v3702
    %3768 = vmatprep.subr.mxu0 %v3706
    %3769 = vmatpush1.msra.mxu0 %v3705
    %3770 = vmatprep.subr.mxu0 %v3709
    %3771 = vmatpush1.msra.mxu0 %v3708
    %3772 = vmatprep.subr.mxu0 %v3712
    %3773 = vmatpush1.msra.mxu0 %v3711
    %3774 = vmatprep.subr.mxu0 %v3715
    %3775 = vmatpush1.msra.mxu0 %v3714
    %3776 = vmatprep.subr.mxu0 %v3718
    %3777 = vmatpush1.msra.mxu0 %v3717
    %3778 = vmatprep.subr.mxu0 %v3721
    %3779 = vmatpush1.msra.mxu0 %v3720
    %3780 = vmatprep.subr.mxu0 %v3724
    %3781 = vmatpush1.msra.mxu0 %v3723
    %3782 = vmatprep.subr.mxu0 %v3727
    %3783 = vmatpush1.msra.mxu0 %v3726
    %3784 = vmatprep.subr.mxu0 %v3730
    %3785 = vmatpush1.msra.mxu0 %v3729
    %3786 = vmatprep.subr.mxu0 %v3733
    %3787 = vmatpush1.msra.mxu0 %v3732
    %3788 = vmatprep.subr.mxu0 %v3736
    %3789 = vmatpush1.msra.mxu0 %v3735
    %3790 = vmatprep.subr.mxu0 %v3739
    %3791 = vmatpush1.msra.mxu0 %v3738
    %3792 = vmatprep.subr.mxu0 %v3742
    %3793 = vmatpush1.msra.mxu0 %v3741
    %3794 = vmatprep.subr.mxu0 %v3745
    %3795 = vmatpush1.msra.mxu0 %v3744
    %3796 = vmatprep.subr.mxu0 0.0
    %3797 = vmatpush1.msra.mxu0 0.0
    %3798 = vmatprep.subr.mxu0 0.0
    %3799 = vmatpush1.msra.mxu0 0.0
    %3800 = vmatprep.subr.mxu0 0.0
    %3801 = vmatpush1.msra.mxu0 0.0
    %3802 = vmatprep.subr.mxu0 0.0
    %3803 = vmatpush1.msra.mxu0 0.0
    %3804 = vmatprep.subr.mxu0 0.0
    %3805 = vmatpush1.msra.mxu0 0.0
    %3806 = vmatprep.subr.mxu0 0.0
    %3807 = vmatpush1.msra.mxu0 0.0
    %3808 = vmatprep.subr.mxu0 0.0
    %3809 = vmatpush1.msra.mxu0 0.0
    %3810 = vmatprep.subr.mxu0 0.0
    %3811 = vmatpush1.msra.mxu0 0.0
    %3812 = vmatprep.subr.mxu0 0.0
    %3813 = vmatpush1.msra.mxu0 0.0
    %3814 = vmatprep.subr.mxu0 0.0
    %3815 = vmatpush1.msra.mxu0 0.0
    %3816 = vmatprep.subr.mxu0 0.0
    %3817 = vmatpush1.msra.mxu0 0.0
    %3818 = vmatprep.subr.mxu0 0.0
    %3819 = vmatpush1.msra.mxu0 0.0
    %3820 = vmatprep.subr.mxu0 0.0
    %3821 = vmatpush1.msra.mxu0 0.0
    %3822 = vmatprep.subr.mxu0 0.0
    %3823 = vmatpush1.msra.mxu0 0.0
    %3824 = vmatprep.subr.mxu0 0.0
    %3825 = vmatpush1.msra.mxu0 0.0
    %3826 = vmatprep.subr.mxu0 0.0
    %3827 = vmatpush1.msra.mxu0 0.0
    %3828 = vmatprep.mubr.f32.mxu0 0.0
    %3829 = vmatmul.mubr.f32.gmra.mrb[0].mxu0 %v2932
    %v3830 = vpop.f32.mrb[0].mxu0
    %v3831 = vadd.f32 %v3752, %v3830
    %v3832 = vpop.f32.mrb[0].mxu0
    %v3833 = vadd.f32 %v3756, %v3832
    %3834 = vdwg.mxu0
    %3835 = vmatprep.subr.mxu0 0.0
    %3836 = vmatpush1.msra.mxu0 %v3701
    %3837 = vmatprep.subr.mxu0 0.0
    %3838 = vmatpush1.msra.mxu0 %v3704
    %3839 = vmatprep.subr.mxu0 0.0
    %3840 = vmatpush1.msra.mxu0 %v3707
    %3841 = vmatprep.subr.mxu0 0.0
    %3842 = vmatpush1.msra.mxu0 %v3710
    %3843 = vmatprep.subr.mxu0 0.0
    %3844 = vmatpush1.msra.mxu0 %v3713
    %3845 = vmatprep.subr.mxu0 0.0
    %3846 = vmatpush1.msra.mxu0 %v3716
    %3847 = vmatprep.subr.mxu0 0.0
    %3848 = vmatpush1.msra.mxu0 %v3719
    %3849 = vmatprep.subr.mxu0 0.0
    %3850 = vmatpush1.msra.mxu0 %v3722
    %3851 = vmatprep.subr.mxu0 0.0
    %3852 = vmatpush1.msra.mxu0 %v3725
    %3853 = vmatprep.subr.mxu0 0.0
    %3854 = vmatpush1.msra.mxu0 %v3728
    %3855 = vmatprep.subr.mxu0 0.0
    %3856 = vmatpush1.msra.mxu0 %v3731
    %3857 = vmatprep.subr.mxu0 0.0
    %3858 = vmatpush1.msra.mxu0 %v3734
    %3859 = vmatprep.subr.mxu0 0.0
    %3860 = vmatpush1.msra.mxu0 %v3737
    %3861 = vmatprep.subr.mxu0 0.0
    %3862 = vmatpush1.msra.mxu0 %v3740
    %3863 = vmatprep.subr.mxu0 0.0
    %3864 = vmatpush1.msra.mxu0 %v3743
    %3865 = vmatprep.subr.mxu0 0.0
    %3866 = vmatpush1.msra.mxu0 %v3746
    %3867 = vmatprep.subr.mxu0 0.0
    %3868 = vmatpush1.msra.mxu0 0.0
    %3869 = vmatprep.subr.mxu0 0.0
    %3870 = vmatpush1.msra.mxu0 0.0
    %3871 = vmatprep.subr.mxu0 0.0
    %3872 = vmatpush1.msra.mxu0 0.0
    %3873 = vmatprep.subr.mxu0 0.0
    %3874 = vmatpush1.msra.mxu0 0.0
    %3875 = vmatprep.subr.mxu0 0.0
    %3876 = vmatpush1.msra.mxu0 0.0
    %3877 = vmatprep.subr.mxu0 0.0
    %3878 = vmatpush1.msra.mxu0 0.0
    %3879 = vmatprep.subr.mxu0 0.0
    %3880 = vmatpush1.msra.mxu0 0.0
    %3881 = vmatprep.subr.mxu0 0.0
    %3882 = vmatpush1.msra.mxu0 0.0
    %3883 = vmatprep.subr.mxu0 0.0
    %3884 = vmatpush1.msra.mxu0 0.0
    %3885 = vmatprep.subr.mxu0 0.0
    %3886 = vmatpush1.msra.mxu0 0.0
    %3887 = vmatprep.subr.mxu0 0.0
    %3888 = vmatpush1.msra.mxu0 0.0
    %3889 = vmatprep.subr.mxu0 0.0
    %3890 = vmatpush1.msra.mxu0 0.0
    %3891 = vmatprep.subr.mxu0 0.0
    %3892 = vmatpush1.msra.mxu0 0.0
    %3893 = vmatprep.subr.mxu0 0.0
    %3894 = vmatpush1.msra.mxu0 0.0
    %3895 = vmatprep.subr.mxu0 0.0
    %3896 = vmatpush1.msra.mxu0 0.0
    %3897 = vmatprep.subr.mxu0 0.0
    %3898 = vmatpush1.msra.mxu0 0.0
    %3899 = vmatprep.mubr.f32.mxu0 0.0
    %3900 = vmatmul.mubr.f32.gmra.mrb[0].mxu0 %v2932
    %v3901 = vpop.f32.mrb[0].mxu0
    %v3902 = vadd.f32 %v3760, %v3901
    %v3903 = vpop.f32.mrb[0].mxu0
    %3904 = vdwg.mxu0
    %v3905 = vadd.f32 %v3625, %v3831
    %v3906 = vxor.u32 %v3905, 2147483648
    %v3907 = vmul.f32 %v3906, 1.442695
    %v3908 = vpow.pop %v3907
    %v3909 = vadd.f32 %v3908, 1.0
    %v3910 = vrcp.pop %v3909
    %v3911 = vmul.f32 1.0, %v3910
    %v3912 = vadd.f32 %v3627, %v3833
    %v3913 = vxor.u32 %v3912, 2147483648
    %v3914 = vmul.f32 %v3913, 1.442695
    %v3915 = vpow.pop %v3914
    %v3916 = vadd.f32 %v3915, 1.0
    %v3917 = vrcp.pop %v3916
    %v3918 = vmul.f32 1.0, %v3917
    %v3919 = vmul.f32 %v3911, %v3902
    %v3920 = vadd.f32 %v3696, %v3919
    %v3921 = vtanh.pop %v3920
    %v3922 = vsub.f32 1.0, %v3918
    %v3923 = vmul.f32 %v3922, %v3921
    %v3924 = vmul.f32 %v3918, %v2932
    %v3925 = vadd.f32 %v3923, %v3924
    %v3926 = vld [vmem:[%s8] sm:$0xff]
    %v3927 = vld [vmem:[%s8 + $0x8] sm:$0xff]
    %v3928 = vld [vmem:[%s8 + $0x10] sm:$0xff]
    %v3929 = vld [vmem:[%s8 + $0x18] sm:$0xff]
    %v3930 = vld [vmem:[%s8 + $0x20] sm:$0xff]
    %v3931 = vld [vmem:[%s8 + $0x28] sm:$0xff]
    %v3932 = vld [vmem:[%s8 + $0x30] sm:$0xff]
    %v3933 = vld [vmem:[%s8 + $0x38] sm:$0xff]
    %v3934 = vld [vmem:[%s8 + $0x40] sm:$0xff]
    %v3935 = vld [vmem:[%s8 + $0x48] sm:$0xff]
    %v3936 = vld [vmem:[%s8 + $0x50] sm:$0xff]
    %v3937 = vld [vmem:[%s8 + $0x58] sm:$0xff]
    %v3938 = vld [vmem:[%s8 + $0x60] sm:$0xff]
    %v3939 = vld [vmem:[%s8 + $0x68] sm:$0xff]
    %v3940 = vld [vmem:[%s8 + $0x70] sm:$0xff]
    %v3941 = vld [vmem:[%s8 + $0x78] sm:$0xff]
    %v3942 = vld [vmem:[%s9] sm:$0x1]
    %v3944 = vlaneseq
    %v3945 = vshrl.u32 %v3944, 7
    %v3946 = vsub.s32 0, %v3945
    %v3947 = vrot.slane %v3942, %v3946
    %3949 = vmatprep.subr.mxu0 0.0
    %3950 = vmatpush1.msra.mxu0 %v3926
    %3951 = vmatprep.subr.mxu0 0.0
    %3952 = vmatpush1.msra.mxu0 %v3927
    %3953 = vmatprep.subr.mxu0 0.0
    %3954 = vmatpush1.msra.mxu0 %v3928
    %3955 = vmatprep.subr.mxu0 0.0
    %3956 = vmatpush1.msra.mxu0 %v3929
    %3957 = vmatprep.subr.mxu0 0.0
    %3958 = vmatpush1.msra.mxu0 %v3930
    %3959 = vmatprep.subr.mxu0 0.0
    %3960 = vmatpush1.msra.mxu0 %v3931
    %3961 = vmatprep.subr.mxu0 0.0
    %3962 = vmatpush1.msra.mxu0 %v3932
    %3963 = vmatprep.subr.mxu0 0.0
    %3964 = vmatpush1.msra.mxu0 %v3933
    %3965 = vmatprep.subr.mxu0 0.0
    %3966 = vmatpush1.msra.mxu0 %v3934
    %3967 = vmatprep.subr.mxu0 0.0
    %3968 = vmatpush1.msra.mxu0 %v3935
    %3969 = vmatprep.subr.mxu0 0.0
    %3970 = vmatpush1.msra.mxu0 %v3936
    %3971 = vmatprep.subr.mxu0 0.0
    %3972 = vmatpush1.msra.mxu0 %v3937
    %3973 = vmatprep.subr.mxu0 0.0
    %3974 = vmatpush1.msra.mxu0 %v3938
    %3975 = vmatprep.subr.mxu0 0.0
    %3976 = vmatpush1.msra.mxu0 %v3939
    %3977 = vmatprep.subr.mxu0 0.0
    %3978 = vmatpush1.msra.mxu0 %v3940
    %3979 = vmatprep.subr.mxu0 0.0
    %3980 = vmatpush1.msra.mxu0 %v3941
    %3981 = vmatprep.subr.mxu0 0.0
    %3982 = vmatpush1.msra.mxu0 0.0
    %3983 = vmatprep.subr.mxu0 0.0
    %3984 = vmatpush1.msra.mxu0 0.0
    %3985 = vmatprep.subr.mxu0 0.0
    %3986 = vmatpush1.msra.mxu0 0.0
    %3987 = vmatprep.subr.mxu0 0.0
    %3988 = vmatpush1.msra.mxu0 0.0
    %3989 = vmatprep.subr.mxu0 0.0
    %3990 = vmatpush1.msra.mxu0 0.0
    %3991 = vmatprep.subr.mxu0 0.0
    %3992 = vmatpush1.msra.mxu0 0.0
    %3993 = vmatprep.subr.mxu0 0.0
    %3994 = vmatpush1.msra.mxu0 0.0
    %3995 = vmatprep.subr.mxu0 0.0
    %3996 = vmatpush1.msra.mxu0 0.0
    %3997 = vmatprep.subr.mxu0 0.0
    %3998 = vmatpush1.msra.mxu0 0.0
    %3999 = vmatprep.subr.mxu0 0.0
    %4000 = vmatpush1.msra.mxu0 0.0
    %4001 = vmatprep.subr.mxu0 0.0
    %4002 = vmatpush1.msra.mxu0 0.0
    %4003 = vmatprep.subr.mxu0 0.0
    %4004 = vmatpush1.msra.mxu0 0.0
    %4005 = vmatprep.subr.mxu0 0.0
    %4006 = vmatpush1.msra.mxu0 0.0
    %4007 = vmatprep.subr.mxu0 0.0
    %4008 = vmatpush1.msra.mxu0 0.0
    %4009 = vmatprep.subr.mxu0 0.0
    %4010 = vmatpush1.msra.mxu0 0.0
    %4011 = vmatprep.subr.mxu0 0.0
    %4012 = vmatpush1.msra.mxu0 0.0
    %4013 = vmatprep.mubr.f32.mxu0 0.0
    %4014 = vmatmul.mubr.f32.gmra.mrb[0].mxu0 %v3925
    %v4015 = vpop.f32.mrb[0].mxu0
    %v4016 = vadd.f32 %v3947, %v4015
    %v4017 = vpop.f32.mrb[0].mxu0
    %4018 = vdwg.mxu0
    %s4019 = scalar_lea.vmem %s11, 24
    %4020 = vst [vmem:[%s4019] sm:$0xff] %v4016
    %4021 = vmax.xlane.f32.xlu0 %v4016
    %v4022 = vpop.xlane.xlu0 %4021
    %vm4023 = vcmp.ge.f32.partialorder %v4016, %v4022
    %v4024 = vsel %vm4023, %v1043, 1073741824
    %v4025 = vand.u32 %v4024, 65535
    %v4026 = vshra.s32 %v4024, 16
    %v4027 = vcvt.s32.f32 %v4025
    %v4028 = vcvt.s32.f32 %v4026
    %4029 = vmin.xlane.f32.xlu0 %v4028
    %v4030 = vpop.xlane.xlu0 %4029
    %vm4031 = vcmp.eq.f32.partialorder %v4028, %v4030
    %v4032 = vsel %vm4031, %v4027, inf
    %4033 = vmin.xlane.f32.xlu0 %v4032
    %v4034 = vpop.xlane.xlu0 %4033
    %v4035 = vcvt.f32.s32 %v4034
    %v4036 = vcvt.f32.s32 %v4030
    %v4037 = vshll.u32 %v4036, 16
    %v4038 = vadd.s32 %v4037, %v4035
    %vm4039 = vcmp.eq.s32.totalorder %v1043, %v4038
    %v4040 = vsel %vm4039, 1, 0
    %v4041 = vcvt.s32.f32 %v4040
    %s4042 = scalar_lea.vmem %s0, 32
    %v4043 = vld [vmem:[%s4042] sm:$0xff]
    %s4044 = scalar_lea.vmem %s1, 32
    %v4045 = vld [vmem:[%s4044] sm:$0xff]
    %4047 = vset.pattern.permute.xlu0 0
    %4048 = vperm.xlu0 %4047, %v4045
    %v4049 = vpop.permute.xlu0 %4048
    %v4051 = vmul.f32 %v4049, %v4041
    %v4052 = vadd.f32 %v4043, %v4051
    %v4053 = vld [vmem:[#allocation2] sm:$0xff]
    %v4054 = vld [vmem:[#allocation2 + $0x8] sm:$0xff]
    %v4055 = vld [vmem:[#allocation2 + $0x10] sm:$0xff]
    %v4056 = vld [vmem:[#allocation2 + $0x18] sm:$0xff]
    %v4057 = vld [vmem:[#allocation2 + $0x20] sm:$0xff]
    %v4058 = vld [vmem:[#allocation2 + $0x28] sm:$0xff]
    %v4059 = vld [vmem:[#allocation2 + $0x30] sm:$0xff]
    %v4060 = vld [vmem:[#allocation2 + $0x38] sm:$0xff]
    %v4061 = vld [vmem:[#allocation2 + $0x40] sm:$0xff]
    %v4062 = vld [vmem:[#allocation2 + $0x48] sm:$0xff]
    %v4063 = vld [vmem:[#allocation2 + $0x50] sm:$0xff]
    %v4064 = vld [vmem:[#allocation2 + $0x58] sm:$0xff]
    %v4065 = vld [vmem:[#allocation2 + $0x60] sm:$0xff]
    %v4066 = vld [vmem:[#allocation2 + $0x68] sm:$0xff]
    %v4067 = vld [vmem:[#allocation2 + $0x70] sm:$0xff]
    %v4068 = vld [vmem:[#allocation2 + $0x78] sm:$0xff]
    %v4069 = vld [vmem:[#allocation2 + $0x80] sm:$0xff]
    %v4070 = vld [vmem:[#allocation2 + $0x88] sm:$0xff]
    %v4071 = vld [vmem:[#allocation2 + $0x90] sm:$0xff]
    %v4072 = vld [vmem:[#allocation2 + $0x98] sm:$0xff]
    %v4073 = vld [vmem:[#allocation2 + $0xa0] sm:$0xff]
    %v4074 = vld [vmem:[#allocation2 + $0xa8] sm:$0xff]
    %v4075 = vld [vmem:[#allocation2 + $0xb0] sm:$0xff]
    %v4076 = vld [vmem:[#allocation2 + $0xb8] sm:$0xff]
    %v4077 = vld [vmem:[#allocation2 + $0xc0] sm:$0xff]
    %v4078 = vld [vmem:[#allocation2 + $0xc8] sm:$0xff]
    %v4079 = vld [vmem:[#allocation2 + $0xd0] sm:$0xff]
    %v4080 = vld [vmem:[#allocation2 + $0xd8] sm:$0xff]
    %v4081 = vld [vmem:[#allocation2 + $0xe0] sm:$0xff]
    %v4082 = vld [vmem:[#allocation2 + $0xe8] sm:$0xff]
    %v4083 = vld [vmem:[#allocation2 + $0xf0] sm:$0xff]
    %v4084 = vld [vmem:[#allocation2 + $0xf8] sm:$0xff]
    %v4085 = vld [vmem:[#allocation2 + $0x100] sm:$0xff]
    %v4086 = vld [vmem:[#allocation2 + $0x108] sm:$0xff]
    %v4087 = vld [vmem:[#allocation2 + $0x110] sm:$0xff]
    %v4088 = vld [vmem:[#allocation2 + $0x118] sm:$0xff]
    %v4089 = vld [vmem:[#allocation2 + $0x120] sm:$0xff]
    %v4090 = vld [vmem:[#allocation2 + $0x128] sm:$0xff]
    %v4091 = vld [vmem:[#allocation2 + $0x130] sm:$0xff]
    %v4092 = vld [vmem:[#allocation2 + $0x138] sm:$0xff]
    %v4093 = vld [vmem:[#allocation2 + $0x140] sm:$0xff]
    %v4094 = vld [vmem:[#allocation2 + $0x148] sm:$0xff]
    %v4095 = vld [vmem:[#allocation2 + $0x150] sm:$0xff]
    %v4096 = vld [vmem:[#allocation2 + $0x158] sm:$0xff]
    %v4097 = vld [vmem:[#allocation2 + $0x160] sm:$0xff]
    %v4098 = vld [vmem:[#allocation2 + $0x168] sm:$0xff]
    %v4099 = vld [vmem:[#allocation2 + $0x170] sm:$0xff]
    %v4100 = vld [vmem:[#allocation2 + $0x178] sm:$0xff]
    %v4101 = vld [vmem:[%s3] sm:$0x7]
    %v4103 = vlaneseq
    %v4104 = vshrl.u32 %v4103, 7
    %v4105 = vsub.s32 0, %v4104
    %v4106 = vrot.slane %v4101, %v4105
    %v4107 = vlaneseq
    %v4108 = vshrl.u32 %v4107, 7
    %v4109 = vsub.s32 1, %v4108
    %v4110 = vrot.slane %v4101, %v4109
    %v4111 = vlaneseq
    %v4112 = vshrl.u32 %v4111, 7
    %v4113 = vsub.s32 2, %v4112
    %v4114 = vrot.slane %v4101, %v4113
    %4118 = vmatprep.subr.mxu0 %v4054
    %4119 = vmatpush1.msra.mxu0 %v4053
    %4120 = vmatprep.subr.mxu0 %v4057
    %4121 = vmatpush1.msra.mxu0 %v4056
    %4122 = vmatprep.subr.mxu0 %v4060
    %4123 = vmatpush1.msra.mxu0 %v4059
    %4124 = vmatprep.subr.mxu0 %v4063
    %4125 = vmatpush1.msra.mxu0 %v4062
    %4126 = vmatprep.subr.mxu0 %v4066
    %4127 = vmatpush1.msra.mxu0 %v4065
    %4128 = vmatprep.subr.mxu0 %v4069
    %4129 = vmatpush1.msra.mxu0 %v4068
    %4130 = vmatprep.subr.mxu0 %v4072
    %4131 = vmatpush1.msra.mxu0 %v4071
    %4132 = vmatprep.subr.mxu0 %v4075
    %4133 = vmatpush1.msra.mxu0 %v4074
    %4134 = vmatprep.subr.mxu0 %v4078
    %4135 = vmatpush1.msra.mxu0 %v4077
    %4136 = vmatprep.subr.mxu0 %v4081
    %4137 = vmatpush1.msra.mxu0 %v4080
    %4138 = vmatprep.subr.mxu0 %v4084
    %4139 = vmatpush1.msra.mxu0 %v4083
    %4140 = vmatprep.subr.mxu0 %v4087
    %4141 = vmatpush1.msra.mxu0 %v4086
    %4142 = vmatprep.subr.mxu0 %v4090
    %4143 = vmatpush1.msra.mxu0 %v4089
    %4144 = vmatprep.subr.mxu0 %v4093
    %4145 = vmatpush1.msra.mxu0 %v4092
    %4146 = vmatprep.subr.mxu0 %v4096
    %4147 = vmatpush1.msra.mxu0 %v4095
    %4148 = vmatprep.subr.mxu0 %v4099
    %4149 = vmatpush1.msra.mxu0 %v4098
    %4150 = vmatprep.subr.mxu0 0.0
    %4151 = vmatpush1.msra.mxu0 0.0
    %4152 = vmatprep.subr.mxu0 0.0
    %4153 = vmatpush1.msra.mxu0 0.0
    %4154 = vmatprep.subr.mxu0 0.0
    %4155 = vmatpush1.msra.mxu0 0.0
    %4156 = vmatprep.subr.mxu0 0.0
    %4157 = vmatpush1.msra.mxu0 0.0
    %4158 = vmatprep.subr.mxu0 0.0
    %4159 = vmatpush1.msra.mxu0 0.0
    %4160 = vmatprep.subr.mxu0 0.0
    %4161 = vmatpush1.msra.mxu0 0.0
    %4162 = vmatprep.subr.mxu0 0.0
    %4163 = vmatpush1.msra.mxu0 0.0
    %4164 = vmatprep.subr.mxu0 0.0
    %4165 = vmatpush1.msra.mxu0 0.0
    %4166 = vmatprep.subr.mxu0 0.0
    %4167 = vmatpush1.msra.mxu0 0.0
    %4168 = vmatprep.subr.mxu0 0.0
    %4169 = vmatpush1.msra.mxu0 0.0
    %4170 = vmatprep.subr.mxu0 0.0
    %4171 = vmatpush1.msra.mxu0 0.0
    %4172 = vmatprep.subr.mxu0 0.0
    %4173 = vmatpush1.msra.mxu0 0.0
    %4174 = vmatprep.subr.mxu0 0.0
    %4175 = vmatpush1.msra.mxu0 0.0
    %4176 = vmatprep.subr.mxu0 0.0
    %4177 = vmatpush1.msra.mxu0 0.0
    %4178 = vmatprep.subr.mxu0 0.0
    %4179 = vmatpush1.msra.mxu0 0.0
    %4180 = vmatprep.subr.mxu0 0.0
    %4181 = vmatpush1.msra.mxu0 0.0
    %4182 = vmatprep.mubr.f32.mxu0 0.0
    %4183 = vmatmul.mubr.f32.gmra.mrb[0].mxu0 %v4052
    %v4184 = vpop.f32.mrb[0].mxu0
    %v4185 = vadd.f32 %v4106, %v4184
    %v4186 = vpop.f32.mrb[0].mxu0
    %v4187 = vadd.f32 %v4110, %v4186
    %4188 = vdwg.mxu0
    %4189 = vmatprep.subr.mxu0 0.0
    %4190 = vmatpush1.msra.mxu0 %v4055
    %4191 = vmatprep.subr.mxu0 0.0
    %4192 = vmatpush1.msra.mxu0 %v4058
    %4193 = vmatprep.subr.mxu0 0.0
    %4194 = vmatpush1.msra.mxu0 %v4061
    %4195 = vmatprep.subr.mxu0 0.0
    %4196 = vmatpush1.msra.mxu0 %v4064
    %4197 = vmatprep.subr.mxu0 0.0
    %4198 = vmatpush1.msra.mxu0 %v4067
    %4199 = vmatprep.subr.mxu0 0.0
    %4200 = vmatpush1.msra.mxu0 %v4070
    %4201 = vmatprep.subr.mxu0 0.0
    %4202 = vmatpush1.msra.mxu0 %v4073
    %4203 = vmatprep.subr.mxu0 0.0
    %4204 = vmatpush1.msra.mxu0 %v4076
    %4205 = vmatprep.subr.mxu0 0.0
    %4206 = vmatpush1.msra.mxu0 %v4079
    %4207 = vmatprep.subr.mxu0 0.0
    %4208 = vmatpush1.msra.mxu0 %v4082
    %4209 = vmatprep.subr.mxu0 0.0
    %4210 = vmatpush1.msra.mxu0 %v4085
    %4211 = vmatprep.subr.mxu0 0.0
    %4212 = vmatpush1.msra.mxu0 %v4088
    %4213 = vmatprep.subr.mxu0 0.0
    %4214 = vmatpush1.msra.mxu0 %v4091
    %4215 = vmatprep.subr.mxu0 0.0
    %4216 = vmatpush1.msra.mxu0 %v4094
    %4217 = vmatprep.subr.mxu0 0.0
    %4218 = vmatpush1.msra.mxu0 %v4097
    %4219 = vmatprep.subr.mxu0 0.0
    %4220 = vmatpush1.msra.mxu0 %v4100
    %4221 = vmatprep.subr.mxu0 0.0
    %4222 = vmatpush1.msra.mxu0 0.0
    %4223 = vmatprep.subr.mxu0 0.0
    %4224 = vmatpush1.msra.mxu0 0.0
    %4225 = vmatprep.subr.mxu0 0.0
    %4226 = vmatpush1.msra.mxu0 0.0
    %4227 = vmatprep.subr.mxu0 0.0
    %4228 = vmatpush1.msra.mxu0 0.0
    %4229 = vmatprep.subr.mxu0 0.0
    %4230 = vmatpush1.msra.mxu0 0.0
    %4231 = vmatprep.subr.mxu0 0.0
    %4232 = vmatpush1.msra.mxu0 0.0
    %4233 = vmatprep.subr.mxu0 0.0
    %4234 = vmatpush1.msra.mxu0 0.0
    %4235 = vmatprep.subr.mxu0 0.0
    %4236 = vmatpush1.msra.mxu0 0.0
    %4237 = vmatprep.subr.mxu0 0.0
    %4238 = vmatpush1.msra.mxu0 0.0
    %4239 = vmatprep.subr.mxu0 0.0
    %4240 = vmatpush1.msra.mxu0 0.0
    %4241 = vmatprep.subr.mxu0 0.0
    %4242 = vmatpush1.msra.mxu0 0.0
    %4243 = vmatprep.subr.mxu0 0.0
    %4244 = vmatpush1.msra.mxu0 0.0
    %4245 = vmatprep.subr.mxu0 0.0
    %4246 = vmatpush1.msra.mxu0 0.0
    %4247 = vmatprep.subr.mxu0 0.0
    %4248 = vmatpush1.msra.mxu0 0.0
    %4249 = vmatprep.subr.mxu0 0.0
    %4250 = vmatpush1.msra.mxu0 0.0
    %4251 = vmatprep.subr.mxu0 0.0
    %4252 = vmatpush1.msra.mxu0 0.0
    %4253 = vmatprep.mubr.f32.mxu0 0.0
    %4254 = vmatmul.mubr.f32.gmra.mrb[0].mxu0 %v4052
    %v4255 = vpop.f32.mrb[0].mxu0
    %v4256 = vadd.f32 %v4114, %v4255
    %v4257 = vpop.f32.mrb[0].mxu0
    %4258 = vdwg.mxu0
    %v4259 = vld [vmem:[%s4] sm:$0xff]
    %v4260 = vld [vmem:[%s4 + $0x8] sm:$0xff]
    %v4261 = vld [vmem:[%s4 + $0x10] sm:$0xff]
    %v4262 = vld [vmem:[%s4 + $0x18] sm:$0xff]
    %v4263 = vld [vmem:[%s4 + $0x20] sm:$0xff]
    %v4264 = vld [vmem:[%s4 + $0x28] sm:$0xff]
    %v4265 = vld [vmem:[%s4 + $0x30] sm:$0xff]
    %v4266 = vld [vmem:[%s4 + $0x38] sm:$0xff]
    %v4267 = vld [vmem:[%s4 + $0x40] sm:$0xff]
    %v4268 = vld [vmem:[%s4 + $0x48] sm:$0xff]
    %v4269 = vld [vmem:[%s4 + $0x50] sm:$0xff]
    %v4270 = vld [vmem:[%s4 + $0x58] sm:$0xff]
    %v4271 = vld [vmem:[%s4 + $0x60] sm:$0xff]
    %v4272 = vld [vmem:[%s4 + $0x68] sm:$0xff]
    %v4273 = vld [vmem:[%s4 + $0x70] sm:$0xff]
    %v4274 = vld [vmem:[%s4 + $0x78] sm:$0xff]
    %v4275 = vld [vmem:[%s4 + $0x80] sm:$0xff]
    %v4276 = vld [vmem:[%s4 + $0x88] sm:$0xff]
    %v4277 = vld [vmem:[%s4 + $0x90] sm:$0xff]
    %v4278 = vld [vmem:[%s4 + $0x98] sm:$0xff]
    %v4279 = vld [vmem:[%s4 + $0xa0] sm:$0xff]
    %v4280 = vld [vmem:[%s4 + $0xa8] sm:$0xff]
    %v4281 = vld [vmem:[%s4 + $0xb0] sm:$0xff]
    %v4282 = vld [vmem:[%s4 + $0xb8] sm:$0xff]
    %v4283 = vld [vmem:[%s4 + $0xc0] sm:$0xff]
    %v4284 = vld [vmem:[%s4 + $0xc8] sm:$0xff]
    %v4285 = vld [vmem:[%s4 + $0xd0] sm:$0xff]
    %v4286 = vld [vmem:[%s4 + $0xd8] sm:$0xff]
    %v4287 = vld [vmem:[%s4 + $0xe0] sm:$0xff]
    %v4288 = vld [vmem:[%s4 + $0xe8] sm:$0xff]
    %v4289 = vld [vmem:[%s4 + $0xf0] sm:$0xff]
    %v4290 = vld [vmem:[%s4 + $0xf8] sm:$0xff]
    %v4291 = vld [vmem:[%s4 + $0x100] sm:$0xff]
    %v4292 = vld [vmem:[%s4 + $0x108] sm:$0xff]
    %v4293 = vld [vmem:[%s4 + $0x110] sm:$0xff]
    %v4294 = vld [vmem:[%s4 + $0x118] sm:$0xff]
    %v4295 = vld [vmem:[%s4 + $0x120] sm:$0xff]
    %v4296 = vld [vmem:[%s4 + $0x128] sm:$0xff]
    %v4297 = vld [vmem:[%s4 + $0x130] sm:$0xff]
    %v4298 = vld [vmem:[%s4 + $0x138] sm:$0xff]
    %v4299 = vld [vmem:[%s4 + $0x140] sm:$0xff]
    %v4300 = vld [vmem:[%s4 + $0x148] sm:$0xff]
    %v4301 = vld [vmem:[%s4 + $0x150] sm:$0xff]
    %v4302 = vld [vmem:[%s4 + $0x158] sm:$0xff]
    %v4303 = vld [vmem:[%s4 + $0x160] sm:$0xff]
    %v4304 = vld [vmem:[%s4 + $0x168] sm:$0xff]
    %v4305 = vld [vmem:[%s4 + $0x170] sm:$0xff]
    %v4306 = vld [vmem:[%s4 + $0x178] sm:$0xff]
    %v4307 = vld [vmem:[%s5] sm:$0x7]
    %v4309 = vlaneseq
    %v4310 = vshrl.u32 %v4309, 7
    %v4311 = vsub.s32 0, %v4310
    %v4312 = vrot.slane %v4307, %v4311
    %v4313 = vlaneseq
    %v4314 = vshrl.u32 %v4313, 7
    %v4315 = vsub.s32 1, %v4314
    %v4316 = vrot.slane %v4307, %v4315
    %v4317 = vlaneseq
    %v4318 = vshrl.u32 %v4317, 7
    %v4319 = vsub.s32 2, %v4318
    %v4320 = vrot.slane %v4307, %v4319
    %4324 = vmatprep.subr.mxu0 %v4260
    %4325 = vmatpush1.msra.mxu0 %v4259
    %4326 = vmatprep.subr.mxu0 %v4263
    %4327 = vmatpush1.msra.mxu0 %v4262
    %4328 = vmatprep.subr.mxu0 %v4266
    %4329 = vmatpush1.msra.mxu0 %v4265
    %4330 = vmatprep.subr.mxu0 %v4269
    %4331 = vmatpush1.msra.mxu0 %v4268
    %4332 = vmatprep.subr.mxu0 %v4272
    %4333 = vmatpush1.msra.mxu0 %v4271
    %4334 = vmatprep.subr.mxu0 %v4275
    %4335 = vmatpush1.msra.mxu0 %v4274
    %4336 = vmatprep.subr.mxu0 %v4278
    %4337 = vmatpush1.msra.mxu0 %v4277
    %4338 = vmatprep.subr.mxu0 %v4281
    %4339 = vmatpush1.msra.mxu0 %v4280
    %4340 = vmatprep.subr.mxu0 %v4284
    %4341 = vmatpush1.msra.mxu0 %v4283
    %4342 = vmatprep.subr.mxu0 %v4287
    %4343 = vmatpush1.msra.mxu0 %v4286
    %4344 = vmatprep.subr.mxu0 %v4290
    %4345 = vmatpush1.msra.mxu0 %v4289
    %4346 = vmatprep.subr.mxu0 %v4293
    %4347 = vmatpush1.msra.mxu0 %v4292
    %4348 = vmatprep.subr.mxu0 %v4296
    %4349 = vmatpush1.msra.mxu0 %v4295
    %4350 = vmatprep.subr.mxu0 %v4299
    %4351 = vmatpush1.msra.mxu0 %v4298
    %4352 = vmatprep.subr.mxu0 %v4302
    %4353 = vmatpush1.msra.mxu0 %v4301
    %4354 = vmatprep.subr.mxu0 %v4305
    %4355 = vmatpush1.msra.mxu0 %v4304
    %4356 = vmatprep.subr.mxu0 0.0
    %4357 = vmatpush1.msra.mxu0 0.0
    %4358 = vmatprep.subr.mxu0 0.0
    %4359 = vmatpush1.msra.mxu0 0.0
    %4360 = vmatprep.subr.mxu0 0.0
    %4361 = vmatpush1.msra.mxu0 0.0
    %4362 = vmatprep.subr.mxu0 0.0
    %4363 = vmatpush1.msra.mxu0 0.0
    %4364 = vmatprep.subr.mxu0 0.0
    %4365 = vmatpush1.msra.mxu0 0.0
    %4366 = vmatprep.subr.mxu0 0.0
    %4367 = vmatpush1.msra.mxu0 0.0
    %4368 = vmatprep.subr.mxu0 0.0
    %4369 = vmatpush1.msra.mxu0 0.0
    %4370 = vmatprep.subr.mxu0 0.0
    %4371 = vmatpush1.msra.mxu0 0.0
    %4372 = vmatprep.subr.mxu0 0.0
    %4373 = vmatpush1.msra.mxu0 0.0
    %4374 = vmatprep.subr.mxu0 0.0
    %4375 = vmatpush1.msra.mxu0 0.0
    %4376 = vmatprep.subr.mxu0 0.0
    %4377 = vmatpush1.msra.mxu0 0.0
    %4378 = vmatprep.subr.mxu0 0.0
    %4379 = vmatpush1.msra.mxu0 0.0
    %4380 = vmatprep.subr.mxu0 0.0
    %4381 = vmatpush1.msra.mxu0 0.0
    %4382 = vmatprep.subr.mxu0 0.0
    %4383 = vmatpush1.msra.mxu0 0.0
    %4384 = vmatprep.subr.mxu0 0.0
    %4385 = vmatpush1.msra.mxu0 0.0
    %4386 = vmatprep.subr.mxu0 0.0
    %4387 = vmatpush1.msra.mxu0 0.0
    %4388 = vmatprep.mubr.f32.mxu0 0.0
    %4389 = vmatmul.mubr.f32.gmra.mrb[0].mxu0 %v3492
    %v4390 = vpop.f32.mrb[0].mxu0
    %v4391 = vadd.f32 %v4312, %v4390
    %v4392 = vpop.f32.mrb[0].mxu0
    %v4393 = vadd.f32 %v4316, %v4392
    %4394 = vdwg.mxu0
    %4395 = vmatprep.subr.mxu0 0.0
    %4396 = vmatpush1.msra.mxu0 %v4261
    %4397 = vmatprep.subr.mxu0 0.0
    %4398 = vmatpush1.msra.mxu0 %v4264
    %4399 = vmatprep.subr.mxu0 0.0
    %4400 = vmatpush1.msra.mxu0 %v4267
    %4401 = vmatprep.subr.mxu0 0.0
    %4402 = vmatpush1.msra.mxu0 %v4270
    %4403 = vmatprep.subr.mxu0 0.0
    %4404 = vmatpush1.msra.mxu0 %v4273
    %4405 = vmatprep.subr.mxu0 0.0
    %4406 = vmatpush1.msra.mxu0 %v4276
    %4407 = vmatprep.subr.mxu0 0.0
    %4408 = vmatpush1.msra.mxu0 %v4279
    %4409 = vmatprep.subr.mxu0 0.0
    %4410 = vmatpush1.msra.mxu0 %v4282
    %4411 = vmatprep.subr.mxu0 0.0
    %4412 = vmatpush1.msra.mxu0 %v4285
    %4413 = vmatprep.subr.mxu0 0.0
    %4414 = vmatpush1.msra.mxu0 %v4288
    %4415 = vmatprep.subr.mxu0 0.0
    %4416 = vmatpush1.msra.mxu0 %v4291
    %4417 = vmatprep.subr.mxu0 0.0
    %4418 = vmatpush1.msra.mxu0 %v4294
    %4419 = vmatprep.subr.mxu0 0.0
    %4420 = vmatpush1.msra.mxu0 %v4297
    %4421 = vmatprep.subr.mxu0 0.0
    %4422 = vmatpush1.msra.mxu0 %v4300
    %4423 = vmatprep.subr.mxu0 0.0
    %4424 = vmatpush1.msra.mxu0 %v4303
    %4425 = vmatprep.subr.mxu0 0.0
    %4426 = vmatpush1.msra.mxu0 %v4306
    %4427 = vmatprep.subr.mxu0 0.0
    %4428 = vmatpush1.msra.mxu0 0.0
    %4429 = vmatprep.subr.mxu0 0.0
    %4430 = vmatpush1.msra.mxu0 0.0
    %4431 = vmatprep.subr.mxu0 0.0
    %4432 = vmatpush1.msra.mxu0 0.0
    %4433 = vmatprep.subr.mxu0 0.0
    %4434 = vmatpush1.msra.mxu0 0.0
    %4435 = vmatprep.subr.mxu0 0.0
    %4436 = vmatpush1.msra.mxu0 0.0
    %4437 = vmatprep.subr.mxu0 0.0
    %4438 = vmatpush1.msra.mxu0 0.0
    %4439 = vmatprep.subr.mxu0 0.0
    %4440 = vmatpush1.msra.mxu0 0.0
    %4441 = vmatprep.subr.mxu0 0.0
    %4442 = vmatpush1.msra.mxu0 0.0
    %4443 = vmatprep.subr.mxu0 0.0
    %4444 = vmatpush1.msra.mxu0 0.0
    %4445 = vmatprep.subr.mxu0 0.0
    %4446 = vmatpush1.msra.mxu0 0.0
    %4447 = vmatprep.subr.mxu0 0.0
    %4448 = vmatpush1.msra.mxu0 0.0
    %4449 = vmatprep.subr.mxu0 0.0
    %4450 = vmatpush1.msra.mxu0 0.0
    %4451 = vmatprep.subr.mxu0 0.0
    %4452 = vmatpush1.msra.mxu0 0.0
    %4453 = vmatprep.subr.mxu0 0.0
    %4454 = vmatpush1.msra.mxu0 0.0
    %4455 = vmatprep.subr.mxu0 0.0
    %4456 = vmatpush1.msra.mxu0 0.0
    %4457 = vmatprep.subr.mxu0 0.0
    %4458 = vmatpush1.msra.mxu0 0.0
    %4459 = vmatprep.mubr.f32.mxu0 0.0
    %4460 = vmatmul.mubr.f32.gmra.mrb[0].mxu0 %v3492
    %v4461 = vpop.f32.mrb[0].mxu0
    %v4462 = vadd.f32 %v4320, %v4461
    %v4463 = vpop.f32.mrb[0].mxu0
    %4464 = vdwg.mxu0
    %v4465 = vadd.f32 %v4185, %v4391
    %v4466 = vxor.u32 %v4465, 2147483648
    %v4467 = vmul.f32 %v4466, 1.442695
    %v4468 = vpow.pop %v4467
    %v4469 = vadd.f32 %v4468, 1.0
    %v4470 = vrcp.pop %v4469
    %v4471 = vmul.f32 1.0, %v4470
    %v4472 = vadd.f32 %v4187, %v4393
    %v4473 = vxor.u32 %v4472, 2147483648
    %v4474 = vmul.f32 %v4473, 1.442695
    %v4475 = vpow.pop %v4474
    %v4476 = vadd.f32 %v4475, 1.0
    %v4477 = vrcp.pop %v4476
    %v4478 = vmul.f32 1.0, %v4477
    %v4479 = vmul.f32 %v4471, %v4462
    %v4480 = vadd.f32 %v4256, %v4479
    %v4481 = vtanh.pop %v4480
    %v4482 = vsub.f32 1.0, %v4478
    %v4483 = vmul.f32 %v4482, %v4481
    %v4484 = vmul.f32 %v4478, %v3492
    %v4485 = vadd.f32 %v4483, %v4484
    %v4486 = vld [vmem:[#allocation4] sm:$0xff]
    %v4487 = vld [vmem:[#allocation4 + $0x8] sm:$0xff]
    %v4488 = vld [vmem:[#allocation4 + $0x10] sm:$0xff]
    %v4489 = vld [vmem:[#allocation4 + $0x18] sm:$0xff]
    %v4490 = vld [vmem:[#allocation4 + $0x20] sm:$0xff]
    %v4491 = vld [vmem:[#allocation4 + $0x28] sm:$0xff]
    %v4492 = vld [vmem:[#allocation4 + $0x30] sm:$0xff]
    %v4493 = vld [vmem:[#allocation4 + $0x38] sm:$0xff]
    %v4494 = vld [vmem:[#allocation4 + $0x40] sm:$0xff]
    %v4495 = vld [vmem:[#allocation4 + $0x48] sm:$0xff]
    %v4496 = vld [vmem:[#allocation4 + $0x50] sm:$0xff]
    %v4497 = vld [vmem:[#allocation4 + $0x58] sm:$0xff]
    %v4498 = vld [vmem:[#allocation4 + $0x60] sm:$0xff]
    %v4499 = vld [vmem:[#allocation4 + $0x68] sm:$0xff]
    %v4500 = vld [vmem:[#allocation4 + $0x70] sm:$0xff]
    %v4501 = vld [vmem:[#allocation4 + $0x78] sm:$0xff]
    %v4502 = vld [vmem:[#allocation4 + $0x80] sm:$0xff]
    %v4503 = vld [vmem:[#allocation4 + $0x88] sm:$0xff]
    %v4504 = vld [vmem:[#allocation4 + $0x90] sm:$0xff]
    %v4505 = vld [vmem:[#allocation4 + $0x98] sm:$0xff]
    %v4506 = vld [vmem:[#allocation4 + $0xa0] sm:$0xff]
    %v4507 = vld [vmem:[#allocation4 + $0xa8] sm:$0xff]
    %v4508 = vld [vmem:[#allocation4 + $0xb0] sm:$0xff]
    %v4509 = vld [vmem:[#allocation4 + $0xb8] sm:$0xff]
    %v4510 = vld [vmem:[#allocation4 + $0xc0] sm:$0xff]
    %v4511 = vld [vmem:[#allocation4 + $0xc8] sm:$0xff]
    %v4512 = vld [vmem:[#allocation4 + $0xd0] sm:$0xff]
    %v4513 = vld [vmem:[#allocation4 + $0xd8] sm:$0xff]
    %v4514 = vld [vmem:[#allocation4 + $0xe0] sm:$0xff]
    %v4515 = vld [vmem:[#allocation4 + $0xe8] sm:$0xff]
    %v4516 = vld [vmem:[#allocation4 + $0xf0] sm:$0xff]
    %v4517 = vld [vmem:[#allocation4 + $0xf8] sm:$0xff]
    %v4518 = vld [vmem:[#allocation4 + $0x100] sm:$0xff]
    %v4519 = vld [vmem:[#allocation4 + $0x108] sm:$0xff]
    %v4520 = vld [vmem:[#allocation4 + $0x110] sm:$0xff]
    %v4521 = vld [vmem:[#allocation4 + $0x118] sm:$0xff]
    %v4522 = vld [vmem:[#allocation4 + $0x120] sm:$0xff]
    %v4523 = vld [vmem:[#allocation4 + $0x128] sm:$0xff]
    %v4524 = vld [vmem:[#allocation4 + $0x130] sm:$0xff]
    %v4525 = vld [vmem:[#allocation4 + $0x138] sm:$0xff]
    %v4526 = vld [vmem:[#allocation4 + $0x140] sm:$0xff]
    %v4527 = vld [vmem:[#allocation4 + $0x148] sm:$0xff]
    %v4528 = vld [vmem:[#allocation4 + $0x150] sm:$0xff]
    %v4529 = vld [vmem:[#allocation4 + $0x158] sm:$0xff]
    %v4530 = vld [vmem:[#allocation4 + $0x160] sm:$0xff]
    %v4531 = vld [vmem:[#allocation4 + $0x168] sm:$0xff]
    %v4532 = vld [vmem:[#allocation4 + $0x170] sm:$0xff]
    %v4533 = vld [vmem:[#allocation4 + $0x178] sm:$0xff]
    %v4534 = vld [vmem:[%s7] sm:$0x7]
    %v4536 = vlaneseq
    %v4537 = vshrl.u32 %v4536, 7
    %v4538 = vsub.s32 0, %v4537
    %v4539 = vrot.slane %v4534, %v4538
    %v4540 = vlaneseq
    %v4541 = vshrl.u32 %v4540, 7
    %v4542 = vsub.s32 1, %v4541
    %v4543 = vrot.slane %v4534, %v4542
    %v4544 = vlaneseq
    %v4545 = vshrl.u32 %v4544, 7
    %v4546 = vsub.s32 2, %v4545
    %v4547 = vrot.slane %v4534, %v4546
    %4551 = vmatprep.subr.mxu0 %v4487
    %4552 = vmatpush1.msra.mxu0 %v4486
    %4553 = vmatprep.subr.mxu0 %v4490
    %4554 = vmatpush1.msra.mxu0 %v4489
    %4555 = vmatprep.subr.mxu0 %v4493
    %4556 = vmatpush1.msra.mxu0 %v4492
    %4557 = vmatprep.subr.mxu0 %v4496
    %4558 = vmatpush1.msra.mxu0 %v4495
    %4559 = vmatprep.subr.mxu0 %v4499
    %4560 = vmatpush1.msra.mxu0 %v4498
    %4561 = vmatprep.subr.mxu0 %v4502
    %4562 = vmatpush1.msra.mxu0 %v4501
    %4563 = vmatprep.subr.mxu0 %v4505
    %4564 = vmatpush1.msra.mxu0 %v4504
    %4565 = vmatprep.subr.mxu0 %v4508
    %4566 = vmatpush1.msra.mxu0 %v4507
    %4567 = vmatprep.subr.mxu0 %v4511
    %4568 = vmatpush1.msra.mxu0 %v4510
    %4569 = vmatprep.subr.mxu0 %v4514
    %4570 = vmatpush1.msra.mxu0 %v4513
    %4571 = vmatprep.subr.mxu0 %v4517
    %4572 = vmatpush1.msra.mxu0 %v4516
    %4573 = vmatprep.subr.mxu0 %v4520
    %4574 = vmatpush1.msra.mxu0 %v4519
    %4575 = vmatprep.subr.mxu0 %v4523
    %4576 = vmatpush1.msra.mxu0 %v4522
    %4577 = vmatprep.subr.mxu0 %v4526
    %4578 = vmatpush1.msra.mxu0 %v4525
    %4579 = vmatprep.subr.mxu0 %v4529
    %4580 = vmatpush1.msra.mxu0 %v4528
    %4581 = vmatprep.subr.mxu0 %v4532
    %4582 = vmatpush1.msra.mxu0 %v4531
    %4583 = vmatprep.subr.mxu0 0.0
    %4584 = vmatpush1.msra.mxu0 0.0
    %4585 = vmatprep.subr.mxu0 0.0
    %4586 = vmatpush1.msra.mxu0 0.0
    %4587 = vmatprep.subr.mxu0 0.0
    %4588 = vmatpush1.msra.mxu0 0.0
    %4589 = vmatprep.subr.mxu0 0.0
    %4590 = vmatpush1.msra.mxu0 0.0
    %4591 = vmatprep.subr.mxu0 0.0
    %4592 = vmatpush1.msra.mxu0 0.0
    %4593 = vmatprep.subr.mxu0 0.0
    %4594 = vmatpush1.msra.mxu0 0.0
    %4595 = vmatprep.subr.mxu0 0.0
    %4596 = vmatpush1.msra.mxu0 0.0
    %4597 = vmatprep.subr.mxu0 0.0
    %4598 = vmatpush1.msra.mxu0 0.0
    %4599 = vmatprep.subr.mxu0 0.0
    %4600 = vmatpush1.msra.mxu0 0.0
    %4601 = vmatprep.subr.mxu0 0.0
    %4602 = vmatpush1.msra.mxu0 0.0
    %4603 = vmatprep.subr.mxu0 0.0
    %4604 = vmatpush1.msra.mxu0 0.0
    %4605 = vmatprep.subr.mxu0 0.0
    %4606 = vmatpush1.msra.mxu0 0.0
    %4607 = vmatprep.subr.mxu0 0.0
    %4608 = vmatpush1.msra.mxu0 0.0
    %4609 = vmatprep.subr.mxu0 0.0
    %4610 = vmatpush1.msra.mxu0 0.0
    %4611 = vmatprep.subr.mxu0 0.0
    %4612 = vmatpush1.msra.mxu0 0.0
    %4613 = vmatprep.subr.mxu0 0.0
    %4614 = vmatpush1.msra.mxu0 0.0
    %4615 = vmatprep.mubr.f32.mxu0 0.0
    %4616 = vmatmul.mubr.f32.gmra.mrb[0].mxu0 %v4485
    %v4617 = vpop.f32.mrb[0].mxu0
    %v4618 = vadd.f32 %v4539, %v4617
    %v4619 = vpop.f32.mrb[0].mxu0
    %v4620 = vadd.f32 %v4543, %v4619
    %4621 = vdwg.mxu0
    %4622 = vmatprep.subr.mxu0 0.0
    %4623 = vmatpush1.msra.mxu0 %v4488
    %4624 = vmatprep.subr.mxu0 0.0
    %4625 = vmatpush1.msra.mxu0 %v4491
    %4626 = vmatprep.subr.mxu0 0.0
    %4627 = vmatpush1.msra.mxu0 %v4494
    %4628 = vmatprep.subr.mxu0 0.0
    %4629 = vmatpush1.msra.mxu0 %v4497
    %4630 = vmatprep.subr.mxu0 0.0
    %4631 = vmatpush1.msra.mxu0 %v4500
    %4632 = vmatprep.subr.mxu0 0.0
    %4633 = vmatpush1.msra.mxu0 %v4503
    %4634 = vmatprep.subr.mxu0 0.0
    %4635 = vmatpush1.msra.mxu0 %v4506
    %4636 = vmatprep.subr.mxu0 0.0
    %4637 = vmatpush1.msra.mxu0 %v4509
    %4638 = vmatprep.subr.mxu0 0.0
    %4639 = vmatpush1.msra.mxu0 %v4512
    %4640 = vmatprep.subr.mxu0 0.0
    %4641 = vmatpush1.msra.mxu0 %v4515
    %4642 = vmatprep.subr.mxu0 0.0
    %4643 = vmatpush1.msra.mxu0 %v4518
    %4644 = vmatprep.subr.mxu0 0.0
    %4645 = vmatpush1.msra.mxu0 %v4521
    %4646 = vmatprep.subr.mxu0 0.0
    %4647 = vmatpush1.msra.mxu0 %v4524
    %4648 = vmatprep.subr.mxu0 0.0
    %4649 = vmatpush1.msra.mxu0 %v4527
    %4650 = vmatprep.subr.mxu0 0.0
    %4651 = vmatpush1.msra.mxu0 %v4530
    %4652 = vmatprep.subr.mxu0 0.0
    %4653 = vmatpush1.msra.mxu0 %v4533
    %4654 = vmatprep.subr.mxu0 0.0
    %4655 = vmatpush1.msra.mxu0 0.0
    %4656 = vmatprep.subr.mxu0 0.0
    %4657 = vmatpush1.msra.mxu0 0.0
    %4658 = vmatprep.subr.mxu0 0.0
    %4659 = vmatpush1.msra.mxu0 0.0
    %4660 = vmatprep.subr.mxu0 0.0
    %4661 = vmatpush1.msra.mxu0 0.0
    %4662 = vmatprep.subr.mxu0 0.0
    %4663 = vmatpush1.msra.mxu0 0.0
    %4664 = vmatprep.subr.mxu0 0.0
    %4665 = vmatpush1.msra.mxu0 0.0
    %4666 = vmatprep.subr.mxu0 0.0
    %4667 = vmatpush1.msra.mxu0 0.0
    %4668 = vmatprep.subr.mxu0 0.0
    %4669 = vmatpush1.msra.mxu0 0.0
    %4670 = vmatprep.subr.mxu0 0.0
    %4671 = vmatpush1.msra.mxu0 0.0
    %4672 = vmatprep.subr.mxu0 0.0
    %4673 = vmatpush1.msra.mxu0 0.0
    %4674 = vmatprep.subr.mxu0 0.0
    %4675 = vmatpush1.msra.mxu0 0.0
    %4676 = vmatprep.subr.mxu0 0.0
    %4677 = vmatpush1.msra.mxu0 0.0
    %4678 = vmatprep.subr.mxu0 0.0
    %4679 = vmatpush1.msra.mxu0 0.0
    %4680 = vmatprep.subr.mxu0 0.0
    %4681 = vmatpush1.msra.mxu0 0.0
    %4682 = vmatprep.subr.mxu0 0.0
    %4683 = vmatpush1.msra.mxu0 0.0
    %4684 = vmatprep.subr.mxu0 0.0
    %4685 = vmatpush1.msra.mxu0 0.0
    %4686 = vmatprep.mubr.f32.mxu0 0.0
    %4687 = vmatmul.mubr.f32.gmra.mrb[0].mxu0 %v4485
    %v4688 = vpop.f32.mrb[0].mxu0
    %v4689 = vadd.f32 %v4547, %v4688
    %v4690 = vpop.f32.mrb[0].mxu0
    %4691 = vdwg.mxu0
    %v4692 = vld [vmem:[%s717] sm:$0xff]
    %v4693 = vld [vmem:[%s717 + $0x8] sm:$0xff]
    %v4694 = vld [vmem:[%s717 + $0x10] sm:$0xff]
    %v4695 = vld [vmem:[%s717 + $0x18] sm:$0xff]
    %v4696 = vld [vmem:[%s717 + $0x20] sm:$0xff]
    %v4697 = vld [vmem:[%s717 + $0x28] sm:$0xff]
    %v4698 = vld [vmem:[%s717 + $0x30] sm:$0xff]
    %v4699 = vld [vmem:[%s717 + $0x38] sm:$0xff]
    %v4700 = vld [vmem:[%s717 + $0x40] sm:$0xff]
    %v4701 = vld [vmem:[%s717 + $0x48] sm:$0xff]
    %v4702 = vld [vmem:[%s717 + $0x50] sm:$0xff]
    %v4703 = vld [vmem:[%s717 + $0x58] sm:$0xff]
    %v4704 = vld [vmem:[%s717 + $0x60] sm:$0xff]
    %v4705 = vld [vmem:[%s717 + $0x68] sm:$0xff]
    %v4706 = vld [vmem:[%s717 + $0x70] sm:$0xff]
    %v4707 = vld [vmem:[%s717 + $0x78] sm:$0xff]
    %v4708 = vld [vmem:[%s717 + $0x80] sm:$0xff]
    %v4709 = vld [vmem:[%s717 + $0x88] sm:$0xff]
    %v4710 = vld [vmem:[%s717 + $0x90] sm:$0xff]
    %v4711 = vld [vmem:[%s717 + $0x98] sm:$0xff]
    %v4712 = vld [vmem:[%s717 + $0xa0] sm:$0xff]
    %v4713 = vld [vmem:[%s717 + $0xa8] sm:$0xff]
    %v4714 = vld [vmem:[%s717 + $0xb0] sm:$0xff]
    %v4715 = vld [vmem:[%s717 + $0xb8] sm:$0xff]
    %v4716 = vld [vmem:[%s717 + $0xc0] sm:$0xff]
    %v4717 = vld [vmem:[%s717 + $0xc8] sm:$0xff]
    %v4718 = vld [vmem:[%s717 + $0xd0] sm:$0xff]
    %v4719 = vld [vmem:[%s717 + $0xd8] sm:$0xff]
    %v4720 = vld [vmem:[%s717 + $0xe0] sm:$0xff]
    %v4721 = vld [vmem:[%s717 + $0xe8] sm:$0xff]
    %v4722 = vld [vmem:[%s717 + $0xf0] sm:$0xff]
    %v4723 = vld [vmem:[%s717 + $0xf8] sm:$0xff]
    %v4724 = vld [vmem:[%s717 + $0x100] sm:$0xff]
    %v4725 = vld [vmem:[%s717 + $0x108] sm:$0xff]
    %v4726 = vld [vmem:[%s717 + $0x110] sm:$0xff]
    %v4727 = vld [vmem:[%s717 + $0x118] sm:$0xff]
    %v4728 = vld [vmem:[%s717 + $0x120] sm:$0xff]
    %v4729 = vld [vmem:[%s717 + $0x128] sm:$0xff]
    %v4730 = vld [vmem:[%s717 + $0x130] sm:$0xff]
    %v4731 = vld [vmem:[%s717 + $0x138] sm:$0xff]
    %v4732 = vld [vmem:[%s717 + $0x140] sm:$0xff]
    %v4733 = vld [vmem:[%s717 + $0x148] sm:$0xff]
    %v4734 = vld [vmem:[%s717 + $0x150] sm:$0xff]
    %v4735 = vld [vmem:[%s717 + $0x158] sm:$0xff]
    %v4736 = vld [vmem:[%s717 + $0x160] sm:$0xff]
    %v4737 = vld [vmem:[%s717 + $0x168] sm:$0xff]
    %v4738 = vld [vmem:[%s717 + $0x170] sm:$0xff]
    %v4739 = vld [vmem:[%s717 + $0x178] sm:$0xff]
    %v4740 = vld [vmem:[%s766] sm:$0x7]
    %v4742 = vlaneseq
    %v4743 = vshrl.u32 %v4742, 7
    %v4744 = vsub.s32 0, %v4743
    %v4745 = vrot.slane %v4740, %v4744
    %v4746 = vlaneseq
    %v4747 = vshrl.u32 %v4746, 7
    %v4748 = vsub.s32 1, %v4747
    %v4749 = vrot.slane %v4740, %v4748
    %v4750 = vlaneseq
    %v4751 = vshrl.u32 %v4750, 7
    %v4752 = vsub.s32 2, %v4751
    %v4753 = vrot.slane %v4740, %v4752
    %4757 = vmatprep.subr.mxu0 %v4693
    %4758 = vmatpush1.msra.mxu0 %v4692
    %4759 = vmatprep.subr.mxu0 %v4696
    %4760 = vmatpush1.msra.mxu0 %v4695
    %4761 = vmatprep.subr.mxu0 %v4699
    %4762 = vmatpush1.msra.mxu0 %v4698
    %4763 = vmatprep.subr.mxu0 %v4702
    %4764 = vmatpush1.msra.mxu0 %v4701
    %4765 = vmatprep.subr.mxu0 %v4705
    %4766 = vmatpush1.msra.mxu0 %v4704
    %4767 = vmatprep.subr.mxu0 %v4708
    %4768 = vmatpush1.msra.mxu0 %v4707
    %4769 = vmatprep.subr.mxu0 %v4711
    %4770 = vmatpush1.msra.mxu0 %v4710
    %4771 = vmatprep.subr.mxu0 %v4714
    %4772 = vmatpush1.msra.mxu0 %v4713
    %4773 = vmatprep.subr.mxu0 %v4717
    %4774 = vmatpush1.msra.mxu0 %v4716
    %4775 = vmatprep.subr.mxu0 %v4720
    %4776 = vmatpush1.msra.mxu0 %v4719
    %4777 = vmatprep.subr.mxu0 %v4723
    %4778 = vmatpush1.msra.mxu0 %v4722
    %4779 = vmatprep.subr.mxu0 %v4726
    %4780 = vmatpush1.msra.mxu0 %v4725
    %4781 = vmatprep.subr.mxu0 %v4729
    %4782 = vmatpush1.msra.mxu0 %v4728
    %4783 = vmatprep.subr.mxu0 %v4732
    %4784 = vmatpush1.msra.mxu0 %v4731
    %4785 = vmatprep.subr.mxu0 %v4735
    %4786 = vmatpush1.msra.mxu0 %v4734
    %4787 = vmatprep.subr.mxu0 %v4738
    %4788 = vmatpush1.msra.mxu0 %v4737
    %4789 = vmatprep.subr.mxu0 0.0
    %4790 = vmatpush1.msra.mxu0 0.0
    %4791 = vmatprep.subr.mxu0 0.0
    %4792 = vmatpush1.msra.mxu0 0.0
    %4793 = vmatprep.subr.mxu0 0.0
    %4794 = vmatpush1.msra.mxu0 0.0
    %4795 = vmatprep.subr.mxu0 0.0
    %4796 = vmatpush1.msra.mxu0 0.0
    %4797 = vmatprep.subr.mxu0 0.0
    %4798 = vmatpush1.msra.mxu0 0.0
    %4799 = vmatprep.subr.mxu0 0.0
    %4800 = vmatpush1.msra.mxu0 0.0
    %4801 = vmatprep.subr.mxu0 0.0
    %4802 = vmatpush1.msra.mxu0 0.0
    %4803 = vmatprep.subr.mxu0 0.0
    %4804 = vmatpush1.msra.mxu0 0.0
    %4805 = vmatprep.subr.mxu0 0.0
    %4806 = vmatpush1.msra.mxu0 0.0
    %4807 = vmatprep.subr.mxu0 0.0
    %4808 = vmatpush1.msra.mxu0 0.0
    %4809 = vmatprep.subr.mxu0 0.0
    %4810 = vmatpush1.msra.mxu0 0.0
    %4811 = vmatprep.subr.mxu0 0.0
    %4812 = vmatpush1.msra.mxu0 0.0
    %4813 = vmatprep.subr.mxu0 0.0
    %4814 = vmatpush1.msra.mxu0 0.0
    %4815 = vmatprep.subr.mxu0 0.0
    %4816 = vmatpush1.msra.mxu0 0.0
    %4817 = vmatprep.subr.mxu0 0.0
    %4818 = vmatpush1.msra.mxu0 0.0
    %4819 = vmatprep.subr.mxu0 0.0
    %4820 = vmatpush1.msra.mxu0 0.0
    %4821 = vmatprep.mubr.f32.mxu0 0.0
    %4822 = vmatmul.mubr.f32.gmra.mrb[0].mxu0 %v3925
    %v4823 = vpop.f32.mrb[0].mxu0
    %v4824 = vadd.f32 %v4745, %v4823
    %v4825 = vpop.f32.mrb[0].mxu0
    %v4826 = vadd.f32 %v4749, %v4825
    %4827 = vdwg.mxu0
    %4828 = vmatprep.subr.mxu0 0.0
    %4829 = vmatpush1.msra.mxu0 %v4694
    %4830 = vmatprep.subr.mxu0 0.0
    %4831 = vmatpush1.msra.mxu0 %v4697
    %4832 = vmatprep.subr.mxu0 0.0
    %4833 = vmatpush1.msra.mxu0 %v4700
    %4834 = vmatprep.subr.mxu0 0.0
    %4835 = vmatpush1.msra.mxu0 %v4703
    %4836 = vmatprep.subr.mxu0 0.0
    %4837 = vmatpush1.msra.mxu0 %v4706
    %4838 = vmatprep.subr.mxu0 0.0
    %4839 = vmatpush1.msra.mxu0 %v4709
    %4840 = vmatprep.subr.mxu0 0.0
    %4841 = vmatpush1.msra.mxu0 %v4712
    %4842 = vmatprep.subr.mxu0 0.0
    %4843 = vmatpush1.msra.mxu0 %v4715
    %4844 = vmatprep.subr.mxu0 0.0
    %4845 = vmatpush1.msra.mxu0 %v4718
    %4846 = vmatprep.subr.mxu0 0.0
    %4847 = vmatpush1.msra.mxu0 %v4721
    %4848 = vmatprep.subr.mxu0 0.0
    %4849 = vmatpush1.msra.mxu0 %v4724
    %4850 = vmatprep.subr.mxu0 0.0
    %4851 = vmatpush1.msra.mxu0 %v4727
    %4852 = vmatprep.subr.mxu0 0.0
    %4853 = vmatpush1.msra.mxu0 %v4730
    %4854 = vmatprep.subr.mxu0 0.0
    %4855 = vmatpush1.msra.mxu0 %v4733
    %4856 = vmatprep.subr.mxu0 0.0
    %4857 = vmatpush1.msra.mxu0 %v4736
    %4858 = vmatprep.subr.mxu0 0.0
    %4859 = vmatpush1.msra.mxu0 %v4739
    %4860 = vmatprep.subr.mxu0 0.0
    %4861 = vmatpush1.msra.mxu0 0.0
    %4862 = vmatprep.subr.mxu0 0.0
    %4863 = vmatpush1.msra.mxu0 0.0
    %4864 = vmatprep.subr.mxu0 0.0
    %4865 = vmatpush1.msra.mxu0 0.0
    %4866 = vmatprep.subr.mxu0 0.0
    %4867 = vmatpush1.msra.mxu0 0.0
    %4868 = vmatprep.subr.mxu0 0.0
    %4869 = vmatpush1.msra.mxu0 0.0
    %4870 = vmatprep.subr.mxu0 0.0
    %4871 = vmatpush1.msra.mxu0 0.0
    %4872 = vmatprep.subr.mxu0 0.0
    %4873 = vmatpush1.msra.mxu0 0.0
    %4874 = vmatprep.subr.mxu0 0.0
    %4875 = vmatpush1.msra.mxu0 0.0
    %4876 = vmatprep.subr.mxu0 0.0
    %4877 = vmatpush1.msra.mxu0 0.0
    %4878 = vmatprep.subr.mxu0 0.0
    %4879 = vmatpush1.msra.mxu0 0.0
    %4880 = vmatprep.subr.mxu0 0.0
    %4881 = vmatpush1.msra.mxu0 0.0
    %4882 = vmatprep.subr.mxu0 0.0
    %4883 = vmatpush1.msra.mxu0 0.0
    %4884 = vmatprep.subr.mxu0 0.0
    %4885 = vmatpush1.msra.mxu0 0.0
    %4886 = vmatprep.subr.mxu0 0.0
    %4887 = vmatpush1.msra.mxu0 0.0
    %4888 = vmatprep.subr.mxu0 0.0
    %4889 = vmatpush1.msra.mxu0 0.0
    %4890 = vmatprep.subr.mxu0 0.0
    %4891 = vmatpush1.msra.mxu0 0.0
    %4892 = vmatprep.mubr.f32.mxu0 0.0
    %4893 = vmatmul.mubr.f32.gmra.mrb[0].mxu0 %v3925
    %v4894 = vpop.f32.mrb[0].mxu0
    %v4895 = vadd.f32 %v4753, %v4894
    %v4896 = vpop.f32.mrb[0].mxu0
    %4897 = vdwg.mxu0
    %v4898 = vadd.f32 %v4618, %v4824
    %v4899 = vxor.u32 %v4898, 2147483648
    %v4900 = vmul.f32 %v4899, 1.442695
    %v4901 = vpow.pop %v4900
    %v4902 = vadd.f32 %v4901, 1.0
    %v4903 = vrcp.pop %v4902
    %v4904 = vmul.f32 1.0, %v4903
    %v4905 = vadd.f32 %v4620, %v4826
    %v4906 = vxor.u32 %v4905, 2147483648
    %v4907 = vmul.f32 %v4906, 1.442695
    %v4908 = vpow.pop %v4907
    %v4909 = vadd.f32 %v4908, 1.0
    %v4910 = vrcp.pop %v4909
    %v4911 = vmul.f32 1.0, %v4910
    %v4912 = vmul.f32 %v4904, %v4895
    %v4913 = vadd.f32 %v4689, %v4912
    %v4914 = vtanh.pop %v4913
    %v4915 = vsub.f32 1.0, %v4911
    %v4916 = vmul.f32 %v4915, %v4914
    %v4917 = vmul.f32 %v4911, %v3925
    %v4918 = vadd.f32 %v4916, %v4917
    %v4919 = vld [vmem:[%s8] sm:$0xff]
    %v4920 = vld [vmem:[%s8 + $0x8] sm:$0xff]
    %v4921 = vld [vmem:[%s8 + $0x10] sm:$0xff]
    %v4922 = vld [vmem:[%s8 + $0x18] sm:$0xff]
    %v4923 = vld [vmem:[%s8 + $0x20] sm:$0xff]
    %v4924 = vld [vmem:[%s8 + $0x28] sm:$0xff]
    %v4925 = vld [vmem:[%s8 + $0x30] sm:$0xff]
    %v4926 = vld [vmem:[%s8 + $0x38] sm:$0xff]
    %v4927 = vld [vmem:[%s8 + $0x40] sm:$0xff]
    %v4928 = vld [vmem:[%s8 + $0x48] sm:$0xff]
    %v4929 = vld [vmem:[%s8 + $0x50] sm:$0xff]
    %v4930 = vld [vmem:[%s8 + $0x58] sm:$0xff]
    %v4931 = vld [vmem:[%s8 + $0x60] sm:$0xff]
    %v4932 = vld [vmem:[%s8 + $0x68] sm:$0xff]
    %v4933 = vld [vmem:[%s8 + $0x70] sm:$0xff]
    %v4934 = vld [vmem:[%s8 + $0x78] sm:$0xff]
    %v4935 = vld [vmem:[%s9] sm:$0x1]
    %v4937 = vlaneseq
    %v4938 = vshrl.u32 %v4937, 7
    %v4939 = vsub.s32 0, %v4938
    %v4940 = vrot.slane %v4935, %v4939
    %4942 = vmatprep.subr.mxu0 0.0
    %4943 = vmatpush1.msra.mxu0 %v4919
    %4944 = vmatprep.subr.mxu0 0.0
    %4945 = vmatpush1.msra.mxu0 %v4920
    %4946 = vmatprep.subr.mxu0 0.0
    %4947 = vmatpush1.msra.mxu0 %v4921
    %4948 = vmatprep.subr.mxu0 0.0
    %4949 = vmatpush1.msra.mxu0 %v4922
    %4950 = vmatprep.subr.mxu0 0.0
    %4951 = vmatpush1.msra.mxu0 %v4923
    %4952 = vmatprep.subr.mxu0 0.0
    %4953 = vmatpush1.msra.mxu0 %v4924
    %4954 = vmatprep.subr.mxu0 0.0
    %4955 = vmatpush1.msra.mxu0 %v4925
    %4956 = vmatprep.subr.mxu0 0.0
    %4957 = vmatpush1.msra.mxu0 %v4926
    %4958 = vmatprep.subr.mxu0 0.0
    %4959 = vmatpush1.msra.mxu0 %v4927
    %4960 = vmatprep.subr.mxu0 0.0
    %4961 = vmatpush1.msra.mxu0 %v4928
    %4962 = vmatprep.subr.mxu0 0.0
    %4963 = vmatpush1.msra.mxu0 %v4929
    %4964 = vmatprep.subr.mxu0 0.0
    %4965 = vmatpush1.msra.mxu0 %v4930
    %4966 = vmatprep.subr.mxu0 0.0
    %4967 = vmatpush1.msra.mxu0 %v4931
    %4968 = vmatprep.subr.mxu0 0.0
    %4969 = vmatpush1.msra.mxu0 %v4932
    %4970 = vmatprep.subr.mxu0 0.0
    %4971 = vmatpush1.msra.mxu0 %v4933
    %4972 = vmatprep.subr.mxu0 0.0
    %4973 = vmatpush1.msra.mxu0 %v4934
    %4974 = vmatprep.subr.mxu0 0.0
    %4975 = vmatpush1.msra.mxu0 0.0
    %4976 = vmatprep.subr.mxu0 0.0
    %4977 = vmatpush1.msra.mxu0 0.0
    %4978 = vmatprep.subr.mxu0 0.0
    %4979 = vmatpush1.msra.mxu0 0.0
    %4980 = vmatprep.subr.mxu0 0.0
    %4981 = vmatpush1.msra.mxu0 0.0
    %4982 = vmatprep.subr.mxu0 0.0
    %4983 = vmatpush1.msra.mxu0 0.0
    %4984 = vmatprep.subr.mxu0 0.0
    %4985 = vmatpush1.msra.mxu0 0.0
    %4986 = vmatprep.subr.mxu0 0.0
    %4987 = vmatpush1.msra.mxu0 0.0
    %4988 = vmatprep.subr.mxu0 0.0
    %4989 = vmatpush1.msra.mxu0 0.0
    %4990 = vmatprep.subr.mxu0 0.0
    %4991 = vmatpush1.msra.mxu0 0.0
    %4992 = vmatprep.subr.mxu0 0.0
    %4993 = vmatpush1.msra.mxu0 0.0
    %4994 = vmatprep.subr.mxu0 0.0
    %4995 = vmatpush1.msra.mxu0 0.0
    %4996 = vmatprep.subr.mxu0 0.0
    %4997 = vmatpush1.msra.mxu0 0.0
    %4998 = vmatprep.subr.mxu0 0.0
    %4999 = vmatpush1.msra.mxu0 0.0
    %5000 = vmatprep.subr.mxu0 0.0
    %5001 = vmatpush1.msra.mxu0 0.0
    %5002 = vmatprep.subr.mxu0 0.0
    %5003 = vmatpush1.msra.mxu0 0.0
    %5004 = vmatprep.subr.mxu0 0.0
    %5005 = vmatpush1.msra.mxu0 0.0
    %5006 = vmatprep.mubr.f32.mxu0 0.0
    %5007 = vmatmul.mubr.f32.gmra.mrb[0].mxu0 %v4918
    %v5008 = vpop.f32.mrb[0].mxu0
    %v5009 = vadd.f32 %v4940, %v5008
    %v5010 = vpop.f32.mrb[0].mxu0
    %5011 = vdwg.mxu0
    %s5012 = scalar_lea.vmem %s11, 32
    %5013 = vst [vmem:[%s5012] sm:$0xff] %v5009
    // Predicated region
    $region54: #{_forward_impl.3} parent=1 // pred_check
      _
    $region55: #{_forward_impl.3} parent=1 // pred_check_branch
      %5015 = sbr.rel (0) target = $region57
    $region56: #{_forward_impl.3} parent=1 // pred_region
      _
    $region57: #{_forward_impl.3} parent=1 // pred_fallthru
      _
    // Predicated region
    $region58: #{_forward_impl.3} parent=1 // pred_check
      _
    $region59: #{_forward_impl.3} parent=1 // pred_check_branch
      %5017 = sbr.rel (0) target = $region61
    $region60: #{_forward_impl.3} parent=1 // pred_region
      _
    $region61: #{_forward_impl.3} parent=1 // pred_fallthru
      _
    %5018 = vsyncpa [#allocation3], 1
    %5019 = vsyncpa [#allocation5], 1

</llo_original>
